<compile_context>
chip_gen: v6e
topology: v6e:2x2x1
jax: 0.10.0
libtpu: 0.0.40
codegen_flags: <defaults>
</compile_context>

<pallas_src>
import jax
import jax.numpy as jnp
from jax.experimental import pallas as pl
from jax.experimental.pallas import tpu as pltpu


def _round_up(x, m):
    return -(-x // m) * m


_VMEM_LIMIT = 32 * 1024 * 1024  # explicit; per-call working set is << 16 MiB


# ---------------------------------------------------------------------------
# Pallas kernels
# ---------------------------------------------------------------------------
def conv_stats_kernel(x_ref, w_ref, y_ref, psum_ref, psq_ref):
    """One (parity, M-tile) block of the decomposed conv-transpose:
    bf16 x bf16 -> f32 MXU matmul, plus per-channel partial sum / sum-of-
    squares (for training-mode BatchNorm) written as independent outputs."""
    acc = jnp.dot(x_ref[0], w_ref[0], preferred_element_type=jnp.float32)
    y_ref[0] = acc.astype(y_ref.dtype)
    cn = acc.shape[-1]
    s = jnp.sum(acc, axis=0, keepdims=True)
    q = jnp.sum(acc * acc, axis=0, keepdims=True)
    # (8, CN) partial-stat blocks keep the sublane dim tile-friendly; every
    # row carries the same value and the wrapper reads row 0 of each block.
    psum_ref[0] = jnp.broadcast_to(s, (8, cn))
    psq_ref[0] = jnp.broadcast_to(q, (8, cn))


def conv_tanh_kernel(x_ref, w_ref, y_ref):
    """Final layer: matmul with the tanh activation fused into the epilogue."""
    acc = jnp.dot(x_ref[0], w_ref[0], preferred_element_type=jnp.float32)
    y_ref[0] = jnp.tanh(acc).astype(y_ref.dtype)


def bn_relu_kernel(y_ref, scale_ref, shift_ref, o_ref):
    """Fused BatchNorm (folded into per-channel scale/shift, f32) + ReLU."""
    z = y_ref[0].astype(jnp.float32) * scale_ref[...] + shift_ref[...]
    o_ref[0] = jnp.maximum(z, 0.0).astype(o_ref.dtype)


# ---------------------------------------------------------------------------
# Batched-matmul core shared by every layer
# ---------------------------------------------------------------------------
def _conv_core(x3, w3, gamma, beta, *, share_x, final_tanh):
    """x3: (Px, M, Kdim) patch rows, w3: (P, Kdim, Cout) per-parity kernels.
    Returns activated output (P, M, Cout): bf16 for BN+ReLU layers, f32 for
    the final fused-tanh layer."""
    Px, M, Kdim = x3.shape
    P, _, Cout = w3.shape
    count = P * M                         # output pixels per channel = N*OH*OW

    Kp = _round_up(Kdim, 128)
    CN = _round_up(Cout, 128)
    TM = 512 if M >= 512 else _round_up(M, 16)
    Mp = _round_up(M, TM)
    n_m = Mp // TM

    xq = jnp.zeros((Px, Mp, Kp), jnp.bfloat16)
    xq = xq.at[:, :M, :Kdim].set(x3.astype(jnp.bfloat16))
    wq = jnp.zeros((P, Kp, CN), jnp.bfloat16)
    wq = wq.at[:, :Kdim, :Cout].set(w3.astype(jnp.bfloat16))

    if share_x:                           # layer 1: same input for all 16 taps
        x_index = lambda p, m: (0, m, 0)
    else:
        x_index = lambda p, m: (p, m, 0)

    in_specs = [
        pl.BlockSpec((1, TM, Kp), x_index),
        pl.BlockSpec((1, Kp, CN), lambda p, m: (p, 0, 0)),  # resident over m
    ]
    y_spec = pl.BlockSpec((1, TM, CN), lambda p, m: (p, m, 0))
    cparams = pltpu.CompilerParams(
        dimension_semantics=("parallel", "parallel"),
        vmem_limit_bytes=_VMEM_LIMIT)

    if final_tanh:
        y = pl.pallas_call(
            conv_tanh_kernel,
            out_shape=jax.ShapeDtypeStruct((P, Mp, CN), jnp.float32),
            grid_spec=pltpu.PrefetchScalarGridSpec(
                num_scalar_prefetch=0, grid=(P, n_m),
                in_specs=in_specs, out_specs=y_spec),
            compiler_params=cparams,
        )(xq, wq)
        return y[:, :M, :Cout]

    y, psum, psq = pl.pallas_call(
        conv_stats_kernel,
        out_shape=(
            jax.ShapeDtypeStruct((P, Mp, CN), jnp.bfloat16),
            jax.ShapeDtypeStruct((P, 8 * n_m, CN), jnp.float32),
            jax.ShapeDtypeStruct((P, 8 * n_m, CN), jnp.float32),
        ),
        grid_spec=pltpu.PrefetchScalarGridSpec(
            num_scalar_prefetch=0, grid=(P, n_m),
            in_specs=in_specs,
            out_specs=(
                y_spec,
                pl.BlockSpec((1, 8, CN), lambda p, m: (p, m, 0)),
                pl.BlockSpec((1, 8, CN), lambda p, m: (p, m, 0)),
            )),
        compiler_params=cparams,
    )(xq, wq)

    # ---- fold BatchNorm (batch stats, eps=1e-5) into per-channel scale/shift
    ssum = jnp.sum(psum[:, ::8, :], axis=(0, 1))      # row 0 of each block
    ssq = jnp.sum(psq[:, ::8, :], axis=(0, 1))
    mean = ssum / count
    var = jnp.maximum(ssq / count - mean * mean, 0.0)  # clamp f32 cancellation
    g = jnp.zeros((CN,), jnp.float32).at[:Cout].set(gamma.astype(jnp.float32))
    b = jnp.zeros((CN,), jnp.float32).at[:Cout].set(beta.astype(jnp.float32))
    inv = g * jax.lax.rsqrt(var + 1e-5)
    scale = inv.reshape(1, CN)
    shift = (b - mean * inv).reshape(1, CN)

    TMB = 1024 if Mp % 1024 == 0 else TM   # bigger tiles for the mem-bound pass
    out = pl.pallas_call(
        bn_relu_kernel,
        out_shape=jax.ShapeDtypeStruct((P, Mp, CN), jnp.bfloat16),
        grid_spec=pltpu.PrefetchScalarGridSpec(
            num_scalar_prefetch=0, grid=(P, Mp // TMB),
            in_specs=[
                pl.BlockSpec((1, TMB, CN), lambda p, m: (p, m, 0)),
                pl.BlockSpec((1, CN), lambda p, m: (0, 0)),
                pl.BlockSpec((1, CN), lambda p, m: (0, 0)),
            ],
            out_specs=pl.BlockSpec((1, TMB, CN), lambda p, m: (p, m, 0))),
        compiler_params=cparams,
    )(y, scale, shift)
    return out[:, :M, :Cout]


# ---------------------------------------------------------------------------
# Layer wrappers (pure-indexing JAX glue around the Pallas core)
# ---------------------------------------------------------------------------
def deconv_first_layer(x_nhwc, w, gamma, beta):
    """ConvTranspose2d(k=4, s=1, p=0, no bias) on a 1x1 input + BN + ReLU.
    out[n, kh, kw, co] = sum_ci x[n, ci] * w[ci, co, kh, kw]  -> 16 per-tap
    matmuls that all share the same (N, Cin) input."""
    N, H, W_, Cin = x_nhwc.shape
    Cout, K = w.shape[1], w.shape[2]
    x3 = x_nhwc.reshape(1, N, Cin)
    w3 = jnp.transpose(w, (2, 3, 0, 1)).reshape(K * K, Cin, Cout)
    y = _conv_core(x3, w3, gamma, beta, share_x=True, final_tanh=False)
    y = y.reshape(K, K, N, Cout)
    return jnp.transpose(y, (2, 0, 1, 3))             # (N, K, K, Cout)


def deconv_s2_layer(x_nhwc, w, gamma, beta, final_tanh):
    """ConvTranspose2d(k=4, s=2, p=1, no bias) + (BN+ReLU) or fused tanh.
    Sub-pixel decomposition: output parity (ry, rx) is a dense 2x2 conv of the
    un-dilated input with its own sub-kernel -> no structural zeros."""
    N, H, W_, Cin = x_nhwc.shape
    Cout = w.shape[1]
    xpad = jnp.pad(x_nhwc, ((0, 0), (1, 1), (1, 1), (0, 0)))
    x_parts, w_parts = [], []
    for ry in range(2):
        for rx in range(2):
            taps = [xpad[:, ry + t:ry + t + H, rx + u:rx + u + W_, :]
                    for t in range(2) for u in range(2)]
            x_parts.append(jnp.stack(taps, axis=3).reshape(N * H * W_, 4 * Cin))
            wsub = jnp.stack([w[:, :, 3 - ry - 2 * t, 3 - rx - 2 * u]
                              for t in range(2) for u in range(2)], axis=0)
            w_parts.append(wsub.reshape(4 * Cin, Cout))
    x3 = jnp.stack(x_parts, axis=0)                   # (4, N*H*W, 4*Cin)
    w3 = jnp.stack(w_parts, axis=0)                   # (4, 4*Cin, Cout)
    # TODO(synk): fold this tap-slicing im2col into the matmul kernel via
    # element-offset BlockSpecs so the 4 shifted copies are never materialized.
    y = _conv_core(x3, w3, gamma, beta, share_x=False, final_tanh=final_tanh)
    y = y.reshape(2, 2, N, H, W_, Cout)
    y = jnp.transpose(y, (2, 3, 0, 4, 1, 5))          # (N, H, 2, W, 2, C)
    return y.reshape(N, 2 * H, 2 * W_, Cout)


# ---------------------------------------------------------------------------
# Generator: parameters + forward
# ---------------------------------------------------------------------------
def init_params(key, nz, ngf):
    # (Cin, Cout, stride, pad) for the 5 ConvTranspose2d layers (k=4, no bias)
    specs = [
        (nz,      ngf * 8, 1, 0),
        (ngf * 8, ngf * 4, 2, 1),
        (ngf * 4, ngf * 2, 2, 1),
        (ngf * 2, ngf,     2, 1),
        (ngf,     3,       2, 1),
    ]
    params = []
    for i, (cin, cout, stride, pad) in enumerate(specs):
        key, kw, kg, kb = jax.random.split(key, 4)
        w = 0.05 * jax.random.normal(kw, (cin, cout, 4, 4), jnp.float32)
        if i < len(specs) - 1:  # BatchNorm after all but the last conv
            gamma = 1.0 + 0.1 * jax.random.normal(kg, (cout,), jnp.float32)
            beta = 0.1 * jax.random.normal(kb, (cout,), jnp.float32)
        else:
            gamma = beta = None
        params.append(dict(w=w, gamma=gamma, beta=beta, stride=stride, pad=pad))
    return params


def generator_forward(x_nchw, params):
    """x_nchw: (N, nz, 1, 1) -> (N, 3, 64, 64), matching the PyTorch Generator
    (train() state: BatchNorm uses batch statistics)."""
    x = jnp.transpose(x_nchw, (0, 2, 3, 1))           # NCHW -> NHWC
    p0 = params[0]
    x = deconv_first_layer(x, p0["w"], p0["gamma"], p0["beta"])
    for p in params[1:-1]:
        x = deconv_s2_layer(x, p["w"], p["gamma"], p["beta"], final_tanh=False)
    pL = params[-1]
    x = deconv_s2_layer(x, pL["w"], None, None, final_tanh=True)
    return jnp.transpose(x, (0, 3, 1, 2)).astype(jnp.float32)  # back to NCHW


# ---------------------------------------------------------------------------
# Pure-JAX f32 reference (correctness sanity check)
# ---------------------------------------------------------------------------
def reference_forward(x_nchw, params):
    x = x_nchw.astype(jnp.float32)
    n_layers = len(params)
    for i, p in enumerate(params):
        w, s, pd = p["w"], p["stride"], p["pad"]
        K = w.shape[-1]
        kernel = jnp.transpose(w[:, :, ::-1, ::-1], (1, 0, 2, 3))  # OIHW
        x = jax.lax.conv_general_dilated(
            x, kernel, window_strides=(1, 1),
            padding=[(K - 1 - pd, K - 1 - pd)] * 2,
            lhs_dilation=(s, s),
            dimension_numbers=("NCHW", "OIHW", "NCHW"))
        if p["gamma"] is not None:
            mean = jnp.mean(x, axis=(0, 2, 3), keepdims=True)
            var = jnp.mean((x - mean) ** 2, axis=(0, 2, 3), keepdims=True)
            g = p["gamma"].reshape(1, -1, 1, 1)
            b = p["beta"].reshape(1, -1, 1, 1)
            x = (x - mean) * jax.lax.rsqrt(var + 1e-5) * g + b
        x = jnp.maximum(x, 0.0) if i < n_layers - 1 else jnp.tanh(x)
    return x


if __name__ == "__main__":
    # Small but structure-preserving config: nz=16, ngf=8, batch=2.
    nz, ngf, batch = 16, 8, 2
    key = jax.random.PRNGKey(0)
    kp, kx = jax.random.split(key)
    params = init_params(kp, nz, ngf)
    x = jax.random.normal(kx, (batch, nz, 1, 1), jnp.float32)

    fwd = jax.jit(lambda inp: generator_forward(inp, params))
    out = jax.block_until_ready(fwd(x))

    assert out.shape == (batch, 3, 64, 64), out.shape
    assert bool(jnp.all(jnp.isfinite(out)))

    ref = jax.block_until_ready(reference_forward(x, params))
    # bf16 MXU operands + bf16 intermediates vs. an f32 reference through 5
    # layers (with BatchNorm renormalization) -> compare with a loose tolerance.
    assert jnp.allclose(out, ref, atol=5e-2, rtol=5e-2), \
        float(jnp.max(jnp.abs(out - ref)))

    print("KERNEL_OK")
</pallas_src>

<mosaic_0001>
module attributes {stable_mosaic.version = 11 : i64} {
  func.func @conv_stats_kernel(%arg0: i32, %arg1: i32, %arg2: memref<1x16x128xbf16, #tpu.memory_space<vmem>>, %arg3: memref<1x128x128xbf16, #tpu.memory_space<vmem>>, %arg4: memref<1x16x128xbf16, #tpu.memory_space<vmem>>, %arg5: memref<1x8x128xf32, #tpu.memory_space<vmem>>, %arg6: memref<1x8x128xf32, #tpu.memory_space<vmem>>) attributes {dimension_semantics = [#tpu.dimension_semantics<parallel>, #tpu.dimension_semantics<parallel>], iteration_bounds = array<i64: 16, 1>, scalar_prefetch = 0 : i64, scratch_operands = 0 : i64, tpu.core_type = #tpu.core_type<tc>, window_params = [{transform_indices = @transform_0, window_bounds = array<i64: 1, 16, 128>}, {transform_indices = @transform_1, window_bounds = array<i64: 1, 128, 128>}, {transform_indices = @transform_2, window_bounds = array<i64: 1, 16, 128>}, {transform_indices = @transform_3, window_bounds = array<i64: 1, 8, 128>}, {transform_indices = @transform_4, window_bounds = array<i64: 1, 8, 128>}]} {
    %c0 = arith.constant 0 : index
    %c0_0 = arith.constant 0 : index
    %c0_1 = arith.constant 0 : index
    %0 = vector.load %arg2[%c0, %c0_0, %c0_1] : memref<1x16x128xbf16, #tpu.memory_space<vmem>>, vector<1x16x128xbf16>
    %1 = vector.shape_cast %0 : vector<1x16x128xbf16> to vector<16x128xbf16>
    %c0_2 = arith.constant 0 : index
    %c0_3 = arith.constant 0 : index
    %c0_4 = arith.constant 0 : index
    %2 = vector.load %arg3[%c0_2, %c0_3, %c0_4] : memref<1x128x128xbf16, #tpu.memory_space<vmem>>, vector<1x128x128xbf16>
    %3 = vector.shape_cast %2 : vector<1x128x128xbf16> to vector<128x128xbf16>
    %cst = arith.constant dense<0.000000e+00> : vector<16x128xf32>
    %4 = tpu.matmul %1, %3, %cst {dimension_numbers = #tpu.dot_dimension_numbers<[1], [0], [0], [1], [0, 0, 1, 1], [], []>} : vector<16x128xbf16>, vector<128x128xbf16>, vector<16x128xf32> -> vector<16x128xf32>
    %5 = arith.truncf %4 : vector<16x128xf32> to vector<16x128xbf16>
    %c0_5 = arith.constant 0 : index
    %c0_6 = arith.constant 0 : index
    %c0_7 = arith.constant 0 : index
    %6 = vector.load %arg4[%c0_5, %c0_6, %c0_7] : memref<1x16x128xbf16, #tpu.memory_space<vmem>>, vector<1x16x128xbf16>
    %7 = vector.shape_cast %6 : vector<1x16x128xbf16> to vector<16x128xbf16>
    %8 = vector.shape_cast %5 : vector<16x128xbf16> to vector<1x16x128xbf16>
    tpu.vector_store %arg4[%c0_5, %c0_6, %c0_7], %8 {strides = array<i32>} : memref<1x16x128xbf16, #tpu.memory_space<vmem>>, vector<1x16x128xbf16>,
    %cst_8 = arith.constant dense<0.000000e+00> : vector<128xf32>
    %9 = vector.multi_reduction <add>, %4, %cst_8 [0] : vector<16x128xf32> to vector<128xf32>
    %10 = vector.shape_cast %9 : vector<128xf32> to vector<1x128xf32>
    %11 = arith.mulf %4, %4 : vector<16x128xf32>
    %cst_9 = arith.constant dense<0.000000e+00> : vector<128xf32>
    %12 = vector.multi_reduction <add>, %11, %cst_9 [0] : vector<16x128xf32> to vector<128xf32>
    %13 = vector.shape_cast %12 : vector<128xf32> to vector<1x128xf32>
    %14 = vector.shape_cast %10 : vector<1x128xf32> to vector<1x128xf32>
    %15 = vector.broadcast %14 : vector<1x128xf32> to vector<8x128xf32>
    %c0_10 = arith.constant 0 : index
    %c0_11 = arith.constant 0 : index
    %c0_12 = arith.constant 0 : index
    %16 = vector.load %arg5[%c0_10, %c0_11, %c0_12] : memref<1x8x128xf32, #tpu.memory_space<vmem>>, vector<1x8x128xf32>
    %17 = vector.shape_cast %16 : vector<1x8x128xf32> to vector<8x128xf32>
    %18 = vector.shape_cast %15 : vector<8x128xf32> to vector<1x8x128xf32>
    tpu.vector_store %arg5[%c0_10, %c0_11, %c0_12], %18 {strides = array<i32>} : memref<1x8x128xf32, #tpu.memory_space<vmem>>, vector<1x8x128xf32>,
    %19 = vector.shape_cast %13 : vector<1x128xf32> to vector<1x128xf32>
    %20 = vector.broadcast %19 : vector<1x128xf32> to vector<8x128xf32>
    %c0_13 = arith.constant 0 : index
    %c0_14 = arith.constant 0 : index
    %c0_15 = arith.constant 0 : index
    %21 = vector.load %arg6[%c0_13, %c0_14, %c0_15] : memref<1x8x128xf32, #tpu.memory_space<vmem>>, vector<1x8x128xf32>
    %22 = vector.shape_cast %21 : vector<1x8x128xf32> to vector<8x128xf32>
    %23 = vector.shape_cast %20 : vector<8x128xf32> to vector<1x8x128xf32>
    tpu.vector_store %arg6[%c0_13, %c0_14, %c0_15], %23 {strides = array<i32>} : memref<1x8x128xf32, #tpu.memory_space<vmem>>, vector<1x8x128xf32>,
    return
  }
  func.func @transform_0(%arg0: i32, %arg1: i32) -> (i32, i32, i32) {
    %c0_i32 = arith.constant 0 : i32
    %c0_i32_0 = arith.constant 0 : i32
    %c0_i32_1 = arith.constant 0 : i32
    return %c0_i32, %arg1, %c0_i32_0 : i32, i32, i32
  }
  func.func @transform_1(%arg0: i32, %arg1: i32) -> (i32, i32, i32) {
    %c0_i32 = arith.constant 0 : i32
    %c0_i32_0 = arith.constant 0 : i32
    %c0_i32_1 = arith.constant 0 : i32
    return %arg0, %c0_i32, %c0_i32_0 : i32, i32, i32
  }
  func.func @transform_2(%arg0: i32, %arg1: i32) -> (i32, i32, i32) {
    %c0_i32 = arith.constant 0 : i32
    %c0_i32_0 = arith.constant 0 : i32
    return %arg0, %arg1, %c0_i32 : i32, i32, i32
  }
  func.func @transform_3(%arg0: i32, %arg1: i32) -> (i32, i32, i32) {
    %c0_i32 = arith.constant 0 : i32
    %c0_i32_0 = arith.constant 0 : i32
    return %arg0, %arg1, %c0_i32 : i32, i32, i32
  }
  func.func @transform_4(%arg0: i32, %arg1: i32) -> (i32, i32, i32) {
    %c0_i32 = arith.constant 0 : i32
    %c0_i32_0 = arith.constant 0 : i32
    return %arg0, %arg1, %c0_i32 : i32, i32, i32
  }
}

module attributes {stable_mosaic.version = 11 : i64} {
  func.func @bn_relu_kernel(%arg0: i32, %arg1: i32, %arg2: memref<1x16x128xbf16, #tpu.memory_space<vmem>>, %arg3: memref<1x128xf32, #tpu.memory_space<vmem>>, %arg4: memref<1x128xf32, #tpu.memory_space<vmem>>, %arg5: memref<1x16x128xbf16, #tpu.memory_space<vmem>>) attributes {dimension_semantics = [#tpu.dimension_semantics<parallel>, #tpu.dimension_semantics<parallel>], iteration_bounds = array<i64: 16, 1>, scalar_prefetch = 0 : i64, scratch_operands = 0 : i64, tpu.core_type = #tpu.core_type<tc>, window_params = [{transform_indices = @transform_0, window_bounds = array<i64: 1, 16, 128>}, {pipeline_mode = #tpu.pipeline_mode<synchronous>, transform_indices = @transform_1, window_bounds = array<i64: 1, 128>}, {pipeline_mode = #tpu.pipeline_mode<synchronous>, transform_indices = @transform_2, window_bounds = array<i64: 1, 128>}, {transform_indices = @transform_3, window_bounds = array<i64: 1, 16, 128>}]} {
    %c0 = arith.constant 0 : index
    %c0_0 = arith.constant 0 : index
    %c0_1 = arith.constant 0 : index
    %0 = vector.load %arg2[%c0, %c0_0, %c0_1] : memref<1x16x128xbf16, #tpu.memory_space<vmem>>, vector<1x16x128xbf16>
    %1 = vector.shape_cast %0 : vector<1x16x128xbf16> to vector<16x128xbf16>
    %2 = arith.extf %1 : vector<16x128xbf16> to vector<16x128xf32>
    %c0_2 = arith.constant 0 : index
    %c0_3 = arith.constant 0 : index
    %3 = vector.load %arg3[%c0_2, %c0_3] : memref<1x128xf32, #tpu.memory_space<vmem>>, vector<1x128xf32>
    %4 = vector.broadcast %3 : vector<1x128xf32> to vector<16x128xf32>
    %5 = arith.mulf %2, %4 : vector<16x128xf32>
    %c0_4 = arith.constant 0 : index
    %c0_5 = arith.constant 0 : index
    %6 = vector.load %arg4[%c0_4, %c0_5] : memref<1x128xf32, #tpu.memory_space<vmem>>, vector<1x128xf32>
    %7 = vector.broadcast %6 : vector<1x128xf32> to vector<16x128xf32>
    %8 = arith.addf %5, %7 : vector<16x128xf32>
    %cst = arith.constant 0.000000e+00 : f32
    %9 = vector.broadcast %cst : f32 to vector<16x128xf32>
    %10 = arith.maximumf %8, %9 : vector<16x128xf32>
    %11 = arith.truncf %10 : vector<16x128xf32> to vector<16x128xbf16>
    %c0_6 = arith.constant 0 : index
    %c0_7 = arith.constant 0 : index
    %c0_8 = arith.constant 0 : index
    %12 = vector.load %arg5[%c0_6, %c0_7, %c0_8] : memref<1x16x128xbf16, #tpu.memory_space<vmem>>, vector<1x16x128xbf16>
    %13 = vector.shape_cast %12 : vector<1x16x128xbf16> to vector<16x128xbf16>
    %14 = vector.shape_cast %11 : vector<16x128xbf16> to vector<1x16x128xbf16>
    tpu.vector_store %arg5[%c0_6, %c0_7, %c0_8], %14 {strides = array<i32>} : memref<1x16x128xbf16, #tpu.memory_space<vmem>>, vector<1x16x128xbf16>,
    return
  }
  func.func @transform_0(%arg0: i32, %arg1: i32) -> (i32, i32, i32) {
    %c0_i32 = arith.constant 0 : i32
    %c0_i32_0 = arith.constant 0 : i32
    return %arg0, %arg1, %c0_i32 : i32, i32, i32
  }
  func.func @transform_1(%arg0: i32, %arg1: i32) -> (i32, i32) {
    %c0_i32 = arith.constant 0 : i32
    %c0_i32_0 = arith.constant 0 : i32
    %c0_i32_1 = arith.constant 0 : i32
    return %c0_i32, %c0_i32_0 : i32, i32
  }
  func.func @transform_2(%arg0: i32, %arg1: i32) -> (i32, i32) {
    %c0_i32 = arith.constant 0 : i32
    %c0_i32_0 = arith.constant 0 : i32
    %c0_i32_1 = arith.constant 0 : i32
    return %c0_i32, %c0_i32_0 : i32, i32
  }
  func.func @transform_3(%arg0: i32, %arg1: i32) -> (i32, i32, i32) {
    %c0_i32 = arith.constant 0 : i32
    %c0_i32_0 = arith.constant 0 : i32
    return %arg0, %arg1, %c0_i32 : i32, i32, i32
  }
}

module attributes {stable_mosaic.version = 11 : i64} {
  func.func @conv_stats_kernel(%arg0: i32, %arg1: i32, %arg2: memref<1x32x256xbf16, #tpu.memory_space<vmem>>, %arg3: memref<1x256x128xbf16, #tpu.memory_space<vmem>>, %arg4: memref<1x32x128xbf16, #tpu.memory_space<vmem>>, %arg5: memref<1x8x128xf32, #tpu.memory_space<vmem>>, %arg6: memref<1x8x128xf32, #tpu.memory_space<vmem>>) attributes {dimension_semantics = [#tpu.dimension_semantics<parallel>, #tpu.dimension_semantics<parallel>], iteration_bounds = array<i64: 4, 1>, scalar_prefetch = 0 : i64, scratch_operands = 0 : i64, tpu.core_type = #tpu.core_type<tc>, window_params = [{transform_indices = @transform_0, window_bounds = array<i64: 1, 32, 256>}, {transform_indices = @transform_1, window_bounds = array<i64: 1, 256, 128>}, {transform_indices = @transform_2, window_bounds = array<i64: 1, 32, 128>}, {transform_indices = @transform_3, window_bounds = array<i64: 1, 8, 128>}, {transform_indices = @transform_4, window_bounds = array<i64: 1, 8, 128>}]} {
    %c0 = arith.constant 0 : index
    %c0_0 = arith.constant 0 : index
    %c0_1 = arith.constant 0 : index
    %0 = vector.load %arg2[%c0, %c0_0, %c0_1] : memref<1x32x256xbf16, #tpu.memory_space<vmem>>, vector<1x32x256xbf16>
    %1 = vector.shape_cast %0 : vector<1x32x256xbf16> to vector<32x256xbf16>
    %c0_2 = arith.constant 0 : index
    %c0_3 = arith.constant 0 : index
    %c0_4 = arith.constant 0 : index
    %2 = vector.load %arg3[%c0_2, %c0_3, %c0_4] : memref<1x256x128xbf16, #tpu.memory_space<vmem>>, vector<1x256x128xbf16>
    %3 = vector.shape_cast %2 : vector<1x256x128xbf16> to vector<256x128xbf16>
    %cst = arith.constant dense<0.000000e+00> : vector<32x128xf32>
    %4 = tpu.matmul %1, %3, %cst {dimension_numbers = #tpu.dot_dimension_numbers<[1], [0], [0], [1], [0, 0, 1, 1], [], []>} : vector<32x256xbf16>, vector<256x128xbf16>, vector<32x128xf32> -> vector<32x128xf32>
    %5 = arith.truncf %4 : vector<32x128xf32> to vector<32x128xbf16>
    %c0_5 = arith.constant 0 : index
    %c0_6 = arith.constant 0 : index
    %c0_7 = arith.constant 0 : index
    %6 = vector.load %arg4[%c0_5, %c0_6, %c0_7] : memref<1x32x128xbf16, #tpu.memory_space<vmem>>, vector<1x32x128xbf16>
    %7 = vector.shape_cast %6 : vector<1x32x128xbf16> to vector<32x128xbf16>
    %8 = vector.shape_cast %5 : vector<32x128xbf16> to vector<1x32x128xbf16>
    tpu.vector_store %arg4[%c0_5, %c0_6, %c0_7], %8 {strides = array<i32>} : memref<1x32x128xbf16, #tpu.memory_space<vmem>>, vector<1x32x128xbf16>,
    %cst_8 = arith.constant dense<0.000000e+00> : vector<128xf32>
    %9 = vector.multi_reduction <add>, %4, %cst_8 [0] : vector<32x128xf32> to vector<128xf32>
    %10 = vector.shape_cast %9 : vector<128xf32> to vector<1x128xf32>
    %11 = arith.mulf %4, %4 : vector<32x128xf32>
    %cst_9 = arith.constant dense<0.000000e+00> : vector<128xf32>
    %12 = vector.multi_reduction <add>, %11, %cst_9 [0] : vector<32x128xf32> to vector<128xf32>
    %13 = vector.shape_cast %12 : vector<128xf32> to vector<1x128xf32>
    %14 = vector.shape_cast %10 : vector<1x128xf32> to vector<1x128xf32>
    %15 = vector.broadcast %14 : vector<1x128xf32> to vector<8x128xf32>
    %c0_10 = arith.constant 0 : index
    %c0_11 = arith.constant 0 : index
    %c0_12 = arith.constant 0 : index
    %16 = vector.load %arg5[%c0_10, %c0_11, %c0_12] : memref<1x8x128xf32, #tpu.memory_space<vmem>>, vector<1x8x128xf32>
    %17 = vector.shape_cast %16 : vector<1x8x128xf32> to vector<8x128xf32>
    %18 = vector.shape_cast %15 : vector<8x128xf32> to vector<1x8x128xf32>
    tpu.vector_store %arg5[%c0_10, %c0_11, %c0_12], %18 {strides = array<i32>} : memref<1x8x128xf32, #tpu.memory_space<vmem>>, vector<1x8x128xf32>,
    %19 = vector.shape_cast %13 : vector<1x128xf32> to vector<1x128xf32>
    %20 = vector.broadcast %19 : vector<1x128xf32> to vector<8x128xf32>
    %c0_13 = arith.constant 0 : index
    %c0_14 = arith.constant 0 : index
    %c0_15 = arith.constant 0 : index
    %21 = vector.load %arg6[%c0_13, %c0_14, %c0_15] : memref<1x8x128xf32, #tpu.memory_space<vmem>>, vector<1x8x128xf32>
    %22 = vector.shape_cast %21 : vector<1x8x128xf32> to vector<8x128xf32>
    %23 = vector.shape_cast %20 : vector<8x128xf32> to vector<1x8x128xf32>
    tpu.vector_store %arg6[%c0_13, %c0_14, %c0_15], %23 {strides = array<i32>} : memref<1x8x128xf32, #tpu.memory_space<vmem>>, vector<1x8x128xf32>,
    return
  }
  func.func @transform_0(%arg0: i32, %arg1: i32) -> (i32, i32, i32) {
    %c0_i32 = arith.constant 0 : i32
    %c0_i32_0 = arith.constant 0 : i32
    return %arg0, %arg1, %c0_i32 : i32, i32, i32
  }
  func.func @transform_1(%arg0: i32, %arg1: i32) -> (i32, i32, i32) {
    %c0_i32 = arith.constant 0 : i32
    %c0_i32_0 = arith.constant 0 : i32
    %c0_i32_1 = arith.constant 0 : i32
    return %arg0, %c0_i32, %c0_i32_0 : i32, i32, i32
  }
  func.func @transform_2(%arg0: i32, %arg1: i32) -> (i32, i32, i32) {
    %c0_i32 = arith.constant 0 : i32
    %c0_i32_0 = arith.constant 0 : i32
    return %arg0, %arg1, %c0_i32 : i32, i32, i32
  }
  func.func @transform_3(%arg0: i32, %arg1: i32) -> (i32, i32, i32) {
    %c0_i32 = arith.constant 0 : i32
    %c0_i32_0 = arith.constant 0 : i32
    return %arg0, %arg1, %c0_i32 : i32, i32, i32
  }
  func.func @transform_4(%arg0: i32, %arg1: i32) -> (i32, i32, i32) {
    %c0_i32 = arith.constant 0 : i32
    %c0_i32_0 = arith.constant 0 : i32
    return %arg0, %arg1, %c0_i32 : i32, i32, i32
  }
}

module attributes {stable_mosaic.version = 11 : i64} {
  func.func @bn_relu_kernel(%arg0: i32, %arg1: i32, %arg2: memref<1x32x128xbf16, #tpu.memory_space<vmem>>, %arg3: memref<1x128xf32, #tpu.memory_space<vmem>>, %arg4: memref<1x128xf32, #tpu.memory_space<vmem>>, %arg5: memref<1x32x128xbf16, #tpu.memory_space<vmem>>) attributes {dimension_semantics = [#tpu.dimension_semantics<parallel>, #tpu.dimension_semantics<parallel>], iteration_bounds = array<i64: 4, 1>, scalar_prefetch = 0 : i64, scratch_operands = 0 : i64, tpu.core_type = #tpu.core_type<tc>, window_params = [{transform_indices = @transform_0, window_bounds = array<i64: 1, 32, 128>}, {pipeline_mode = #tpu.pipeline_mode<synchronous>, transform_indices = @transform_1, window_bounds = array<i64: 1, 128>}, {pipeline_mode = #tpu.pipeline_mode<synchronous>, transform_indices = @transform_2, window_bounds = array<i64: 1, 128>}, {transform_indices = @transform_3, window_bounds = array<i64: 1, 32, 128>}]} {
    %c0 = arith.constant 0 : index
    %c0_0 = arith.constant 0 : index
    %c0_1 = arith.constant 0 : index
    %0 = vector.load %arg2[%c0, %c0_0, %c0_1] : memref<1x32x128xbf16, #tpu.memory_space<vmem>>, vector<1x32x128xbf16>
    %1 = vector.shape_cast %0 : vector<1x32x128xbf16> to vector<32x128xbf16>
    %2 = arith.extf %1 : vector<32x128xbf16> to vector<32x128xf32>
    %c0_2 = arith.constant 0 : index
    %c0_3 = arith.constant 0 : index
    %3 = vector.load %arg3[%c0_2, %c0_3] : memref<1x128xf32, #tpu.memory_space<vmem>>, vector<1x128xf32>
    %4 = vector.broadcast %3 : vector<1x128xf32> to vector<32x128xf32>
    %5 = arith.mulf %2, %4 : vector<32x128xf32>
    %c0_4 = arith.constant 0 : index
    %c0_5 = arith.constant 0 : index
    %6 = vector.load %arg4[%c0_4, %c0_5] : memref<1x128xf32, #tpu.memory_space<vmem>>, vector<1x128xf32>
    %7 = vector.broadcast %6 : vector<1x128xf32> to vector<32x128xf32>
    %8 = arith.addf %5, %7 : vector<32x128xf32>
    %cst = arith.constant 0.000000e+00 : f32
    %9 = vector.broadcast %cst : f32 to vector<32x128xf32>
    %10 = arith.maximumf %8, %9 : vector<32x128xf32>
    %11 = arith.truncf %10 : vector<32x128xf32> to vector<32x128xbf16>
    %c0_6 = arith.constant 0 : index
    %c0_7 = arith.constant 0 : index
    %c0_8 = arith.constant 0 : index
    %12 = vector.load %arg5[%c0_6, %c0_7, %c0_8] : memref<1x32x128xbf16, #tpu.memory_space<vmem>>, vector<1x32x128xbf16>
    %13 = vector.shape_cast %12 : vector<1x32x128xbf16> to vector<32x128xbf16>
    %14 = vector.shape_cast %11 : vector<32x128xbf16> to vector<1x32x128xbf16>
    tpu.vector_store %arg5[%c0_6, %c0_7, %c0_8], %14 {strides = array<i32>} : memref<1x32x128xbf16, #tpu.memory_space<vmem>>, vector<1x32x128xbf16>,
    return
  }
  func.func @transform_0(%arg0: i32, %arg1: i32) -> (i32, i32, i32) {
    %c0_i32 = arith.constant 0 : i32
    %c0_i32_0 = arith.constant 0 : i32
    return %arg0, %arg1, %c0_i32 : i32, i32, i32
  }
  func.func @transform_1(%arg0: i32, %arg1: i32) -> (i32, i32) {
    %c0_i32 = arith.constant 0 : i32
    %c0_i32_0 = arith.constant 0 : i32
    %c0_i32_1 = arith.constant 0 : i32
    return %c0_i32, %c0_i32_0 : i32, i32
  }
  func.func @transform_2(%arg0: i32, %arg1: i32) -> (i32, i32) {
    %c0_i32 = arith.constant 0 : i32
    %c0_i32_0 = arith.constant 0 : i32
    %c0_i32_1 = arith.constant 0 : i32
    return %c0_i32, %c0_i32_0 : i32, i32
  }
  func.func @transform_3(%arg0: i32, %arg1: i32) -> (i32, i32, i32) {
    %c0_i32 = arith.constant 0 : i32
    %c0_i32_0 = arith.constant 0 : i32
    return %arg0, %arg1, %c0_i32 : i32, i32, i32
  }
}

module attributes {stable_mosaic.version = 11 : i64} {
  func.func @conv_stats_kernel(%arg0: i32, %arg1: i32, %arg2: memref<1x128x128xbf16, #tpu.memory_space<vmem>>, %arg3: memref<1x128x128xbf16, #tpu.memory_space<vmem>>, %arg4: memref<1x128x128xbf16, #tpu.memory_space<vmem>>, %arg5: memref<1x8x128xf32, #tpu.memory_space<vmem>>, %arg6: memref<1x8x128xf32, #tpu.memory_space<vmem>>) attributes {dimension_semantics = [#tpu.dimension_semantics<parallel>, #tpu.dimension_semantics<parallel>], iteration_bounds = array<i64: 4, 1>, scalar_prefetch = 0 : i64, scratch_operands = 0 : i64, tpu.core_type = #tpu.core_type<tc>, window_params = [{transform_indices = @transform_0, window_bounds = array<i64: 1, 128, 128>}, {transform_indices = @transform_1, window_bounds = array<i64: 1, 128, 128>}, {transform_indices = @transform_2, window_bounds = array<i64: 1, 128, 128>}, {transform_indices = @transform_3, window_bounds = array<i64: 1, 8, 128>}, {transform_indices = @transform_4, window_bounds = array<i64: 1, 8, 128>}]} {
    %c0 = arith.constant 0 : index
    %c0_0 = arith.constant 0 : index
    %c0_1 = arith.constant 0 : index
    %0 = vector.load %arg2[%c0, %c0_0, %c0_1] : memref<1x128x128xbf16, #tpu.memory_space<vmem>>, vector<1x128x128xbf16>
    %1 = vector.shape_cast %0 : vector<1x128x128xbf16> to vector<128x128xbf16>
    %c0_2 = arith.constant 0 : index
    %c0_3 = arith.constant 0 : index
    %c0_4 = arith.constant 0 : index
    %2 = vector.load %arg3[%c0_2, %c0_3, %c0_4] : memref<1x128x128xbf16, #tpu.memory_space<vmem>>, vector<1x128x128xbf16>
    %3 = vector.shape_cast %2 : vector<1x128x128xbf16> to vector<128x128xbf16>
    %cst = arith.constant dense<0.000000e+00> : vector<128x128xf32>
    %4 = tpu.matmul %1, %3, %cst {dimension_numbers = #tpu.dot_dimension_numbers<[1], [0], [0], [1], [0, 0, 1, 1], [], []>} : vector<128x128xbf16>, vector<128x128xbf16>, vector<128x128xf32> -> vector<128x128xf32>
    %5 = arith.truncf %4 : vector<128x128xf32> to vector<128x128xbf16>
    %c0_5 = arith.constant 0 : index
    %c0_6 = arith.constant 0 : index
    %c0_7 = arith.constant 0 : index
    %6 = vector.load %arg4[%c0_5, %c0_6, %c0_7] : memref<1x128x128xbf16, #tpu.memory_space<vmem>>, vector<1x128x128xbf16>
    %7 = vector.shape_cast %6 : vector<1x128x128xbf16> to vector<128x128xbf16>
    %8 = vector.shape_cast %5 : vector<128x128xbf16> to vector<1x128x128xbf16>
    tpu.vector_store %arg4[%c0_5, %c0_6, %c0_7], %8 {strides = array<i32>} : memref<1x128x128xbf16, #tpu.memory_space<vmem>>, vector<1x128x128xbf16>,
    %cst_8 = arith.constant dense<0.000000e+00> : vector<128xf32>
    %9 = vector.multi_reduction <add>, %4, %cst_8 [0] : vector<128x128xf32> to vector<128xf32>
    %10 = vector.shape_cast %9 : vector<128xf32> to vector<1x128xf32>
    %11 = arith.mulf %4, %4 : vector<128x128xf32>
    %cst_9 = arith.constant dense<0.000000e+00> : vector<128xf32>
    %12 = vector.multi_reduction <add>, %11, %cst_9 [0] : vector<128x128xf32> to vector<128xf32>
    %13 = vector.shape_cast %12 : vector<128xf32> to vector<1x128xf32>
    %14 = vector.shape_cast %10 : vector<1x128xf32> to vector<1x128xf32>
    %15 = vector.broadcast %14 : vector<1x128xf32> to vector<8x128xf32>
    %c0_10 = arith.constant 0 : index
    %c0_11 = arith.constant 0 : index
    %c0_12 = arith.constant 0 : index
    %16 = vector.load %arg5[%c0_10, %c0_11, %c0_12] : memref<1x8x128xf32, #tpu.memory_space<vmem>>, vector<1x8x128xf32>
    %17 = vector.shape_cast %16 : vector<1x8x128xf32> to vector<8x128xf32>
    %18 = vector.shape_cast %15 : vector<8x128xf32> to vector<1x8x128xf32>
    tpu.vector_store %arg5[%c0_10, %c0_11, %c0_12], %18 {strides = array<i32>} : memref<1x8x128xf32, #tpu.memory_space<vmem>>, vector<1x8x128xf32>,
    %19 = vector.shape_cast %13 : vector<1x128xf32> to vector<1x128xf32>
    %20 = vector.broadcast %19 : vector<1x128xf32> to vector<8x128xf32>
    %c0_13 = arith.constant 0 : index
    %c0_14 = arith.constant 0 : index
    %c0_15 = arith.constant 0 : index
    %21 = vector.load %arg6[%c0_13, %c0_14, %c0_15] : memref<1x8x128xf32, #tpu.memory_space<vmem>>, vector<1x8x128xf32>
    %22 = vector.shape_cast %21 : vector<1x8x128xf32> to vector<8x128xf32>
    %23 = vector.shape_cast %20 : vector<8x128xf32> to vector<1x8x128xf32>
    tpu.vector_store %arg6[%c0_13, %c0_14, %c0_15], %23 {strides = array<i32>} : memref<1x8x128xf32, #tpu.memory_space<vmem>>, vector<1x8x128xf32>,
    return
  }
  func.func @transform_0(%arg0: i32, %arg1: i32) -> (i32, i32, i32) {
    %c0_i32 = arith.constant 0 : i32
    %c0_i32_0 = arith.constant 0 : i32
    return %arg0, %arg1, %c0_i32 : i32, i32, i32
  }
  func.func @transform_1(%arg0: i32, %arg1: i32) -> (i32, i32, i32) {
    %c0_i32 = arith.constant 0 : i32
    %c0_i32_0 = arith.constant 0 : i32
    %c0_i32_1 = arith.constant 0 : i32
    return %arg0, %c0_i32, %c0_i32_0 : i32, i32, i32
  }
  func.func @transform_2(%arg0: i32, %arg1: i32) -> (i32, i32, i32) {
    %c0_i32 = arith.constant 0 : i32
    %c0_i32_0 = arith.constant 0 : i32
    return %arg0, %arg1, %c0_i32 : i32, i32, i32
  }
  func.func @transform_3(%arg0: i32, %arg1: i32) -> (i32, i32, i32) {
    %c0_i32 = arith.constant 0 : i32
    %c0_i32_0 = arith.constant 0 : i32
    return %arg0, %arg1, %c0_i32 : i32, i32, i32
  }
  func.func @transform_4(%arg0: i32, %arg1: i32) -> (i32, i32, i32) {
    %c0_i32 = arith.constant 0 : i32
    %c0_i32_0 = arith.constant 0 : i32
    return %arg0, %arg1, %c0_i32 : i32, i32, i32
  }
}

module attributes {stable_mosaic.version = 11 : i64} {
  func.func @bn_relu_kernel(%arg0: i32, %arg1: i32, %arg2: memref<1x128x128xbf16, #tpu.memory_space<vmem>>, %arg3: memref<1x128xf32, #tpu.memory_space<vmem>>, %arg4: memref<1x128xf32, #tpu.memory_space<vmem>>, %arg5: memref<1x128x128xbf16, #tpu.memory_space<vmem>>) attributes {dimension_semantics = [#tpu.dimension_semantics<parallel>, #tpu.dimension_semantics<parallel>], iteration_bounds = array<i64: 4, 1>, scalar_prefetch = 0 : i64, scratch_operands = 0 : i64, tpu.core_type = #tpu.core_type<tc>, window_params = [{transform_indices = @transform_0, window_bounds = array<i64: 1, 128, 128>}, {pipeline_mode = #tpu.pipeline_mode<synchronous>, transform_indices = @transform_1, window_bounds = array<i64: 1, 128>}, {pipeline_mode = #tpu.pipeline_mode<synchronous>, transform_indices = @transform_2, window_bounds = array<i64: 1, 128>}, {transform_indices = @transform_3, window_bounds = array<i64: 1, 128, 128>}]} {
    %c0 = arith.constant 0 : index
    %c0_0 = arith.constant 0 : index
    %c0_1 = arith.constant 0 : index
    %0 = vector.load %arg2[%c0, %c0_0, %c0_1] : memref<1x128x128xbf16, #tpu.memory_space<vmem>>, vector<1x128x128xbf16>
    %1 = vector.shape_cast %0 : vector<1x128x128xbf16> to vector<128x128xbf16>
    %2 = arith.extf %1 : vector<128x128xbf16> to vector<128x128xf32>
    %c0_2 = arith.constant 0 : index
    %c0_3 = arith.constant 0 : index
    %3 = vector.load %arg3[%c0_2, %c0_3] : memref<1x128xf32, #tpu.memory_space<vmem>>, vector<1x128xf32>
    %4 = vector.broadcast %3 : vector<1x128xf32> to vector<128x128xf32>
    %5 = arith.mulf %2, %4 : vector<128x128xf32>
    %c0_4 = arith.constant 0 : index
    %c0_5 = arith.constant 0 : index
    %6 = vector.load %arg4[%c0_4, %c0_5] : memref<1x128xf32, #tpu.memory_space<vmem>>, vector<1x128xf32>
    %7 = vector.broadcast %6 : vector<1x128xf32> to vector<128x128xf32>
    %8 = arith.addf %5, %7 : vector<128x128xf32>
    %cst = arith.constant 0.000000e+00 : f32
    %9 = vector.broadcast %cst : f32 to vector<128x128xf32>
    %10 = arith.maximumf %8, %9 : vector<128x128xf32>
    %11 = arith.truncf %10 : vector<128x128xf32> to vector<128x128xbf16>
    %c0_6 = arith.constant 0 : index
    %c0_7 = arith.constant 0 : index
    %c0_8 = arith.constant 0 : index
    %12 = vector.load %arg5[%c0_6, %c0_7, %c0_8] : memref<1x128x128xbf16, #tpu.memory_space<vmem>>, vector<1x128x128xbf16>
    %13 = vector.shape_cast %12 : vector<1x128x128xbf16> to vector<128x128xbf16>
    %14 = vector.shape_cast %11 : vector<128x128xbf16> to vector<1x128x128xbf16>
    tpu.vector_store %arg5[%c0_6, %c0_7, %c0_8], %14 {strides = array<i32>} : memref<1x128x128xbf16, #tpu.memory_space<vmem>>, vector<1x128x128xbf16>,
    return
  }
  func.func @transform_0(%arg0: i32, %arg1: i32) -> (i32, i32, i32) {
    %c0_i32 = arith.constant 0 : i32
    %c0_i32_0 = arith.constant 0 : i32
    return %arg0, %arg1, %c0_i32 : i32, i32, i32
  }
  func.func @transform_1(%arg0: i32, %arg1: i32) -> (i32, i32) {
    %c0_i32 = arith.constant 0 : i32
    %c0_i32_0 = arith.constant 0 : i32
    %c0_i32_1 = arith.constant 0 : i32
    return %c0_i32, %c0_i32_0 : i32, i32
  }
  func.func @transform_2(%arg0: i32, %arg1: i32) -> (i32, i32) {
    %c0_i32 = arith.constant 0 : i32
    %c0_i32_0 = arith.constant 0 : i32
    %c0_i32_1 = arith.constant 0 : i32
    return %c0_i32, %c0_i32_0 : i32, i32
  }
  func.func @transform_3(%arg0: i32, %arg1: i32) -> (i32, i32, i32) {
    %c0_i32 = arith.constant 0 : i32
    %c0_i32_0 = arith.constant 0 : i32
    return %arg0, %arg1, %c0_i32 : i32, i32, i32
  }
}

module attributes {stable_mosaic.version = 11 : i64} {
  func.func @conv_stats_kernel(%arg0: i32, %arg1: i32, %arg2: memref<1x512x128xbf16, #tpu.memory_space<vmem>>, %arg3: memref<1x128x128xbf16, #tpu.memory_space<vmem>>, %arg4: memref<1x512x128xbf16, #tpu.memory_space<vmem>>, %arg5: memref<1x8x128xf32, #tpu.memory_space<vmem>>, %arg6: memref<1x8x128xf32, #tpu.memory_space<vmem>>) attributes {dimension_semantics = [#tpu.dimension_semantics<parallel>, #tpu.dimension_semantics<parallel>], iteration_bounds = array<i64: 4, 1>, scalar_prefetch = 0 : i64, scratch_operands = 0 : i64, tpu.core_type = #tpu.core_type<tc>, window_params = [{transform_indices = @transform_0, window_bounds = array<i64: 1, 512, 128>}, {transform_indices = @transform_1, window_bounds = array<i64: 1, 128, 128>}, {transform_indices = @transform_2, window_bounds = array<i64: 1, 512, 128>}, {transform_indices = @transform_3, window_bounds = array<i64: 1, 8, 128>}, {transform_indices = @transform_4, window_bounds = array<i64: 1, 8, 128>}]} {
    %c0 = arith.constant 0 : index
    %c0_0 = arith.constant 0 : index
    %c0_1 = arith.constant 0 : index
    %0 = vector.load %arg2[%c0, %c0_0, %c0_1] : memref<1x512x128xbf16, #tpu.memory_space<vmem>>, vector<1x512x128xbf16>
    %1 = vector.shape_cast %0 : vector<1x512x128xbf16> to vector<512x128xbf16>
    %c0_2 = arith.constant 0 : index
    %c0_3 = arith.constant 0 : index
    %c0_4 = arith.constant 0 : index
    %2 = vector.load %arg3[%c0_2, %c0_3, %c0_4] : memref<1x128x128xbf16, #tpu.memory_space<vmem>>, vector<1x128x128xbf16>
    %3 = vector.shape_cast %2 : vector<1x128x128xbf16> to vector<128x128xbf16>
    %cst = arith.constant dense<0.000000e+00> : vector<512x128xf32>
    %4 = tpu.matmul %1, %3, %cst {dimension_numbers = #tpu.dot_dimension_numbers<[1], [0], [0], [1], [0, 0, 1, 1], [], []>} : vector<512x128xbf16>, vector<128x128xbf16>, vector<512x128xf32> -> vector<512x128xf32>
    %5 = arith.truncf %4 : vector<512x128xf32> to vector<512x128xbf16>
    %c0_5 = arith.constant 0 : index
    %c0_6 = arith.constant 0 : index
    %c0_7 = arith.constant 0 : index
    %6 = vector.load %arg4[%c0_5, %c0_6, %c0_7] : memref<1x512x128xbf16, #tpu.memory_space<vmem>>, vector<1x512x128xbf16>
    %7 = vector.shape_cast %6 : vector<1x512x128xbf16> to vector<512x128xbf16>
    %8 = vector.shape_cast %5 : vector<512x128xbf16> to vector<1x512x128xbf16>
    tpu.vector_store %arg4[%c0_5, %c0_6, %c0_7], %8 {strides = array<i32>} : memref<1x512x128xbf16, #tpu.memory_space<vmem>>, vector<1x512x128xbf16>,
    %cst_8 = arith.constant dense<0.000000e+00> : vector<128xf32>
    %9 = vector.multi_reduction <add>, %4, %cst_8 [0] : vector<512x128xf32> to vector<128xf32>
    %10 = vector.shape_cast %9 : vector<128xf32> to vector<1x128xf32>
    %11 = arith.mulf %4, %4 : vector<512x128xf32>
    %cst_9 = arith.constant dense<0.000000e+00> : vector<128xf32>
    %12 = vector.multi_reduction <add>, %11, %cst_9 [0] : vector<512x128xf32> to vector<128xf32>
    %13 = vector.shape_cast %12 : vector<128xf32> to vector<1x128xf32>
    %14 = vector.shape_cast %10 : vector<1x128xf32> to vector<1x128xf32>
    %15 = vector.broadcast %14 : vector<1x128xf32> to vector<8x128xf32>
    %c0_10 = arith.constant 0 : index
    %c0_11 = arith.constant 0 : index
    %c0_12 = arith.constant 0 : index
    %16 = vector.load %arg5[%c0_10, %c0_11, %c0_12] : memref<1x8x128xf32, #tpu.memory_space<vmem>>, vector<1x8x128xf32>
    %17 = vector.shape_cast %16 : vector<1x8x128xf32> to vector<8x128xf32>
    %18 = vector.shape_cast %15 : vector<8x128xf32> to vector<1x8x128xf32>
    tpu.vector_store %arg5[%c0_10, %c0_11, %c0_12], %18 {strides = array<i32>} : memref<1x8x128xf32, #tpu.memory_space<vmem>>, vector<1x8x128xf32>,
    %19 = vector.shape_cast %13 : vector<1x128xf32> to vector<1x128xf32>
    %20 = vector.broadcast %19 : vector<1x128xf32> to vector<8x128xf32>
    %c0_13 = arith.constant 0 : index
    %c0_14 = arith.constant 0 : index
    %c0_15 = arith.constant 0 : index
    %21 = vector.load %arg6[%c0_13, %c0_14, %c0_15] : memref<1x8x128xf32, #tpu.memory_space<vmem>>, vector<1x8x128xf32>
    %22 = vector.shape_cast %21 : vector<1x8x128xf32> to vector<8x128xf32>
    %23 = vector.shape_cast %20 : vector<8x128xf32> to vector<1x8x128xf32>
    tpu.vector_store %arg6[%c0_13, %c0_14, %c0_15], %23 {strides = array<i32>} : memref<1x8x128xf32, #tpu.memory_space<vmem>>, vector<1x8x128xf32>,
    return
  }
  func.func @transform_0(%arg0: i32, %arg1: i32) -> (i32, i32, i32) {
    %c0_i32 = arith.constant 0 : i32
    %c0_i32_0 = arith.constant 0 : i32
    return %arg0, %arg1, %c0_i32 : i32, i32, i32
  }
  func.func @transform_1(%arg0: i32, %arg1: i32) -> (i32, i32, i32) {
    %c0_i32 = arith.constant 0 : i32
    %c0_i32_0 = arith.constant 0 : i32
    %c0_i32_1 = arith.constant 0 : i32
    return %arg0, %c0_i32, %c0_i32_0 : i32, i32, i32
  }
  func.func @transform_2(%arg0: i32, %arg1: i32) -> (i32, i32, i32) {
    %c0_i32 = arith.constant 0 : i32
    %c0_i32_0 = arith.constant 0 : i32
    return %arg0, %arg1, %c0_i32 : i32, i32, i32
  }
  func.func @transform_3(%arg0: i32, %arg1: i32) -> (i32, i32, i32) {
    %c0_i32 = arith.constant 0 : i32
    %c0_i32_0 = arith.constant 0 : i32
    return %arg0, %arg1, %c0_i32 : i32, i32, i32
  }
  func.func @transform_4(%arg0: i32, %arg1: i32) -> (i32, i32, i32) {
    %c0_i32 = arith.constant 0 : i32
    %c0_i32_0 = arith.constant 0 : i32
    return %arg0, %arg1, %c0_i32 : i32, i32, i32
  }
}

module attributes {stable_mosaic.version = 11 : i64} {
  func.func @bn_relu_kernel(%arg0: i32, %arg1: i32, %arg2: memref<1x512x128xbf16, #tpu.memory_space<vmem>>, %arg3: memref<1x128xf32, #tpu.memory_space<vmem>>, %arg4: memref<1x128xf32, #tpu.memory_space<vmem>>, %arg5: memref<1x512x128xbf16, #tpu.memory_space<vmem>>) attributes {dimension_semantics = [#tpu.dimension_semantics<parallel>, #tpu.dimension_semantics<parallel>], iteration_bounds = array<i64: 4, 1>, scalar_prefetch = 0 : i64, scratch_operands = 0 : i64, tpu.core_type = #tpu.core_type<tc>, window_params = [{transform_indices = @transform_0, window_bounds = array<i64: 1, 512, 128>}, {pipeline_mode = #tpu.pipeline_mode<synchronous>, transform_indices = @transform_1, window_bounds = array<i64: 1, 128>}, {pipeline_mode = #tpu.pipeline_mode<synchronous>, transform_indices = @transform_2, window_bounds = array<i64: 1, 128>}, {transform_indices = @transform_3, window_bounds = array<i64: 1, 512, 128>}]} {
    %c0 = arith.constant 0 : index
    %c0_0 = arith.constant 0 : index
    %c0_1 = arith.constant 0 : index
    %0 = vector.load %arg2[%c0, %c0_0, %c0_1] : memref<1x512x128xbf16, #tpu.memory_space<vmem>>, vector<1x512x128xbf16>
    %1 = vector.shape_cast %0 : vector<1x512x128xbf16> to vector<512x128xbf16>
    %2 = arith.extf %1 : vector<512x128xbf16> to vector<512x128xf32>
    %c0_2 = arith.constant 0 : index
    %c0_3 = arith.constant 0 : index
    %3 = vector.load %arg3[%c0_2, %c0_3] : memref<1x128xf32, #tpu.memory_space<vmem>>, vector<1x128xf32>
    %4 = vector.broadcast %3 : vector<1x128xf32> to vector<512x128xf32>
    %5 = arith.mulf %2, %4 : vector<512x128xf32>
    %c0_4 = arith.constant 0 : index
    %c0_5 = arith.constant 0 : index
    %6 = vector.load %arg4[%c0_4, %c0_5] : memref<1x128xf32, #tpu.memory_space<vmem>>, vector<1x128xf32>
    %7 = vector.broadcast %6 : vector<1x128xf32> to vector<512x128xf32>
    %8 = arith.addf %5, %7 : vector<512x128xf32>
    %cst = arith.constant 0.000000e+00 : f32
    %9 = vector.broadcast %cst : f32 to vector<512x128xf32>
    %10 = arith.maximumf %8, %9 : vector<512x128xf32>
    %11 = arith.truncf %10 : vector<512x128xf32> to vector<512x128xbf16>
    %c0_6 = arith.constant 0 : index
    %c0_7 = arith.constant 0 : index
    %c0_8 = arith.constant 0 : index
    %12 = vector.load %arg5[%c0_6, %c0_7, %c0_8] : memref<1x512x128xbf16, #tpu.memory_space<vmem>>, vector<1x512x128xbf16>
    %13 = vector.shape_cast %12 : vector<1x512x128xbf16> to vector<512x128xbf16>
    %14 = vector.shape_cast %11 : vector<512x128xbf16> to vector<1x512x128xbf16>
    tpu.vector_store %arg5[%c0_6, %c0_7, %c0_8], %14 {strides = array<i32>} : memref<1x512x128xbf16, #tpu.memory_space<vmem>>, vector<1x512x128xbf16>,
    return
  }
  func.func @transform_0(%arg0: i32, %arg1: i32) -> (i32, i32, i32) {
    %c0_i32 = arith.constant 0 : i32
    %c0_i32_0 = arith.constant 0 : i32
    return %arg0, %arg1, %c0_i32 : i32, i32, i32
  }
  func.func @transform_1(%arg0: i32, %arg1: i32) -> (i32, i32) {
    %c0_i32 = arith.constant 0 : i32
    %c0_i32_0 = arith.constant 0 : i32
    %c0_i32_1 = arith.constant 0 : i32
    return %c0_i32, %c0_i32_0 : i32, i32
  }
  func.func @transform_2(%arg0: i32, %arg1: i32) -> (i32, i32) {
    %c0_i32 = arith.constant 0 : i32
    %c0_i32_0 = arith.constant 0 : i32
    %c0_i32_1 = arith.constant 0 : i32
    return %c0_i32, %c0_i32_0 : i32, i32
  }
  func.func @transform_3(%arg0: i32, %arg1: i32) -> (i32, i32, i32) {
    %c0_i32 = arith.constant 0 : i32
    %c0_i32_0 = arith.constant 0 : i32
    return %arg0, %arg1, %c0_i32 : i32, i32, i32
  }
}

module attributes {stable_mosaic.version = 11 : i64} {
  func.func @conv_tanh_kernel(%arg0: i32, %arg1: i32, %arg2: memref<1x512x128xbf16, #tpu.memory_space<vmem>>, %arg3: memref<1x128x128xbf16, #tpu.memory_space<vmem>>, %arg4: memref<1x512x128xf32, #tpu.memory_space<vmem>>) attributes {dimension_semantics = [#tpu.dimension_semantics<parallel>, #tpu.dimension_semantics<parallel>], iteration_bounds = array<i64: 4, 4>, scalar_prefetch = 0 : i64, scratch_operands = 0 : i64, tpu.core_type = #tpu.core_type<tc>, window_params = [{transform_indices = @transform_0, window_bounds = array<i64: 1, 512, 128>}, {transform_indices = @transform_1, window_bounds = array<i64: 1, 128, 128>}, {transform_indices = @transform_2, window_bounds = array<i64: 1, 512, 128>}]} {
    %c0 = arith.constant 0 : index
    %c0_0 = arith.constant 0 : index
    %c0_1 = arith.constant 0 : index
    %0 = vector.load %arg2[%c0, %c0_0, %c0_1] : memref<1x512x128xbf16, #tpu.memory_space<vmem>>, vector<1x512x128xbf16>
    %1 = vector.shape_cast %0 : vector<1x512x128xbf16> to vector<512x128xbf16>
    %c0_2 = arith.constant 0 : index
    %c0_3 = arith.constant 0 : index
    %c0_4 = arith.constant 0 : index
    %2 = vector.load %arg3[%c0_2, %c0_3, %c0_4] : memref<1x128x128xbf16, #tpu.memory_space<vmem>>, vector<1x128x128xbf16>
    %3 = vector.shape_cast %2 : vector<1x128x128xbf16> to vector<128x128xbf16>
    %cst = arith.constant dense<0.000000e+00> : vector<512x128xf32>
    %4 = tpu.matmul %1, %3, %cst {dimension_numbers = #tpu.dot_dimension_numbers<[1], [0], [0], [1], [0, 0, 1, 1], [], []>} : vector<512x128xbf16>, vector<128x128xbf16>, vector<512x128xf32> -> vector<512x128xf32>
    %5 = math.tanh %4 : vector<512x128xf32>
    %c0_5 = arith.constant 0 : index
    %c0_6 = arith.constant 0 : index
    %c0_7 = arith.constant 0 : index
    %6 = vector.load %arg4[%c0_5, %c0_6, %c0_7] : memref<1x512x128xf32, #tpu.memory_space<vmem>>, vector<1x512x128xf32>
    %7 = vector.shape_cast %6 : vector<1x512x128xf32> to vector<512x128xf32>
    %8 = vector.shape_cast %5 : vector<512x128xf32> to vector<1x512x128xf32>
    tpu.vector_store %arg4[%c0_5, %c0_6, %c0_7], %8 {strides = array<i32>} : memref<1x512x128xf32, #tpu.memory_space<vmem>>, vector<1x512x128xf32>,
    return
  }
  func.func @transform_0(%arg0: i32, %arg1: i32) -> (i32, i32, i32) {
    %c0_i32 = arith.constant 0 : i32
    %c0_i32_0 = arith.constant 0 : i32
    return %arg0, %arg1, %c0_i32 : i32, i32, i32
  }
  func.func @transform_1(%arg0: i32, %arg1: i32) -> (i32, i32, i32) {
    %c0_i32 = arith.constant 0 : i32
    %c0_i32_0 = arith.constant 0 : i32
    %c0_i32_1 = arith.constant 0 : i32
    return %arg0, %c0_i32, %c0_i32_0 : i32, i32, i32
  }
  func.func @transform_2(%arg0: i32, %arg1: i32) -> (i32, i32, i32) {
    %c0_i32 = arith.constant 0 : i32
    %c0_i32_0 = arith.constant 0 : i32
    return %arg0, %arg1, %c0_i32 : i32, i32, i32
  }
}

</mosaic_0001>

<llo_original>
// kernel: _lambda_.10
$region0: #{_lambda_.10}
  #allocation0 [shape = 'u32[]', space=smem, size = 0x4, offset = 0x4, fixed_abs, tag = 'smem constant byte address 0x4 - core index']
  #allocation1 [shape = 'u32[144,128]{1,0:T(1,128)}', space=vmem, size = 0x12000, scoped, tag = 'internal scratch']
  %s0 = inlined_call_operand.vmem [shape: bf16[16,16,128], index: 0, kind: input, shape index: {}]
  %s1 = inlined_call_operand.vmem [shape: f32[1,128], index: 1, kind: input, shape index: {}]
  %s2 = inlined_call_operand.vmem [shape: f32[1,128], index: 2, kind: input, shape index: {}]
  %s3 = inlined_call_operand.vmem [shape: bf16[16,16,128], index: 3, kind: output, shape index: {}]
  %s4 = sld [smem:[#allocation0]]
  $region45: #{_lambda_.10} parent=0
    _
  %s6 = ssub.s32 1, %s4
  %s7 = scalar_select 0, %s6, %s4
  loop: start=0, step=1, limit=18
  $region2: #{_lambda_.10} parent=0 // loop_pre_header
    _
  $region3: #{_lambda_.10} parent=0 // loop_header
    %s9 = sphi 0, %s13
    %p10 = scmp.ge.s32.totalorder %s9, 18
    %s16 = sphi 0, %s28
    %s17 = sphi 0, %s24
    %s18 = sphi 0, %s16
    %s19 = sphi 0, %s17
    %s20 = sphi 0, %s18
    %s21 = sphi 0, %s19
    %s33 = sphi 0, %s35
    %s36 = sphi 0, %s33
    %s37 = sphi 0, %s36
    %s53 = sphi 0, %s37
    %s57 = sphi 0, %s57
    %s59 = sphi 0, %s57
    %s60 = sphi 0, %s59
    %s74 = sphi 0, %s60
    %s78 = sphi 0, %s78
    %s80 = sphi 0, %s78
    %s81 = sphi 0, %s80
    %s95 = sphi 0, %s81
    %s103 = sphi 0, %s105
    %s106 = sphi 0, %s103
    %s107 = sphi 0, %s106
    %s123 = sphi 0, %s107
  $region4: #{_lambda_.10} parent=0 // loop_header_branch
    %12 = sbr.rel (%p10) target = $region8
  $region5: #{_lambda_.10} parent=0 // loop_body
    %s14 = ssub.s32 %s9, 1
    %s15 = ssub.s32 %s9, 2
    %s22 = sadd.s32 1, %s17
    %p23 = scmp.ge.s32.totalorder %s22, 1
    %s24 = scalar_select %p23, 0, %s22
    %s25 = sadd.s32 1, %s16
    %s26 = scalar_select %p23, %s25, %s16
    %p27 = scmp.ge.s32.totalorder %s26, 16
    %s28 = scalar_select %p27, 0, %s26
    %s29 = ssub.s32 %s16, %s28
    %s30 = ssub.s32 %s17, %s24
    %s31 = sor.u32 %s29, %s30
    %p32 = scmp.eq.s32.totalorder %s31, 0
    %s34 = sadd.s32 %s33, 1
    %s35 = scalar_select %p32, %s33, %s34
    %p38 = pneg %p32
    %p39 = scmp.eq.s32.totalorder %s9, 15
    %p40 = por %p38, %p39
    %p41 = scmp.ne.s32.totalorder %s33, %s36
    %p42 = scmp.eq.s32.totalorder %s9, 0
    %p43 = por %p41, %p42
    %p44 = scmp.ne.s32.totalorder %s33, %s36
    %p45 = scmp.eq.s32.totalorder %s14, 15
    %p46 = por %p44, %p45
    %p47 = scmp.ne.s32.totalorder %s36, %s37
    %p48 = scmp.eq.s32.totalorder %s14, 0
    %p49 = por %p47, %p48
    %p50 = scmp.ne.s32.totalorder %s36, %s37
    %p51 = scmp.eq.s32.totalorder %s15, 15
    %p52 = por %p50, %p51
    %p54 = scmp.ne.s32.totalorder %s37, %s53
    %p55 = scmp.eq.s32.totalorder %s15, 0
    %p56 = por %p54, %p55
    %s58 = sadd.s32 %s57, 1
    %p61 = scmp.eq.s32.totalorder %s9, 15
    %p62 = scmp.ne.s32.totalorder %s57, %s59
    %p63 = scmp.eq.s32.totalorder %s9, 0
    %p64 = por %p62, %p63
    %p65 = scmp.ne.s32.totalorder %s57, %s59
    %p66 = scmp.eq.s32.totalorder %s14, 15
    %p67 = por %p65, %p66
    %p68 = scmp.ne.s32.totalorder %s59, %s60
    %p69 = scmp.eq.s32.totalorder %s14, 0
    %p70 = por %p68, %p69
    %p71 = scmp.ne.s32.totalorder %s59, %s60
    %p72 = scmp.eq.s32.totalorder %s15, 15
    %p73 = por %p71, %p72
    %p75 = scmp.ne.s32.totalorder %s60, %s74
    %p76 = scmp.eq.s32.totalorder %s15, 0
    %p77 = por %p75, %p76
    %s79 = sadd.s32 %s78, 1
    %p82 = scmp.eq.s32.totalorder %s9, 15
    %p83 = scmp.ne.s32.totalorder %s78, %s80
    %p84 = scmp.eq.s32.totalorder %s9, 0
    %p85 = por %p83, %p84
    %p86 = scmp.ne.s32.totalorder %s78, %s80
    %p87 = scmp.eq.s32.totalorder %s14, 15
    %p88 = por %p86, %p87
    %p89 = scmp.ne.s32.totalorder %s80, %s81
    %p90 = scmp.eq.s32.totalorder %s14, 0
    %p91 = por %p89, %p90
    %p92 = scmp.ne.s32.totalorder %s80, %s81
    %p93 = scmp.eq.s32.totalorder %s15, 15
    %p94 = por %p92, %p93
    %p96 = scmp.ne.s32.totalorder %s81, %s95
    %p97 = scmp.eq.s32.totalorder %s15, 0
    %p98 = por %p96, %p97
    %s99 = ssub.s32 %s16, %s28
    %s100 = ssub.s32 %s17, %s24
    %s101 = sor.u32 %s99, %s100
    %p102 = scmp.eq.s32.totalorder %s101, 0
    %s104 = sadd.s32 %s103, 1
    %s105 = scalar_select %p102, %s103, %s104
    %p108 = pneg %p102
    %p109 = scmp.eq.s32.totalorder %s9, 15
    %p110 = por %p108, %p109
    %p111 = scmp.ne.s32.totalorder %s103, %s106
    %p112 = scmp.eq.s32.totalorder %s9, 0
    %p113 = por %p111, %p112
    %p114 = scmp.ne.s32.totalorder %s103, %s106
    %p115 = scmp.eq.s32.totalorder %s14, 15
    %p116 = por %p114, %p115
    %p117 = scmp.ne.s32.totalorder %s106, %s107
    %p118 = scmp.eq.s32.totalorder %s14, 0
    %p119 = por %p117, %p118
    %p120 = scmp.ne.s32.totalorder %s106, %s107
    %p121 = scmp.eq.s32.totalorder %s15, 15
    %p122 = por %p120, %p121
    %p124 = scmp.ne.s32.totalorder %s107, %s123
    %p125 = scmp.eq.s32.totalorder %s15, 0
    %p126 = por %p124, %p125
    %p127 = scmp.le.s32.totalorder 1, %s9
    %p128 = scmp.lt.s32.totalorder %s9, 17
    %p129 = pnand %p127, %p128
    %p130 = pneg %p129
    // Predicated region
    $region9: #{_lambda_.10} parent=5 // pred_check
      _
    $region10: #{_lambda_.10} parent=5 // pred_check_branch
      %132 = sbr.rel (%p129) target = $region12
    $region11: #{_lambda_.10} parent=5 // pred_region
      %s133 = ssub.s32 %s9, 1
      // Predicated region
      $region13: #{_lambda_.10} parent=11 // pred_check
        %p134 = pneg %p70
      $region14: #{_lambda_.10} parent=11 // pred_check_branch
        %136 = sbr.rel (%p134) target = $region16
      $region15: #{_lambda_.10} parent=11 // pred_region
        _
      $region16: #{_lambda_.10} parent=11 // pred_fallthru
        _
      // Predicated region
      $region17: #{_lambda_.10} parent=11 // pred_check
        %p137 = pneg %p91
      $region18: #{_lambda_.10} parent=11 // pred_check_branch
        %139 = sbr.rel (%p137) target = $region20
      $region19: #{_lambda_.10} parent=11 // pred_region
        _
      $region20: #{_lambda_.10} parent=11 // pred_fallthru
        _
    $region12: #{_lambda_.10} parent=5 // pred_fallthru
      _
    %p140 = scmp.lt.s32.totalorder %s9, 16
    // Predicated region
    $region21: #{_lambda_.10} parent=5 // pred_check
      %p141 = pneg %p140
    $region22: #{_lambda_.10} parent=5 // pred_check_branch
      %143 = sbr.rel (%p141) target = $region24
    $region23: #{_lambda_.10} parent=5 // pred_region
      // Predicated region
      $region25: #{_lambda_.10} parent=23 // pred_check
        %p144 = pneg %p43
      $region26: #{_lambda_.10} parent=23 // pred_check_branch
        %146 = sbr.rel (%p144) target = $region28
      $region27: #{_lambda_.10} parent=23 // pred_region
        %s147 = smul.u32 2, %s17
        %p148 = scmp.lt.s32.totalorder %s16, 15
        %s149 = scalar_select %p148, %s16, 15
        %p150 = scmp.lt.s32.totalorder %s147, 1
        %s151 = scalar_select %p150, %s147, 1
        %s152 = smul.addr %s149, 2
        %s153 = sadd.s32 %s151, %s152
        %s154 = smul.addr %s153, 4
        %s155 = scalar_lea.vmem %s0, %s154
        %s156 = smul.u32 2, %s17
      $region28: #{_lambda_.10} parent=23 // pred_fallthru
        _
    $region24: #{_lambda_.10} parent=5 // pred_fallthru
      _
    %p157 = scmp.le.s32.totalorder 1, %s9
    %p158 = scmp.lt.s32.totalorder %s9, 17
    %p159 = pnand %p157, %p158
    %p160 = pneg %p159
    // Predicated region
    $region29: #{_lambda_.10} parent=5 // pred_check
      _
    $region30: #{_lambda_.10} parent=5 // pred_check_branch
      %162 = sbr.rel (%p159) target = $region32
    $region31: #{_lambda_.10} parent=5 // pred_region
      %s163 = ssub.s32 %s9, 1
      %s164 = smul.u32 2, %s19
      %p165 = scmp.lt.s32.totalorder %s18, 15
      %s166 = scalar_select %p165, %s18, 15
      %p167 = scmp.lt.s32.totalorder %s164, 1
      %s168 = scalar_select %p167, %s164, 1
      %s169 = smul.addr %s166, 2
      %s170 = sadd.s32 %s168, %s169
      %s171 = smul.addr %s170, 4
      %s172 = scalar_lea.vmem %s0, %s171
      %p173 = pneg %p49
      %p174 = pneg %p46
      %p175 = pneg %p70
      %p176 = pneg %p67
      %p177 = pneg %p91
      %p178 = pneg %p88
      %p179 = pneg %p119
      %p180 = pneg %p116
      %s181 = smul.u32 2, %s19
      %p182 = scmp.lt.s32.totalorder %s18, 15
      %s183 = scalar_select %p182, %s18, 15
      %p184 = scmp.lt.s32.totalorder %s181, 1
      %s185 = scalar_select %p184, %s181, 1
      %s186 = smul.addr %s183, 2
      %s187 = sadd.s32 %s185, %s186
      %s188 = smul.addr %s187, 4
      %s189 = scalar_lea.vmem %s3, %s188
      %s190 = smul.u32 2, %s19
      %p191 = scmp.lt.s32.totalorder %s18, 15
      %s192 = scalar_select %p191, %s18, 15
      %p193 = scmp.lt.s32.totalorder %s190, 1
      %s194 = scalar_select %p193, %s190, 1
      %s195 = smul.addr %s192, 2
      %s196 = sadd.s32 %s194, %s195
      %s197 = smul.addr %s196, 4
      %s198 = scalar_lea.vmem %s0, %s197
      %s199 = smul.u32 2, %s19
      %s200 = smul.u32 2, %s19
      %p201 = scmp.lt.s32.totalorder %s18, 15
      %s202 = scalar_select %p201, %s18, 15
      %p203 = scmp.lt.s32.totalorder %s200, 1
      %s204 = scalar_select %p203, %s200, 1
      %s205 = smul.addr %s202, 2
      %s206 = sadd.s32 %s204, %s205
      %s207 = smul.addr %s206, 4
      %s208 = scalar_lea.vmem %s3, %s207
      %s209 = smul.u32 2, %s19
      %v210 = vld [vmem:[%s198] sm:$0xf]
      %v211 = vld [vmem:[%s198 + $0x4] sm:$0xf]
      %v212 = vunpack.c.l.bf16 %v210
      %v213 = vunpack.c.l.bf16 %v211
      %v214 = vld [vmem:[%s1] sm:$0x1]
      %v216 = vlaneseq
      %v217 = vshrl.u32 %v216, 7
      %v218 = vsub.s32 0, %v217
      %v219 = vrot.slane %v214, %v218
      %v221 = vmul.f32 %v212, %v219
      %v222 = vmul.f32 %v213, %v219
      %v223 = vld [vmem:[%s2] sm:$0x1]
      %v225 = vlaneseq
      %v226 = vshrl.u32 %v225, 7
      %v227 = vsub.s32 0, %v226
      %v228 = vrot.slane %v223, %v227
      %v230 = vadd.f32 %v221, %v228
      %v231 = vadd.f32 %v222, %v228
      %v232 = vmax.f32 %v230, 0.0
      %v233 = vmax.f32 %v231, 0.0
      %v234 = vpack.c.bf16 %v233, %v232
      %v236 = vunpack.c.l.b16 %v234
      %v237 = vunpack.c.h.b16 %v234
      %v238 = vpack.c.b16 %v236, %v236
      %v239 = vpack.c.b16 %v237, %v237
      %242 = vst [vmem:[%s208] sm:$0xf] %v238
      %243 = vst [vmem:[%s208 + $0x4] sm:$0xf] %v239
      %s244 = smul.u32 2, %s19
      %p245 = scmp.lt.s32.totalorder %s18, 15
      %s246 = scalar_select %p245, %s18, 15
      %p247 = scmp.lt.s32.totalorder %s244, 1
      %s248 = scalar_select %p247, %s244, 1
      %s249 = smul.addr %s246, 2
      %s250 = sadd.s32 %s248, %s249
      %s251 = smul.addr %s250, 4
      %s252 = scalar_lea.vmem %s3, %s251
      // Predicated region
      $region33: #{_lambda_.10} parent=31 // pred_check
        %p253 = pneg %p116
      $region34: #{_lambda_.10} parent=31 // pred_check_branch
        %255 = sbr.rel (%p253) target = $region36
      $region35: #{_lambda_.10} parent=31 // pred_region
        %s256 = smul.u32 2, %s19
      $region36: #{_lambda_.10} parent=31 // pred_fallthru
        _
    $region32: #{_lambda_.10} parent=5 // pred_fallthru
      _
    %p257 = scmp.le.s32.totalorder 2, %s9
    // Predicated region
    $region37: #{_lambda_.10} parent=5 // pred_check
      %p258 = pneg %p257
    $region38: #{_lambda_.10} parent=5 // pred_check_branch
      %260 = sbr.rel (%p258) target = $region40
    $region39: #{_lambda_.10} parent=5 // pred_region
      %s261 = ssub.s32 %s9, 2
      // Predicated region
      $region41: #{_lambda_.10} parent=39 // pred_check
        %p262 = pneg %p122
      $region42: #{_lambda_.10} parent=39 // pred_check_branch
        %264 = sbr.rel (%p262) target = $region44
      $region43: #{_lambda_.10} parent=39 // pred_region
        %s265 = smul.u32 2, %s21
        %p266 = scmp.lt.s32.totalorder %s20, 15
        %s267 = scalar_select %p266, %s20, 15
        %p268 = scmp.lt.s32.totalorder %s265, 1
        %s269 = scalar_select %p268, %s265, 1
        %s270 = smul.addr %s267, 2
        %s271 = sadd.s32 %s269, %s270
        %s272 = smul.addr %s271, 4
        %s273 = scalar_lea.vmem %s3, %s272
      $region44: #{_lambda_.10} parent=39 // pred_fallthru
        _
    $region40: #{_lambda_.10} parent=5 // pred_fallthru
      _
  $region6: #{_lambda_.10} parent=0 // loop_footer
    %s13 = sadd.s32 1, %s9
  $region7: #{_lambda_.10} parent=0 // loop_footer_branch
    %8 = sbr.rel target = $region3
  $region8: #{_lambda_.10} parent=0 // loop_exit
    _

// kernel: _lambda_.9
$region0: #{_lambda_.9}
  #allocation0 [shape = 'u32[]', space=smem, size = 0x4, offset = 0x4, fixed_abs, tag = 'smem constant byte address 0x4 - core index']
  #allocation1 [shape = 'u32[144,128]{1,0:T(1,128)}', space=vmem, size = 0x12000, scoped, tag = 'internal scratch']
  %s0 = inlined_call_operand.vmem [shape: bf16[1,16,128], index: 0, kind: input, shape index: {}]
  %s1 = inlined_call_operand.hbm [shape: bf16[16,128,128], index: 1, kind: input, shape index: {}]
  %s2 = inlined_call_operand.vmem [shape: bf16[16,16,128], index: 2, kind: output, shape index: {0}]
  %s3 = inlined_call_operand.vmem [shape: f32[16,8,128], index: 3, kind: output, shape index: {1}]
  %s4 = inlined_call_operand.vmem [shape: f32[16,8,128], index: 4, kind: output, shape index: {2}]
  %5 = xla_tuple %s2, %s3, %s4
  %s6 = sld [smem:[#allocation0]]
  $region61: #{_lambda_.9} parent=0
    _
  %s8 = ssub.s32 1, %s6
  %s9 = scalar_select 0, %s8, %s6
  $region1: #{_lambda_.9} parent=0
    #allocation2 [shape = 'u8[65536]{0}', space=vmem, size = 0x10000, scoped, tag = 'input window, operand 1']
    #allocation3 [shape = 's32[2]{0}', space=sflag, size = 0x8, scoped, tag = 'scoped memory for _lambda_.9']
    %10 = vsyncpa [#allocation3], 0
    %s11 = scalar_lea.sflag [#allocation3], 1
    %12 = vsyncpa %s11, 0
    loop: start=0, step=1, limit=18
    $region2: #{_lambda_.9} parent=1 // loop_pre_header
      _
    $region3: #{_lambda_.9} parent=1 // loop_header
      %s14 = sphi 0, %s18
      %p15 = scmp.ge.s32.totalorder %s14, 18
      %s21 = sphi 0, %s33
      %s22 = sphi 0, %s29
      %s23 = sphi 0, %s21
      %s24 = sphi 0, %s22
      %s25 = sphi 0, %s23
      %s26 = sphi 0, %s24
      %s36 = sphi 0, %s38
      %s39 = sphi 0, %s36
      %s40 = sphi 0, %s39
      %s56 = sphi 0, %s40
      %s62 = sphi 0, %s64
      %s65 = sphi 0, %s62
      %s66 = sphi 0, %s65
      %s82 = sphi 0, %s66
      %s90 = sphi 0, %s92
      %s93 = sphi 0, %s90
      %s94 = sphi 0, %s93
      %s110 = sphi 0, %s94
      %s118 = sphi 0, %s120
      %s121 = sphi 0, %s118
      %s122 = sphi 0, %s121
      %s138 = sphi 0, %s122
      %s146 = sphi 0, %s148
      %s149 = sphi 0, %s146
      %s150 = sphi 0, %s149
      %s166 = sphi 0, %s150
    $region4: #{_lambda_.9} parent=1 // loop_header_branch
      %17 = sbr.rel (%p15) target = $region8
    $region5: #{_lambda_.9} parent=1 // loop_body
      %s19 = ssub.s32 %s14, 1
      %s20 = ssub.s32 %s14, 2
      %s27 = sadd.s32 1, %s22
      %p28 = scmp.ge.s32.totalorder %s27, 1
      %s29 = scalar_select %p28, 0, %s27
      %s30 = sadd.s32 1, %s21
      %s31 = scalar_select %p28, %s30, %s21
      %p32 = scmp.ge.s32.totalorder %s31, 16
      %s33 = scalar_select %p32, 0, %s31
      %s34 = ssub.s32 %s22, %s29
      %p35 = scmp.eq.s32.totalorder %s34, 0
      %s37 = sadd.s32 %s36, 1
      %s38 = scalar_select %p35, %s36, %s37
      %p41 = pneg %p35
      %p42 = scmp.eq.s32.totalorder %s14, 15
      %p43 = por %p41, %p42
      %p44 = scmp.ne.s32.totalorder %s36, %s39
      %p45 = scmp.eq.s32.totalorder %s14, 0
      %p46 = por %p44, %p45
      %p47 = scmp.ne.s32.totalorder %s36, %s39
      %p48 = scmp.eq.s32.totalorder %s19, 15
      %p49 = por %p47, %p48
      %p50 = scmp.ne.s32.totalorder %s39, %s40
      %p51 = scmp.eq.s32.totalorder %s19, 0
      %p52 = por %p50, %p51
      %p53 = scmp.ne.s32.totalorder %s39, %s40
      %p54 = scmp.eq.s32.totalorder %s20, 15
      %p55 = por %p53, %p54
      %p57 = scmp.ne.s32.totalorder %s40, %s56
      %p58 = scmp.eq.s32.totalorder %s20, 0
      %p59 = por %p57, %p58
      %s60 = ssub.s32 %s21, %s33
      %p61 = scmp.eq.s32.totalorder %s60, 0
      %s63 = sadd.s32 %s62, 1
      %s64 = scalar_select %p61, %s62, %s63
      %p67 = pneg %p61
      %p68 = scmp.eq.s32.totalorder %s14, 15
      %p69 = por %p67, %p68
      %p70 = scmp.ne.s32.totalorder %s62, %s65
      %p71 = scmp.eq.s32.totalorder %s14, 0
      %p72 = por %p70, %p71
      %p73 = scmp.ne.s32.totalorder %s62, %s65
      %p74 = scmp.eq.s32.totalorder %s19, 15
      %p75 = por %p73, %p74
      %p76 = scmp.ne.s32.totalorder %s65, %s66
      %p77 = scmp.eq.s32.totalorder %s19, 0
      %p78 = por %p76, %p77
      %p79 = scmp.ne.s32.totalorder %s65, %s66
      %p80 = scmp.eq.s32.totalorder %s20, 15
      %p81 = por %p79, %p80
      %p83 = scmp.ne.s32.totalorder %s66, %s82
      %p84 = scmp.eq.s32.totalorder %s20, 0
      %p85 = por %p83, %p84
      %s86 = ssub.s32 %s21, %s33
      %s87 = ssub.s32 %s22, %s29
      %s88 = sor.u32 %s86, %s87
      %p89 = scmp.eq.s32.totalorder %s88, 0
      %s91 = sadd.s32 %s90, 1
      %s92 = scalar_select %p89, %s90, %s91
      %p95 = pneg %p89
      %p96 = scmp.eq.s32.totalorder %s14, 15
      %p97 = por %p95, %p96
      %p98 = scmp.ne.s32.totalorder %s90, %s93
      %p99 = scmp.eq.s32.totalorder %s14, 0
      %p100 = por %p98, %p99
      %p101 = scmp.ne.s32.totalorder %s90, %s93
      %p102 = scmp.eq.s32.totalorder %s19, 15
      %p103 = por %p101, %p102
      %p104 = scmp.ne.s32.totalorder %s93, %s94
      %p105 = scmp.eq.s32.totalorder %s19, 0
      %p106 = por %p104, %p105
      %p107 = scmp.ne.s32.totalorder %s93, %s94
      %p108 = scmp.eq.s32.totalorder %s20, 15
      %p109 = por %p107, %p108
      %p111 = scmp.ne.s32.totalorder %s94, %s110
      %p112 = scmp.eq.s32.totalorder %s20, 0
      %p113 = por %p111, %p112
      %s114 = ssub.s32 %s21, %s33
      %s115 = ssub.s32 %s22, %s29
      %s116 = sor.u32 %s114, %s115
      %p117 = scmp.eq.s32.totalorder %s116, 0
      %s119 = sadd.s32 %s118, 1
      %s120 = scalar_select %p117, %s118, %s119
      %p123 = pneg %p117
      %p124 = scmp.eq.s32.totalorder %s14, 15
      %p125 = por %p123, %p124
      %p126 = scmp.ne.s32.totalorder %s118, %s121
      %p127 = scmp.eq.s32.totalorder %s14, 0
      %p128 = por %p126, %p127
      %p129 = scmp.ne.s32.totalorder %s118, %s121
      %p130 = scmp.eq.s32.totalorder %s19, 15
      %p131 = por %p129, %p130
      %p132 = scmp.ne.s32.totalorder %s121, %s122
      %p133 = scmp.eq.s32.totalorder %s19, 0
      %p134 = por %p132, %p133
      %p135 = scmp.ne.s32.totalorder %s121, %s122
      %p136 = scmp.eq.s32.totalorder %s20, 15
      %p137 = por %p135, %p136
      %p139 = scmp.ne.s32.totalorder %s122, %s138
      %p140 = scmp.eq.s32.totalorder %s20, 0
      %p141 = por %p139, %p140
      %s142 = ssub.s32 %s21, %s33
      %s143 = ssub.s32 %s22, %s29
      %s144 = sor.u32 %s142, %s143
      %p145 = scmp.eq.s32.totalorder %s144, 0
      %s147 = sadd.s32 %s146, 1
      %s148 = scalar_select %p145, %s146, %s147
      %p151 = pneg %p145
      %p152 = scmp.eq.s32.totalorder %s14, 15
      %p153 = por %p151, %p152
      %p154 = scmp.ne.s32.totalorder %s146, %s149
      %p155 = scmp.eq.s32.totalorder %s14, 0
      %p156 = por %p154, %p155
      %p157 = scmp.ne.s32.totalorder %s146, %s149
      %p158 = scmp.eq.s32.totalorder %s19, 15
      %p159 = por %p157, %p158
      %p160 = scmp.ne.s32.totalorder %s149, %s150
      %p161 = scmp.eq.s32.totalorder %s19, 0
      %p162 = por %p160, %p161
      %p163 = scmp.ne.s32.totalorder %s149, %s150
      %p164 = scmp.eq.s32.totalorder %s20, 15
      %p165 = por %p163, %p164
      %p167 = scmp.ne.s32.totalorder %s150, %s166
      %p168 = scmp.eq.s32.totalorder %s20, 0
      %p169 = por %p167, %p168
      %p170 = scmp.le.s32.totalorder 1, %s14
      %p171 = scmp.lt.s32.totalorder %s14, 17
      %p172 = pnand %p170, %p171
      %p173 = pneg %p172
      // Predicated region
      $region9: #{_lambda_.9} parent=5 // pred_check
        _
      $region10: #{_lambda_.9} parent=5 // pred_check_branch
        %175 = sbr.rel (%p172) target = $region12
      $region11: #{_lambda_.9} parent=5 // pred_region
        %s176 = ssub.s32 %s14, 1
        // Predicated region
        $region13: #{_lambda_.9} parent=11 // pred_check
          %p177 = pneg %p52
        $region14: #{_lambda_.9} parent=11 // pred_check_branch
          %179 = sbr.rel (%p177) target = $region16
        $region15: #{_lambda_.9} parent=11 // pred_region
          %s180 = smul.u32 2, %s24
          %p181 = scmp.lt.s32.totalorder %s180, 1
          %s182 = scalar_select %p181, %s180, 1
          %s183 = smul.addr %s182, 4
          %s184 = scalar_lea.vmem %s0, %s183
          %s185 = smul.u32 2, %s24
        $region16: #{_lambda_.9} parent=11 // pred_fallthru
          _
      $region12: #{_lambda_.9} parent=5 // pred_fallthru
        _
      %p186 = scmp.lt.s32.totalorder %s14, 16
      // Predicated region
      $region17: #{_lambda_.9} parent=5 // pred_check
        %p187 = pneg %p186
      $region18: #{_lambda_.9} parent=5 // pred_check_branch
        %189 = sbr.rel (%p187) target = $region20
      $region19: #{_lambda_.9} parent=5 // pred_region
        // Predicated region
        $region21: #{_lambda_.9} parent=19 // pred_check
          %p190 = pneg %p72
        $region22: #{_lambda_.9} parent=19 // pred_check_branch
          %192 = sbr.rel (%p190) target = $region24
        $region23: #{_lambda_.9} parent=19 // pred_region
          %s193 = sand.u32 %s62, 1
          %s194 = scalar_lea.sflag [#allocation3], %s193
          %s195 = sand.u32 %s62, 1
          %s196 = smul.addr %s195, 64
          %s197 = scalar_lea.vmem [#allocation2], %s196
          %s199 = ssub.s32 1024, 1024
          %200 = vsyncadd %s194, %s199
          %s201 = smul.addr %s21, 16
          %s202 = smul.addr %s201, 64
          %s203 = scalar_lea.hbm %s1, %s202
          %s204 = sshll.u32 %s197, 4
          %s205 = int_to_ptr.vmem [resolvable:$true] %s204
          %210 = dma.hbm_to_vmem [thread:$0]  %s203, 1024, %s205, %s194, 64, 64, 4
        $region24: #{_lambda_.9} parent=19 // pred_fallthru
          _
      $region20: #{_lambda_.9} parent=5 // pred_fallthru
        _
      %p211 = scmp.le.s32.totalorder 1, %s14
      %p212 = scmp.lt.s32.totalorder %s14, 17
      %p213 = pnand %p211, %p212
      %p214 = pneg %p213
      // Predicated region
      $region25: #{_lambda_.9} parent=5 // pred_check
        _
      $region26: #{_lambda_.9} parent=5 // pred_check_branch
        %216 = sbr.rel (%p213) target = $region28
      $region27: #{_lambda_.9} parent=5 // pred_region
        %s217 = ssub.s32 %s14, 1
        %s218 = sand.u32 %s65, 1
        %s219 = scalar_lea.sflag [#allocation3], %s218
        %s220 = sand.u32 %s65, 1
        %s221 = smul.addr %s220, 64
        %s222 = scalar_lea.vmem [#allocation2], %s221
        // Predicated region
        $region29: #{_lambda_.9} parent=27 // pred_check
          %p223 = pneg %p78
        $region30: #{_lambda_.9} parent=27 // pred_check_branch
          %225 = sbr.rel (%p223) target = $region32
        $region31: #{_lambda_.9} parent=27 // pred_region
          %226 = dma.done %s219, 1024
        $region32: #{_lambda_.9} parent=27 // pred_fallthru
          _
        %s227 = smul.u32 2, %s24
        %p228 = scmp.lt.s32.totalorder %s227, 1
        %s229 = scalar_select %p228, %s227, 1
        %s230 = smul.addr %s229, 4
        %s231 = scalar_lea.vmem %s0, %s230
        %p232 = pneg %p52
        %p233 = pneg %p49
        %s234 = sand.u32 %s65, 1
        %s235 = scalar_lea.sflag [#allocation3], %s234
        %s236 = sand.u32 %s65, 1
        %s237 = smul.addr %s236, 64
        %s238 = scalar_lea.vmem [#allocation2], %s237
        %p239 = pneg %p78
        %p240 = pneg %p75
        %p241 = pneg %p106
        %p242 = pneg %p103
        %s243 = smul.u32 2, %s24
        %p244 = scmp.lt.s32.totalorder %s23, 15
        %s245 = scalar_select %p244, %s23, 15
        %p246 = scmp.lt.s32.totalorder %s243, 1
        %s247 = scalar_select %p246, %s243, 1
        %s248 = smul.addr %s245, 2
        %s249 = sadd.s32 %s247, %s248
        %s250 = smul.addr %s249, 4
        %s251 = scalar_lea.vmem %s2, %s250
        %p252 = pneg %p134
        %p253 = pneg %p131
        %p254 = scmp.lt.s32.totalorder %s23, 15
        %s255 = scalar_select %p254, %s23, 15
        %p256 = scmp.lt.s32.totalorder %s24, 0
        %s257 = scalar_select %p256, %s24, 0
        %s258 = sadd.s32 %s257, %s255
        %s259 = smul.addr %s258, 8
        %s260 = scalar_lea.vmem %s3, %s259
        %p261 = pneg %p162
        %p262 = pneg %p159
        %p263 = scmp.lt.s32.totalorder %s23, 15
        %s264 = scalar_select %p263, %s23, 15
        %p265 = scmp.lt.s32.totalorder %s24, 0
        %s266 = scalar_select %p265, %s24, 0
        %s267 = sadd.s32 %s266, %s264
        %s268 = smul.addr %s267, 8
        %s269 = scalar_lea.vmem %s4, %s268
        %s270 = smul.u32 2, %s24
        %p271 = scmp.lt.s32.totalorder %s270, 1
        %s272 = scalar_select %p271, %s270, 1
        %s273 = smul.addr %s272, 4
        %s274 = scalar_lea.vmem %s0, %s273
        %s275 = smul.u32 2, %s24
        %s276 = smul.u32 2, %s24
        %p277 = scmp.lt.s32.totalorder %s23, 15
        %s278 = scalar_select %p277, %s23, 15
        %p279 = scmp.lt.s32.totalorder %s276, 1
        %s280 = scalar_select %p279, %s276, 1
        %s281 = smul.addr %s278, 2
        %s282 = sadd.s32 %s280, %s281
        %s283 = smul.addr %s282, 4
        %s284 = scalar_lea.vmem %s2, %s283
        %s285 = smul.u32 2, %s24
        %p286 = scmp.lt.s32.totalorder %s23, 15
        %s287 = scalar_select %p286, %s23, 15
        %p288 = scmp.lt.s32.totalorder %s24, 0
        %s289 = scalar_select %p288, %s24, 0
        %s290 = sadd.s32 %s289, %s287
        %s291 = smul.addr %s290, 8
        %s292 = scalar_lea.vmem %s3, %s291
        %p293 = scmp.lt.s32.totalorder %s23, 15
        %s294 = scalar_select %p293, %s23, 15
        %p295 = scmp.lt.s32.totalorder %s24, 0
        %s296 = scalar_select %p295, %s24, 0
        %s297 = sadd.s32 %s296, %s294
        %s298 = smul.addr %s297, 8
        %s299 = scalar_lea.vmem %s4, %s298
        %v301 = vld [vmem:[%s274] sm:$0xf]
        %v302 = vld [vmem:[%s274 + $0x4] sm:$0xf]
        %v303 = vld [vmem:[%s222] sm:$0xf]
        %v304 = vld [vmem:[%s222 + $0x4] sm:$0xf]
        %v305 = vld [vmem:[%s222 + $0x8] sm:$0xf]
        %v306 = vld [vmem:[%s222 + $0xc] sm:$0xf]
        %v307 = vld [vmem:[%s222 + $0x10] sm:$0xf]
        %v308 = vld [vmem:[%s222 + $0x14] sm:$0xf]
        %v309 = vld [vmem:[%s222 + $0x18] sm:$0xf]
        %v310 = vld [vmem:[%s222 + $0x1c] sm:$0xf]
        %v311 = vld [vmem:[%s222 + $0x20] sm:$0xf]
        %v312 = vld [vmem:[%s222 + $0x24] sm:$0xf]
        %v313 = vld [vmem:[%s222 + $0x28] sm:$0xf]
        %v314 = vld [vmem:[%s222 + $0x2c] sm:$0xf]
        %v315 = vld [vmem:[%s222 + $0x30] sm:$0xf]
        %v316 = vld [vmem:[%s222 + $0x34] sm:$0xf]
        %v317 = vld [vmem:[%s222 + $0x38] sm:$0xf]
        %v318 = vld [vmem:[%s222 + $0x3c] sm:$0xf]
        %v321 = vunpack.c.l.b16 %v301
        %v322 = vunpack.c.l.b16 %v302
        %v323 = vpack.c.b16 %v322, %v321
        %v341 = vunpack.c.l.b16 %v303
        %v342 = vunpack.c.l.b16 %v304
        %v343 = vunpack.c.l.b16 %v305
        %v344 = vunpack.c.l.b16 %v306
        %v345 = vunpack.c.l.b16 %v307
        %v346 = vunpack.c.l.b16 %v308
        %v347 = vunpack.c.l.b16 %v309
        %v348 = vunpack.c.l.b16 %v310
        %v349 = vunpack.c.l.b16 %v311
        %v350 = vunpack.c.l.b16 %v312
        %v351 = vunpack.c.l.b16 %v313
        %v352 = vunpack.c.l.b16 %v314
        %v353 = vunpack.c.l.b16 %v315
        %v354 = vunpack.c.l.b16 %v316
        %v355 = vunpack.c.l.b16 %v317
        %v356 = vunpack.c.l.b16 %v318
        %v357 = vpack.c.b16 %v342, %v341
        %v358 = vpack.c.b16 %v344, %v343
        %v359 = vpack.c.b16 %v346, %v345
        %v360 = vpack.c.b16 %v348, %v347
        %v361 = vpack.c.b16 %v350, %v349
        %v362 = vpack.c.b16 %v352, %v351
        %v363 = vpack.c.b16 %v354, %v353
        %v364 = vpack.c.b16 %v356, %v355
        %373 = vmatprep.subr.bf16.mxu0 0
        %374 = vmatpush1.bf16.msra.mxu0 %v364
        %375 = vmatprep.subr.bf16.mxu0 0
        %376 = vmatpush1.bf16.msra.mxu0 %v363
        %377 = vmatprep.subr.bf16.mxu0 0
        %378 = vmatpush1.bf16.msra.mxu0 %v362
        %379 = vmatprep.subr.bf16.mxu0 0
        %380 = vmatpush1.bf16.msra.mxu0 %v361
        %381 = vmatprep.subr.bf16.mxu0 0
        %382 = vmatpush1.bf16.msra.mxu0 %v360
        %383 = vmatprep.subr.bf16.mxu0 0
        %384 = vmatpush1.bf16.msra.mxu0 %v359
        %385 = vmatprep.subr.bf16.mxu0 0
        %386 = vmatpush1.bf16.msra.mxu0 %v358
        %387 = vmatprep.subr.bf16.mxu0 0
        %388 = vmatpush1.bf16.msra.mxu0 %v357
        %389 = vmatprep.subr.bf16.mxu0 0
        %390 = vmatpush2.bf16.msra.mxu0 0
        %391 = vmatprep.subr.bf16.mxu0 0
        %392 = vmatpush2.bf16.msra.mxu0 0
        %393 = vmatprep.subr.bf16.mxu0 0
        %394 = vmatpush2.bf16.msra.mxu0 0
        %395 = vmatprep.subr.bf16.mxu0 0
        %396 = vmatpush2.bf16.msra.mxu0 0
        %397 = vmatprep.subr.bf16.mxu0 0
        %398 = vmatpush2.bf16.msra.mxu0 0
        %399 = vmatprep.subr.bf16.mxu0 0
        %400 = vmatpush2.bf16.msra.mxu0 0
        %401 = vmatprep.subr.bf16.mxu0 0
        %402 = vmatpush2.bf16.msra.mxu0 0
        %403 = vmatprep.subr.bf16.mxu0 0
        %404 = vmatpush2.bf16.msra.mxu0 0
        %405 = vmatprep.mubr.bf16.mxu0 0
        %406 = vmatmul.mubr.bf16.gmra.mxu0 %v323
        %v407 = vpop.f32.mrf.mxu0
        %v408 = vadd.f32 0.0, %v407
        %v409 = vpop.f32.mrf.mxu0
        %v410 = vpop.f32.mrf.mxu0
        %v411 = vadd.f32 0.0, %v410
        %v412 = vpop.f32.mrf.mxu0
        %413 = vdwg.mxu0
        %v414 = vpack.c.bf16 %v411, %v408
        %v416 = vunpack.c.l.b16 %v414
        %v417 = vunpack.c.h.b16 %v414
        %v418 = vpack.c.b16 %v416, %v416
        %v419 = vpack.c.b16 %v417, %v417
        %422 = vst [vmem:[%s284] sm:$0xf] %v418
        %423 = vst [vmem:[%s284 + $0x4] sm:$0xf] %v419
        %v424 = vadd.f32 %v408, %v411
        %v425 = vrot.slane %v424, 4
        %v426 = vadd.f32 %v424, %v425
        %v427 = vrot.slane %v426, 2
        %v428 = vadd.f32 %v426, %v427
        %v429 = vrot.slane %v428, 1
        %v430 = vadd.f32 %v428, %v429
        %v431 = vmul.f32 %v408, %v408
        %v432 = vmul.f32 %v411, %v411
        %v433 = vadd.f32 %v431, %v432
        %v434 = vrot.slane %v433, 4
        %v435 = vadd.f32 %v433, %v434
        %v436 = vrot.slane %v435, 2
        %v437 = vadd.f32 %v435, %v436
        %v438 = vrot.slane %v437, 1
        %v439 = vadd.f32 %v437, %v438
        %440 = vst [vmem:[%s292] sm:$0xff] %v430
        %441 = vst [vmem:[%s299] sm:$0xff] %v439
        %s442 = smul.u32 2, %s24
        %p443 = scmp.lt.s32.totalorder %s23, 15
        %s444 = scalar_select %p443, %s23, 15
        %p445 = scmp.lt.s32.totalorder %s442, 1
        %s446 = scalar_select %p445, %s442, 1
        %s447 = smul.addr %s444, 2
        %s448 = sadd.s32 %s446, %s447
        %s449 = smul.addr %s448, 4
        %s450 = scalar_lea.vmem %s2, %s449
        %p451 = scmp.lt.s32.totalorder %s23, 15
        %s452 = scalar_select %p451, %s23, 15
        %p453 = scmp.lt.s32.totalorder %s24, 0
        %s454 = scalar_select %p453, %s24, 0
        %s455 = sadd.s32 %s454, %s452
        %s456 = smul.addr %s455, 8
        %s457 = scalar_lea.vmem %s3, %s456
        %p458 = scmp.lt.s32.totalorder %s23, 15
        %s459 = scalar_select %p458, %s23, 15
        %p460 = scmp.lt.s32.totalorder %s24, 0
        %s461 = scalar_select %p460, %s24, 0
        %s462 = sadd.s32 %s461, %s459
        %s463 = smul.addr %s462, 8
        %s464 = scalar_lea.vmem %s4, %s463
        // Predicated region
        $region33: #{_lambda_.9} parent=27 // pred_check
          %p465 = pneg %p103
        $region34: #{_lambda_.9} parent=27 // pred_check_branch
          %467 = sbr.rel (%p465) target = $region36
        $region35: #{_lambda_.9} parent=27 // pred_region
          %s468 = smul.u32 2, %s24
        $region36: #{_lambda_.9} parent=27 // pred_fallthru
          _
        // Predicated region
        $region37: #{_lambda_.9} parent=27 // pred_check
          %p469 = pneg %p131
        $region38: #{_lambda_.9} parent=27 // pred_check_branch
          %471 = sbr.rel (%p469) target = $region40
        $region39: #{_lambda_.9} parent=27 // pred_region
          _
        $region40: #{_lambda_.9} parent=27 // pred_fallthru
          _
        // Predicated region
        $region41: #{_lambda_.9} parent=27 // pred_check
          %p472 = pneg %p159
        $region42: #{_lambda_.9} parent=27 // pred_check_branch
          %474 = sbr.rel (%p472) target = $region44
        $region43: #{_lambda_.9} parent=27 // pred_region
          _
        $region44: #{_lambda_.9} parent=27 // pred_fallthru
          _
      $region28: #{_lambda_.9} parent=5 // pred_fallthru
        _
      %p475 = scmp.le.s32.totalorder 2, %s14
      // Predicated region
      $region45: #{_lambda_.9} parent=5 // pred_check
        %p476 = pneg %p475
      $region46: #{_lambda_.9} parent=5 // pred_check_branch
        %478 = sbr.rel (%p476) target = $region48
      $region47: #{_lambda_.9} parent=5 // pred_region
        %s479 = ssub.s32 %s14, 2
        // Predicated region
        $region49: #{_lambda_.9} parent=47 // pred_check
          %p480 = pneg %p109
        $region50: #{_lambda_.9} parent=47 // pred_check_branch
          %482 = sbr.rel (%p480) target = $region52
        $region51: #{_lambda_.9} parent=47 // pred_region
          %s483 = smul.u32 2, %s26
          %p484 = scmp.lt.s32.totalorder %s25, 15
          %s485 = scalar_select %p484, %s25, 15
          %p486 = scmp.lt.s32.totalorder %s483, 1
          %s487 = scalar_select %p486, %s483, 1
          %s488 = smul.addr %s485, 2
          %s489 = sadd.s32 %s487, %s488
          %s490 = smul.addr %s489, 4
          %s491 = scalar_lea.vmem %s2, %s490
        $region52: #{_lambda_.9} parent=47 // pred_fallthru
          _
        // Predicated region
        $region53: #{_lambda_.9} parent=47 // pred_check
          %p492 = pneg %p137
        $region54: #{_lambda_.9} parent=47 // pred_check_branch
          %494 = sbr.rel (%p492) target = $region56
        $region55: #{_lambda_.9} parent=47 // pred_region
          %p495 = scmp.lt.s32.totalorder %s25, 15
          %s496 = scalar_select %p495, %s25, 15
          %p497 = scmp.lt.s32.totalorder %s26, 0
          %s498 = scalar_select %p497, %s26, 0
          %s499 = sadd.s32 %s498, %s496
          %s500 = smul.addr %s499, 8
          %s501 = scalar_lea.vmem %s3, %s500
        $region56: #{_lambda_.9} parent=47 // pred_fallthru
          _
        // Predicated region
        $region57: #{_lambda_.9} parent=47 // pred_check
          %p502 = pneg %p165
        $region58: #{_lambda_.9} parent=47 // pred_check_branch
          %504 = sbr.rel (%p502) target = $region60
        $region59: #{_lambda_.9} parent=47 // pred_region
          %p505 = scmp.lt.s32.totalorder %s25, 15
          %s506 = scalar_select %p505, %s25, 15
          %p507 = scmp.lt.s32.totalorder %s26, 0
          %s508 = scalar_select %p507, %s26, 0
          %s509 = sadd.s32 %s508, %s506
          %s510 = smul.addr %s509, 8
          %s511 = scalar_lea.vmem %s4, %s510
        $region60: #{_lambda_.9} parent=47 // pred_fallthru
          _
      $region48: #{_lambda_.9} parent=5 // pred_fallthru
        _
    $region6: #{_lambda_.9} parent=1 // loop_footer
      %s18 = sadd.s32 1, %s14
    $region7: #{_lambda_.9} parent=1 // loop_footer_branch
      %13 = sbr.rel target = $region3
    $region8: #{_lambda_.9} parent=1 // loop_exit
      _
    %512 = vsyncpa [#allocation3], 1
    %s513 = scalar_lea.sflag [#allocation3], 1
    %514 = vsyncpa %s513, 1

// kernel: _lambda_.12
$region0: #{_lambda_.12}
  #allocation0 [shape = 'u32[]', space=smem, size = 0x4, offset = 0x4, fixed_abs, tag = 'smem constant byte address 0x4 - core index']
  #allocation1 [shape = 'u32[144,128]{1,0:T(1,128)}', space=vmem, size = 0x12000, scoped, tag = 'internal scratch']
  %s0 = inlined_call_operand.vmem [shape: bf16[4,32,128], index: 0, kind: input, shape index: {}]
  %s1 = inlined_call_operand.vmem [shape: f32[1,128], index: 1, kind: input, shape index: {}]
  %s2 = inlined_call_operand.vmem [shape: f32[1,128], index: 2, kind: input, shape index: {}]
  %s3 = inlined_call_operand.vmem [shape: bf16[4,32,128], index: 3, kind: output, shape index: {}]
  %s4 = sld [smem:[#allocation0]]
  $region45: #{_lambda_.12} parent=0
    _
  %s6 = ssub.s32 1, %s4
  %s7 = scalar_select 0, %s6, %s4
  loop: start=0, step=1, limit=6
  $region2: #{_lambda_.12} parent=0 // loop_pre_header
    _
  $region3: #{_lambda_.12} parent=0 // loop_header
    %s9 = sphi 0, %s13
    %p10 = scmp.ge.s32.totalorder %s9, 6
    %s16 = sphi 0, %s28
    %s17 = sphi 0, %s24
    %s18 = sphi 0, %s16
    %s19 = sphi 0, %s17
    %s20 = sphi 0, %s18
    %s21 = sphi 0, %s19
    %s33 = sphi 0, %s35
    %s36 = sphi 0, %s33
    %s37 = sphi 0, %s36
    %s53 = sphi 0, %s37
    %s57 = sphi 0, %s57
    %s59 = sphi 0, %s57
    %s60 = sphi 0, %s59
    %s74 = sphi 0, %s60
    %s78 = sphi 0, %s78
    %s80 = sphi 0, %s78
    %s81 = sphi 0, %s80
    %s95 = sphi 0, %s81
    %s103 = sphi 0, %s105
    %s106 = sphi 0, %s103
    %s107 = sphi 0, %s106
    %s123 = sphi 0, %s107
  $region4: #{_lambda_.12} parent=0 // loop_header_branch
    %12 = sbr.rel (%p10) target = $region8
  $region5: #{_lambda_.12} parent=0 // loop_body
    %s14 = ssub.s32 %s9, 1
    %s15 = ssub.s32 %s9, 2
    %s22 = sadd.s32 1, %s17
    %p23 = scmp.ge.s32.totalorder %s22, 1
    %s24 = scalar_select %p23, 0, %s22
    %s25 = sadd.s32 1, %s16
    %s26 = scalar_select %p23, %s25, %s16
    %p27 = scmp.ge.s32.totalorder %s26, 4
    %s28 = scalar_select %p27, 0, %s26
    %s29 = ssub.s32 %s16, %s28
    %s30 = ssub.s32 %s17, %s24
    %s31 = sor.u32 %s29, %s30
    %p32 = scmp.eq.s32.totalorder %s31, 0
    %s34 = sadd.s32 %s33, 1
    %s35 = scalar_select %p32, %s33, %s34
    %p38 = pneg %p32
    %p39 = scmp.eq.s32.totalorder %s9, 3
    %p40 = por %p38, %p39
    %p41 = scmp.ne.s32.totalorder %s33, %s36
    %p42 = scmp.eq.s32.totalorder %s9, 0
    %p43 = por %p41, %p42
    %p44 = scmp.ne.s32.totalorder %s33, %s36
    %p45 = scmp.eq.s32.totalorder %s14, 3
    %p46 = por %p44, %p45
    %p47 = scmp.ne.s32.totalorder %s36, %s37
    %p48 = scmp.eq.s32.totalorder %s14, 0
    %p49 = por %p47, %p48
    %p50 = scmp.ne.s32.totalorder %s36, %s37
    %p51 = scmp.eq.s32.totalorder %s15, 3
    %p52 = por %p50, %p51
    %p54 = scmp.ne.s32.totalorder %s37, %s53
    %p55 = scmp.eq.s32.totalorder %s15, 0
    %p56 = por %p54, %p55
    %s58 = sadd.s32 %s57, 1
    %p61 = scmp.eq.s32.totalorder %s9, 3
    %p62 = scmp.ne.s32.totalorder %s57, %s59
    %p63 = scmp.eq.s32.totalorder %s9, 0
    %p64 = por %p62, %p63
    %p65 = scmp.ne.s32.totalorder %s57, %s59
    %p66 = scmp.eq.s32.totalorder %s14, 3
    %p67 = por %p65, %p66
    %p68 = scmp.ne.s32.totalorder %s59, %s60
    %p69 = scmp.eq.s32.totalorder %s14, 0
    %p70 = por %p68, %p69
    %p71 = scmp.ne.s32.totalorder %s59, %s60
    %p72 = scmp.eq.s32.totalorder %s15, 3
    %p73 = por %p71, %p72
    %p75 = scmp.ne.s32.totalorder %s60, %s74
    %p76 = scmp.eq.s32.totalorder %s15, 0
    %p77 = por %p75, %p76
    %s79 = sadd.s32 %s78, 1
    %p82 = scmp.eq.s32.totalorder %s9, 3
    %p83 = scmp.ne.s32.totalorder %s78, %s80
    %p84 = scmp.eq.s32.totalorder %s9, 0
    %p85 = por %p83, %p84
    %p86 = scmp.ne.s32.totalorder %s78, %s80
    %p87 = scmp.eq.s32.totalorder %s14, 3
    %p88 = por %p86, %p87
    %p89 = scmp.ne.s32.totalorder %s80, %s81
    %p90 = scmp.eq.s32.totalorder %s14, 0
    %p91 = por %p89, %p90
    %p92 = scmp.ne.s32.totalorder %s80, %s81
    %p93 = scmp.eq.s32.totalorder %s15, 3
    %p94 = por %p92, %p93
    %p96 = scmp.ne.s32.totalorder %s81, %s95
    %p97 = scmp.eq.s32.totalorder %s15, 0
    %p98 = por %p96, %p97
    %s99 = ssub.s32 %s16, %s28
    %s100 = ssub.s32 %s17, %s24
    %s101 = sor.u32 %s99, %s100
    %p102 = scmp.eq.s32.totalorder %s101, 0
    %s104 = sadd.s32 %s103, 1
    %s105 = scalar_select %p102, %s103, %s104
    %p108 = pneg %p102
    %p109 = scmp.eq.s32.totalorder %s9, 3
    %p110 = por %p108, %p109
    %p111 = scmp.ne.s32.totalorder %s103, %s106
    %p112 = scmp.eq.s32.totalorder %s9, 0
    %p113 = por %p111, %p112
    %p114 = scmp.ne.s32.totalorder %s103, %s106
    %p115 = scmp.eq.s32.totalorder %s14, 3
    %p116 = por %p114, %p115
    %p117 = scmp.ne.s32.totalorder %s106, %s107
    %p118 = scmp.eq.s32.totalorder %s14, 0
    %p119 = por %p117, %p118
    %p120 = scmp.ne.s32.totalorder %s106, %s107
    %p121 = scmp.eq.s32.totalorder %s15, 3
    %p122 = por %p120, %p121
    %p124 = scmp.ne.s32.totalorder %s107, %s123
    %p125 = scmp.eq.s32.totalorder %s15, 0
    %p126 = por %p124, %p125
    %p127 = scmp.le.s32.totalorder 1, %s9
    %p128 = scmp.lt.s32.totalorder %s9, 5
    %p129 = pnand %p127, %p128
    %p130 = pneg %p129
    // Predicated region
    $region9: #{_lambda_.12} parent=5 // pred_check
      _
    $region10: #{_lambda_.12} parent=5 // pred_check_branch
      %132 = sbr.rel (%p129) target = $region12
    $region11: #{_lambda_.12} parent=5 // pred_region
      %s133 = ssub.s32 %s9, 1
      // Predicated region
      $region13: #{_lambda_.12} parent=11 // pred_check
        %p134 = pneg %p70
      $region14: #{_lambda_.12} parent=11 // pred_check_branch
        %136 = sbr.rel (%p134) target = $region16
      $region15: #{_lambda_.12} parent=11 // pred_region
        _
      $region16: #{_lambda_.12} parent=11 // pred_fallthru
        _
      // Predicated region
      $region17: #{_lambda_.12} parent=11 // pred_check
        %p137 = pneg %p91
      $region18: #{_lambda_.12} parent=11 // pred_check_branch
        %139 = sbr.rel (%p137) target = $region20
      $region19: #{_lambda_.12} parent=11 // pred_region
        _
      $region20: #{_lambda_.12} parent=11 // pred_fallthru
        _
    $region12: #{_lambda_.12} parent=5 // pred_fallthru
      _
    %p140 = scmp.lt.s32.totalorder %s9, 4
    // Predicated region
    $region21: #{_lambda_.12} parent=5 // pred_check
      %p141 = pneg %p140
    $region22: #{_lambda_.12} parent=5 // pred_check_branch
      %143 = sbr.rel (%p141) target = $region24
    $region23: #{_lambda_.12} parent=5 // pred_region
      // Predicated region
      $region25: #{_lambda_.12} parent=23 // pred_check
        %p144 = pneg %p43
      $region26: #{_lambda_.12} parent=23 // pred_check_branch
        %146 = sbr.rel (%p144) target = $region28
      $region27: #{_lambda_.12} parent=23 // pred_region
        %s147 = smul.u32 4, %s17
        %p148 = scmp.lt.s32.totalorder %s16, 3
        %s149 = scalar_select %p148, %s16, 3
        %p150 = scmp.lt.s32.totalorder %s147, 3
        %s151 = scalar_select %p150, %s147, 3
        %s152 = smul.addr %s149, 4
        %s153 = sadd.s32 %s151, %s152
        %s154 = smul.addr %s153, 4
        %s155 = scalar_lea.vmem %s0, %s154
        %s156 = smul.u32 4, %s17
      $region28: #{_lambda_.12} parent=23 // pred_fallthru
        _
    $region24: #{_lambda_.12} parent=5 // pred_fallthru
      _
    %p157 = scmp.le.s32.totalorder 1, %s9
    %p158 = scmp.lt.s32.totalorder %s9, 5
    %p159 = pnand %p157, %p158
    %p160 = pneg %p159
    // Predicated region
    $region29: #{_lambda_.12} parent=5 // pred_check
      _
    $region30: #{_lambda_.12} parent=5 // pred_check_branch
      %162 = sbr.rel (%p159) target = $region32
    $region31: #{_lambda_.12} parent=5 // pred_region
      %s163 = ssub.s32 %s9, 1
      %s164 = smul.u32 4, %s19
      %p165 = scmp.lt.s32.totalorder %s18, 3
      %s166 = scalar_select %p165, %s18, 3
      %p167 = scmp.lt.s32.totalorder %s164, 3
      %s168 = scalar_select %p167, %s164, 3
      %s169 = smul.addr %s166, 4
      %s170 = sadd.s32 %s168, %s169
      %s171 = smul.addr %s170, 4
      %s172 = scalar_lea.vmem %s0, %s171
      %p173 = pneg %p49
      %p174 = pneg %p46
      %p175 = pneg %p70
      %p176 = pneg %p67
      %p177 = pneg %p91
      %p178 = pneg %p88
      %p179 = pneg %p119
      %p180 = pneg %p116
      %s181 = smul.u32 4, %s19
      %p182 = scmp.lt.s32.totalorder %s18, 3
      %s183 = scalar_select %p182, %s18, 3
      %p184 = scmp.lt.s32.totalorder %s181, 3
      %s185 = scalar_select %p184, %s181, 3
      %s186 = smul.addr %s183, 4
      %s187 = sadd.s32 %s185, %s186
      %s188 = smul.addr %s187, 4
      %s189 = scalar_lea.vmem %s3, %s188
      %s190 = smul.u32 4, %s19
      %p191 = scmp.lt.s32.totalorder %s18, 3
      %s192 = scalar_select %p191, %s18, 3
      %p193 = scmp.lt.s32.totalorder %s190, 3
      %s194 = scalar_select %p193, %s190, 3
      %s195 = smul.addr %s192, 4
      %s196 = sadd.s32 %s194, %s195
      %s197 = smul.addr %s196, 4
      %s198 = scalar_lea.vmem %s0, %s197
      %s199 = smul.u32 4, %s19
      %s200 = smul.u32 4, %s19
      %p201 = scmp.lt.s32.totalorder %s18, 3
      %s202 = scalar_select %p201, %s18, 3
      %p203 = scmp.lt.s32.totalorder %s200, 3
      %s204 = scalar_select %p203, %s200, 3
      %s205 = smul.addr %s202, 4
      %s206 = sadd.s32 %s204, %s205
      %s207 = smul.addr %s206, 4
      %s208 = scalar_lea.vmem %s3, %s207
      %s209 = smul.u32 4, %s19
      %v210 = vld [vmem:[%s198] sm:$0xf]
      %v211 = vld [vmem:[%s198 + $0x4] sm:$0xf]
      %v212 = vld [vmem:[%s198 + $0x8] sm:$0xf]
      %v213 = vld [vmem:[%s198 + $0xc] sm:$0xf]
      %v214 = vunpack.c.l.bf16 %v210
      %v215 = vunpack.c.l.bf16 %v211
      %v216 = vunpack.c.l.bf16 %v212
      %v217 = vunpack.c.l.bf16 %v213
      %v218 = vld [vmem:[%s1] sm:$0x1]
      %v220 = vlaneseq
      %v221 = vshrl.u32 %v220, 7
      %v222 = vsub.s32 0, %v221
      %v223 = vrot.slane %v218, %v222
      %v225 = vmul.f32 %v214, %v223
      %v226 = vmul.f32 %v215, %v223
      %v227 = vmul.f32 %v216, %v223
      %v228 = vmul.f32 %v217, %v223
      %v229 = vld [vmem:[%s2] sm:$0x1]
      %v231 = vlaneseq
      %v232 = vshrl.u32 %v231, 7
      %v233 = vsub.s32 0, %v232
      %v234 = vrot.slane %v229, %v233
      %v236 = vadd.f32 %v225, %v234
      %v237 = vadd.f32 %v226, %v234
      %v238 = vadd.f32 %v227, %v234
      %v239 = vadd.f32 %v228, %v234
      %v240 = vmax.f32 %v236, 0.0
      %v241 = vmax.f32 %v237, 0.0
      %v242 = vmax.f32 %v238, 0.0
      %v243 = vmax.f32 %v239, 0.0
      %v244 = vpack.c.bf16 %v241, %v240
      %v245 = vpack.c.bf16 %v243, %v242
      %v248 = vunpack.c.l.b16 %v244
      %v249 = vunpack.c.h.b16 %v244
      %v250 = vunpack.c.l.b16 %v245
      %v251 = vunpack.c.h.b16 %v245
      %v252 = vpack.c.b16 %v248, %v248
      %v253 = vpack.c.b16 %v249, %v249
      %v254 = vpack.c.b16 %v250, %v250
      %v255 = vpack.c.b16 %v251, %v251
      %260 = vst [vmem:[%s208] sm:$0xf] %v252
      %261 = vst [vmem:[%s208 + $0x4] sm:$0xf] %v253
      %262 = vst [vmem:[%s208 + $0x8] sm:$0xf] %v254
      %263 = vst [vmem:[%s208 + $0xc] sm:$0xf] %v255
      %s264 = smul.u32 4, %s19
      %p265 = scmp.lt.s32.totalorder %s18, 3
      %s266 = scalar_select %p265, %s18, 3
      %p267 = scmp.lt.s32.totalorder %s264, 3
      %s268 = scalar_select %p267, %s264, 3
      %s269 = smul.addr %s266, 4
      %s270 = sadd.s32 %s268, %s269
      %s271 = smul.addr %s270, 4
      %s272 = scalar_lea.vmem %s3, %s271
      // Predicated region
      $region33: #{_lambda_.12} parent=31 // pred_check
        %p273 = pneg %p116
      $region34: #{_lambda_.12} parent=31 // pred_check_branch
        %275 = sbr.rel (%p273) target = $region36
      $region35: #{_lambda_.12} parent=31 // pred_region
        %s276 = smul.u32 4, %s19
      $region36: #{_lambda_.12} parent=31 // pred_fallthru
        _
    $region32: #{_lambda_.12} parent=5 // pred_fallthru
      _
    %p277 = scmp.le.s32.totalorder 2, %s9
    // Predicated region
    $region37: #{_lambda_.12} parent=5 // pred_check
      %p278 = pneg %p277
    $region38: #{_lambda_.12} parent=5 // pred_check_branch
      %280 = sbr.rel (%p278) target = $region40
    $region39: #{_lambda_.12} parent=5 // pred_region
      %s281 = ssub.s32 %s9, 2
      // Predicated region
      $region41: #{_lambda_.12} parent=39 // pred_check
        %p282 = pneg %p122
      $region42: #{_lambda_.12} parent=39 // pred_check_branch
        %284 = sbr.rel (%p282) target = $region44
      $region43: #{_lambda_.12} parent=39 // pred_region
        %s285 = smul.u32 4, %s21
        %p286 = scmp.lt.s32.totalorder %s20, 3
        %s287 = scalar_select %p286, %s20, 3
        %p288 = scmp.lt.s32.totalorder %s285, 3
        %s289 = scalar_select %p288, %s285, 3
        %s290 = smul.addr %s287, 4
        %s291 = sadd.s32 %s289, %s290
        %s292 = smul.addr %s291, 4
        %s293 = scalar_lea.vmem %s3, %s292
      $region44: #{_lambda_.12} parent=39 // pred_fallthru
        _
    $region40: #{_lambda_.12} parent=5 // pred_fallthru
      _
  $region6: #{_lambda_.12} parent=0 // loop_footer
    %s13 = sadd.s32 1, %s9
  $region7: #{_lambda_.12} parent=0 // loop_footer_branch
    %8 = sbr.rel target = $region3
  $region8: #{_lambda_.12} parent=0 // loop_exit
    _

// kernel: _lambda_.11
$region0: #{_lambda_.11}
  #allocation0 [shape = 'u32[]', space=smem, size = 0x4, offset = 0x4, fixed_abs, tag = 'smem constant byte address 0x4 - core index']
  #allocation1 [shape = 'u32[144,128]{1,0:T(1,128)}', space=vmem, size = 0x12000, scoped, tag = 'internal scratch']
  %s0 = inlined_call_operand.vmem [shape: bf16[4,32,256], index: 0, kind: input, shape index: {}]
  %s1 = inlined_call_operand.hbm [shape: bf16[4,256,128], index: 1, kind: input, shape index: {}]
  %s2 = inlined_call_operand.vmem [shape: bf16[4,32,128], index: 2, kind: output, shape index: {0}]
  %s3 = inlined_call_operand.vmem [shape: f32[4,8,128], index: 3, kind: output, shape index: {1}]
  %s4 = inlined_call_operand.vmem [shape: f32[4,8,128], index: 4, kind: output, shape index: {2}]
  %5 = xla_tuple %s2, %s3, %s4
  %s6 = sld [smem:[#allocation0]]
  $region61: #{_lambda_.11} parent=0
    _
  %s8 = ssub.s32 1, %s6
  %s9 = scalar_select 0, %s8, %s6
  $region1: #{_lambda_.11} parent=0
    #allocation2 [shape = 'u8[131072]{0}', space=vmem, size = 0x20000, scoped, tag = 'input window, operand 1']
    #allocation3 [shape = 's32[2]{0}', space=sflag, size = 0x8, scoped, tag = 'scoped memory for _lambda_.11']
    %10 = vsyncpa [#allocation3], 0
    %s11 = scalar_lea.sflag [#allocation3], 1
    %12 = vsyncpa %s11, 0
    loop: start=0, step=1, limit=6
    $region2: #{_lambda_.11} parent=1 // loop_pre_header
      _
    $region3: #{_lambda_.11} parent=1 // loop_header
      %s14 = sphi 0, %s18
      %p15 = scmp.ge.s32.totalorder %s14, 6
      %s21 = sphi 0, %s33
      %s22 = sphi 0, %s29
      %s23 = sphi 0, %s21
      %s24 = sphi 0, %s22
      %s25 = sphi 0, %s23
      %s26 = sphi 0, %s24
      %s38 = sphi 0, %s40
      %s41 = sphi 0, %s38
      %s42 = sphi 0, %s41
      %s58 = sphi 0, %s42
      %s64 = sphi 0, %s66
      %s67 = sphi 0, %s64
      %s68 = sphi 0, %s67
      %s84 = sphi 0, %s68
      %s92 = sphi 0, %s94
      %s95 = sphi 0, %s92
      %s96 = sphi 0, %s95
      %s112 = sphi 0, %s96
      %s120 = sphi 0, %s122
      %s123 = sphi 0, %s120
      %s124 = sphi 0, %s123
      %s140 = sphi 0, %s124
      %s148 = sphi 0, %s150
      %s151 = sphi 0, %s148
      %s152 = sphi 0, %s151
      %s168 = sphi 0, %s152
    $region4: #{_lambda_.11} parent=1 // loop_header_branch
      %17 = sbr.rel (%p15) target = $region8
    $region5: #{_lambda_.11} parent=1 // loop_body
      %s19 = ssub.s32 %s14, 1
      %s20 = ssub.s32 %s14, 2
      %s27 = sadd.s32 1, %s22
      %p28 = scmp.ge.s32.totalorder %s27, 1
      %s29 = scalar_select %p28, 0, %s27
      %s30 = sadd.s32 1, %s21
      %s31 = scalar_select %p28, %s30, %s21
      %p32 = scmp.ge.s32.totalorder %s31, 4
      %s33 = scalar_select %p32, 0, %s31
      %s34 = ssub.s32 %s21, %s33
      %s35 = ssub.s32 %s22, %s29
      %s36 = sor.u32 %s34, %s35
      %p37 = scmp.eq.s32.totalorder %s36, 0
      %s39 = sadd.s32 %s38, 1
      %s40 = scalar_select %p37, %s38, %s39
      %p43 = pneg %p37
      %p44 = scmp.eq.s32.totalorder %s14, 3
      %p45 = por %p43, %p44
      %p46 = scmp.ne.s32.totalorder %s38, %s41
      %p47 = scmp.eq.s32.totalorder %s14, 0
      %p48 = por %p46, %p47
      %p49 = scmp.ne.s32.totalorder %s38, %s41
      %p50 = scmp.eq.s32.totalorder %s19, 3
      %p51 = por %p49, %p50
      %p52 = scmp.ne.s32.totalorder %s41, %s42
      %p53 = scmp.eq.s32.totalorder %s19, 0
      %p54 = por %p52, %p53
      %p55 = scmp.ne.s32.totalorder %s41, %s42
      %p56 = scmp.eq.s32.totalorder %s20, 3
      %p57 = por %p55, %p56
      %p59 = scmp.ne.s32.totalorder %s42, %s58
      %p60 = scmp.eq.s32.totalorder %s20, 0
      %p61 = por %p59, %p60
      %s62 = ssub.s32 %s21, %s33
      %p63 = scmp.eq.s32.totalorder %s62, 0
      %s65 = sadd.s32 %s64, 1
      %s66 = scalar_select %p63, %s64, %s65
      %p69 = pneg %p63
      %p70 = scmp.eq.s32.totalorder %s14, 3
      %p71 = por %p69, %p70
      %p72 = scmp.ne.s32.totalorder %s64, %s67
      %p73 = scmp.eq.s32.totalorder %s14, 0
      %p74 = por %p72, %p73
      %p75 = scmp.ne.s32.totalorder %s64, %s67
      %p76 = scmp.eq.s32.totalorder %s19, 3
      %p77 = por %p75, %p76
      %p78 = scmp.ne.s32.totalorder %s67, %s68
      %p79 = scmp.eq.s32.totalorder %s19, 0
      %p80 = por %p78, %p79
      %p81 = scmp.ne.s32.totalorder %s67, %s68
      %p82 = scmp.eq.s32.totalorder %s20, 3
      %p83 = por %p81, %p82
      %p85 = scmp.ne.s32.totalorder %s68, %s84
      %p86 = scmp.eq.s32.totalorder %s20, 0
      %p87 = por %p85, %p86
      %s88 = ssub.s32 %s21, %s33
      %s89 = ssub.s32 %s22, %s29
      %s90 = sor.u32 %s88, %s89
      %p91 = scmp.eq.s32.totalorder %s90, 0
      %s93 = sadd.s32 %s92, 1
      %s94 = scalar_select %p91, %s92, %s93
      %p97 = pneg %p91
      %p98 = scmp.eq.s32.totalorder %s14, 3
      %p99 = por %p97, %p98
      %p100 = scmp.ne.s32.totalorder %s92, %s95
      %p101 = scmp.eq.s32.totalorder %s14, 0
      %p102 = por %p100, %p101
      %p103 = scmp.ne.s32.totalorder %s92, %s95
      %p104 = scmp.eq.s32.totalorder %s19, 3
      %p105 = por %p103, %p104
      %p106 = scmp.ne.s32.totalorder %s95, %s96
      %p107 = scmp.eq.s32.totalorder %s19, 0
      %p108 = por %p106, %p107
      %p109 = scmp.ne.s32.totalorder %s95, %s96
      %p110 = scmp.eq.s32.totalorder %s20, 3
      %p111 = por %p109, %p110
      %p113 = scmp.ne.s32.totalorder %s96, %s112
      %p114 = scmp.eq.s32.totalorder %s20, 0
      %p115 = por %p113, %p114
      %s116 = ssub.s32 %s21, %s33
      %s117 = ssub.s32 %s22, %s29
      %s118 = sor.u32 %s116, %s117
      %p119 = scmp.eq.s32.totalorder %s118, 0
      %s121 = sadd.s32 %s120, 1
      %s122 = scalar_select %p119, %s120, %s121
      %p125 = pneg %p119
      %p126 = scmp.eq.s32.totalorder %s14, 3
      %p127 = por %p125, %p126
      %p128 = scmp.ne.s32.totalorder %s120, %s123
      %p129 = scmp.eq.s32.totalorder %s14, 0
      %p130 = por %p128, %p129
      %p131 = scmp.ne.s32.totalorder %s120, %s123
      %p132 = scmp.eq.s32.totalorder %s19, 3
      %p133 = por %p131, %p132
      %p134 = scmp.ne.s32.totalorder %s123, %s124
      %p135 = scmp.eq.s32.totalorder %s19, 0
      %p136 = por %p134, %p135
      %p137 = scmp.ne.s32.totalorder %s123, %s124
      %p138 = scmp.eq.s32.totalorder %s20, 3
      %p139 = por %p137, %p138
      %p141 = scmp.ne.s32.totalorder %s124, %s140
      %p142 = scmp.eq.s32.totalorder %s20, 0
      %p143 = por %p141, %p142
      %s144 = ssub.s32 %s21, %s33
      %s145 = ssub.s32 %s22, %s29
      %s146 = sor.u32 %s144, %s145
      %p147 = scmp.eq.s32.totalorder %s146, 0
      %s149 = sadd.s32 %s148, 1
      %s150 = scalar_select %p147, %s148, %s149
      %p153 = pneg %p147
      %p154 = scmp.eq.s32.totalorder %s14, 3
      %p155 = por %p153, %p154
      %p156 = scmp.ne.s32.totalorder %s148, %s151
      %p157 = scmp.eq.s32.totalorder %s14, 0
      %p158 = por %p156, %p157
      %p159 = scmp.ne.s32.totalorder %s148, %s151
      %p160 = scmp.eq.s32.totalorder %s19, 3
      %p161 = por %p159, %p160
      %p162 = scmp.ne.s32.totalorder %s151, %s152
      %p163 = scmp.eq.s32.totalorder %s19, 0
      %p164 = por %p162, %p163
      %p165 = scmp.ne.s32.totalorder %s151, %s152
      %p166 = scmp.eq.s32.totalorder %s20, 3
      %p167 = por %p165, %p166
      %p169 = scmp.ne.s32.totalorder %s152, %s168
      %p170 = scmp.eq.s32.totalorder %s20, 0
      %p171 = por %p169, %p170
      %p172 = scmp.le.s32.totalorder 1, %s14
      %p173 = scmp.lt.s32.totalorder %s14, 5
      %p174 = pnand %p172, %p173
      %p175 = pneg %p174
      // Predicated region
      $region9: #{_lambda_.11} parent=5 // pred_check
        _
      $region10: #{_lambda_.11} parent=5 // pred_check_branch
        %177 = sbr.rel (%p174) target = $region12
      $region11: #{_lambda_.11} parent=5 // pred_region
        %s178 = ssub.s32 %s14, 1
      $region12: #{_lambda_.11} parent=5 // pred_fallthru
        _
      %p179 = scmp.lt.s32.totalorder %s14, 4
      // Predicated region
      $region13: #{_lambda_.11} parent=5 // pred_check
        %p180 = pneg %p179
      $region14: #{_lambda_.11} parent=5 // pred_check_branch
        %182 = sbr.rel (%p180) target = $region16
      $region15: #{_lambda_.11} parent=5 // pred_region
        // Predicated region
        $region17: #{_lambda_.11} parent=15 // pred_check
          %p183 = pneg %p48
        $region18: #{_lambda_.11} parent=15 // pred_check_branch
          %185 = sbr.rel (%p183) target = $region20
        $region19: #{_lambda_.11} parent=15 // pred_region
          %s186 = smul.u32 4, %s22
          %p187 = scmp.lt.s32.totalorder %s21, 3
          %s188 = scalar_select %p187, %s21, 3
          %p189 = scmp.lt.s32.totalorder %s186, 3
          %s190 = scalar_select %p189, %s186, 3
          %s191 = smul.addr %s190, 2
          %s192 = smul.addr %s188, 8
          %s193 = sadd.s32 %s191, %s192
          %s194 = smul.addr %s193, 4
          %s195 = scalar_lea.vmem %s0, %s194
          %s196 = smul.u32 4, %s22
        $region20: #{_lambda_.11} parent=15 // pred_fallthru
          _
        // Predicated region
        $region21: #{_lambda_.11} parent=15 // pred_check
          %p197 = pneg %p74
        $region22: #{_lambda_.11} parent=15 // pred_check_branch
          %199 = sbr.rel (%p197) target = $region24
        $region23: #{_lambda_.11} parent=15 // pred_region
          %s200 = sand.u32 %s64, 1
          %s201 = scalar_lea.sflag [#allocation3], %s200
          %s202 = sand.u32 %s64, 1
          %s203 = smul.addr %s202, 128
          %s204 = scalar_lea.vmem [#allocation2], %s203
          %s206 = ssub.s32 2048, 2048
          %207 = vsyncadd %s201, %s206
          %s208 = smul.addr %s21, 32
          %s209 = smul.addr %s208, 64
          %s210 = scalar_lea.hbm %s1, %s209
          %s211 = sshll.u32 %s204, 4
          %s212 = int_to_ptr.vmem [resolvable:$true] %s211
          %217 = dma.hbm_to_vmem [thread:$0]  %s210, 2048, %s212, %s201, 64, 64, 4
        $region24: #{_lambda_.11} parent=15 // pred_fallthru
          _
      $region16: #{_lambda_.11} parent=5 // pred_fallthru
        _
      %p218 = scmp.le.s32.totalorder 1, %s14
      %p219 = scmp.lt.s32.totalorder %s14, 5
      %p220 = pnand %p218, %p219
      %p221 = pneg %p220
      // Predicated region
      $region25: #{_lambda_.11} parent=5 // pred_check
        _
      $region26: #{_lambda_.11} parent=5 // pred_check_branch
        %223 = sbr.rel (%p220) target = $region28
      $region27: #{_lambda_.11} parent=5 // pred_region
        %s224 = ssub.s32 %s14, 1
        %s225 = sand.u32 %s67, 1
        %s226 = scalar_lea.sflag [#allocation3], %s225
        %s227 = sand.u32 %s67, 1
        %s228 = smul.addr %s227, 128
        %s229 = scalar_lea.vmem [#allocation2], %s228
        // Predicated region
        $region29: #{_lambda_.11} parent=27 // pred_check
          %p230 = pneg %p80
        $region30: #{_lambda_.11} parent=27 // pred_check_branch
          %232 = sbr.rel (%p230) target = $region32
        $region31: #{_lambda_.11} parent=27 // pred_region
          %233 = dma.done %s226, 2048
        $region32: #{_lambda_.11} parent=27 // pred_fallthru
          _
        %s234 = smul.u32 4, %s24
        %p235 = scmp.lt.s32.totalorder %s23, 3
        %s236 = scalar_select %p235, %s23, 3
        %p237 = scmp.lt.s32.totalorder %s234, 3
        %s238 = scalar_select %p237, %s234, 3
        %s239 = smul.addr %s238, 2
        %s240 = smul.addr %s236, 8
        %s241 = sadd.s32 %s239, %s240
        %s242 = smul.addr %s241, 4
        %s243 = scalar_lea.vmem %s0, %s242
        %p244 = pneg %p54
        %p245 = pneg %p51
        %s246 = sand.u32 %s67, 1
        %s247 = scalar_lea.sflag [#allocation3], %s246
        %s248 = sand.u32 %s67, 1
        %s249 = smul.addr %s248, 128
        %s250 = scalar_lea.vmem [#allocation2], %s249
        %p251 = pneg %p80
        %p252 = pneg %p77
        %p253 = pneg %p108
        %p254 = pneg %p105
        %s255 = smul.u32 4, %s24
        %p256 = scmp.lt.s32.totalorder %s23, 3
        %s257 = scalar_select %p256, %s23, 3
        %p258 = scmp.lt.s32.totalorder %s255, 3
        %s259 = scalar_select %p258, %s255, 3
        %s260 = smul.addr %s257, 4
        %s261 = sadd.s32 %s259, %s260
        %s262 = smul.addr %s261, 4
        %s263 = scalar_lea.vmem %s2, %s262
        %p264 = pneg %p136
        %p265 = pneg %p133
        %p266 = scmp.lt.s32.totalorder %s23, 3
        %s267 = scalar_select %p266, %s23, 3
        %p268 = scmp.lt.s32.totalorder %s24, 0
        %s269 = scalar_select %p268, %s24, 0
        %s270 = sadd.s32 %s269, %s267
        %s271 = smul.addr %s270, 8
        %s272 = scalar_lea.vmem %s3, %s271
        %p273 = pneg %p164
        %p274 = pneg %p161
        %p275 = scmp.lt.s32.totalorder %s23, 3
        %s276 = scalar_select %p275, %s23, 3
        %p277 = scmp.lt.s32.totalorder %s24, 0
        %s278 = scalar_select %p277, %s24, 0
        %s279 = sadd.s32 %s278, %s276
        %s280 = smul.addr %s279, 8
        %s281 = scalar_lea.vmem %s4, %s280
        %s282 = smul.u32 4, %s24
        %p283 = scmp.lt.s32.totalorder %s23, 3
        %s284 = scalar_select %p283, %s23, 3
        %p285 = scmp.lt.s32.totalorder %s282, 3
        %s286 = scalar_select %p285, %s282, 3
        %s287 = smul.addr %s286, 2
        %s288 = smul.addr %s284, 8
        %s289 = sadd.s32 %s287, %s288
        %s290 = smul.addr %s289, 4
        %s291 = scalar_lea.vmem %s0, %s290
        %s292 = smul.u32 4, %s24
        %s293 = smul.u32 4, %s24
        %p294 = scmp.lt.s32.totalorder %s23, 3
        %s295 = scalar_select %p294, %s23, 3
        %p296 = scmp.lt.s32.totalorder %s293, 3
        %s297 = scalar_select %p296, %s293, 3
        %s298 = smul.addr %s295, 4
        %s299 = sadd.s32 %s297, %s298
        %s300 = smul.addr %s299, 4
        %s301 = scalar_lea.vmem %s2, %s300
        %s302 = smul.u32 4, %s24
        %p303 = scmp.lt.s32.totalorder %s23, 3
        %s304 = scalar_select %p303, %s23, 3
        %p305 = scmp.lt.s32.totalorder %s24, 0
        %s306 = scalar_select %p305, %s24, 0
        %s307 = sadd.s32 %s306, %s304
        %s308 = smul.addr %s307, 8
        %s309 = scalar_lea.vmem %s3, %s308
        %p310 = scmp.lt.s32.totalorder %s23, 3
        %s311 = scalar_select %p310, %s23, 3
        %p312 = scmp.lt.s32.totalorder %s24, 0
        %s313 = scalar_select %p312, %s24, 0
        %s314 = sadd.s32 %s313, %s311
        %s315 = smul.addr %s314, 8
        %s316 = scalar_lea.vmem %s4, %s315
        %v318 = vld [vmem:[%s291] sm:$0xff]
        %v319 = vld [vmem:[%s291 + $0x8] sm:$0xff]
        %v320 = vld [vmem:[%s291 + $0x10] sm:$0xff]
        %v321 = vld [vmem:[%s291 + $0x18] sm:$0xff]
        %v322 = vld [vmem:[%s229] sm:$0xf]
        %v323 = vld [vmem:[%s229 + $0x4] sm:$0xf]
        %v324 = vld [vmem:[%s229 + $0x8] sm:$0xf]
        %v325 = vld [vmem:[%s229 + $0xc] sm:$0xf]
        %v326 = vld [vmem:[%s229 + $0x10] sm:$0xf]
        %v327 = vld [vmem:[%s229 + $0x14] sm:$0xf]
        %v328 = vld [vmem:[%s229 + $0x18] sm:$0xf]
        %v329 = vld [vmem:[%s229 + $0x1c] sm:$0xf]
        %v330 = vld [vmem:[%s229 + $0x20] sm:$0xf]
        %v331 = vld [vmem:[%s229 + $0x24] sm:$0xf]
        %v332 = vld [vmem:[%s229 + $0x28] sm:$0xf]
        %v333 = vld [vmem:[%s229 + $0x2c] sm:$0xf]
        %v334 = vld [vmem:[%s229 + $0x30] sm:$0xf]
        %v335 = vld [vmem:[%s229 + $0x34] sm:$0xf]
        %v336 = vld [vmem:[%s229 + $0x38] sm:$0xf]
        %v337 = vld [vmem:[%s229 + $0x3c] sm:$0xf]
        %v338 = vld [vmem:[%s229 + $0x40] sm:$0xf]
        %v339 = vld [vmem:[%s229 + $0x44] sm:$0xf]
        %v340 = vld [vmem:[%s229 + $0x48] sm:$0xf]
        %v341 = vld [vmem:[%s229 + $0x4c] sm:$0xf]
        %v342 = vld [vmem:[%s229 + $0x50] sm:$0xf]
        %v343 = vld [vmem:[%s229 + $0x54] sm:$0xf]
        %v344 = vld [vmem:[%s229 + $0x58] sm:$0xf]
        %v345 = vld [vmem:[%s229 + $0x5c] sm:$0xf]
        %v346 = vld [vmem:[%s229 + $0x60] sm:$0xf]
        %v347 = vld [vmem:[%s229 + $0x64] sm:$0xf]
        %v348 = vld [vmem:[%s229 + $0x68] sm:$0xf]
        %v349 = vld [vmem:[%s229 + $0x6c] sm:$0xf]
        %v350 = vld [vmem:[%s229 + $0x70] sm:$0xf]
        %v351 = vld [vmem:[%s229 + $0x74] sm:$0xf]
        %v352 = vld [vmem:[%s229 + $0x78] sm:$0xf]
        %v353 = vld [vmem:[%s229 + $0x7c] sm:$0xf]
        %v358 = vunpack.c.l.b16 %v318
        %v359 = vunpack.c.h.b16 %v318
        %v360 = vunpack.c.l.b16 %v319
        %v361 = vunpack.c.h.b16 %v319
        %v362 = vunpack.c.l.b16 %v320
        %v363 = vunpack.c.h.b16 %v320
        %v364 = vunpack.c.l.b16 %v321
        %v365 = vunpack.c.h.b16 %v321
        %v366 = vpack.c.b16 %v360, %v358
        %v367 = vpack.c.b16 %v361, %v359
        %v368 = vpack.c.b16 %v364, %v362
        %v369 = vpack.c.b16 %v365, %v363
        %v406 = vunpack.c.l.b16 %v322
        %v407 = vunpack.c.l.b16 %v323
        %v408 = vunpack.c.l.b16 %v324
        %v409 = vunpack.c.l.b16 %v325
        %v410 = vunpack.c.l.b16 %v326
        %v411 = vunpack.c.l.b16 %v327
        %v412 = vunpack.c.l.b16 %v328
        %v413 = vunpack.c.l.b16 %v329
        %v414 = vunpack.c.l.b16 %v330
        %v415 = vunpack.c.l.b16 %v331
        %v416 = vunpack.c.l.b16 %v332
        %v417 = vunpack.c.l.b16 %v333
        %v418 = vunpack.c.l.b16 %v334
        %v419 = vunpack.c.l.b16 %v335
        %v420 = vunpack.c.l.b16 %v336
        %v421 = vunpack.c.l.b16 %v337
        %v422 = vunpack.c.l.b16 %v338
        %v423 = vunpack.c.l.b16 %v339
        %v424 = vunpack.c.l.b16 %v340
        %v425 = vunpack.c.l.b16 %v341
        %v426 = vunpack.c.l.b16 %v342
        %v427 = vunpack.c.l.b16 %v343
        %v428 = vunpack.c.l.b16 %v344
        %v429 = vunpack.c.l.b16 %v345
        %v430 = vunpack.c.l.b16 %v346
        %v431 = vunpack.c.l.b16 %v347
        %v432 = vunpack.c.l.b16 %v348
        %v433 = vunpack.c.l.b16 %v349
        %v434 = vunpack.c.l.b16 %v350
        %v435 = vunpack.c.l.b16 %v351
        %v436 = vunpack.c.l.b16 %v352
        %v437 = vunpack.c.l.b16 %v353
        %v438 = vpack.c.b16 %v407, %v406
        %v439 = vpack.c.b16 %v409, %v408
        %v440 = vpack.c.b16 %v411, %v410
        %v441 = vpack.c.b16 %v413, %v412
        %v442 = vpack.c.b16 %v415, %v414
        %v443 = vpack.c.b16 %v417, %v416
        %v444 = vpack.c.b16 %v419, %v418
        %v445 = vpack.c.b16 %v421, %v420
        %v446 = vpack.c.b16 %v423, %v422
        %v447 = vpack.c.b16 %v425, %v424
        %v448 = vpack.c.b16 %v427, %v426
        %v449 = vpack.c.b16 %v429, %v428
        %v450 = vpack.c.b16 %v431, %v430
        %v451 = vpack.c.b16 %v433, %v432
        %v452 = vpack.c.b16 %v435, %v434
        %v453 = vpack.c.b16 %v437, %v436
        %470 = vmatprep.subr.bf16.mxu0 0
        %471 = vmatpush1.bf16.msra.mxu0 %v445
        %472 = vmatprep.subr.bf16.mxu0 0
        %473 = vmatpush1.bf16.msra.mxu0 %v444
        %474 = vmatprep.subr.bf16.mxu0 0
        %475 = vmatpush1.bf16.msra.mxu0 %v443
        %476 = vmatprep.subr.bf16.mxu0 0
        %477 = vmatpush1.bf16.msra.mxu0 %v442
        %478 = vmatprep.subr.bf16.mxu0 0
        %479 = vmatpush1.bf16.msra.mxu0 %v441
        %480 = vmatprep.subr.bf16.mxu0 0
        %481 = vmatpush1.bf16.msra.mxu0 %v440
        %482 = vmatprep.subr.bf16.mxu0 0
        %483 = vmatpush1.bf16.msra.mxu0 %v439
        %484 = vmatprep.subr.bf16.mxu0 0
        %485 = vmatpush1.bf16.msra.mxu0 %v438
        %486 = vmatprep.subr.bf16.mxu0 0
        %487 = vmatpush2.bf16.msra.mxu0 %v453
        %488 = vmatprep.subr.bf16.mxu0 0
        %489 = vmatpush2.bf16.msra.mxu0 %v452
        %490 = vmatprep.subr.bf16.mxu0 0
        %491 = vmatpush2.bf16.msra.mxu0 %v451
        %492 = vmatprep.subr.bf16.mxu0 0
        %493 = vmatpush2.bf16.msra.mxu0 %v450
        %494 = vmatprep.subr.bf16.mxu0 0
        %495 = vmatpush2.bf16.msra.mxu0 %v449
        %496 = vmatprep.subr.bf16.mxu0 0
        %497 = vmatpush2.bf16.msra.mxu0 %v448
        %498 = vmatprep.subr.bf16.mxu0 0
        %499 = vmatpush2.bf16.msra.mxu0 %v447
        %500 = vmatprep.subr.bf16.mxu0 0
        %501 = vmatpush2.bf16.msra.mxu0 %v446
        %502 = vmatprep.mubr.bf16.mxu0 %v367
        %503 = vmatmul.mubr.bf16.gmra.mxu0 %v366
        %v504 = vpop.f32.mrf.mxu0
        %v505 = vadd.f32 0.0, %v504
        %v506 = vpop.f32.mrf.mxu0
        %v507 = vpop.f32.mrf.mxu0
        %v508 = vadd.f32 0.0, %v507
        %v509 = vpop.f32.mrf.mxu0
        %510 = vmatprep.mubr.bf16.mxu0 %v369
        %511 = vmatmul.mubr.bf16.gmra.mxu0 %v368
        %v512 = vpop.f32.mrf.mxu0
        %v513 = vadd.f32 0.0, %v512
        %v514 = vpop.f32.mrf.mxu0
        %v515 = vpop.f32.mrf.mxu0
        %v516 = vadd.f32 0.0, %v515
        %v517 = vpop.f32.mrf.mxu0
        %518 = vdwg.mxu0
        %v519 = vpack.c.bf16 %v508, %v505
        %v520 = vpack.c.bf16 %v516, %v513
        %v523 = vunpack.c.l.b16 %v519
        %v524 = vunpack.c.h.b16 %v519
        %v525 = vunpack.c.l.b16 %v520
        %v526 = vunpack.c.h.b16 %v520
        %v527 = vpack.c.b16 %v523, %v523
        %v528 = vpack.c.b16 %v524, %v524
        %v529 = vpack.c.b16 %v525, %v525
        %v530 = vpack.c.b16 %v526, %v526
        %535 = vst [vmem:[%s301] sm:$0xf] %v527
        %536 = vst [vmem:[%s301 + $0x4] sm:$0xf] %v528
        %537 = vst [vmem:[%s301 + $0x8] sm:$0xf] %v529
        %538 = vst [vmem:[%s301 + $0xc] sm:$0xf] %v530
        %v539 = vadd.f32 %v505, %v508
        %v540 = vadd.f32 %v539, %v513
        %v541 = vadd.f32 %v540, %v516
        %v542 = vrot.slane %v541, 4
        %v543 = vadd.f32 %v541, %v542
        %v544 = vrot.slane %v543, 2
        %v545 = vadd.f32 %v543, %v544
        %v546 = vrot.slane %v545, 1
        %v547 = vadd.f32 %v545, %v546
        %v548 = vmul.f32 %v505, %v505
        %v549 = vmul.f32 %v508, %v508
        %v550 = vmul.f32 %v513, %v513
        %v551 = vmul.f32 %v516, %v516
        %v552 = vadd.f32 %v548, %v549
        %v553 = vadd.f32 %v552, %v550
        %v554 = vadd.f32 %v553, %v551
        %v555 = vrot.slane %v554, 4
        %v556 = vadd.f32 %v554, %v555
        %v557 = vrot.slane %v556, 2
        %v558 = vadd.f32 %v556, %v557
        %v559 = vrot.slane %v558, 1
        %v560 = vadd.f32 %v558, %v559
        %561 = vst [vmem:[%s309] sm:$0xff] %v547
        %562 = vst [vmem:[%s316] sm:$0xff] %v560
        %s563 = smul.u32 4, %s24
        %p564 = scmp.lt.s32.totalorder %s23, 3
        %s565 = scalar_select %p564, %s23, 3
        %p566 = scmp.lt.s32.totalorder %s563, 3
        %s567 = scalar_select %p566, %s563, 3
        %s568 = smul.addr %s565, 4
        %s569 = sadd.s32 %s567, %s568
        %s570 = smul.addr %s569, 4
        %s571 = scalar_lea.vmem %s2, %s570
        %p572 = scmp.lt.s32.totalorder %s23, 3
        %s573 = scalar_select %p572, %s23, 3
        %p574 = scmp.lt.s32.totalorder %s24, 0
        %s575 = scalar_select %p574, %s24, 0
        %s576 = sadd.s32 %s575, %s573
        %s577 = smul.addr %s576, 8
        %s578 = scalar_lea.vmem %s3, %s577
        %p579 = scmp.lt.s32.totalorder %s23, 3
        %s580 = scalar_select %p579, %s23, 3
        %p581 = scmp.lt.s32.totalorder %s24, 0
        %s582 = scalar_select %p581, %s24, 0
        %s583 = sadd.s32 %s582, %s580
        %s584 = smul.addr %s583, 8
        %s585 = scalar_lea.vmem %s4, %s584
        // Predicated region
        $region33: #{_lambda_.11} parent=27 // pred_check
          %p586 = pneg %p105
        $region34: #{_lambda_.11} parent=27 // pred_check_branch
          %588 = sbr.rel (%p586) target = $region36
        $region35: #{_lambda_.11} parent=27 // pred_region
          %s589 = smul.u32 4, %s24
        $region36: #{_lambda_.11} parent=27 // pred_fallthru
          _
        // Predicated region
        $region37: #{_lambda_.11} parent=27 // pred_check
          %p590 = pneg %p133
        $region38: #{_lambda_.11} parent=27 // pred_check_branch
          %592 = sbr.rel (%p590) target = $region40
        $region39: #{_lambda_.11} parent=27 // pred_region
          _
        $region40: #{_lambda_.11} parent=27 // pred_fallthru
          _
        // Predicated region
        $region41: #{_lambda_.11} parent=27 // pred_check
          %p593 = pneg %p161
        $region42: #{_lambda_.11} parent=27 // pred_check_branch
          %595 = sbr.rel (%p593) target = $region44
        $region43: #{_lambda_.11} parent=27 // pred_region
          _
        $region44: #{_lambda_.11} parent=27 // pred_fallthru
          _
      $region28: #{_lambda_.11} parent=5 // pred_fallthru
        _
      %p596 = scmp.le.s32.totalorder 2, %s14
      // Predicated region
      $region45: #{_lambda_.11} parent=5 // pred_check
        %p597 = pneg %p596
      $region46: #{_lambda_.11} parent=5 // pred_check_branch
        %599 = sbr.rel (%p597) target = $region48
      $region47: #{_lambda_.11} parent=5 // pred_region
        %s600 = ssub.s32 %s14, 2
        // Predicated region
        $region49: #{_lambda_.11} parent=47 // pred_check
          %p601 = pneg %p111
        $region50: #{_lambda_.11} parent=47 // pred_check_branch
          %603 = sbr.rel (%p601) target = $region52
        $region51: #{_lambda_.11} parent=47 // pred_region
          %s604 = smul.u32 4, %s26
          %p605 = scmp.lt.s32.totalorder %s25, 3
          %s606 = scalar_select %p605, %s25, 3
          %p607 = scmp.lt.s32.totalorder %s604, 3
          %s608 = scalar_select %p607, %s604, 3
          %s609 = smul.addr %s606, 4
          %s610 = sadd.s32 %s608, %s609
          %s611 = smul.addr %s610, 4
          %s612 = scalar_lea.vmem %s2, %s611
        $region52: #{_lambda_.11} parent=47 // pred_fallthru
          _
        // Predicated region
        $region53: #{_lambda_.11} parent=47 // pred_check
          %p613 = pneg %p139
        $region54: #{_lambda_.11} parent=47 // pred_check_branch
          %615 = sbr.rel (%p613) target = $region56
        $region55: #{_lambda_.11} parent=47 // pred_region
          %p616 = scmp.lt.s32.totalorder %s25, 3
          %s617 = scalar_select %p616, %s25, 3
          %p618 = scmp.lt.s32.totalorder %s26, 0
          %s619 = scalar_select %p618, %s26, 0
          %s620 = sadd.s32 %s619, %s617
          %s621 = smul.addr %s620, 8
          %s622 = scalar_lea.vmem %s3, %s621
        $region56: #{_lambda_.11} parent=47 // pred_fallthru
          _
        // Predicated region
        $region57: #{_lambda_.11} parent=47 // pred_check
          %p623 = pneg %p167
        $region58: #{_lambda_.11} parent=47 // pred_check_branch
          %625 = sbr.rel (%p623) target = $region60
        $region59: #{_lambda_.11} parent=47 // pred_region
          %p626 = scmp.lt.s32.totalorder %s25, 3
          %s627 = scalar_select %p626, %s25, 3
          %p628 = scmp.lt.s32.totalorder %s26, 0
          %s629 = scalar_select %p628, %s26, 0
          %s630 = sadd.s32 %s629, %s627
          %s631 = smul.addr %s630, 8
          %s632 = scalar_lea.vmem %s4, %s631
        $region60: #{_lambda_.11} parent=47 // pred_fallthru
          _
      $region48: #{_lambda_.11} parent=5 // pred_fallthru
        _
    $region6: #{_lambda_.11} parent=1 // loop_footer
      %s18 = sadd.s32 1, %s14
    $region7: #{_lambda_.11} parent=1 // loop_footer_branch
      %13 = sbr.rel target = $region3
    $region8: #{_lambda_.11} parent=1 // loop_exit
      _
    %633 = vsyncpa [#allocation3], 1
    %s634 = scalar_lea.sflag [#allocation3], 1
    %635 = vsyncpa %s634, 1

// kernel: _lambda_.13
$region0: #{_lambda_.13}
  #allocation0 [shape = 'u32[]', space=smem, size = 0x4, offset = 0x4, fixed_abs, tag = 'smem constant byte address 0x4 - core index']
  #allocation1 [shape = 'u32[144,128]{1,0:T(1,128)}', space=vmem, size = 0x12000, scoped, tag = 'internal scratch']
  %s0 = inlined_call_operand.vmem [shape: bf16[4,128,128], index: 0, kind: input, shape index: {}]
  %s1 = inlined_call_operand.vmem [shape: bf16[4,128,128], index: 1, kind: input, shape index: {}]
  %s2 = inlined_call_operand.vmem [shape: bf16[4,128,128], index: 2, kind: output, shape index: {0}]
  %s3 = inlined_call_operand.vmem [shape: f32[4,8,128], index: 3, kind: output, shape index: {1}]
  %s4 = inlined_call_operand.vmem [shape: f32[4,8,128], index: 4, kind: output, shape index: {2}]
  %5 = xla_tuple %s2, %s3, %s4
  %s6 = sld [smem:[#allocation0]]
  $region57: #{_lambda_.13} parent=0
    _
  %s8 = ssub.s32 1, %s6
  %s9 = scalar_select 0, %s8, %s6
  loop: start=0, step=1, limit=6
  $region2: #{_lambda_.13} parent=0 // loop_pre_header
    _
  $region3: #{_lambda_.13} parent=0 // loop_header
    %s11 = sphi 0, %s15
    %p12 = scmp.ge.s32.totalorder %s11, 6
    %s18 = sphi 0, %s30
    %s19 = sphi 0, %s26
    %s20 = sphi 0, %s18
    %s21 = sphi 0, %s19
    %s22 = sphi 0, %s20
    %s23 = sphi 0, %s21
    %s35 = sphi 0, %s37
    %s38 = sphi 0, %s35
    %s39 = sphi 0, %s38
    %s55 = sphi 0, %s39
    %s61 = sphi 0, %s63
    %s64 = sphi 0, %s61
    %s65 = sphi 0, %s64
    %s81 = sphi 0, %s65
    %s89 = sphi 0, %s91
    %s92 = sphi 0, %s89
    %s93 = sphi 0, %s92
    %s109 = sphi 0, %s93
    %s117 = sphi 0, %s119
    %s120 = sphi 0, %s117
    %s121 = sphi 0, %s120
    %s137 = sphi 0, %s121
    %s145 = sphi 0, %s147
    %s148 = sphi 0, %s145
    %s149 = sphi 0, %s148
    %s165 = sphi 0, %s149
  $region4: #{_lambda_.13} parent=0 // loop_header_branch
    %14 = sbr.rel (%p12) target = $region8
  $region5: #{_lambda_.13} parent=0 // loop_body
    %s16 = ssub.s32 %s11, 1
    %s17 = ssub.s32 %s11, 2
    %s24 = sadd.s32 1, %s19
    %p25 = scmp.ge.s32.totalorder %s24, 1
    %s26 = scalar_select %p25, 0, %s24
    %s27 = sadd.s32 1, %s18
    %s28 = scalar_select %p25, %s27, %s18
    %p29 = scmp.ge.s32.totalorder %s28, 4
    %s30 = scalar_select %p29, 0, %s28
    %s31 = ssub.s32 %s18, %s30
    %s32 = ssub.s32 %s19, %s26
    %s33 = sor.u32 %s31, %s32
    %p34 = scmp.eq.s32.totalorder %s33, 0
    %s36 = sadd.s32 %s35, 1
    %s37 = scalar_select %p34, %s35, %s36
    %p40 = pneg %p34
    %p41 = scmp.eq.s32.totalorder %s11, 3
    %p42 = por %p40, %p41
    %p43 = scmp.ne.s32.totalorder %s35, %s38
    %p44 = scmp.eq.s32.totalorder %s11, 0
    %p45 = por %p43, %p44
    %p46 = scmp.ne.s32.totalorder %s35, %s38
    %p47 = scmp.eq.s32.totalorder %s16, 3
    %p48 = por %p46, %p47
    %p49 = scmp.ne.s32.totalorder %s38, %s39
    %p50 = scmp.eq.s32.totalorder %s16, 0
    %p51 = por %p49, %p50
    %p52 = scmp.ne.s32.totalorder %s38, %s39
    %p53 = scmp.eq.s32.totalorder %s17, 3
    %p54 = por %p52, %p53
    %p56 = scmp.ne.s32.totalorder %s39, %s55
    %p57 = scmp.eq.s32.totalorder %s17, 0
    %p58 = por %p56, %p57
    %s59 = ssub.s32 %s18, %s30
    %p60 = scmp.eq.s32.totalorder %s59, 0
    %s62 = sadd.s32 %s61, 1
    %s63 = scalar_select %p60, %s61, %s62
    %p66 = pneg %p60
    %p67 = scmp.eq.s32.totalorder %s11, 3
    %p68 = por %p66, %p67
    %p69 = scmp.ne.s32.totalorder %s61, %s64
    %p70 = scmp.eq.s32.totalorder %s11, 0
    %p71 = por %p69, %p70
    %p72 = scmp.ne.s32.totalorder %s61, %s64
    %p73 = scmp.eq.s32.totalorder %s16, 3
    %p74 = por %p72, %p73
    %p75 = scmp.ne.s32.totalorder %s64, %s65
    %p76 = scmp.eq.s32.totalorder %s16, 0
    %p77 = por %p75, %p76
    %p78 = scmp.ne.s32.totalorder %s64, %s65
    %p79 = scmp.eq.s32.totalorder %s17, 3
    %p80 = por %p78, %p79
    %p82 = scmp.ne.s32.totalorder %s65, %s81
    %p83 = scmp.eq.s32.totalorder %s17, 0
    %p84 = por %p82, %p83
    %s85 = ssub.s32 %s18, %s30
    %s86 = ssub.s32 %s19, %s26
    %s87 = sor.u32 %s85, %s86
    %p88 = scmp.eq.s32.totalorder %s87, 0
    %s90 = sadd.s32 %s89, 1
    %s91 = scalar_select %p88, %s89, %s90
    %p94 = pneg %p88
    %p95 = scmp.eq.s32.totalorder %s11, 3
    %p96 = por %p94, %p95
    %p97 = scmp.ne.s32.totalorder %s89, %s92
    %p98 = scmp.eq.s32.totalorder %s11, 0
    %p99 = por %p97, %p98
    %p100 = scmp.ne.s32.totalorder %s89, %s92
    %p101 = scmp.eq.s32.totalorder %s16, 3
    %p102 = por %p100, %p101
    %p103 = scmp.ne.s32.totalorder %s92, %s93
    %p104 = scmp.eq.s32.totalorder %s16, 0
    %p105 = por %p103, %p104
    %p106 = scmp.ne.s32.totalorder %s92, %s93
    %p107 = scmp.eq.s32.totalorder %s17, 3
    %p108 = por %p106, %p107
    %p110 = scmp.ne.s32.totalorder %s93, %s109
    %p111 = scmp.eq.s32.totalorder %s17, 0
    %p112 = por %p110, %p111
    %s113 = ssub.s32 %s18, %s30
    %s114 = ssub.s32 %s19, %s26
    %s115 = sor.u32 %s113, %s114
    %p116 = scmp.eq.s32.totalorder %s115, 0
    %s118 = sadd.s32 %s117, 1
    %s119 = scalar_select %p116, %s117, %s118
    %p122 = pneg %p116
    %p123 = scmp.eq.s32.totalorder %s11, 3
    %p124 = por %p122, %p123
    %p125 = scmp.ne.s32.totalorder %s117, %s120
    %p126 = scmp.eq.s32.totalorder %s11, 0
    %p127 = por %p125, %p126
    %p128 = scmp.ne.s32.totalorder %s117, %s120
    %p129 = scmp.eq.s32.totalorder %s16, 3
    %p130 = por %p128, %p129
    %p131 = scmp.ne.s32.totalorder %s120, %s121
    %p132 = scmp.eq.s32.totalorder %s16, 0
    %p133 = por %p131, %p132
    %p134 = scmp.ne.s32.totalorder %s120, %s121
    %p135 = scmp.eq.s32.totalorder %s17, 3
    %p136 = por %p134, %p135
    %p138 = scmp.ne.s32.totalorder %s121, %s137
    %p139 = scmp.eq.s32.totalorder %s17, 0
    %p140 = por %p138, %p139
    %s141 = ssub.s32 %s18, %s30
    %s142 = ssub.s32 %s19, %s26
    %s143 = sor.u32 %s141, %s142
    %p144 = scmp.eq.s32.totalorder %s143, 0
    %s146 = sadd.s32 %s145, 1
    %s147 = scalar_select %p144, %s145, %s146
    %p150 = pneg %p144
    %p151 = scmp.eq.s32.totalorder %s11, 3
    %p152 = por %p150, %p151
    %p153 = scmp.ne.s32.totalorder %s145, %s148
    %p154 = scmp.eq.s32.totalorder %s11, 0
    %p155 = por %p153, %p154
    %p156 = scmp.ne.s32.totalorder %s145, %s148
    %p157 = scmp.eq.s32.totalorder %s16, 3
    %p158 = por %p156, %p157
    %p159 = scmp.ne.s32.totalorder %s148, %s149
    %p160 = scmp.eq.s32.totalorder %s16, 0
    %p161 = por %p159, %p160
    %p162 = scmp.ne.s32.totalorder %s148, %s149
    %p163 = scmp.eq.s32.totalorder %s17, 3
    %p164 = por %p162, %p163
    %p166 = scmp.ne.s32.totalorder %s149, %s165
    %p167 = scmp.eq.s32.totalorder %s17, 0
    %p168 = por %p166, %p167
    %p169 = scmp.le.s32.totalorder 1, %s11
    %p170 = scmp.lt.s32.totalorder %s11, 5
    %p171 = pnand %p169, %p170
    %p172 = pneg %p171
    // Predicated region
    $region9: #{_lambda_.13} parent=5 // pred_check
      _
    $region10: #{_lambda_.13} parent=5 // pred_check_branch
      %174 = sbr.rel (%p171) target = $region12
    $region11: #{_lambda_.13} parent=5 // pred_region
      %s175 = ssub.s32 %s11, 1
    $region12: #{_lambda_.13} parent=5 // pred_fallthru
      _
    %p176 = scmp.lt.s32.totalorder %s11, 4
    // Predicated region
    $region13: #{_lambda_.13} parent=5 // pred_check
      %p177 = pneg %p176
    $region14: #{_lambda_.13} parent=5 // pred_check_branch
      %179 = sbr.rel (%p177) target = $region16
    $region15: #{_lambda_.13} parent=5 // pred_region
      // Predicated region
      $region17: #{_lambda_.13} parent=15 // pred_check
        %p180 = pneg %p45
      $region18: #{_lambda_.13} parent=15 // pred_check_branch
        %182 = sbr.rel (%p180) target = $region20
      $region19: #{_lambda_.13} parent=15 // pred_region
        %s183 = smul.u32 16, %s19
        %p184 = scmp.lt.s32.totalorder %s18, 3
        %s185 = scalar_select %p184, %s18, 3
        %p186 = scmp.lt.s32.totalorder %s183, 15
        %s187 = scalar_select %p186, %s183, 15
        %s188 = smul.addr %s185, 16
        %s189 = sadd.s32 %s187, %s188
        %s190 = smul.addr %s189, 4
        %s191 = scalar_lea.vmem %s0, %s190
        %s192 = smul.u32 16, %s19
      $region20: #{_lambda_.13} parent=15 // pred_fallthru
        _
      // Predicated region
      $region21: #{_lambda_.13} parent=15 // pred_check
        %p193 = pneg %p71
      $region22: #{_lambda_.13} parent=15 // pred_check_branch
        %195 = sbr.rel (%p193) target = $region24
      $region23: #{_lambda_.13} parent=15 // pred_region
        %p196 = scmp.lt.s32.totalorder %s18, 3
        %s197 = scalar_select %p196, %s18, 3
        %s198 = smul.addr %s197, 16
        %s199 = smul.addr %s198, 4
        %s200 = scalar_lea.vmem %s1, %s199
      $region24: #{_lambda_.13} parent=15 // pred_fallthru
        _
    $region16: #{_lambda_.13} parent=5 // pred_fallthru
      _
    %p201 = scmp.le.s32.totalorder 1, %s11
    %p202 = scmp.lt.s32.totalorder %s11, 5
    %p203 = pnand %p201, %p202
    %p204 = pneg %p203
    // Predicated region
    $region25: #{_lambda_.13} parent=5 // pred_check
      _
    $region26: #{_lambda_.13} parent=5 // pred_check_branch
      %206 = sbr.rel (%p203) target = $region28
    $region27: #{_lambda_.13} parent=5 // pred_region
      %s207 = ssub.s32 %s11, 1
      %s208 = smul.u32 16, %s21
      %p209 = scmp.lt.s32.totalorder %s20, 3
      %s210 = scalar_select %p209, %s20, 3
      %p211 = scmp.lt.s32.totalorder %s208, 15
      %s212 = scalar_select %p211, %s208, 15
      %s213 = smul.addr %s210, 16
      %s214 = sadd.s32 %s212, %s213
      %s215 = smul.addr %s214, 4
      %s216 = scalar_lea.vmem %s0, %s215
      %p217 = pneg %p51
      %p218 = pneg %p48
      %p219 = scmp.lt.s32.totalorder %s20, 3
      %s220 = scalar_select %p219, %s20, 3
      %s221 = smul.addr %s220, 16
      %s222 = smul.addr %s221, 4
      %s223 = scalar_lea.vmem %s1, %s222
      %p224 = pneg %p77
      %p225 = pneg %p74
      %p226 = pneg %p105
      %p227 = pneg %p102
      %s228 = smul.u32 16, %s21
      %p229 = scmp.lt.s32.totalorder %s20, 3
      %s230 = scalar_select %p229, %s20, 3
      %p231 = scmp.lt.s32.totalorder %s228, 15
      %s232 = scalar_select %p231, %s228, 15
      %s233 = smul.addr %s230, 16
      %s234 = sadd.s32 %s232, %s233
      %s235 = smul.addr %s234, 4
      %s236 = scalar_lea.vmem %s2, %s235
      %p237 = pneg %p133
      %p238 = pneg %p130
      %p239 = scmp.lt.s32.totalorder %s20, 3
      %s240 = scalar_select %p239, %s20, 3
      %p241 = scmp.lt.s32.totalorder %s21, 0
      %s242 = scalar_select %p241, %s21, 0
      %s243 = sadd.s32 %s242, %s240
      %s244 = smul.addr %s243, 8
      %s245 = scalar_lea.vmem %s3, %s244
      %p246 = pneg %p161
      %p247 = pneg %p158
      %p248 = scmp.lt.s32.totalorder %s20, 3
      %s249 = scalar_select %p248, %s20, 3
      %p250 = scmp.lt.s32.totalorder %s21, 0
      %s251 = scalar_select %p250, %s21, 0
      %s252 = sadd.s32 %s251, %s249
      %s253 = smul.addr %s252, 8
      %s254 = scalar_lea.vmem %s4, %s253
      %s255 = smul.u32 16, %s21
      %p256 = scmp.lt.s32.totalorder %s20, 3
      %s257 = scalar_select %p256, %s20, 3
      %p258 = scmp.lt.s32.totalorder %s255, 15
      %s259 = scalar_select %p258, %s255, 15
      %s260 = smul.addr %s257, 16
      %s261 = sadd.s32 %s259, %s260
      %s262 = smul.addr %s261, 4
      %s263 = scalar_lea.vmem %s0, %s262
      %s264 = smul.u32 16, %s21
      %p265 = scmp.lt.s32.totalorder %s20, 3
      %s266 = scalar_select %p265, %s20, 3
      %s267 = smul.addr %s266, 16
      %s268 = smul.addr %s267, 4
      %s269 = scalar_lea.vmem %s1, %s268
      %s270 = smul.u32 16, %s21
      %p271 = scmp.lt.s32.totalorder %s20, 3
      %s272 = scalar_select %p271, %s20, 3
      %p273 = scmp.lt.s32.totalorder %s270, 15
      %s274 = scalar_select %p273, %s270, 15
      %s275 = smul.addr %s272, 16
      %s276 = sadd.s32 %s274, %s275
      %s277 = smul.addr %s276, 4
      %s278 = scalar_lea.vmem %s2, %s277
      %s279 = smul.u32 16, %s21
      %p280 = scmp.lt.s32.totalorder %s20, 3
      %s281 = scalar_select %p280, %s20, 3
      %p282 = scmp.lt.s32.totalorder %s21, 0
      %s283 = scalar_select %p282, %s21, 0
      %s284 = sadd.s32 %s283, %s281
      %s285 = smul.addr %s284, 8
      %s286 = scalar_lea.vmem %s3, %s285
      %p287 = scmp.lt.s32.totalorder %s20, 3
      %s288 = scalar_select %p287, %s20, 3
      %p289 = scmp.lt.s32.totalorder %s21, 0
      %s290 = scalar_select %p289, %s21, 0
      %s291 = sadd.s32 %s290, %s288
      %s292 = smul.addr %s291, 8
      %s293 = scalar_lea.vmem %s4, %s292
      %v295 = vld [vmem:[%s263] sm:$0xf]
      %v296 = vld [vmem:[%s263 + $0x4] sm:$0xf]
      %v297 = vld [vmem:[%s263 + $0x8] sm:$0xf]
      %v298 = vld [vmem:[%s263 + $0xc] sm:$0xf]
      %v299 = vld [vmem:[%s263 + $0x10] sm:$0xf]
      %v300 = vld [vmem:[%s263 + $0x14] sm:$0xf]
      %v301 = vld [vmem:[%s263 + $0x18] sm:$0xf]
      %v302 = vld [vmem:[%s263 + $0x1c] sm:$0xf]
      %v303 = vld [vmem:[%s263 + $0x20] sm:$0xf]
      %v304 = vld [vmem:[%s263 + $0x24] sm:$0xf]
      %v305 = vld [vmem:[%s263 + $0x28] sm:$0xf]
      %v306 = vld [vmem:[%s263 + $0x2c] sm:$0xf]
      %v307 = vld [vmem:[%s263 + $0x30] sm:$0xf]
      %v308 = vld [vmem:[%s263 + $0x34] sm:$0xf]
      %v309 = vld [vmem:[%s263 + $0x38] sm:$0xf]
      %v310 = vld [vmem:[%s263 + $0x3c] sm:$0xf]
      %v311 = vld [vmem:[%s269] sm:$0xf]
      %v312 = vld [vmem:[%s269 + $0x4] sm:$0xf]
      %v313 = vld [vmem:[%s269 + $0x8] sm:$0xf]
      %v314 = vld [vmem:[%s269 + $0xc] sm:$0xf]
      %v315 = vld [vmem:[%s269 + $0x10] sm:$0xf]
      %v316 = vld [vmem:[%s269 + $0x14] sm:$0xf]
      %v317 = vld [vmem:[%s269 + $0x18] sm:$0xf]
      %v318 = vld [vmem:[%s269 + $0x1c] sm:$0xf]
      %v319 = vld [vmem:[%s269 + $0x20] sm:$0xf]
      %v320 = vld [vmem:[%s269 + $0x24] sm:$0xf]
      %v321 = vld [vmem:[%s269 + $0x28] sm:$0xf]
      %v322 = vld [vmem:[%s269 + $0x2c] sm:$0xf]
      %v323 = vld [vmem:[%s269 + $0x30] sm:$0xf]
      %v324 = vld [vmem:[%s269 + $0x34] sm:$0xf]
      %v325 = vld [vmem:[%s269 + $0x38] sm:$0xf]
      %v326 = vld [vmem:[%s269 + $0x3c] sm:$0xf]
      %v343 = vunpack.c.l.b16 %v295
      %v344 = vunpack.c.l.b16 %v296
      %v345 = vunpack.c.l.b16 %v297
      %v346 = vunpack.c.l.b16 %v298
      %v347 = vunpack.c.l.b16 %v299
      %v348 = vunpack.c.l.b16 %v300
      %v349 = vunpack.c.l.b16 %v301
      %v350 = vunpack.c.l.b16 %v302
      %v351 = vunpack.c.l.b16 %v303
      %v352 = vunpack.c.l.b16 %v304
      %v353 = vunpack.c.l.b16 %v305
      %v354 = vunpack.c.l.b16 %v306
      %v355 = vunpack.c.l.b16 %v307
      %v356 = vunpack.c.l.b16 %v308
      %v357 = vunpack.c.l.b16 %v309
      %v358 = vunpack.c.l.b16 %v310
      %v359 = vpack.c.b16 %v344, %v343
      %v360 = vpack.c.b16 %v346, %v345
      %v361 = vpack.c.b16 %v348, %v347
      %v362 = vpack.c.b16 %v350, %v349
      %v363 = vpack.c.b16 %v352, %v351
      %v364 = vpack.c.b16 %v354, %v353
      %v365 = vpack.c.b16 %v356, %v355
      %v366 = vpack.c.b16 %v358, %v357
      %v391 = vunpack.c.l.b16 %v311
      %v392 = vunpack.c.l.b16 %v312
      %v393 = vunpack.c.l.b16 %v313
      %v394 = vunpack.c.l.b16 %v314
      %v395 = vunpack.c.l.b16 %v315
      %v396 = vunpack.c.l.b16 %v316
      %v397 = vunpack.c.l.b16 %v317
      %v398 = vunpack.c.l.b16 %v318
      %v399 = vunpack.c.l.b16 %v319
      %v400 = vunpack.c.l.b16 %v320
      %v401 = vunpack.c.l.b16 %v321
      %v402 = vunpack.c.l.b16 %v322
      %v403 = vunpack.c.l.b16 %v323
      %v404 = vunpack.c.l.b16 %v324
      %v405 = vunpack.c.l.b16 %v325
      %v406 = vunpack.c.l.b16 %v326
      %v407 = vpack.c.b16 %v392, %v391
      %v408 = vpack.c.b16 %v394, %v393
      %v409 = vpack.c.b16 %v396, %v395
      %v410 = vpack.c.b16 %v398, %v397
      %v411 = vpack.c.b16 %v400, %v399
      %v412 = vpack.c.b16 %v402, %v401
      %v413 = vpack.c.b16 %v404, %v403
      %v414 = vpack.c.b16 %v406, %v405
      %423 = vmatprep.subr.bf16.mxu0 0
      %424 = vmatpush1.bf16.msra.mxu0 %v414
      %425 = vmatprep.subr.bf16.mxu0 0
      %426 = vmatpush1.bf16.msra.mxu0 %v413
      %427 = vmatprep.subr.bf16.mxu0 0
      %428 = vmatpush1.bf16.msra.mxu0 %v412
      %429 = vmatprep.subr.bf16.mxu0 0
      %430 = vmatpush1.bf16.msra.mxu0 %v411
      %431 = vmatprep.subr.bf16.mxu0 0
      %432 = vmatpush1.bf16.msra.mxu0 %v410
      %433 = vmatprep.subr.bf16.mxu0 0
      %434 = vmatpush1.bf16.msra.mxu0 %v409
      %435 = vmatprep.subr.bf16.mxu0 0
      %436 = vmatpush1.bf16.msra.mxu0 %v408
      %437 = vmatprep.subr.bf16.mxu0 0
      %438 = vmatpush1.bf16.msra.mxu0 %v407
      %439 = vmatprep.subr.bf16.mxu0 0
      %440 = vmatpush2.bf16.msra.mxu0 0
      %441 = vmatprep.subr.bf16.mxu0 0
      %442 = vmatpush2.bf16.msra.mxu0 0
      %443 = vmatprep.subr.bf16.mxu0 0
      %444 = vmatpush2.bf16.msra.mxu0 0
      %445 = vmatprep.subr.bf16.mxu0 0
      %446 = vmatpush2.bf16.msra.mxu0 0
      %447 = vmatprep.subr.bf16.mxu0 0
      %448 = vmatpush2.bf16.msra.mxu0 0
      %449 = vmatprep.subr.bf16.mxu0 0
      %450 = vmatpush2.bf16.msra.mxu0 0
      %451 = vmatprep.subr.bf16.mxu0 0
      %452 = vmatpush2.bf16.msra.mxu0 0
      %453 = vmatprep.subr.bf16.mxu0 0
      %454 = vmatpush2.bf16.msra.mxu0 0
      %455 = vmatprep.mubr.bf16.mxu0 0
      %456 = vmatmul.mubr.bf16.gmra.mxu0 %v359
      %v457 = vpop.f32.mrf.mxu0
      %v458 = vadd.f32 0.0, %v457
      %v459 = vpop.f32.mrf.mxu0
      %v460 = vpop.f32.mrf.mxu0
      %v461 = vadd.f32 0.0, %v460
      %v462 = vpop.f32.mrf.mxu0
      %463 = vmatprep.mubr.bf16.mxu0 0
      %464 = vmatmul.mubr.bf16.gmra.mxu0 %v360
      %v465 = vpop.f32.mrf.mxu0
      %v466 = vadd.f32 0.0, %v465
      %v467 = vpop.f32.mrf.mxu0
      %v468 = vpop.f32.mrf.mxu0
      %v469 = vadd.f32 0.0, %v468
      %v470 = vpop.f32.mrf.mxu0
      %471 = vmatprep.mubr.bf16.mxu0 0
      %472 = vmatmul.mubr.bf16.gmra.mxu0 %v361
      %v473 = vpop.f32.mrf.mxu0
      %v474 = vadd.f32 0.0, %v473
      %v475 = vpop.f32.mrf.mxu0
      %v476 = vpop.f32.mrf.mxu0
      %v477 = vadd.f32 0.0, %v476
      %v478 = vpop.f32.mrf.mxu0
      %479 = vmatprep.mubr.bf16.mxu0 0
      %480 = vmatmul.mubr.bf16.gmra.mxu0 %v362
      %v481 = vpop.f32.mrf.mxu0
      %v482 = vadd.f32 0.0, %v481
      %v483 = vpop.f32.mrf.mxu0
      %v484 = vpop.f32.mrf.mxu0
      %v485 = vadd.f32 0.0, %v484
      %v486 = vpop.f32.mrf.mxu0
      %487 = vmatprep.mubr.bf16.mxu0 0
      %488 = vmatmul.mubr.bf16.gmra.mxu0 %v363
      %v489 = vpop.f32.mrf.mxu0
      %v490 = vadd.f32 0.0, %v489
      %v491 = vpop.f32.mrf.mxu0
      %v492 = vpop.f32.mrf.mxu0
      %v493 = vadd.f32 0.0, %v492
      %v494 = vpop.f32.mrf.mxu0
      %495 = vmatprep.mubr.bf16.mxu0 0
      %496 = vmatmul.mubr.bf16.gmra.mxu0 %v364
      %v497 = vpop.f32.mrf.mxu0
      %v498 = vadd.f32 0.0, %v497
      %v499 = vpop.f32.mrf.mxu0
      %v500 = vpop.f32.mrf.mxu0
      %v501 = vadd.f32 0.0, %v500
      %v502 = vpop.f32.mrf.mxu0
      %503 = vmatprep.mubr.bf16.mxu0 0
      %504 = vmatmul.mubr.bf16.gmra.mxu0 %v365
      %v505 = vpop.f32.mrf.mxu0
      %v506 = vadd.f32 0.0, %v505
      %v507 = vpop.f32.mrf.mxu0
      %v508 = vpop.f32.mrf.mxu0
      %v509 = vadd.f32 0.0, %v508
      %v510 = vpop.f32.mrf.mxu0
      %511 = vmatprep.mubr.bf16.mxu0 0
      %512 = vmatmul.mubr.bf16.gmra.mxu0 %v366
      %v513 = vpop.f32.mrf.mxu0
      %v514 = vadd.f32 0.0, %v513
      %v515 = vpop.f32.mrf.mxu0
      %v516 = vpop.f32.mrf.mxu0
      %v517 = vadd.f32 0.0, %v516
      %v518 = vpop.f32.mrf.mxu0
      %519 = vdwg.mxu0
      %v520 = vpack.c.bf16 %v461, %v458
      %v521 = vpack.c.bf16 %v469, %v466
      %v522 = vpack.c.bf16 %v477, %v474
      %v523 = vpack.c.bf16 %v485, %v482
      %v524 = vpack.c.bf16 %v493, %v490
      %v525 = vpack.c.bf16 %v501, %v498
      %v526 = vpack.c.bf16 %v509, %v506
      %v527 = vpack.c.bf16 %v517, %v514
      %v536 = vunpack.c.l.b16 %v520
      %v537 = vunpack.c.h.b16 %v520
      %v538 = vunpack.c.l.b16 %v521
      %v539 = vunpack.c.h.b16 %v521
      %v540 = vunpack.c.l.b16 %v522
      %v541 = vunpack.c.h.b16 %v522
      %v542 = vunpack.c.l.b16 %v523
      %v543 = vunpack.c.h.b16 %v523
      %v544 = vunpack.c.l.b16 %v524
      %v545 = vunpack.c.h.b16 %v524
      %v546 = vunpack.c.l.b16 %v525
      %v547 = vunpack.c.h.b16 %v525
      %v548 = vunpack.c.l.b16 %v526
      %v549 = vunpack.c.h.b16 %v526
      %v550 = vunpack.c.l.b16 %v527
      %v551 = vunpack.c.h.b16 %v527
      %v552 = vpack.c.b16 %v536, %v536
      %v553 = vpack.c.b16 %v537, %v537
      %v554 = vpack.c.b16 %v538, %v538
      %v555 = vpack.c.b16 %v539, %v539
      %v556 = vpack.c.b16 %v540, %v540
      %v557 = vpack.c.b16 %v541, %v541
      %v558 = vpack.c.b16 %v542, %v542
      %v559 = vpack.c.b16 %v543, %v543
      %v560 = vpack.c.b16 %v544, %v544
      %v561 = vpack.c.b16 %v545, %v545
      %v562 = vpack.c.b16 %v546, %v546
      %v563 = vpack.c.b16 %v547, %v547
      %v564 = vpack.c.b16 %v548, %v548
      %v565 = vpack.c.b16 %v549, %v549
      %v566 = vpack.c.b16 %v550, %v550
      %v567 = vpack.c.b16 %v551, %v551
      %584 = vst [vmem:[%s278] sm:$0xf] %v552
      %585 = vst [vmem:[%s278 + $0x4] sm:$0xf] %v553
      %586 = vst [vmem:[%s278 + $0x8] sm:$0xf] %v554
      %587 = vst [vmem:[%s278 + $0xc] sm:$0xf] %v555
      %588 = vst [vmem:[%s278 + $0x10] sm:$0xf] %v556
      %589 = vst [vmem:[%s278 + $0x14] sm:$0xf] %v557
      %590 = vst [vmem:[%s278 + $0x18] sm:$0xf] %v558
      %591 = vst [vmem:[%s278 + $0x1c] sm:$0xf] %v559
      %592 = vst [vmem:[%s278 + $0x20] sm:$0xf] %v560
      %593 = vst [vmem:[%s278 + $0x24] sm:$0xf] %v561
      %594 = vst [vmem:[%s278 + $0x28] sm:$0xf] %v562
      %595 = vst [vmem:[%s278 + $0x2c] sm:$0xf] %v563
      %596 = vst [vmem:[%s278 + $0x30] sm:$0xf] %v564
      %597 = vst [vmem:[%s278 + $0x34] sm:$0xf] %v565
      %598 = vst [vmem:[%s278 + $0x38] sm:$0xf] %v566
      %599 = vst [vmem:[%s278 + $0x3c] sm:$0xf] %v567
      %v600 = vadd.f32 %v458, %v461
      %v601 = vadd.f32 %v600, %v466
      %v602 = vadd.f32 %v601, %v469
      %v603 = vadd.f32 %v602, %v474
      %v604 = vadd.f32 %v603, %v477
      %v605 = vadd.f32 %v604, %v482
      %v606 = vadd.f32 %v605, %v485
      %v607 = vadd.f32 %v606, %v490
      %v608 = vadd.f32 %v607, %v493
      %v609 = vadd.f32 %v608, %v498
      %v610 = vadd.f32 %v609, %v501
      %v611 = vadd.f32 %v610, %v506
      %v612 = vadd.f32 %v611, %v509
      %v613 = vadd.f32 %v612, %v514
      %v614 = vadd.f32 %v613, %v517
      %v615 = vrot.slane %v614, 4
      %v616 = vadd.f32 %v614, %v615
      %v617 = vrot.slane %v616, 2
      %v618 = vadd.f32 %v616, %v617
      %v619 = vrot.slane %v618, 1
      %v620 = vadd.f32 %v618, %v619
      %v621 = vmul.f32 %v458, %v458
      %v622 = vmul.f32 %v461, %v461
      %v623 = vmul.f32 %v466, %v466
      %v624 = vmul.f32 %v469, %v469
      %v625 = vmul.f32 %v474, %v474
      %v626 = vmul.f32 %v477, %v477
      %v627 = vmul.f32 %v482, %v482
      %v628 = vmul.f32 %v485, %v485
      %v629 = vmul.f32 %v490, %v490
      %v630 = vmul.f32 %v493, %v493
      %v631 = vmul.f32 %v498, %v498
      %v632 = vmul.f32 %v501, %v501
      %v633 = vmul.f32 %v506, %v506
      %v634 = vmul.f32 %v509, %v509
      %v635 = vmul.f32 %v514, %v514
      %v636 = vmul.f32 %v517, %v517
      %v637 = vadd.f32 %v621, %v622
      %v638 = vadd.f32 %v637, %v623
      %v639 = vadd.f32 %v638, %v624
      %v640 = vadd.f32 %v639, %v625
      %v641 = vadd.f32 %v640, %v626
      %v642 = vadd.f32 %v641, %v627
      %v643 = vadd.f32 %v642, %v628
      %v644 = vadd.f32 %v643, %v629
      %v645 = vadd.f32 %v644, %v630
      %v646 = vadd.f32 %v645, %v631
      %v647 = vadd.f32 %v646, %v632
      %v648 = vadd.f32 %v647, %v633
      %v649 = vadd.f32 %v648, %v634
      %v650 = vadd.f32 %v649, %v635
      %v651 = vadd.f32 %v650, %v636
      %v652 = vrot.slane %v651, 4
      %v653 = vadd.f32 %v651, %v652
      %v654 = vrot.slane %v653, 2
      %v655 = vadd.f32 %v653, %v654
      %v656 = vrot.slane %v655, 1
      %v657 = vadd.f32 %v655, %v656
      %658 = vst [vmem:[%s286] sm:$0xff] %v620
      %659 = vst [vmem:[%s293] sm:$0xff] %v657
      %s660 = smul.u32 16, %s21
      %p661 = scmp.lt.s32.totalorder %s20, 3
      %s662 = scalar_select %p661, %s20, 3
      %p663 = scmp.lt.s32.totalorder %s660, 15
      %s664 = scalar_select %p663, %s660, 15
      %s665 = smul.addr %s662, 16
      %s666 = sadd.s32 %s664, %s665
      %s667 = smul.addr %s666, 4
      %s668 = scalar_lea.vmem %s2, %s667
      %p669 = scmp.lt.s32.totalorder %s20, 3
      %s670 = scalar_select %p669, %s20, 3
      %p671 = scmp.lt.s32.totalorder %s21, 0
      %s672 = scalar_select %p671, %s21, 0
      %s673 = sadd.s32 %s672, %s670
      %s674 = smul.addr %s673, 8
      %s675 = scalar_lea.vmem %s3, %s674
      %p676 = scmp.lt.s32.totalorder %s20, 3
      %s677 = scalar_select %p676, %s20, 3
      %p678 = scmp.lt.s32.totalorder %s21, 0
      %s679 = scalar_select %p678, %s21, 0
      %s680 = sadd.s32 %s679, %s677
      %s681 = smul.addr %s680, 8
      %s682 = scalar_lea.vmem %s4, %s681
      // Predicated region
      $region29: #{_lambda_.13} parent=27 // pred_check
        %p683 = pneg %p102
      $region30: #{_lambda_.13} parent=27 // pred_check_branch
        %685 = sbr.rel (%p683) target = $region32
      $region31: #{_lambda_.13} parent=27 // pred_region
        %s686 = smul.u32 16, %s21
      $region32: #{_lambda_.13} parent=27 // pred_fallthru
        _
      // Predicated region
      $region33: #{_lambda_.13} parent=27 // pred_check
        %p687 = pneg %p130
      $region34: #{_lambda_.13} parent=27 // pred_check_branch
        %689 = sbr.rel (%p687) target = $region36
      $region35: #{_lambda_.13} parent=27 // pred_region
        _
      $region36: #{_lambda_.13} parent=27 // pred_fallthru
        _
      // Predicated region
      $region37: #{_lambda_.13} parent=27 // pred_check
        %p690 = pneg %p158
      $region38: #{_lambda_.13} parent=27 // pred_check_branch
        %692 = sbr.rel (%p690) target = $region40
      $region39: #{_lambda_.13} parent=27 // pred_region
        _
      $region40: #{_lambda_.13} parent=27 // pred_fallthru
        _
    $region28: #{_lambda_.13} parent=5 // pred_fallthru
      _
    %p693 = scmp.le.s32.totalorder 2, %s11
    // Predicated region
    $region41: #{_lambda_.13} parent=5 // pred_check
      %p694 = pneg %p693
    $region42: #{_lambda_.13} parent=5 // pred_check_branch
      %696 = sbr.rel (%p694) target = $region44
    $region43: #{_lambda_.13} parent=5 // pred_region
      %s697 = ssub.s32 %s11, 2
      // Predicated region
      $region45: #{_lambda_.13} parent=43 // pred_check
        %p698 = pneg %p108
      $region46: #{_lambda_.13} parent=43 // pred_check_branch
        %700 = sbr.rel (%p698) target = $region48
      $region47: #{_lambda_.13} parent=43 // pred_region
        %s701 = smul.u32 16, %s23
        %p702 = scmp.lt.s32.totalorder %s22, 3
        %s703 = scalar_select %p702, %s22, 3
        %p704 = scmp.lt.s32.totalorder %s701, 15
        %s705 = scalar_select %p704, %s701, 15
        %s706 = smul.addr %s703, 16
        %s707 = sadd.s32 %s705, %s706
        %s708 = smul.addr %s707, 4
        %s709 = scalar_lea.vmem %s2, %s708
      $region48: #{_lambda_.13} parent=43 // pred_fallthru
        _
      // Predicated region
      $region49: #{_lambda_.13} parent=43 // pred_check
        %p710 = pneg %p136
      $region50: #{_lambda_.13} parent=43 // pred_check_branch
        %712 = sbr.rel (%p710) target = $region52
      $region51: #{_lambda_.13} parent=43 // pred_region
        %p713 = scmp.lt.s32.totalorder %s22, 3
        %s714 = scalar_select %p713, %s22, 3
        %p715 = scmp.lt.s32.totalorder %s23, 0
        %s716 = scalar_select %p715, %s23, 0
        %s717 = sadd.s32 %s716, %s714
        %s718 = smul.addr %s717, 8
        %s719 = scalar_lea.vmem %s3, %s718
      $region52: #{_lambda_.13} parent=43 // pred_fallthru
        _
      // Predicated region
      $region53: #{_lambda_.13} parent=43 // pred_check
        %p720 = pneg %p164
      $region54: #{_lambda_.13} parent=43 // pred_check_branch
        %722 = sbr.rel (%p720) target = $region56
      $region55: #{_lambda_.13} parent=43 // pred_region
        %p723 = scmp.lt.s32.totalorder %s22, 3
        %s724 = scalar_select %p723, %s22, 3
        %p725 = scmp.lt.s32.totalorder %s23, 0
        %s726 = scalar_select %p725, %s23, 0
        %s727 = sadd.s32 %s726, %s724
        %s728 = smul.addr %s727, 8
        %s729 = scalar_lea.vmem %s4, %s728
      $region56: #{_lambda_.13} parent=43 // pred_fallthru
        _
    $region44: #{_lambda_.13} parent=5 // pred_fallthru
      _
  $region6: #{_lambda_.13} parent=0 // loop_footer
    %s15 = sadd.s32 1, %s11
  $region7: #{_lambda_.13} parent=0 // loop_footer_branch
    %10 = sbr.rel target = $region3
  $region8: #{_lambda_.13} parent=0 // loop_exit
    _

// kernel: _lambda_.14
$region0: #{_lambda_.14}
  #allocation0 [shape = 'u32[]', space=smem, size = 0x4, offset = 0x4, fixed_abs, tag = 'smem constant byte address 0x4 - core index']
  #allocation1 [shape = 'u32[144,128]{1,0:T(1,128)}', space=vmem, size = 0x12000, scoped, tag = 'internal scratch']
  %s0 = inlined_call_operand.vmem [shape: bf16[4,128,128], index: 0, kind: input, shape index: {}]
  %s1 = inlined_call_operand.vmem [shape: f32[1,128], index: 1, kind: input, shape index: {}]
  %s2 = inlined_call_operand.vmem [shape: f32[1,128], index: 2, kind: input, shape index: {}]
  %s3 = inlined_call_operand.vmem [shape: bf16[4,128,128], index: 3, kind: output, shape index: {}]
  %s4 = sld [smem:[#allocation0]]
  $region45: #{_lambda_.14} parent=0
    _
  %s6 = ssub.s32 1, %s4
  %s7 = scalar_select 0, %s6, %s4
  loop: start=0, step=1, limit=6
  $region2: #{_lambda_.14} parent=0 // loop_pre_header
    _
  $region3: #{_lambda_.14} parent=0 // loop_header
    %s9 = sphi 0, %s13
    %p10 = scmp.ge.s32.totalorder %s9, 6
    %s16 = sphi 0, %s28
    %s17 = sphi 0, %s24
    %s18 = sphi 0, %s16
    %s19 = sphi 0, %s17
    %s20 = sphi 0, %s18
    %s21 = sphi 0, %s19
    %s33 = sphi 0, %s35
    %s36 = sphi 0, %s33
    %s37 = sphi 0, %s36
    %s53 = sphi 0, %s37
    %s57 = sphi 0, %s57
    %s59 = sphi 0, %s57
    %s60 = sphi 0, %s59
    %s74 = sphi 0, %s60
    %s78 = sphi 0, %s78
    %s80 = sphi 0, %s78
    %s81 = sphi 0, %s80
    %s95 = sphi 0, %s81
    %s103 = sphi 0, %s105
    %s106 = sphi 0, %s103
    %s107 = sphi 0, %s106
    %s123 = sphi 0, %s107
  $region4: #{_lambda_.14} parent=0 // loop_header_branch
    %12 = sbr.rel (%p10) target = $region8
  $region5: #{_lambda_.14} parent=0 // loop_body
    %s14 = ssub.s32 %s9, 1
    %s15 = ssub.s32 %s9, 2
    %s22 = sadd.s32 1, %s17
    %p23 = scmp.ge.s32.totalorder %s22, 1
    %s24 = scalar_select %p23, 0, %s22
    %s25 = sadd.s32 1, %s16
    %s26 = scalar_select %p23, %s25, %s16
    %p27 = scmp.ge.s32.totalorder %s26, 4
    %s28 = scalar_select %p27, 0, %s26
    %s29 = ssub.s32 %s16, %s28
    %s30 = ssub.s32 %s17, %s24
    %s31 = sor.u32 %s29, %s30
    %p32 = scmp.eq.s32.totalorder %s31, 0
    %s34 = sadd.s32 %s33, 1
    %s35 = scalar_select %p32, %s33, %s34
    %p38 = pneg %p32
    %p39 = scmp.eq.s32.totalorder %s9, 3
    %p40 = por %p38, %p39
    %p41 = scmp.ne.s32.totalorder %s33, %s36
    %p42 = scmp.eq.s32.totalorder %s9, 0
    %p43 = por %p41, %p42
    %p44 = scmp.ne.s32.totalorder %s33, %s36
    %p45 = scmp.eq.s32.totalorder %s14, 3
    %p46 = por %p44, %p45
    %p47 = scmp.ne.s32.totalorder %s36, %s37
    %p48 = scmp.eq.s32.totalorder %s14, 0
    %p49 = por %p47, %p48
    %p50 = scmp.ne.s32.totalorder %s36, %s37
    %p51 = scmp.eq.s32.totalorder %s15, 3
    %p52 = por %p50, %p51
    %p54 = scmp.ne.s32.totalorder %s37, %s53
    %p55 = scmp.eq.s32.totalorder %s15, 0
    %p56 = por %p54, %p55
    %s58 = sadd.s32 %s57, 1
    %p61 = scmp.eq.s32.totalorder %s9, 3
    %p62 = scmp.ne.s32.totalorder %s57, %s59
    %p63 = scmp.eq.s32.totalorder %s9, 0
    %p64 = por %p62, %p63
    %p65 = scmp.ne.s32.totalorder %s57, %s59
    %p66 = scmp.eq.s32.totalorder %s14, 3
    %p67 = por %p65, %p66
    %p68 = scmp.ne.s32.totalorder %s59, %s60
    %p69 = scmp.eq.s32.totalorder %s14, 0
    %p70 = por %p68, %p69
    %p71 = scmp.ne.s32.totalorder %s59, %s60
    %p72 = scmp.eq.s32.totalorder %s15, 3
    %p73 = por %p71, %p72
    %p75 = scmp.ne.s32.totalorder %s60, %s74
    %p76 = scmp.eq.s32.totalorder %s15, 0
    %p77 = por %p75, %p76
    %s79 = sadd.s32 %s78, 1
    %p82 = scmp.eq.s32.totalorder %s9, 3
    %p83 = scmp.ne.s32.totalorder %s78, %s80
    %p84 = scmp.eq.s32.totalorder %s9, 0
    %p85 = por %p83, %p84
    %p86 = scmp.ne.s32.totalorder %s78, %s80
    %p87 = scmp.eq.s32.totalorder %s14, 3
    %p88 = por %p86, %p87
    %p89 = scmp.ne.s32.totalorder %s80, %s81
    %p90 = scmp.eq.s32.totalorder %s14, 0
    %p91 = por %p89, %p90
    %p92 = scmp.ne.s32.totalorder %s80, %s81
    %p93 = scmp.eq.s32.totalorder %s15, 3
    %p94 = por %p92, %p93
    %p96 = scmp.ne.s32.totalorder %s81, %s95
    %p97 = scmp.eq.s32.totalorder %s15, 0
    %p98 = por %p96, %p97
    %s99 = ssub.s32 %s16, %s28
    %s100 = ssub.s32 %s17, %s24
    %s101 = sor.u32 %s99, %s100
    %p102 = scmp.eq.s32.totalorder %s101, 0
    %s104 = sadd.s32 %s103, 1
    %s105 = scalar_select %p102, %s103, %s104
    %p108 = pneg %p102
    %p109 = scmp.eq.s32.totalorder %s9, 3
    %p110 = por %p108, %p109
    %p111 = scmp.ne.s32.totalorder %s103, %s106
    %p112 = scmp.eq.s32.totalorder %s9, 0
    %p113 = por %p111, %p112
    %p114 = scmp.ne.s32.totalorder %s103, %s106
    %p115 = scmp.eq.s32.totalorder %s14, 3
    %p116 = por %p114, %p115
    %p117 = scmp.ne.s32.totalorder %s106, %s107
    %p118 = scmp.eq.s32.totalorder %s14, 0
    %p119 = por %p117, %p118
    %p120 = scmp.ne.s32.totalorder %s106, %s107
    %p121 = scmp.eq.s32.totalorder %s15, 3
    %p122 = por %p120, %p121
    %p124 = scmp.ne.s32.totalorder %s107, %s123
    %p125 = scmp.eq.s32.totalorder %s15, 0
    %p126 = por %p124, %p125
    %p127 = scmp.le.s32.totalorder 1, %s9
    %p128 = scmp.lt.s32.totalorder %s9, 5
    %p129 = pnand %p127, %p128
    %p130 = pneg %p129
    // Predicated region
    $region9: #{_lambda_.14} parent=5 // pred_check
      _
    $region10: #{_lambda_.14} parent=5 // pred_check_branch
      %132 = sbr.rel (%p129) target = $region12
    $region11: #{_lambda_.14} parent=5 // pred_region
      %s133 = ssub.s32 %s9, 1
      // Predicated region
      $region13: #{_lambda_.14} parent=11 // pred_check
        %p134 = pneg %p70
      $region14: #{_lambda_.14} parent=11 // pred_check_branch
        %136 = sbr.rel (%p134) target = $region16
      $region15: #{_lambda_.14} parent=11 // pred_region
        _
      $region16: #{_lambda_.14} parent=11 // pred_fallthru
        _
      // Predicated region
      $region17: #{_lambda_.14} parent=11 // pred_check
        %p137 = pneg %p91
      $region18: #{_lambda_.14} parent=11 // pred_check_branch
        %139 = sbr.rel (%p137) target = $region20
      $region19: #{_lambda_.14} parent=11 // pred_region
        _
      $region20: #{_lambda_.14} parent=11 // pred_fallthru
        _
    $region12: #{_lambda_.14} parent=5 // pred_fallthru
      _
    %p140 = scmp.lt.s32.totalorder %s9, 4
    // Predicated region
    $region21: #{_lambda_.14} parent=5 // pred_check
      %p141 = pneg %p140
    $region22: #{_lambda_.14} parent=5 // pred_check_branch
      %143 = sbr.rel (%p141) target = $region24
    $region23: #{_lambda_.14} parent=5 // pred_region
      // Predicated region
      $region25: #{_lambda_.14} parent=23 // pred_check
        %p144 = pneg %p43
      $region26: #{_lambda_.14} parent=23 // pred_check_branch
        %146 = sbr.rel (%p144) target = $region28
      $region27: #{_lambda_.14} parent=23 // pred_region
        %s147 = smul.u32 16, %s17
        %p148 = scmp.lt.s32.totalorder %s16, 3
        %s149 = scalar_select %p148, %s16, 3
        %p150 = scmp.lt.s32.totalorder %s147, 15
        %s151 = scalar_select %p150, %s147, 15
        %s152 = smul.addr %s149, 16
        %s153 = sadd.s32 %s151, %s152
        %s154 = smul.addr %s153, 4
        %s155 = scalar_lea.vmem %s0, %s154
        %s156 = smul.u32 16, %s17
      $region28: #{_lambda_.14} parent=23 // pred_fallthru
        _
    $region24: #{_lambda_.14} parent=5 // pred_fallthru
      _
    %p157 = scmp.le.s32.totalorder 1, %s9
    %p158 = scmp.lt.s32.totalorder %s9, 5
    %p159 = pnand %p157, %p158
    %p160 = pneg %p159
    // Predicated region
    $region29: #{_lambda_.14} parent=5 // pred_check
      _
    $region30: #{_lambda_.14} parent=5 // pred_check_branch
      %162 = sbr.rel (%p159) target = $region32
    $region31: #{_lambda_.14} parent=5 // pred_region
      %s163 = ssub.s32 %s9, 1
      %s164 = smul.u32 16, %s19
      %p165 = scmp.lt.s32.totalorder %s18, 3
      %s166 = scalar_select %p165, %s18, 3
      %p167 = scmp.lt.s32.totalorder %s164, 15
      %s168 = scalar_select %p167, %s164, 15
      %s169 = smul.addr %s166, 16
      %s170 = sadd.s32 %s168, %s169
      %s171 = smul.addr %s170, 4
      %s172 = scalar_lea.vmem %s0, %s171
      %p173 = pneg %p49
      %p174 = pneg %p46
      %p175 = pneg %p70
      %p176 = pneg %p67
      %p177 = pneg %p91
      %p178 = pneg %p88
      %p179 = pneg %p119
      %p180 = pneg %p116
      %s181 = smul.u32 16, %s19
      %p182 = scmp.lt.s32.totalorder %s18, 3
      %s183 = scalar_select %p182, %s18, 3
      %p184 = scmp.lt.s32.totalorder %s181, 15
      %s185 = scalar_select %p184, %s181, 15
      %s186 = smul.addr %s183, 16
      %s187 = sadd.s32 %s185, %s186
      %s188 = smul.addr %s187, 4
      %s189 = scalar_lea.vmem %s3, %s188
      %s190 = smul.u32 16, %s19
      %p191 = scmp.lt.s32.totalorder %s18, 3
      %s192 = scalar_select %p191, %s18, 3
      %p193 = scmp.lt.s32.totalorder %s190, 15
      %s194 = scalar_select %p193, %s190, 15
      %s195 = smul.addr %s192, 16
      %s196 = sadd.s32 %s194, %s195
      %s197 = smul.addr %s196, 4
      %s198 = scalar_lea.vmem %s0, %s197
      %s199 = smul.u32 16, %s19
      %s200 = smul.u32 16, %s19
      %p201 = scmp.lt.s32.totalorder %s18, 3
      %s202 = scalar_select %p201, %s18, 3
      %p203 = scmp.lt.s32.totalorder %s200, 15
      %s204 = scalar_select %p203, %s200, 15
      %s205 = smul.addr %s202, 16
      %s206 = sadd.s32 %s204, %s205
      %s207 = smul.addr %s206, 4
      %s208 = scalar_lea.vmem %s3, %s207
      %s209 = smul.u32 16, %s19
      %v210 = vld [vmem:[%s198] sm:$0xf]
      %v211 = vld [vmem:[%s198 + $0x4] sm:$0xf]
      %v212 = vld [vmem:[%s198 + $0x8] sm:$0xf]
      %v213 = vld [vmem:[%s198 + $0xc] sm:$0xf]
      %v214 = vld [vmem:[%s198 + $0x10] sm:$0xf]
      %v215 = vld [vmem:[%s198 + $0x14] sm:$0xf]
      %v216 = vld [vmem:[%s198 + $0x18] sm:$0xf]
      %v217 = vld [vmem:[%s198 + $0x1c] sm:$0xf]
      %v218 = vld [vmem:[%s198 + $0x20] sm:$0xf]
      %v219 = vld [vmem:[%s198 + $0x24] sm:$0xf]
      %v220 = vld [vmem:[%s198 + $0x28] sm:$0xf]
      %v221 = vld [vmem:[%s198 + $0x2c] sm:$0xf]
      %v222 = vld [vmem:[%s198 + $0x30] sm:$0xf]
      %v223 = vld [vmem:[%s198 + $0x34] sm:$0xf]
      %v224 = vld [vmem:[%s198 + $0x38] sm:$0xf]
      %v225 = vld [vmem:[%s198 + $0x3c] sm:$0xf]
      %v226 = vunpack.c.l.bf16 %v210
      %v227 = vunpack.c.l.bf16 %v211
      %v228 = vunpack.c.l.bf16 %v212
      %v229 = vunpack.c.l.bf16 %v213
      %v230 = vunpack.c.l.bf16 %v214
      %v231 = vunpack.c.l.bf16 %v215
      %v232 = vunpack.c.l.bf16 %v216
      %v233 = vunpack.c.l.bf16 %v217
      %v234 = vunpack.c.l.bf16 %v218
      %v235 = vunpack.c.l.bf16 %v219
      %v236 = vunpack.c.l.bf16 %v220
      %v237 = vunpack.c.l.bf16 %v221
      %v238 = vunpack.c.l.bf16 %v222
      %v239 = vunpack.c.l.bf16 %v223
      %v240 = vunpack.c.l.bf16 %v224
      %v241 = vunpack.c.l.bf16 %v225
      %v242 = vld [vmem:[%s1] sm:$0x1]
      %v244 = vlaneseq
      %v245 = vshrl.u32 %v244, 7
      %v246 = vsub.s32 0, %v245
      %v247 = vrot.slane %v242, %v246
      %v249 = vmul.f32 %v226, %v247
      %v250 = vmul.f32 %v227, %v247
      %v251 = vmul.f32 %v228, %v247
      %v252 = vmul.f32 %v229, %v247
      %v253 = vmul.f32 %v230, %v247
      %v254 = vmul.f32 %v231, %v247
      %v255 = vmul.f32 %v232, %v247
      %v256 = vmul.f32 %v233, %v247
      %v257 = vmul.f32 %v234, %v247
      %v258 = vmul.f32 %v235, %v247
      %v259 = vmul.f32 %v236, %v247
      %v260 = vmul.f32 %v237, %v247
      %v261 = vmul.f32 %v238, %v247
      %v262 = vmul.f32 %v239, %v247
      %v263 = vmul.f32 %v240, %v247
      %v264 = vmul.f32 %v241, %v247
      %v265 = vld [vmem:[%s2] sm:$0x1]
      %v267 = vlaneseq
      %v268 = vshrl.u32 %v267, 7
      %v269 = vsub.s32 0, %v268
      %v270 = vrot.slane %v265, %v269
      %v272 = vadd.f32 %v249, %v270
      %v273 = vadd.f32 %v250, %v270
      %v274 = vadd.f32 %v251, %v270
      %v275 = vadd.f32 %v252, %v270
      %v276 = vadd.f32 %v253, %v270
      %v277 = vadd.f32 %v254, %v270
      %v278 = vadd.f32 %v255, %v270
      %v279 = vadd.f32 %v256, %v270
      %v280 = vadd.f32 %v257, %v270
      %v281 = vadd.f32 %v258, %v270
      %v282 = vadd.f32 %v259, %v270
      %v283 = vadd.f32 %v260, %v270
      %v284 = vadd.f32 %v261, %v270
      %v285 = vadd.f32 %v262, %v270
      %v286 = vadd.f32 %v263, %v270
      %v287 = vadd.f32 %v264, %v270
      %v288 = vmax.f32 %v272, 0.0
      %v289 = vmax.f32 %v273, 0.0
      %v290 = vmax.f32 %v274, 0.0
      %v291 = vmax.f32 %v275, 0.0
      %v292 = vmax.f32 %v276, 0.0
      %v293 = vmax.f32 %v277, 0.0
      %v294 = vmax.f32 %v278, 0.0
      %v295 = vmax.f32 %v279, 0.0
      %v296 = vmax.f32 %v280, 0.0
      %v297 = vmax.f32 %v281, 0.0
      %v298 = vmax.f32 %v282, 0.0
      %v299 = vmax.f32 %v283, 0.0
      %v300 = vmax.f32 %v284, 0.0
      %v301 = vmax.f32 %v285, 0.0
      %v302 = vmax.f32 %v286, 0.0
      %v303 = vmax.f32 %v287, 0.0
      %v304 = vpack.c.bf16 %v289, %v288
      %v305 = vpack.c.bf16 %v291, %v290
      %v306 = vpack.c.bf16 %v293, %v292
      %v307 = vpack.c.bf16 %v295, %v294
      %v308 = vpack.c.bf16 %v297, %v296
      %v309 = vpack.c.bf16 %v299, %v298
      %v310 = vpack.c.bf16 %v301, %v300
      %v311 = vpack.c.bf16 %v303, %v302
      %v320 = vunpack.c.l.b16 %v304
      %v321 = vunpack.c.h.b16 %v304
      %v322 = vunpack.c.l.b16 %v305
      %v323 = vunpack.c.h.b16 %v305
      %v324 = vunpack.c.l.b16 %v306
      %v325 = vunpack.c.h.b16 %v306
      %v326 = vunpack.c.l.b16 %v307
      %v327 = vunpack.c.h.b16 %v307
      %v328 = vunpack.c.l.b16 %v308
      %v329 = vunpack.c.h.b16 %v308
      %v330 = vunpack.c.l.b16 %v309
      %v331 = vunpack.c.h.b16 %v309
      %v332 = vunpack.c.l.b16 %v310
      %v333 = vunpack.c.h.b16 %v310
      %v334 = vunpack.c.l.b16 %v311
      %v335 = vunpack.c.h.b16 %v311
      %v336 = vpack.c.b16 %v320, %v320
      %v337 = vpack.c.b16 %v321, %v321
      %v338 = vpack.c.b16 %v322, %v322
      %v339 = vpack.c.b16 %v323, %v323
      %v340 = vpack.c.b16 %v324, %v324
      %v341 = vpack.c.b16 %v325, %v325
      %v342 = vpack.c.b16 %v326, %v326
      %v343 = vpack.c.b16 %v327, %v327
      %v344 = vpack.c.b16 %v328, %v328
      %v345 = vpack.c.b16 %v329, %v329
      %v346 = vpack.c.b16 %v330, %v330
      %v347 = vpack.c.b16 %v331, %v331
      %v348 = vpack.c.b16 %v332, %v332
      %v349 = vpack.c.b16 %v333, %v333
      %v350 = vpack.c.b16 %v334, %v334
      %v351 = vpack.c.b16 %v335, %v335
      %368 = vst [vmem:[%s208] sm:$0xf] %v336
      %369 = vst [vmem:[%s208 + $0x4] sm:$0xf] %v337
      %370 = vst [vmem:[%s208 + $0x8] sm:$0xf] %v338
      %371 = vst [vmem:[%s208 + $0xc] sm:$0xf] %v339
      %372 = vst [vmem:[%s208 + $0x10] sm:$0xf] %v340
      %373 = vst [vmem:[%s208 + $0x14] sm:$0xf] %v341
      %374 = vst [vmem:[%s208 + $0x18] sm:$0xf] %v342
      %375 = vst [vmem:[%s208 + $0x1c] sm:$0xf] %v343
      %376 = vst [vmem:[%s208 + $0x20] sm:$0xf] %v344
      %377 = vst [vmem:[%s208 + $0x24] sm:$0xf] %v345
      %378 = vst [vmem:[%s208 + $0x28] sm:$0xf] %v346
      %379 = vst [vmem:[%s208 + $0x2c] sm:$0xf] %v347
      %380 = vst [vmem:[%s208 + $0x30] sm:$0xf] %v348
      %381 = vst [vmem:[%s208 + $0x34] sm:$0xf] %v349
      %382 = vst [vmem:[%s208 + $0x38] sm:$0xf] %v350
      %383 = vst [vmem:[%s208 + $0x3c] sm:$0xf] %v351
      %s384 = smul.u32 16, %s19
      %p385 = scmp.lt.s32.totalorder %s18, 3
      %s386 = scalar_select %p385, %s18, 3
      %p387 = scmp.lt.s32.totalorder %s384, 15
      %s388 = scalar_select %p387, %s384, 15
      %s389 = smul.addr %s386, 16
      %s390 = sadd.s32 %s388, %s389
      %s391 = smul.addr %s390, 4
      %s392 = scalar_lea.vmem %s3, %s391
      // Predicated region
      $region33: #{_lambda_.14} parent=31 // pred_check
        %p393 = pneg %p116
      $region34: #{_lambda_.14} parent=31 // pred_check_branch
        %395 = sbr.rel (%p393) target = $region36
      $region35: #{_lambda_.14} parent=31 // pred_region
        %s396 = smul.u32 16, %s19
      $region36: #{_lambda_.14} parent=31 // pred_fallthru
        _
    $region32: #{_lambda_.14} parent=5 // pred_fallthru
      _
    %p397 = scmp.le.s32.totalorder 2, %s9
    // Predicated region
    $region37: #{_lambda_.14} parent=5 // pred_check
      %p398 = pneg %p397
    $region38: #{_lambda_.14} parent=5 // pred_check_branch
      %400 = sbr.rel (%p398) target = $region40
    $region39: #{_lambda_.14} parent=5 // pred_region
      %s401 = ssub.s32 %s9, 2
      // Predicated region
      $region41: #{_lambda_.14} parent=39 // pred_check
        %p402 = pneg %p122
      $region42: #{_lambda_.14} parent=39 // pred_check_branch
        %404 = sbr.rel (%p402) target = $region44
      $region43: #{_lambda_.14} parent=39 // pred_region
        %s405 = smul.u32 16, %s21
        %p406 = scmp.lt.s32.totalorder %s20, 3
        %s407 = scalar_select %p406, %s20, 3
        %p408 = scmp.lt.s32.totalorder %s405, 15
        %s409 = scalar_select %p408, %s405, 15
        %s410 = smul.addr %s407, 16
        %s411 = sadd.s32 %s409, %s410
        %s412 = smul.addr %s411, 4
        %s413 = scalar_lea.vmem %s3, %s412
      $region44: #{_lambda_.14} parent=39 // pred_fallthru
        _
    $region40: #{_lambda_.14} parent=5 // pred_fallthru
      _
  $region6: #{_lambda_.14} parent=0 // loop_footer
    %s13 = sadd.s32 1, %s9
  $region7: #{_lambda_.14} parent=0 // loop_footer_branch
    %8 = sbr.rel target = $region3
  $region8: #{_lambda_.14} parent=0 // loop_exit
    _

// kernel: _lambda_.15
$region0: #{_lambda_.15}
  #allocation0 [shape = 'u32[]', space=smem, size = 0x4, offset = 0x4, fixed_abs, tag = 'smem constant byte address 0x4 - core index']
  #allocation1 [shape = 'u32[144,128]{1,0:T(1,128)}', space=vmem, size = 0x12000, scoped, tag = 'internal scratch']
  %s0 = inlined_call_operand.vmem [shape: bf16[4,512,128], index: 0, kind: input, shape index: {}]
  %s1 = inlined_call_operand.vmem [shape: bf16[4,128,128], index: 1, kind: input, shape index: {}]
  %s2 = inlined_call_operand.vmem [shape: bf16[4,512,128], index: 2, kind: output, shape index: {0}]
  %s3 = inlined_call_operand.vmem [shape: f32[4,8,128], index: 3, kind: output, shape index: {1}]
  %s4 = inlined_call_operand.vmem [shape: f32[4,8,128], index: 4, kind: output, shape index: {2}]
  %5 = xla_tuple %s2, %s3, %s4
  %s6 = sld [smem:[#allocation0]]
  $region57: #{_lambda_.15} parent=0
    _
  %s8 = ssub.s32 1, %s6
  %s9 = scalar_select 0, %s8, %s6
  loop: start=0, step=1, limit=6
  $region2: #{_lambda_.15} parent=0 // loop_pre_header
    _
  $region3: #{_lambda_.15} parent=0 // loop_header
    %s11 = sphi 0, %s15
    %p12 = scmp.ge.s32.totalorder %s11, 6
    %s18 = sphi 0, %s30
    %s19 = sphi 0, %s26
    %s20 = sphi 0, %s18
    %s21 = sphi 0, %s19
    %s22 = sphi 0, %s20
    %s23 = sphi 0, %s21
    %s35 = sphi 0, %s37
    %s38 = sphi 0, %s35
    %s39 = sphi 0, %s38
    %s55 = sphi 0, %s39
    %s61 = sphi 0, %s63
    %s64 = sphi 0, %s61
    %s65 = sphi 0, %s64
    %s81 = sphi 0, %s65
    %s89 = sphi 0, %s91
    %s92 = sphi 0, %s89
    %s93 = sphi 0, %s92
    %s109 = sphi 0, %s93
    %s117 = sphi 0, %s119
    %s120 = sphi 0, %s117
    %s121 = sphi 0, %s120
    %s137 = sphi 0, %s121
    %s145 = sphi 0, %s147
    %s148 = sphi 0, %s145
    %s149 = sphi 0, %s148
    %s165 = sphi 0, %s149
  $region4: #{_lambda_.15} parent=0 // loop_header_branch
    %14 = sbr.rel (%p12) target = $region8
  $region5: #{_lambda_.15} parent=0 // loop_body
    %s16 = ssub.s32 %s11, 1
    %s17 = ssub.s32 %s11, 2
    %s24 = sadd.s32 1, %s19
    %p25 = scmp.ge.s32.totalorder %s24, 1
    %s26 = scalar_select %p25, 0, %s24
    %s27 = sadd.s32 1, %s18
    %s28 = scalar_select %p25, %s27, %s18
    %p29 = scmp.ge.s32.totalorder %s28, 4
    %s30 = scalar_select %p29, 0, %s28
    %s31 = ssub.s32 %s18, %s30
    %s32 = ssub.s32 %s19, %s26
    %s33 = sor.u32 %s31, %s32
    %p34 = scmp.eq.s32.totalorder %s33, 0
    %s36 = sadd.s32 %s35, 1
    %s37 = scalar_select %p34, %s35, %s36
    %p40 = pneg %p34
    %p41 = scmp.eq.s32.totalorder %s11, 3
    %p42 = por %p40, %p41
    %p43 = scmp.ne.s32.totalorder %s35, %s38
    %p44 = scmp.eq.s32.totalorder %s11, 0
    %p45 = por %p43, %p44
    %p46 = scmp.ne.s32.totalorder %s35, %s38
    %p47 = scmp.eq.s32.totalorder %s16, 3
    %p48 = por %p46, %p47
    %p49 = scmp.ne.s32.totalorder %s38, %s39
    %p50 = scmp.eq.s32.totalorder %s16, 0
    %p51 = por %p49, %p50
    %p52 = scmp.ne.s32.totalorder %s38, %s39
    %p53 = scmp.eq.s32.totalorder %s17, 3
    %p54 = por %p52, %p53
    %p56 = scmp.ne.s32.totalorder %s39, %s55
    %p57 = scmp.eq.s32.totalorder %s17, 0
    %p58 = por %p56, %p57
    %s59 = ssub.s32 %s18, %s30
    %p60 = scmp.eq.s32.totalorder %s59, 0
    %s62 = sadd.s32 %s61, 1
    %s63 = scalar_select %p60, %s61, %s62
    %p66 = pneg %p60
    %p67 = scmp.eq.s32.totalorder %s11, 3
    %p68 = por %p66, %p67
    %p69 = scmp.ne.s32.totalorder %s61, %s64
    %p70 = scmp.eq.s32.totalorder %s11, 0
    %p71 = por %p69, %p70
    %p72 = scmp.ne.s32.totalorder %s61, %s64
    %p73 = scmp.eq.s32.totalorder %s16, 3
    %p74 = por %p72, %p73
    %p75 = scmp.ne.s32.totalorder %s64, %s65
    %p76 = scmp.eq.s32.totalorder %s16, 0
    %p77 = por %p75, %p76
    %p78 = scmp.ne.s32.totalorder %s64, %s65
    %p79 = scmp.eq.s32.totalorder %s17, 3
    %p80 = por %p78, %p79
    %p82 = scmp.ne.s32.totalorder %s65, %s81
    %p83 = scmp.eq.s32.totalorder %s17, 0
    %p84 = por %p82, %p83
    %s85 = ssub.s32 %s18, %s30
    %s86 = ssub.s32 %s19, %s26
    %s87 = sor.u32 %s85, %s86
    %p88 = scmp.eq.s32.totalorder %s87, 0
    %s90 = sadd.s32 %s89, 1
    %s91 = scalar_select %p88, %s89, %s90
    %p94 = pneg %p88
    %p95 = scmp.eq.s32.totalorder %s11, 3
    %p96 = por %p94, %p95
    %p97 = scmp.ne.s32.totalorder %s89, %s92
    %p98 = scmp.eq.s32.totalorder %s11, 0
    %p99 = por %p97, %p98
    %p100 = scmp.ne.s32.totalorder %s89, %s92
    %p101 = scmp.eq.s32.totalorder %s16, 3
    %p102 = por %p100, %p101
    %p103 = scmp.ne.s32.totalorder %s92, %s93
    %p104 = scmp.eq.s32.totalorder %s16, 0
    %p105 = por %p103, %p104
    %p106 = scmp.ne.s32.totalorder %s92, %s93
    %p107 = scmp.eq.s32.totalorder %s17, 3
    %p108 = por %p106, %p107
    %p110 = scmp.ne.s32.totalorder %s93, %s109
    %p111 = scmp.eq.s32.totalorder %s17, 0
    %p112 = por %p110, %p111
    %s113 = ssub.s32 %s18, %s30
    %s114 = ssub.s32 %s19, %s26
    %s115 = sor.u32 %s113, %s114
    %p116 = scmp.eq.s32.totalorder %s115, 0
    %s118 = sadd.s32 %s117, 1
    %s119 = scalar_select %p116, %s117, %s118
    %p122 = pneg %p116
    %p123 = scmp.eq.s32.totalorder %s11, 3
    %p124 = por %p122, %p123
    %p125 = scmp.ne.s32.totalorder %s117, %s120
    %p126 = scmp.eq.s32.totalorder %s11, 0
    %p127 = por %p125, %p126
    %p128 = scmp.ne.s32.totalorder %s117, %s120
    %p129 = scmp.eq.s32.totalorder %s16, 3
    %p130 = por %p128, %p129
    %p131 = scmp.ne.s32.totalorder %s120, %s121
    %p132 = scmp.eq.s32.totalorder %s16, 0
    %p133 = por %p131, %p132
    %p134 = scmp.ne.s32.totalorder %s120, %s121
    %p135 = scmp.eq.s32.totalorder %s17, 3
    %p136 = por %p134, %p135
    %p138 = scmp.ne.s32.totalorder %s121, %s137
    %p139 = scmp.eq.s32.totalorder %s17, 0
    %p140 = por %p138, %p139
    %s141 = ssub.s32 %s18, %s30
    %s142 = ssub.s32 %s19, %s26
    %s143 = sor.u32 %s141, %s142
    %p144 = scmp.eq.s32.totalorder %s143, 0
    %s146 = sadd.s32 %s145, 1
    %s147 = scalar_select %p144, %s145, %s146
    %p150 = pneg %p144
    %p151 = scmp.eq.s32.totalorder %s11, 3
    %p152 = por %p150, %p151
    %p153 = scmp.ne.s32.totalorder %s145, %s148
    %p154 = scmp.eq.s32.totalorder %s11, 0
    %p155 = por %p153, %p154
    %p156 = scmp.ne.s32.totalorder %s145, %s148
    %p157 = scmp.eq.s32.totalorder %s16, 3
    %p158 = por %p156, %p157
    %p159 = scmp.ne.s32.totalorder %s148, %s149
    %p160 = scmp.eq.s32.totalorder %s16, 0
    %p161 = por %p159, %p160
    %p162 = scmp.ne.s32.totalorder %s148, %s149
    %p163 = scmp.eq.s32.totalorder %s17, 3
    %p164 = por %p162, %p163
    %p166 = scmp.ne.s32.totalorder %s149, %s165
    %p167 = scmp.eq.s32.totalorder %s17, 0
    %p168 = por %p166, %p167
    %p169 = scmp.le.s32.totalorder 1, %s11
    %p170 = scmp.lt.s32.totalorder %s11, 5
    %p171 = pnand %p169, %p170
    %p172 = pneg %p171
    // Predicated region
    $region9: #{_lambda_.15} parent=5 // pred_check
      _
    $region10: #{_lambda_.15} parent=5 // pred_check_branch
      %174 = sbr.rel (%p171) target = $region12
    $region11: #{_lambda_.15} parent=5 // pred_region
      %s175 = ssub.s32 %s11, 1
    $region12: #{_lambda_.15} parent=5 // pred_fallthru
      _
    %p176 = scmp.lt.s32.totalorder %s11, 4
    // Predicated region
    $region13: #{_lambda_.15} parent=5 // pred_check
      %p177 = pneg %p176
    $region14: #{_lambda_.15} parent=5 // pred_check_branch
      %179 = sbr.rel (%p177) target = $region16
    $region15: #{_lambda_.15} parent=5 // pred_region
      // Predicated region
      $region17: #{_lambda_.15} parent=15 // pred_check
        %p180 = pneg %p45
      $region18: #{_lambda_.15} parent=15 // pred_check_branch
        %182 = sbr.rel (%p180) target = $region20
      $region19: #{_lambda_.15} parent=15 // pred_region
        %s183 = smul.u32 64, %s19
        %p184 = scmp.lt.s32.totalorder %s18, 3
        %s185 = scalar_select %p184, %s18, 3
        %p186 = scmp.lt.s32.totalorder %s183, 63
        %s187 = scalar_select %p186, %s183, 63
        %s188 = smul.addr %s185, 64
        %s189 = sadd.s32 %s187, %s188
        %s190 = smul.addr %s189, 4
        %s191 = scalar_lea.vmem %s0, %s190
        %s192 = smul.u32 64, %s19
      $region20: #{_lambda_.15} parent=15 // pred_fallthru
        _
      // Predicated region
      $region21: #{_lambda_.15} parent=15 // pred_check
        %p193 = pneg %p71
      $region22: #{_lambda_.15} parent=15 // pred_check_branch
        %195 = sbr.rel (%p193) target = $region24
      $region23: #{_lambda_.15} parent=15 // pred_region
        %p196 = scmp.lt.s32.totalorder %s18, 3
        %s197 = scalar_select %p196, %s18, 3
        %s198 = smul.addr %s197, 16
        %s199 = smul.addr %s198, 4
        %s200 = scalar_lea.vmem %s1, %s199
      $region24: #{_lambda_.15} parent=15 // pred_fallthru
        _
    $region16: #{_lambda_.15} parent=5 // pred_fallthru
      _
    %p201 = scmp.le.s32.totalorder 1, %s11
    %p202 = scmp.lt.s32.totalorder %s11, 5
    %p203 = pnand %p201, %p202
    %p204 = pneg %p203
    // Predicated region
    $region25: #{_lambda_.15} parent=5 // pred_check
      _
    $region26: #{_lambda_.15} parent=5 // pred_check_branch
      %206 = sbr.rel (%p203) target = $region28
    $region27: #{_lambda_.15} parent=5 // pred_region
      %s207 = ssub.s32 %s11, 1
      %s208 = smul.u32 64, %s21
      %p209 = scmp.lt.s32.totalorder %s20, 3
      %s210 = scalar_select %p209, %s20, 3
      %p211 = scmp.lt.s32.totalorder %s208, 63
      %s212 = scalar_select %p211, %s208, 63
      %s213 = smul.addr %s210, 64
      %s214 = sadd.s32 %s212, %s213
      %s215 = smul.addr %s214, 4
      %s216 = scalar_lea.vmem %s0, %s215
      %p217 = pneg %p51
      %p218 = pneg %p48
      %p219 = scmp.lt.s32.totalorder %s20, 3
      %s220 = scalar_select %p219, %s20, 3
      %s221 = smul.addr %s220, 16
      %s222 = smul.addr %s221, 4
      %s223 = scalar_lea.vmem %s1, %s222
      %p224 = pneg %p77
      %p225 = pneg %p74
      %p226 = pneg %p105
      %p227 = pneg %p102
      %s228 = smul.u32 64, %s21
      %p229 = scmp.lt.s32.totalorder %s20, 3
      %s230 = scalar_select %p229, %s20, 3
      %p231 = scmp.lt.s32.totalorder %s228, 63
      %s232 = scalar_select %p231, %s228, 63
      %s233 = smul.addr %s230, 64
      %s234 = sadd.s32 %s232, %s233
      %s235 = smul.addr %s234, 4
      %s236 = scalar_lea.vmem %s2, %s235
      %p237 = pneg %p133
      %p238 = pneg %p130
      %p239 = scmp.lt.s32.totalorder %s20, 3
      %s240 = scalar_select %p239, %s20, 3
      %p241 = scmp.lt.s32.totalorder %s21, 0
      %s242 = scalar_select %p241, %s21, 0
      %s243 = sadd.s32 %s242, %s240
      %s244 = smul.addr %s243, 8
      %s245 = scalar_lea.vmem %s3, %s244
      %p246 = pneg %p161
      %p247 = pneg %p158
      %p248 = scmp.lt.s32.totalorder %s20, 3
      %s249 = scalar_select %p248, %s20, 3
      %p250 = scmp.lt.s32.totalorder %s21, 0
      %s251 = scalar_select %p250, %s21, 0
      %s252 = sadd.s32 %s251, %s249
      %s253 = smul.addr %s252, 8
      %s254 = scalar_lea.vmem %s4, %s253
      %s255 = smul.u32 64, %s21
      %p256 = scmp.lt.s32.totalorder %s20, 3
      %s257 = scalar_select %p256, %s20, 3
      %p258 = scmp.lt.s32.totalorder %s255, 63
      %s259 = scalar_select %p258, %s255, 63
      %s260 = smul.addr %s257, 64
      %s261 = sadd.s32 %s259, %s260
      %s262 = smul.addr %s261, 4
      %s263 = scalar_lea.vmem %s0, %s262
      %s264 = smul.u32 64, %s21
      %p265 = scmp.lt.s32.totalorder %s20, 3
      %s266 = scalar_select %p265, %s20, 3
      %s267 = smul.addr %s266, 16
      %s268 = smul.addr %s267, 4
      %s269 = scalar_lea.vmem %s1, %s268
      %s270 = smul.u32 64, %s21
      %p271 = scmp.lt.s32.totalorder %s20, 3
      %s272 = scalar_select %p271, %s20, 3
      %p273 = scmp.lt.s32.totalorder %s270, 63
      %s274 = scalar_select %p273, %s270, 63
      %s275 = smul.addr %s272, 64
      %s276 = sadd.s32 %s274, %s275
      %s277 = smul.addr %s276, 4
      %s278 = scalar_lea.vmem %s2, %s277
      %s279 = smul.u32 64, %s21
      %p280 = scmp.lt.s32.totalorder %s20, 3
      %s281 = scalar_select %p280, %s20, 3
      %p282 = scmp.lt.s32.totalorder %s21, 0
      %s283 = scalar_select %p282, %s21, 0
      %s284 = sadd.s32 %s283, %s281
      %s285 = smul.addr %s284, 8
      %s286 = scalar_lea.vmem %s3, %s285
      %p287 = scmp.lt.s32.totalorder %s20, 3
      %s288 = scalar_select %p287, %s20, 3
      %p289 = scmp.lt.s32.totalorder %s21, 0
      %s290 = scalar_select %p289, %s21, 0
      %s291 = sadd.s32 %s290, %s288
      %s292 = smul.addr %s291, 8
      %s293 = scalar_lea.vmem %s4, %s292
      %v295 = vld [vmem:[%s263] sm:$0xf]
      %v296 = vld [vmem:[%s263 + $0x4] sm:$0xf]
      %v297 = vld [vmem:[%s263 + $0x8] sm:$0xf]
      %v298 = vld [vmem:[%s263 + $0xc] sm:$0xf]
      %v299 = vld [vmem:[%s263 + $0x10] sm:$0xf]
      %v300 = vld [vmem:[%s263 + $0x14] sm:$0xf]
      %v301 = vld [vmem:[%s263 + $0x18] sm:$0xf]
      %v302 = vld [vmem:[%s263 + $0x1c] sm:$0xf]
      %v303 = vld [vmem:[%s263 + $0x20] sm:$0xf]
      %v304 = vld [vmem:[%s263 + $0x24] sm:$0xf]
      %v305 = vld [vmem:[%s263 + $0x28] sm:$0xf]
      %v306 = vld [vmem:[%s263 + $0x2c] sm:$0xf]
      %v307 = vld [vmem:[%s263 + $0x30] sm:$0xf]
      %v308 = vld [vmem:[%s263 + $0x34] sm:$0xf]
      %v309 = vld [vmem:[%s263 + $0x38] sm:$0xf]
      %v310 = vld [vmem:[%s263 + $0x3c] sm:$0xf]
      %v311 = vld [vmem:[%s263 + $0x40] sm:$0xf]
      %v312 = vld [vmem:[%s263 + $0x44] sm:$0xf]
      %v313 = vld [vmem:[%s263 + $0x48] sm:$0xf]
      %v314 = vld [vmem:[%s263 + $0x4c] sm:$0xf]
      %v315 = vld [vmem:[%s263 + $0x50] sm:$0xf]
      %v316 = vld [vmem:[%s263 + $0x54] sm:$0xf]
      %v317 = vld [vmem:[%s263 + $0x58] sm:$0xf]
      %v318 = vld [vmem:[%s263 + $0x5c] sm:$0xf]
      %v319 = vld [vmem:[%s263 + $0x60] sm:$0xf]
      %v320 = vld [vmem:[%s263 + $0x64] sm:$0xf]
      %v321 = vld [vmem:[%s263 + $0x68] sm:$0xf]
      %v322 = vld [vmem:[%s263 + $0x6c] sm:$0xf]
      %v323 = vld [vmem:[%s263 + $0x70] sm:$0xf]
      %v324 = vld [vmem:[%s263 + $0x74] sm:$0xf]
      %v325 = vld [vmem:[%s263 + $0x78] sm:$0xf]
      %v326 = vld [vmem:[%s263 + $0x7c] sm:$0xf]
      %v327 = vld [vmem:[%s263 + $0x80] sm:$0xf]
      %v328 = vld [vmem:[%s263 + $0x84] sm:$0xf]
      %v329 = vld [vmem:[%s263 + $0x88] sm:$0xf]
      %v330 = vld [vmem:[%s263 + $0x8c] sm:$0xf]
      %v331 = vld [vmem:[%s263 + $0x90] sm:$0xf]
      %v332 = vld [vmem:[%s263 + $0x94] sm:$0xf]
      %v333 = vld [vmem:[%s263 + $0x98] sm:$0xf]
      %v334 = vld [vmem:[%s263 + $0x9c] sm:$0xf]
      %v335 = vld [vmem:[%s263 + $0xa0] sm:$0xf]
      %v336 = vld [vmem:[%s263 + $0xa4] sm:$0xf]
      %v337 = vld [vmem:[%s263 + $0xa8] sm:$0xf]
      %v338 = vld [vmem:[%s263 + $0xac] sm:$0xf]
      %v339 = vld [vmem:[%s263 + $0xb0] sm:$0xf]
      %v340 = vld [vmem:[%s263 + $0xb4] sm:$0xf]
      %v341 = vld [vmem:[%s263 + $0xb8] sm:$0xf]
      %v342 = vld [vmem:[%s263 + $0xbc] sm:$0xf]
      %v343 = vld [vmem:[%s263 + $0xc0] sm:$0xf]
      %v344 = vld [vmem:[%s263 + $0xc4] sm:$0xf]
      %v345 = vld [vmem:[%s263 + $0xc8] sm:$0xf]
      %v346 = vld [vmem:[%s263 + $0xcc] sm:$0xf]
      %v347 = vld [vmem:[%s263 + $0xd0] sm:$0xf]
      %v348 = vld [vmem:[%s263 + $0xd4] sm:$0xf]
      %v349 = vld [vmem:[%s263 + $0xd8] sm:$0xf]
      %v350 = vld [vmem:[%s263 + $0xdc] sm:$0xf]
      %v351 = vld [vmem:[%s263 + $0xe0] sm:$0xf]
      %v352 = vld [vmem:[%s263 + $0xe4] sm:$0xf]
      %v353 = vld [vmem:[%s263 + $0xe8] sm:$0xf]
      %v354 = vld [vmem:[%s263 + $0xec] sm:$0xf]
      %v355 = vld [vmem:[%s263 + $0xf0] sm:$0xf]
      %v356 = vld [vmem:[%s263 + $0xf4] sm:$0xf]
      %v357 = vld [vmem:[%s263 + $0xf8] sm:$0xf]
      %v358 = vld [vmem:[%s263 + $0xfc] sm:$0xf]
      %v359 = vld [vmem:[%s269] sm:$0xf]
      %v360 = vld [vmem:[%s269 + $0x4] sm:$0xf]
      %v361 = vld [vmem:[%s269 + $0x8] sm:$0xf]
      %v362 = vld [vmem:[%s269 + $0xc] sm:$0xf]
      %v363 = vld [vmem:[%s269 + $0x10] sm:$0xf]
      %v364 = vld [vmem:[%s269 + $0x14] sm:$0xf]
      %v365 = vld [vmem:[%s269 + $0x18] sm:$0xf]
      %v366 = vld [vmem:[%s269 + $0x1c] sm:$0xf]
      %v367 = vld [vmem:[%s269 + $0x20] sm:$0xf]
      %v368 = vld [vmem:[%s269 + $0x24] sm:$0xf]
      %v369 = vld [vmem:[%s269 + $0x28] sm:$0xf]
      %v370 = vld [vmem:[%s269 + $0x2c] sm:$0xf]
      %v371 = vld [vmem:[%s269 + $0x30] sm:$0xf]
      %v372 = vld [vmem:[%s269 + $0x34] sm:$0xf]
      %v373 = vld [vmem:[%s269 + $0x38] sm:$0xf]
      %v374 = vld [vmem:[%s269 + $0x3c] sm:$0xf]
      %v439 = vunpack.c.l.b16 %v295
      %v440 = vunpack.c.l.b16 %v296
      %v441 = vunpack.c.l.b16 %v297
      %v442 = vunpack.c.l.b16 %v298
      %v443 = vunpack.c.l.b16 %v299
      %v444 = vunpack.c.l.b16 %v300
      %v445 = vunpack.c.l.b16 %v301
      %v446 = vunpack.c.l.b16 %v302
      %v447 = vunpack.c.l.b16 %v303
      %v448 = vunpack.c.l.b16 %v304
      %v449 = vunpack.c.l.b16 %v305
      %v450 = vunpack.c.l.b16 %v306
      %v451 = vunpack.c.l.b16 %v307
      %v452 = vunpack.c.l.b16 %v308
      %v453 = vunpack.c.l.b16 %v309
      %v454 = vunpack.c.l.b16 %v310
      %v455 = vunpack.c.l.b16 %v311
      %v456 = vunpack.c.l.b16 %v312
      %v457 = vunpack.c.l.b16 %v313
      %v458 = vunpack.c.l.b16 %v314
      %v459 = vunpack.c.l.b16 %v315
      %v460 = vunpack.c.l.b16 %v316
      %v461 = vunpack.c.l.b16 %v317
      %v462 = vunpack.c.l.b16 %v318
      %v463 = vunpack.c.l.b16 %v319
      %v464 = vunpack.c.l.b16 %v320
      %v465 = vunpack.c.l.b16 %v321
      %v466 = vunpack.c.l.b16 %v322
      %v467 = vunpack.c.l.b16 %v323
      %v468 = vunpack.c.l.b16 %v324
      %v469 = vunpack.c.l.b16 %v325
      %v470 = vunpack.c.l.b16 %v326
      %v471 = vunpack.c.l.b16 %v327
      %v472 = vunpack.c.l.b16 %v328
      %v473 = vunpack.c.l.b16 %v329
      %v474 = vunpack.c.l.b16 %v330
      %v475 = vunpack.c.l.b16 %v331
      %v476 = vunpack.c.l.b16 %v332
      %v477 = vunpack.c.l.b16 %v333
      %v478 = vunpack.c.l.b16 %v334
      %v479 = vunpack.c.l.b16 %v335
      %v480 = vunpack.c.l.b16 %v336
      %v481 = vunpack.c.l.b16 %v337
      %v482 = vunpack.c.l.b16 %v338
      %v483 = vunpack.c.l.b16 %v339
      %v484 = vunpack.c.l.b16 %v340
      %v485 = vunpack.c.l.b16 %v341
      %v486 = vunpack.c.l.b16 %v342
      %v487 = vunpack.c.l.b16 %v343
      %v488 = vunpack.c.l.b16 %v344
      %v489 = vunpack.c.l.b16 %v345
      %v490 = vunpack.c.l.b16 %v346
      %v491 = vunpack.c.l.b16 %v347
      %v492 = vunpack.c.l.b16 %v348
      %v493 = vunpack.c.l.b16 %v349
      %v494 = vunpack.c.l.b16 %v350
      %v495 = vunpack.c.l.b16 %v351
      %v496 = vunpack.c.l.b16 %v352
      %v497 = vunpack.c.l.b16 %v353
      %v498 = vunpack.c.l.b16 %v354
      %v499 = vunpack.c.l.b16 %v355
      %v500 = vunpack.c.l.b16 %v356
      %v501 = vunpack.c.l.b16 %v357
      %v502 = vunpack.c.l.b16 %v358
      %v503 = vpack.c.b16 %v440, %v439
      %v504 = vpack.c.b16 %v442, %v441
      %v505 = vpack.c.b16 %v444, %v443
      %v506 = vpack.c.b16 %v446, %v445
      %v507 = vpack.c.b16 %v448, %v447
      %v508 = vpack.c.b16 %v450, %v449
      %v509 = vpack.c.b16 %v452, %v451
      %v510 = vpack.c.b16 %v454, %v453
      %v511 = vpack.c.b16 %v456, %v455
      %v512 = vpack.c.b16 %v458, %v457
      %v513 = vpack.c.b16 %v460, %v459
      %v514 = vpack.c.b16 %v462, %v461
      %v515 = vpack.c.b16 %v464, %v463
      %v516 = vpack.c.b16 %v466, %v465
      %v517 = vpack.c.b16 %v468, %v467
      %v518 = vpack.c.b16 %v470, %v469
      %v519 = vpack.c.b16 %v472, %v471
      %v520 = vpack.c.b16 %v474, %v473
      %v521 = vpack.c.b16 %v476, %v475
      %v522 = vpack.c.b16 %v478, %v477
      %v523 = vpack.c.b16 %v480, %v479
      %v524 = vpack.c.b16 %v482, %v481
      %v525 = vpack.c.b16 %v484, %v483
      %v526 = vpack.c.b16 %v486, %v485
      %v527 = vpack.c.b16 %v488, %v487
      %v528 = vpack.c.b16 %v490, %v489
      %v529 = vpack.c.b16 %v492, %v491
      %v530 = vpack.c.b16 %v494, %v493
      %v531 = vpack.c.b16 %v496, %v495
      %v532 = vpack.c.b16 %v498, %v497
      %v533 = vpack.c.b16 %v500, %v499
      %v534 = vpack.c.b16 %v502, %v501
      %v583 = vunpack.c.l.b16 %v359
      %v584 = vunpack.c.l.b16 %v360
      %v585 = vunpack.c.l.b16 %v361
      %v586 = vunpack.c.l.b16 %v362
      %v587 = vunpack.c.l.b16 %v363
      %v588 = vunpack.c.l.b16 %v364
      %v589 = vunpack.c.l.b16 %v365
      %v590 = vunpack.c.l.b16 %v366
      %v591 = vunpack.c.l.b16 %v367
      %v592 = vunpack.c.l.b16 %v368
      %v593 = vunpack.c.l.b16 %v369
      %v594 = vunpack.c.l.b16 %v370
      %v595 = vunpack.c.l.b16 %v371
      %v596 = vunpack.c.l.b16 %v372
      %v597 = vunpack.c.l.b16 %v373
      %v598 = vunpack.c.l.b16 %v374
      %v599 = vpack.c.b16 %v584, %v583
      %v600 = vpack.c.b16 %v586, %v585
      %v601 = vpack.c.b16 %v588, %v587
      %v602 = vpack.c.b16 %v590, %v589
      %v603 = vpack.c.b16 %v592, %v591
      %v604 = vpack.c.b16 %v594, %v593
      %v605 = vpack.c.b16 %v596, %v595
      %v606 = vpack.c.b16 %v598, %v597
      %615 = vmatprep.subr.bf16.mxu0 0
      %616 = vmatpush1.bf16.msra.mxu0 %v606
      %617 = vmatprep.subr.bf16.mxu0 0
      %618 = vmatpush1.bf16.msra.mxu0 %v605
      %619 = vmatprep.subr.bf16.mxu0 0
      %620 = vmatpush1.bf16.msra.mxu0 %v604
      %621 = vmatprep.subr.bf16.mxu0 0
      %622 = vmatpush1.bf16.msra.mxu0 %v603
      %623 = vmatprep.subr.bf16.mxu0 0
      %624 = vmatpush1.bf16.msra.mxu0 %v602
      %625 = vmatprep.subr.bf16.mxu0 0
      %626 = vmatpush1.bf16.msra.mxu0 %v601
      %627 = vmatprep.subr.bf16.mxu0 0
      %628 = vmatpush1.bf16.msra.mxu0 %v600
      %629 = vmatprep.subr.bf16.mxu0 0
      %630 = vmatpush1.bf16.msra.mxu0 %v599
      %631 = vmatprep.subr.bf16.mxu0 0
      %632 = vmatpush2.bf16.msra.mxu0 0
      %633 = vmatprep.subr.bf16.mxu0 0
      %634 = vmatpush2.bf16.msra.mxu0 0
      %635 = vmatprep.subr.bf16.mxu0 0
      %636 = vmatpush2.bf16.msra.mxu0 0
      %637 = vmatprep.subr.bf16.mxu0 0
      %638 = vmatpush2.bf16.msra.mxu0 0
      %639 = vmatprep.subr.bf16.mxu0 0
      %640 = vmatpush2.bf16.msra.mxu0 0
      %641 = vmatprep.subr.bf16.mxu0 0
      %642 = vmatpush2.bf16.msra.mxu0 0
      %643 = vmatprep.subr.bf16.mxu0 0
      %644 = vmatpush2.bf16.msra.mxu0 0
      %645 = vmatprep.subr.bf16.mxu0 0
      %646 = vmatpush2.bf16.msra.mxu0 0
      %647 = vmatprep.mubr.bf16.mxu0 0
      %648 = vmatmul.mubr.bf16.gmra.mxu0 %v503
      %v649 = vpop.f32.mrf.mxu0
      %v650 = vadd.f32 0.0, %v649
      %v651 = vpop.f32.mrf.mxu0
      %v652 = vpop.f32.mrf.mxu0
      %v653 = vadd.f32 0.0, %v652
      %v654 = vpop.f32.mrf.mxu0
      %655 = vmatprep.mubr.bf16.mxu0 0
      %656 = vmatmul.mubr.bf16.gmra.mxu0 %v504
      %v657 = vpop.f32.mrf.mxu0
      %v658 = vadd.f32 0.0, %v657
      %v659 = vpop.f32.mrf.mxu0
      %v660 = vpop.f32.mrf.mxu0
      %v661 = vadd.f32 0.0, %v660
      %v662 = vpop.f32.mrf.mxu0
      %663 = vmatprep.mubr.bf16.mxu0 0
      %664 = vmatmul.mubr.bf16.gmra.mxu0 %v505
      %v665 = vpop.f32.mrf.mxu0
      %v666 = vadd.f32 0.0, %v665
      %v667 = vpop.f32.mrf.mxu0
      %v668 = vpop.f32.mrf.mxu0
      %v669 = vadd.f32 0.0, %v668
      %v670 = vpop.f32.mrf.mxu0
      %671 = vmatprep.mubr.bf16.mxu0 0
      %672 = vmatmul.mubr.bf16.gmra.mxu0 %v506
      %v673 = vpop.f32.mrf.mxu0
      %v674 = vadd.f32 0.0, %v673
      %v675 = vpop.f32.mrf.mxu0
      %v676 = vpop.f32.mrf.mxu0
      %v677 = vadd.f32 0.0, %v676
      %v678 = vpop.f32.mrf.mxu0
      %679 = vmatprep.mubr.bf16.mxu0 0
      %680 = vmatmul.mubr.bf16.gmra.mxu0 %v507
      %v681 = vpop.f32.mrf.mxu0
      %v682 = vadd.f32 0.0, %v681
      %v683 = vpop.f32.mrf.mxu0
      %v684 = vpop.f32.mrf.mxu0
      %v685 = vadd.f32 0.0, %v684
      %v686 = vpop.f32.mrf.mxu0
      %687 = vmatprep.mubr.bf16.mxu0 0
      %688 = vmatmul.mubr.bf16.gmra.mxu0 %v508
      %v689 = vpop.f32.mrf.mxu0
      %v690 = vadd.f32 0.0, %v689
      %v691 = vpop.f32.mrf.mxu0
      %v692 = vpop.f32.mrf.mxu0
      %v693 = vadd.f32 0.0, %v692
      %v694 = vpop.f32.mrf.mxu0
      %695 = vmatprep.mubr.bf16.mxu0 0
      %696 = vmatmul.mubr.bf16.gmra.mxu0 %v509
      %v697 = vpop.f32.mrf.mxu0
      %v698 = vadd.f32 0.0, %v697
      %v699 = vpop.f32.mrf.mxu0
      %v700 = vpop.f32.mrf.mxu0
      %v701 = vadd.f32 0.0, %v700
      %v702 = vpop.f32.mrf.mxu0
      %703 = vmatprep.mubr.bf16.mxu0 0
      %704 = vmatmul.mubr.bf16.gmra.mxu0 %v510
      %v705 = vpop.f32.mrf.mxu0
      %v706 = vadd.f32 0.0, %v705
      %v707 = vpop.f32.mrf.mxu0
      %v708 = vpop.f32.mrf.mxu0
      %v709 = vadd.f32 0.0, %v708
      %v710 = vpop.f32.mrf.mxu0
      %711 = vmatprep.mubr.bf16.mxu0 0
      %712 = vmatmul.mubr.bf16.gmra.mxu0 %v511
      %v713 = vpop.f32.mrf.mxu0
      %v714 = vadd.f32 0.0, %v713
      %v715 = vpop.f32.mrf.mxu0
      %v716 = vpop.f32.mrf.mxu0
      %v717 = vadd.f32 0.0, %v716
      %v718 = vpop.f32.mrf.mxu0
      %719 = vmatprep.mubr.bf16.mxu0 0
      %720 = vmatmul.mubr.bf16.gmra.mxu0 %v512
      %v721 = vpop.f32.mrf.mxu0
      %v722 = vadd.f32 0.0, %v721
      %v723 = vpop.f32.mrf.mxu0
      %v724 = vpop.f32.mrf.mxu0
      %v725 = vadd.f32 0.0, %v724
      %v726 = vpop.f32.mrf.mxu0
      %727 = vmatprep.mubr.bf16.mxu0 0
      %728 = vmatmul.mubr.bf16.gmra.mxu0 %v513
      %v729 = vpop.f32.mrf.mxu0
      %v730 = vadd.f32 0.0, %v729
      %v731 = vpop.f32.mrf.mxu0
      %v732 = vpop.f32.mrf.mxu0
      %v733 = vadd.f32 0.0, %v732
      %v734 = vpop.f32.mrf.mxu0
      %735 = vmatprep.mubr.bf16.mxu0 0
      %736 = vmatmul.mubr.bf16.gmra.mxu0 %v514
      %v737 = vpop.f32.mrf.mxu0
      %v738 = vadd.f32 0.0, %v737
      %v739 = vpop.f32.mrf.mxu0
      %v740 = vpop.f32.mrf.mxu0
      %v741 = vadd.f32 0.0, %v740
      %v742 = vpop.f32.mrf.mxu0
      %743 = vmatprep.mubr.bf16.mxu0 0
      %744 = vmatmul.mubr.bf16.gmra.mxu0 %v515
      %v745 = vpop.f32.mrf.mxu0
      %v746 = vadd.f32 0.0, %v745
      %v747 = vpop.f32.mrf.mxu0
      %v748 = vpop.f32.mrf.mxu0
      %v749 = vadd.f32 0.0, %v748
      %v750 = vpop.f32.mrf.mxu0
      %751 = vmatprep.mubr.bf16.mxu0 0
      %752 = vmatmul.mubr.bf16.gmra.mxu0 %v516
      %v753 = vpop.f32.mrf.mxu0
      %v754 = vadd.f32 0.0, %v753
      %v755 = vpop.f32.mrf.mxu0
      %v756 = vpop.f32.mrf.mxu0
      %v757 = vadd.f32 0.0, %v756
      %v758 = vpop.f32.mrf.mxu0
      %759 = vmatprep.mubr.bf16.mxu0 0
      %760 = vmatmul.mubr.bf16.gmra.mxu0 %v517
      %v761 = vpop.f32.mrf.mxu0
      %v762 = vadd.f32 0.0, %v761
      %v763 = vpop.f32.mrf.mxu0
      %v764 = vpop.f32.mrf.mxu0
      %v765 = vadd.f32 0.0, %v764
      %v766 = vpop.f32.mrf.mxu0
      %767 = vmatprep.mubr.bf16.mxu0 0
      %768 = vmatmul.mubr.bf16.gmra.mxu0 %v518
      %v769 = vpop.f32.mrf.mxu0
      %v770 = vadd.f32 0.0, %v769
      %v771 = vpop.f32.mrf.mxu0
      %v772 = vpop.f32.mrf.mxu0
      %v773 = vadd.f32 0.0, %v772
      %v774 = vpop.f32.mrf.mxu0
      %775 = vmatprep.mubr.bf16.mxu0 0
      %776 = vmatmul.mubr.bf16.gmra.mxu0 %v519
      %v777 = vpop.f32.mrf.mxu0
      %v778 = vadd.f32 0.0, %v777
      %v779 = vpop.f32.mrf.mxu0
      %v780 = vpop.f32.mrf.mxu0
      %v781 = vadd.f32 0.0, %v780
      %v782 = vpop.f32.mrf.mxu0
      %783 = vmatprep.mubr.bf16.mxu0 0
      %784 = vmatmul.mubr.bf16.gmra.mxu0 %v520
      %v785 = vpop.f32.mrf.mxu0
      %v786 = vadd.f32 0.0, %v785
      %v787 = vpop.f32.mrf.mxu0
      %v788 = vpop.f32.mrf.mxu0
      %v789 = vadd.f32 0.0, %v788
      %v790 = vpop.f32.mrf.mxu0
      %791 = vmatprep.mubr.bf16.mxu0 0
      %792 = vmatmul.mubr.bf16.gmra.mxu0 %v521
      %v793 = vpop.f32.mrf.mxu0
      %v794 = vadd.f32 0.0, %v793
      %v795 = vpop.f32.mrf.mxu0
      %v796 = vpop.f32.mrf.mxu0
      %v797 = vadd.f32 0.0, %v796
      %v798 = vpop.f32.mrf.mxu0
      %799 = vmatprep.mubr.bf16.mxu0 0
      %800 = vmatmul.mubr.bf16.gmra.mxu0 %v522
      %v801 = vpop.f32.mrf.mxu0
      %v802 = vadd.f32 0.0, %v801
      %v803 = vpop.f32.mrf.mxu0
      %v804 = vpop.f32.mrf.mxu0
      %v805 = vadd.f32 0.0, %v804
      %v806 = vpop.f32.mrf.mxu0
      %807 = vmatprep.mubr.bf16.mxu0 0
      %808 = vmatmul.mubr.bf16.gmra.mxu0 %v523
      %v809 = vpop.f32.mrf.mxu0
      %v810 = vadd.f32 0.0, %v809
      %v811 = vpop.f32.mrf.mxu0
      %v812 = vpop.f32.mrf.mxu0
      %v813 = vadd.f32 0.0, %v812
      %v814 = vpop.f32.mrf.mxu0
      %815 = vmatprep.mubr.bf16.mxu0 0
      %816 = vmatmul.mubr.bf16.gmra.mxu0 %v524
      %v817 = vpop.f32.mrf.mxu0
      %v818 = vadd.f32 0.0, %v817
      %v819 = vpop.f32.mrf.mxu0
      %v820 = vpop.f32.mrf.mxu0
      %v821 = vadd.f32 0.0, %v820
      %v822 = vpop.f32.mrf.mxu0
      %823 = vmatprep.mubr.bf16.mxu0 0
      %824 = vmatmul.mubr.bf16.gmra.mxu0 %v525
      %v825 = vpop.f32.mrf.mxu0
      %v826 = vadd.f32 0.0, %v825
      %v827 = vpop.f32.mrf.mxu0
      %v828 = vpop.f32.mrf.mxu0
      %v829 = vadd.f32 0.0, %v828
      %v830 = vpop.f32.mrf.mxu0
      %831 = vmatprep.mubr.bf16.mxu0 0
      %832 = vmatmul.mubr.bf16.gmra.mxu0 %v526
      %v833 = vpop.f32.mrf.mxu0
      %v834 = vadd.f32 0.0, %v833
      %v835 = vpop.f32.mrf.mxu0
      %v836 = vpop.f32.mrf.mxu0
      %v837 = vadd.f32 0.0, %v836
      %v838 = vpop.f32.mrf.mxu0
      %839 = vmatprep.mubr.bf16.mxu0 0
      %840 = vmatmul.mubr.bf16.gmra.mxu0 %v527
      %v841 = vpop.f32.mrf.mxu0
      %v842 = vadd.f32 0.0, %v841
      %v843 = vpop.f32.mrf.mxu0
      %v844 = vpop.f32.mrf.mxu0
      %v845 = vadd.f32 0.0, %v844
      %v846 = vpop.f32.mrf.mxu0
      %847 = vmatprep.mubr.bf16.mxu0 0
      %848 = vmatmul.mubr.bf16.gmra.mxu0 %v528
      %v849 = vpop.f32.mrf.mxu0
      %v850 = vadd.f32 0.0, %v849
      %v851 = vpop.f32.mrf.mxu0
      %v852 = vpop.f32.mrf.mxu0
      %v853 = vadd.f32 0.0, %v852
      %v854 = vpop.f32.mrf.mxu0
      %855 = vmatprep.mubr.bf16.mxu0 0
      %856 = vmatmul.mubr.bf16.gmra.mxu0 %v529
      %v857 = vpop.f32.mrf.mxu0
      %v858 = vadd.f32 0.0, %v857
      %v859 = vpop.f32.mrf.mxu0
      %v860 = vpop.f32.mrf.mxu0
      %v861 = vadd.f32 0.0, %v860
      %v862 = vpop.f32.mrf.mxu0
      %863 = vmatprep.mubr.bf16.mxu0 0
      %864 = vmatmul.mubr.bf16.gmra.mxu0 %v530
      %v865 = vpop.f32.mrf.mxu0
      %v866 = vadd.f32 0.0, %v865
      %v867 = vpop.f32.mrf.mxu0
      %v868 = vpop.f32.mrf.mxu0
      %v869 = vadd.f32 0.0, %v868
      %v870 = vpop.f32.mrf.mxu0
      %871 = vmatprep.mubr.bf16.mxu0 0
      %872 = vmatmul.mubr.bf16.gmra.mxu0 %v531
      %v873 = vpop.f32.mrf.mxu0
      %v874 = vadd.f32 0.0, %v873
      %v875 = vpop.f32.mrf.mxu0
      %v876 = vpop.f32.mrf.mxu0
      %v877 = vadd.f32 0.0, %v876
      %v878 = vpop.f32.mrf.mxu0
      %879 = vmatprep.mubr.bf16.mxu0 0
      %880 = vmatmul.mubr.bf16.gmra.mxu0 %v532
      %v881 = vpop.f32.mrf.mxu0
      %v882 = vadd.f32 0.0, %v881
      %v883 = vpop.f32.mrf.mxu0
      %v884 = vpop.f32.mrf.mxu0
      %v885 = vadd.f32 0.0, %v884
      %v886 = vpop.f32.mrf.mxu0
      %887 = vmatprep.mubr.bf16.mxu0 0
      %888 = vmatmul.mubr.bf16.gmra.mxu0 %v533
      %v889 = vpop.f32.mrf.mxu0
      %v890 = vadd.f32 0.0, %v889
      %v891 = vpop.f32.mrf.mxu0
      %v892 = vpop.f32.mrf.mxu0
      %v893 = vadd.f32 0.0, %v892
      %v894 = vpop.f32.mrf.mxu0
      %895 = vmatprep.mubr.bf16.mxu0 0
      %896 = vmatmul.mubr.bf16.gmra.mxu0 %v534
      %v897 = vpop.f32.mrf.mxu0
      %v898 = vadd.f32 0.0, %v897
      %v899 = vpop.f32.mrf.mxu0
      %v900 = vpop.f32.mrf.mxu0
      %v901 = vadd.f32 0.0, %v900
      %v902 = vpop.f32.mrf.mxu0
      %903 = vdwg.mxu0
      %v904 = vpack.c.bf16 %v653, %v650
      %v905 = vpack.c.bf16 %v661, %v658
      %v906 = vpack.c.bf16 %v669, %v666
      %v907 = vpack.c.bf16 %v677, %v674
      %v908 = vpack.c.bf16 %v685, %v682
      %v909 = vpack.c.bf16 %v693, %v690
      %v910 = vpack.c.bf16 %v701, %v698
      %v911 = vpack.c.bf16 %v709, %v706
      %v912 = vpack.c.bf16 %v717, %v714
      %v913 = vpack.c.bf16 %v725, %v722
      %v914 = vpack.c.bf16 %v733, %v730
      %v915 = vpack.c.bf16 %v741, %v738
      %v916 = vpack.c.bf16 %v749, %v746
      %v917 = vpack.c.bf16 %v757, %v754
      %v918 = vpack.c.bf16 %v765, %v762
      %v919 = vpack.c.bf16 %v773, %v770
      %v920 = vpack.c.bf16 %v781, %v778
      %v921 = vpack.c.bf16 %v789, %v786
      %v922 = vpack.c.bf16 %v797, %v794
      %v923 = vpack.c.bf16 %v805, %v802
      %v924 = vpack.c.bf16 %v813, %v810
      %v925 = vpack.c.bf16 %v821, %v818
      %v926 = vpack.c.bf16 %v829, %v826
      %v927 = vpack.c.bf16 %v837, %v834
      %v928 = vpack.c.bf16 %v845, %v842
      %v929 = vpack.c.bf16 %v853, %v850
      %v930 = vpack.c.bf16 %v861, %v858
      %v931 = vpack.c.bf16 %v869, %v866
      %v932 = vpack.c.bf16 %v877, %v874
      %v933 = vpack.c.bf16 %v885, %v882
      %v934 = vpack.c.bf16 %v893, %v890
      %v935 = vpack.c.bf16 %v901, %v898
      %v968 = vunpack.c.l.b16 %v904
      %v969 = vunpack.c.h.b16 %v904
      %v970 = vunpack.c.l.b16 %v905
      %v971 = vunpack.c.h.b16 %v905
      %v972 = vunpack.c.l.b16 %v906
      %v973 = vunpack.c.h.b16 %v906
      %v974 = vunpack.c.l.b16 %v907
      %v975 = vunpack.c.h.b16 %v907
      %v976 = vunpack.c.l.b16 %v908
      %v977 = vunpack.c.h.b16 %v908
      %v978 = vunpack.c.l.b16 %v909
      %v979 = vunpack.c.h.b16 %v909
      %v980 = vunpack.c.l.b16 %v910
      %v981 = vunpack.c.h.b16 %v910
      %v982 = vunpack.c.l.b16 %v911
      %v983 = vunpack.c.h.b16 %v911
      %v984 = vunpack.c.l.b16 %v912
      %v985 = vunpack.c.h.b16 %v912
      %v986 = vunpack.c.l.b16 %v913
      %v987 = vunpack.c.h.b16 %v913
      %v988 = vunpack.c.l.b16 %v914
      %v989 = vunpack.c.h.b16 %v914
      %v990 = vunpack.c.l.b16 %v915
      %v991 = vunpack.c.h.b16 %v915
      %v992 = vunpack.c.l.b16 %v916
      %v993 = vunpack.c.h.b16 %v916
      %v994 = vunpack.c.l.b16 %v917
      %v995 = vunpack.c.h.b16 %v917
      %v996 = vunpack.c.l.b16 %v918
      %v997 = vunpack.c.h.b16 %v918
      %v998 = vunpack.c.l.b16 %v919
      %v999 = vunpack.c.h.b16 %v919
      %v1000 = vunpack.c.l.b16 %v920
      %v1001 = vunpack.c.h.b16 %v920
      %v1002 = vunpack.c.l.b16 %v921
      %v1003 = vunpack.c.h.b16 %v921
      %v1004 = vunpack.c.l.b16 %v922
      %v1005 = vunpack.c.h.b16 %v922
      %v1006 = vunpack.c.l.b16 %v923
      %v1007 = vunpack.c.h.b16 %v923
      %v1008 = vunpack.c.l.b16 %v924
      %v1009 = vunpack.c.h.b16 %v924
      %v1010 = vunpack.c.l.b16 %v925
      %v1011 = vunpack.c.h.b16 %v925
      %v1012 = vunpack.c.l.b16 %v926
      %v1013 = vunpack.c.h.b16 %v926
      %v1014 = vunpack.c.l.b16 %v927
      %v1015 = vunpack.c.h.b16 %v927
      %v1016 = vunpack.c.l.b16 %v928
      %v1017 = vunpack.c.h.b16 %v928
      %v1018 = vunpack.c.l.b16 %v929
      %v1019 = vunpack.c.h.b16 %v929
      %v1020 = vunpack.c.l.b16 %v930
      %v1021 = vunpack.c.h.b16 %v930
      %v1022 = vunpack.c.l.b16 %v931
      %v1023 = vunpack.c.h.b16 %v931
      %v1024 = vunpack.c.l.b16 %v932
      %v1025 = vunpack.c.h.b16 %v932
      %v1026 = vunpack.c.l.b16 %v933
      %v1027 = vunpack.c.h.b16 %v933
      %v1028 = vunpack.c.l.b16 %v934
      %v1029 = vunpack.c.h.b16 %v934
      %v1030 = vunpack.c.l.b16 %v935
      %v1031 = vunpack.c.h.b16 %v935
      %v1032 = vpack.c.b16 %v968, %v968
      %v1033 = vpack.c.b16 %v969, %v969
      %v1034 = vpack.c.b16 %v970, %v970
      %v1035 = vpack.c.b16 %v971, %v971
      %v1036 = vpack.c.b16 %v972, %v972
      %v1037 = vpack.c.b16 %v973, %v973
      %v1038 = vpack.c.b16 %v974, %v974
      %v1039 = vpack.c.b16 %v975, %v975
      %v1040 = vpack.c.b16 %v976, %v976
      %v1041 = vpack.c.b16 %v977, %v977
      %v1042 = vpack.c.b16 %v978, %v978
      %v1043 = vpack.c.b16 %v979, %v979
      %v1044 = vpack.c.b16 %v980, %v980
      %v1045 = vpack.c.b16 %v981, %v981
      %v1046 = vpack.c.b16 %v982, %v982
      %v1047 = vpack.c.b16 %v983, %v983
      %v1048 = vpack.c.b16 %v984, %v984
      %v1049 = vpack.c.b16 %v985, %v985
      %v1050 = vpack.c.b16 %v986, %v986
      %v1051 = vpack.c.b16 %v987, %v987
      %v1052 = vpack.c.b16 %v988, %v988
      %v1053 = vpack.c.b16 %v989, %v989
      %v1054 = vpack.c.b16 %v990, %v990
      %v1055 = vpack.c.b16 %v991, %v991
      %v1056 = vpack.c.b16 %v992, %v992
      %v1057 = vpack.c.b16 %v993, %v993
      %v1058 = vpack.c.b16 %v994, %v994
      %v1059 = vpack.c.b16 %v995, %v995
      %v1060 = vpack.c.b16 %v996, %v996
      %v1061 = vpack.c.b16 %v997, %v997
      %v1062 = vpack.c.b16 %v998, %v998
      %v1063 = vpack.c.b16 %v999, %v999
      %v1064 = vpack.c.b16 %v1000, %v1000
      %v1065 = vpack.c.b16 %v1001, %v1001
      %v1066 = vpack.c.b16 %v1002, %v1002
      %v1067 = vpack.c.b16 %v1003, %v1003
      %v1068 = vpack.c.b16 %v1004, %v1004
      %v1069 = vpack.c.b16 %v1005, %v1005
      %v1070 = vpack.c.b16 %v1006, %v1006
      %v1071 = vpack.c.b16 %v1007, %v1007
      %v1072 = vpack.c.b16 %v1008, %v1008
      %v1073 = vpack.c.b16 %v1009, %v1009
      %v1074 = vpack.c.b16 %v1010, %v1010
      %v1075 = vpack.c.b16 %v1011, %v1011
      %v1076 = vpack.c.b16 %v1012, %v1012
      %v1077 = vpack.c.b16 %v1013, %v1013
      %v1078 = vpack.c.b16 %v1014, %v1014
      %v1079 = vpack.c.b16 %v1015, %v1015
      %v1080 = vpack.c.b16 %v1016, %v1016
      %v1081 = vpack.c.b16 %v1017, %v1017
      %v1082 = vpack.c.b16 %v1018, %v1018
      %v1083 = vpack.c.b16 %v1019, %v1019
      %v1084 = vpack.c.b16 %v1020, %v1020
      %v1085 = vpack.c.b16 %v1021, %v1021
      %v1086 = vpack.c.b16 %v1022, %v1022
      %v1087 = vpack.c.b16 %v1023, %v1023
      %v1088 = vpack.c.b16 %v1024, %v1024
      %v1089 = vpack.c.b16 %v1025, %v1025
      %v1090 = vpack.c.b16 %v1026, %v1026
      %v1091 = vpack.c.b16 %v1027, %v1027
      %v1092 = vpack.c.b16 %v1028, %v1028
      %v1093 = vpack.c.b16 %v1029, %v1029
      %v1094 = vpack.c.b16 %v1030, %v1030
      %v1095 = vpack.c.b16 %v1031, %v1031
      %1160 = vst [vmem:[%s278] sm:$0xf] %v1032
      %1161 = vst [vmem:[%s278 + $0x4] sm:$0xf] %v1033
      %1162 = vst [vmem:[%s278 + $0x8] sm:$0xf] %v1034
      %1163 = vst [vmem:[%s278 + $0xc] sm:$0xf] %v1035
      %1164 = vst [vmem:[%s278 + $0x10] sm:$0xf] %v1036
      %1165 = vst [vmem:[%s278 + $0x14] sm:$0xf] %v1037
      %1166 = vst [vmem:[%s278 + $0x18] sm:$0xf] %v1038
      %1167 = vst [vmem:[%s278 + $0x1c] sm:$0xf] %v1039
      %1168 = vst [vmem:[%s278 + $0x20] sm:$0xf] %v1040
      %1169 = vst [vmem:[%s278 + $0x24] sm:$0xf] %v1041
      %1170 = vst [vmem:[%s278 + $0x28] sm:$0xf] %v1042
      %1171 = vst [vmem:[%s278 + $0x2c] sm:$0xf] %v1043
      %1172 = vst [vmem:[%s278 + $0x30] sm:$0xf] %v1044
      %1173 = vst [vmem:[%s278 + $0x34] sm:$0xf] %v1045
      %1174 = vst [vmem:[%s278 + $0x38] sm:$0xf] %v1046
      %1175 = vst [vmem:[%s278 + $0x3c] sm:$0xf] %v1047
      %1176 = vst [vmem:[%s278 + $0x40] sm:$0xf] %v1048
      %1177 = vst [vmem:[%s278 + $0x44] sm:$0xf] %v1049
      %1178 = vst [vmem:[%s278 + $0x48] sm:$0xf] %v1050
      %1179 = vst [vmem:[%s278 + $0x4c] sm:$0xf] %v1051
      %1180 = vst [vmem:[%s278 + $0x50] sm:$0xf] %v1052
      %1181 = vst [vmem:[%s278 + $0x54] sm:$0xf] %v1053
      %1182 = vst [vmem:[%s278 + $0x58] sm:$0xf] %v1054
      %1183 = vst [vmem:[%s278 + $0x5c] sm:$0xf] %v1055
      %1184 = vst [vmem:[%s278 + $0x60] sm:$0xf] %v1056
      %1185 = vst [vmem:[%s278 + $0x64] sm:$0xf] %v1057
      %1186 = vst [vmem:[%s278 + $0x68] sm:$0xf] %v1058
      %1187 = vst [vmem:[%s278 + $0x6c] sm:$0xf] %v1059
      %1188 = vst [vmem:[%s278 + $0x70] sm:$0xf] %v1060
      %1189 = vst [vmem:[%s278 + $0x74] sm:$0xf] %v1061
      %1190 = vst [vmem:[%s278 + $0x78] sm:$0xf] %v1062
      %1191 = vst [vmem:[%s278 + $0x7c] sm:$0xf] %v1063
      %1192 = vst [vmem:[%s278 + $0x80] sm:$0xf] %v1064
      %1193 = vst [vmem:[%s278 + $0x84] sm:$0xf] %v1065
      %1194 = vst [vmem:[%s278 + $0x88] sm:$0xf] %v1066
      %1195 = vst [vmem:[%s278 + $0x8c] sm:$0xf] %v1067
      %1196 = vst [vmem:[%s278 + $0x90] sm:$0xf] %v1068
      %1197 = vst [vmem:[%s278 + $0x94] sm:$0xf] %v1069
      %1198 = vst [vmem:[%s278 + $0x98] sm:$0xf] %v1070
      %1199 = vst [vmem:[%s278 + $0x9c] sm:$0xf] %v1071
      %1200 = vst [vmem:[%s278 + $0xa0] sm:$0xf] %v1072
      %1201 = vst [vmem:[%s278 + $0xa4] sm:$0xf] %v1073
      %1202 = vst [vmem:[%s278 + $0xa8] sm:$0xf] %v1074
      %1203 = vst [vmem:[%s278 + $0xac] sm:$0xf] %v1075
      %1204 = vst [vmem:[%s278 + $0xb0] sm:$0xf] %v1076
      %1205 = vst [vmem:[%s278 + $0xb4] sm:$0xf] %v1077
      %1206 = vst [vmem:[%s278 + $0xb8] sm:$0xf] %v1078
      %1207 = vst [vmem:[%s278 + $0xbc] sm:$0xf] %v1079
      %1208 = vst [vmem:[%s278 + $0xc0] sm:$0xf] %v1080
      %1209 = vst [vmem:[%s278 + $0xc4] sm:$0xf] %v1081
      %1210 = vst [vmem:[%s278 + $0xc8] sm:$0xf] %v1082
      %1211 = vst [vmem:[%s278 + $0xcc] sm:$0xf] %v1083
      %1212 = vst [vmem:[%s278 + $0xd0] sm:$0xf] %v1084
      %1213 = vst [vmem:[%s278 + $0xd4] sm:$0xf] %v1085
      %1214 = vst [vmem:[%s278 + $0xd8] sm:$0xf] %v1086
      %1215 = vst [vmem:[%s278 + $0xdc] sm:$0xf] %v1087
      %1216 = vst [vmem:[%s278 + $0xe0] sm:$0xf] %v1088
      %1217 = vst [vmem:[%s278 + $0xe4] sm:$0xf] %v1089
      %1218 = vst [vmem:[%s278 + $0xe8] sm:$0xf] %v1090
      %1219 = vst [vmem:[%s278 + $0xec] sm:$0xf] %v1091
      %1220 = vst [vmem:[%s278 + $0xf0] sm:$0xf] %v1092
      %1221 = vst [vmem:[%s278 + $0xf4] sm:$0xf] %v1093
      %1222 = vst [vmem:[%s278 + $0xf8] sm:$0xf] %v1094
      %1223 = vst [vmem:[%s278 + $0xfc] sm:$0xf] %v1095
      %v1224 = vadd.f32 %v650, %v653
      %v1225 = vadd.f32 %v1224, %v658
      %v1226 = vadd.f32 %v1225, %v661
      %v1227 = vadd.f32 %v1226, %v666
      %v1228 = vadd.f32 %v1227, %v669
      %v1229 = vadd.f32 %v1228, %v674
      %v1230 = vadd.f32 %v1229, %v677
      %v1231 = vadd.f32 %v1230, %v682
      %v1232 = vadd.f32 %v1231, %v685
      %v1233 = vadd.f32 %v1232, %v690
      %v1234 = vadd.f32 %v1233, %v693
      %v1235 = vadd.f32 %v1234, %v698
      %v1236 = vadd.f32 %v1235, %v701
      %v1237 = vadd.f32 %v1236, %v706
      %v1238 = vadd.f32 %v1237, %v709
      %v1239 = vadd.f32 %v1238, %v714
      %v1240 = vadd.f32 %v1239, %v717
      %v1241 = vadd.f32 %v1240, %v722
      %v1242 = vadd.f32 %v1241, %v725
      %v1243 = vadd.f32 %v1242, %v730
      %v1244 = vadd.f32 %v1243, %v733
      %v1245 = vadd.f32 %v1244, %v738
      %v1246 = vadd.f32 %v1245, %v741
      %v1247 = vadd.f32 %v1246, %v746
      %v1248 = vadd.f32 %v1247, %v749
      %v1249 = vadd.f32 %v1248, %v754
      %v1250 = vadd.f32 %v1249, %v757
      %v1251 = vadd.f32 %v1250, %v762
      %v1252 = vadd.f32 %v1251, %v765
      %v1253 = vadd.f32 %v1252, %v770
      %v1254 = vadd.f32 %v1253, %v773
      %v1255 = vadd.f32 %v1254, %v778
      %v1256 = vadd.f32 %v1255, %v781
      %v1257 = vadd.f32 %v1256, %v786
      %v1258 = vadd.f32 %v1257, %v789
      %v1259 = vadd.f32 %v1258, %v794
      %v1260 = vadd.f32 %v1259, %v797
      %v1261 = vadd.f32 %v1260, %v802
      %v1262 = vadd.f32 %v1261, %v805
      %v1263 = vadd.f32 %v1262, %v810
      %v1264 = vadd.f32 %v1263, %v813
      %v1265 = vadd.f32 %v1264, %v818
      %v1266 = vadd.f32 %v1265, %v821
      %v1267 = vadd.f32 %v1266, %v826
      %v1268 = vadd.f32 %v1267, %v829
      %v1269 = vadd.f32 %v1268, %v834
      %v1270 = vadd.f32 %v1269, %v837
      %v1271 = vadd.f32 %v1270, %v842
      %v1272 = vadd.f32 %v1271, %v845
      %v1273 = vadd.f32 %v1272, %v850
      %v1274 = vadd.f32 %v1273, %v853
      %v1275 = vadd.f32 %v1274, %v858
      %v1276 = vadd.f32 %v1275, %v861
      %v1277 = vadd.f32 %v1276, %v866
      %v1278 = vadd.f32 %v1277, %v869
      %v1279 = vadd.f32 %v1278, %v874
      %v1280 = vadd.f32 %v1279, %v877
      %v1281 = vadd.f32 %v1280, %v882
      %v1282 = vadd.f32 %v1281, %v885
      %v1283 = vadd.f32 %v1282, %v890
      %v1284 = vadd.f32 %v1283, %v893
      %v1285 = vadd.f32 %v1284, %v898
      %v1286 = vadd.f32 %v1285, %v901
      %v1287 = vrot.slane %v1286, 4
      %v1288 = vadd.f32 %v1286, %v1287
      %v1289 = vrot.slane %v1288, 2
      %v1290 = vadd.f32 %v1288, %v1289
      %v1291 = vrot.slane %v1290, 1
      %v1292 = vadd.f32 %v1290, %v1291
      %v1293 = vmul.f32 %v650, %v650
      %v1294 = vmul.f32 %v653, %v653
      %v1295 = vmul.f32 %v658, %v658
      %v1296 = vmul.f32 %v661, %v661
      %v1297 = vmul.f32 %v666, %v666
      %v1298 = vmul.f32 %v669, %v669
      %v1299 = vmul.f32 %v674, %v674
      %v1300 = vmul.f32 %v677, %v677
      %v1301 = vmul.f32 %v682, %v682
      %v1302 = vmul.f32 %v685, %v685
      %v1303 = vmul.f32 %v690, %v690
      %v1304 = vmul.f32 %v693, %v693
      %v1305 = vmul.f32 %v698, %v698
      %v1306 = vmul.f32 %v701, %v701
      %v1307 = vmul.f32 %v706, %v706
      %v1308 = vmul.f32 %v709, %v709
      %v1309 = vmul.f32 %v714, %v714
      %v1310 = vmul.f32 %v717, %v717
      %v1311 = vmul.f32 %v722, %v722
      %v1312 = vmul.f32 %v725, %v725
      %v1313 = vmul.f32 %v730, %v730
      %v1314 = vmul.f32 %v733, %v733
      %v1315 = vmul.f32 %v738, %v738
      %v1316 = vmul.f32 %v741, %v741
      %v1317 = vmul.f32 %v746, %v746
      %v1318 = vmul.f32 %v749, %v749
      %v1319 = vmul.f32 %v754, %v754
      %v1320 = vmul.f32 %v757, %v757
      %v1321 = vmul.f32 %v762, %v762
      %v1322 = vmul.f32 %v765, %v765
      %v1323 = vmul.f32 %v770, %v770
      %v1324 = vmul.f32 %v773, %v773
      %v1325 = vmul.f32 %v778, %v778
      %v1326 = vmul.f32 %v781, %v781
      %v1327 = vmul.f32 %v786, %v786
      %v1328 = vmul.f32 %v789, %v789
      %v1329 = vmul.f32 %v794, %v794
      %v1330 = vmul.f32 %v797, %v797
      %v1331 = vmul.f32 %v802, %v802
      %v1332 = vmul.f32 %v805, %v805
      %v1333 = vmul.f32 %v810, %v810
      %v1334 = vmul.f32 %v813, %v813
      %v1335 = vmul.f32 %v818, %v818
      %v1336 = vmul.f32 %v821, %v821
      %v1337 = vmul.f32 %v826, %v826
      %v1338 = vmul.f32 %v829, %v829
      %v1339 = vmul.f32 %v834, %v834
      %v1340 = vmul.f32 %v837, %v837
      %v1341 = vmul.f32 %v842, %v842
      %v1342 = vmul.f32 %v845, %v845
      %v1343 = vmul.f32 %v850, %v850
      %v1344 = vmul.f32 %v853, %v853
      %v1345 = vmul.f32 %v858, %v858
      %v1346 = vmul.f32 %v861, %v861
      %v1347 = vmul.f32 %v866, %v866
      %v1348 = vmul.f32 %v869, %v869
      %v1349 = vmul.f32 %v874, %v874
      %v1350 = vmul.f32 %v877, %v877
      %v1351 = vmul.f32 %v882, %v882
      %v1352 = vmul.f32 %v885, %v885
      %v1353 = vmul.f32 %v890, %v890
      %v1354 = vmul.f32 %v893, %v893
      %v1355 = vmul.f32 %v898, %v898
      %v1356 = vmul.f32 %v901, %v901
      %v1357 = vadd.f32 %v1293, %v1294
      %v1358 = vadd.f32 %v1357, %v1295
      %v1359 = vadd.f32 %v1358, %v1296
      %v1360 = vadd.f32 %v1359, %v1297
      %v1361 = vadd.f32 %v1360, %v1298
      %v1362 = vadd.f32 %v1361, %v1299
      %v1363 = vadd.f32 %v1362, %v1300
      %v1364 = vadd.f32 %v1363, %v1301
      %v1365 = vadd.f32 %v1364, %v1302
      %v1366 = vadd.f32 %v1365, %v1303
      %v1367 = vadd.f32 %v1366, %v1304
      %v1368 = vadd.f32 %v1367, %v1305
      %v1369 = vadd.f32 %v1368, %v1306
      %v1370 = vadd.f32 %v1369, %v1307
      %v1371 = vadd.f32 %v1370, %v1308
      %v1372 = vadd.f32 %v1371, %v1309
      %v1373 = vadd.f32 %v1372, %v1310
      %v1374 = vadd.f32 %v1373, %v1311
      %v1375 = vadd.f32 %v1374, %v1312
      %v1376 = vadd.f32 %v1375, %v1313
      %v1377 = vadd.f32 %v1376, %v1314
      %v1378 = vadd.f32 %v1377, %v1315
      %v1379 = vadd.f32 %v1378, %v1316
      %v1380 = vadd.f32 %v1379, %v1317
      %v1381 = vadd.f32 %v1380, %v1318
      %v1382 = vadd.f32 %v1381, %v1319
      %v1383 = vadd.f32 %v1382, %v1320
      %v1384 = vadd.f32 %v1383, %v1321
      %v1385 = vadd.f32 %v1384, %v1322
      %v1386 = vadd.f32 %v1385, %v1323
      %v1387 = vadd.f32 %v1386, %v1324
      %v1388 = vadd.f32 %v1387, %v1325
      %v1389 = vadd.f32 %v1388, %v1326
      %v1390 = vadd.f32 %v1389, %v1327
      %v1391 = vadd.f32 %v1390, %v1328
      %v1392 = vadd.f32 %v1391, %v1329
      %v1393 = vadd.f32 %v1392, %v1330
      %v1394 = vadd.f32 %v1393, %v1331
      %v1395 = vadd.f32 %v1394, %v1332
      %v1396 = vadd.f32 %v1395, %v1333
      %v1397 = vadd.f32 %v1396, %v1334
      %v1398 = vadd.f32 %v1397, %v1335
      %v1399 = vadd.f32 %v1398, %v1336
      %v1400 = vadd.f32 %v1399, %v1337
      %v1401 = vadd.f32 %v1400, %v1338
      %v1402 = vadd.f32 %v1401, %v1339
      %v1403 = vadd.f32 %v1402, %v1340
      %v1404 = vadd.f32 %v1403, %v1341
      %v1405 = vadd.f32 %v1404, %v1342
      %v1406 = vadd.f32 %v1405, %v1343
      %v1407 = vadd.f32 %v1406, %v1344
      %v1408 = vadd.f32 %v1407, %v1345
      %v1409 = vadd.f32 %v1408, %v1346
      %v1410 = vadd.f32 %v1409, %v1347
      %v1411 = vadd.f32 %v1410, %v1348
      %v1412 = vadd.f32 %v1411, %v1349
      %v1413 = vadd.f32 %v1412, %v1350
      %v1414 = vadd.f32 %v1413, %v1351
      %v1415 = vadd.f32 %v1414, %v1352
      %v1416 = vadd.f32 %v1415, %v1353
      %v1417 = vadd.f32 %v1416, %v1354
      %v1418 = vadd.f32 %v1417, %v1355
      %v1419 = vadd.f32 %v1418, %v1356
      %v1420 = vrot.slane %v1419, 4
      %v1421 = vadd.f32 %v1419, %v1420
      %v1422 = vrot.slane %v1421, 2
      %v1423 = vadd.f32 %v1421, %v1422
      %v1424 = vrot.slane %v1423, 1
      %v1425 = vadd.f32 %v1423, %v1424
      %1426 = vst [vmem:[%s286] sm:$0xff] %v1292
      %1427 = vst [vmem:[%s293] sm:$0xff] %v1425
      %s1428 = smul.u32 64, %s21
      %p1429 = scmp.lt.s32.totalorder %s20, 3
      %s1430 = scalar_select %p1429, %s20, 3
      %p1431 = scmp.lt.s32.totalorder %s1428, 63
      %s1432 = scalar_select %p1431, %s1428, 63
      %s1433 = smul.addr %s1430, 64
      %s1434 = sadd.s32 %s1432, %s1433
      %s1435 = smul.addr %s1434, 4
      %s1436 = scalar_lea.vmem %s2, %s1435
      %p1437 = scmp.lt.s32.totalorder %s20, 3
      %s1438 = scalar_select %p1437, %s20, 3
      %p1439 = scmp.lt.s32.totalorder %s21, 0
      %s1440 = scalar_select %p1439, %s21, 0
      %s1441 = sadd.s32 %s1440, %s1438
      %s1442 = smul.addr %s1441, 8
      %s1443 = scalar_lea.vmem %s3, %s1442
      %p1444 = scmp.lt.s32.totalorder %s20, 3
      %s1445 = scalar_select %p1444, %s20, 3
      %p1446 = scmp.lt.s32.totalorder %s21, 0
      %s1447 = scalar_select %p1446, %s21, 0
      %s1448 = sadd.s32 %s1447, %s1445
      %s1449 = smul.addr %s1448, 8
      %s1450 = scalar_lea.vmem %s4, %s1449
      // Predicated region
      $region29: #{_lambda_.15} parent=27 // pred_check
        %p1451 = pneg %p102
      $region30: #{_lambda_.15} parent=27 // pred_check_branch
        %1453 = sbr.rel (%p1451) target = $region32
      $region31: #{_lambda_.15} parent=27 // pred_region
        %s1454 = smul.u32 64, %s21
      $region32: #{_lambda_.15} parent=27 // pred_fallthru
        _
      // Predicated region
      $region33: #{_lambda_.15} parent=27 // pred_check
        %p1455 = pneg %p130
      $region34: #{_lambda_.15} parent=27 // pred_check_branch
        %1457 = sbr.rel (%p1455) target = $region36
      $region35: #{_lambda_.15} parent=27 // pred_region
        _
      $region36: #{_lambda_.15} parent=27 // pred_fallthru
        _
      // Predicated region
      $region37: #{_lambda_.15} parent=27 // pred_check
        %p1458 = pneg %p158
      $region38: #{_lambda_.15} parent=27 // pred_check_branch
        %1460 = sbr.rel (%p1458) target = $region40
      $region39: #{_lambda_.15} parent=27 // pred_region
        _
      $region40: #{_lambda_.15} parent=27 // pred_fallthru
        _
    $region28: #{_lambda_.15} parent=5 // pred_fallthru
      _
    %p1461 = scmp.le.s32.totalorder 2, %s11
    // Predicated region
    $region41: #{_lambda_.15} parent=5 // pred_check
      %p1462 = pneg %p1461
    $region42: #{_lambda_.15} parent=5 // pred_check_branch
      %1464 = sbr.rel (%p1462) target = $region44
    $region43: #{_lambda_.15} parent=5 // pred_region
      %s1465 = ssub.s32 %s11, 2
      // Predicated region
      $region45: #{_lambda_.15} parent=43 // pred_check
        %p1466 = pneg %p108
      $region46: #{_lambda_.15} parent=43 // pred_check_branch
        %1468 = sbr.rel (%p1466) target = $region48
      $region47: #{_lambda_.15} parent=43 // pred_region
        %s1469 = smul.u32 64, %s23
        %p1470 = scmp.lt.s32.totalorder %s22, 3
        %s1471 = scalar_select %p1470, %s22, 3
        %p1472 = scmp.lt.s32.totalorder %s1469, 63
        %s1473 = scalar_select %p1472, %s1469, 63
        %s1474 = smul.addr %s1471, 64
        %s1475 = sadd.s32 %s1473, %s1474
        %s1476 = smul.addr %s1475, 4
        %s1477 = scalar_lea.vmem %s2, %s1476
      $region48: #{_lambda_.15} parent=43 // pred_fallthru
        _
      // Predicated region
      $region49: #{_lambda_.15} parent=43 // pred_check
        %p1478 = pneg %p136
      $region50: #{_lambda_.15} parent=43 // pred_check_branch
        %1480 = sbr.rel (%p1478) target = $region52
      $region51: #{_lambda_.15} parent=43 // pred_region
        %p1481 = scmp.lt.s32.totalorder %s22, 3
        %s1482 = scalar_select %p1481, %s22, 3
        %p1483 = scmp.lt.s32.totalorder %s23, 0
        %s1484 = scalar_select %p1483, %s23, 0
        %s1485 = sadd.s32 %s1484, %s1482
        %s1486 = smul.addr %s1485, 8
        %s1487 = scalar_lea.vmem %s3, %s1486
      $region52: #{_lambda_.15} parent=43 // pred_fallthru
        _
      // Predicated region
      $region53: #{_lambda_.15} parent=43 // pred_check
        %p1488 = pneg %p164
      $region54: #{_lambda_.15} parent=43 // pred_check_branch
        %1490 = sbr.rel (%p1488) target = $region56
      $region55: #{_lambda_.15} parent=43 // pred_region
        %p1491 = scmp.lt.s32.totalorder %s22, 3
        %s1492 = scalar_select %p1491, %s22, 3
        %p1493 = scmp.lt.s32.totalorder %s23, 0
        %s1494 = scalar_select %p1493, %s23, 0
        %s1495 = sadd.s32 %s1494, %s1492
        %s1496 = smul.addr %s1495, 8
        %s1497 = scalar_lea.vmem %s4, %s1496
      $region56: #{_lambda_.15} parent=43 // pred_fallthru
        _
    $region44: #{_lambda_.15} parent=5 // pred_fallthru
      _
  $region6: #{_lambda_.15} parent=0 // loop_footer
    %s15 = sadd.s32 1, %s11
  $region7: #{_lambda_.15} parent=0 // loop_footer_branch
    %10 = sbr.rel target = $region3
  $region8: #{_lambda_.15} parent=0 // loop_exit
    _

// kernel: _lambda_.16
$region0: #{_lambda_.16}
  #allocation0 [shape = 'u32[]', space=smem, size = 0x4, offset = 0x4, fixed_abs, tag = 'smem constant byte address 0x4 - core index']
  #allocation1 [shape = 'u32[144,128]{1,0:T(1,128)}', space=vmem, size = 0x12000, scoped, tag = 'internal scratch']
  %s0 = inlined_call_operand.vmem [shape: bf16[4,512,128], index: 0, kind: input, shape index: {}]
  %s1 = inlined_call_operand.vmem [shape: f32[1,128], index: 1, kind: input, shape index: {}]
  %s2 = inlined_call_operand.vmem [shape: f32[1,128], index: 2, kind: input, shape index: {}]
  %s3 = inlined_call_operand.vmem [shape: bf16[4,512,128], index: 3, kind: output, shape index: {}]
  %s4 = sld [smem:[#allocation0]]
  $region45: #{_lambda_.16} parent=0
    _
  %s6 = ssub.s32 1, %s4
  %s7 = scalar_select 0, %s6, %s4
  loop: start=0, step=1, limit=6
  $region2: #{_lambda_.16} parent=0 // loop_pre_header
    _
  $region3: #{_lambda_.16} parent=0 // loop_header
    %s9 = sphi 0, %s13
    %p10 = scmp.ge.s32.totalorder %s9, 6
    %s16 = sphi 0, %s28
    %s17 = sphi 0, %s24
    %s18 = sphi 0, %s16
    %s19 = sphi 0, %s17
    %s20 = sphi 0, %s18
    %s21 = sphi 0, %s19
    %s33 = sphi 0, %s35
    %s36 = sphi 0, %s33
    %s37 = sphi 0, %s36
    %s53 = sphi 0, %s37
    %s57 = sphi 0, %s57
    %s59 = sphi 0, %s57
    %s60 = sphi 0, %s59
    %s74 = sphi 0, %s60
    %s78 = sphi 0, %s78
    %s80 = sphi 0, %s78
    %s81 = sphi 0, %s80
    %s95 = sphi 0, %s81
    %s103 = sphi 0, %s105
    %s106 = sphi 0, %s103
    %s107 = sphi 0, %s106
    %s123 = sphi 0, %s107
  $region4: #{_lambda_.16} parent=0 // loop_header_branch
    %12 = sbr.rel (%p10) target = $region8
  $region5: #{_lambda_.16} parent=0 // loop_body
    %s14 = ssub.s32 %s9, 1
    %s15 = ssub.s32 %s9, 2
    %s22 = sadd.s32 1, %s17
    %p23 = scmp.ge.s32.totalorder %s22, 1
    %s24 = scalar_select %p23, 0, %s22
    %s25 = sadd.s32 1, %s16
    %s26 = scalar_select %p23, %s25, %s16
    %p27 = scmp.ge.s32.totalorder %s26, 4
    %s28 = scalar_select %p27, 0, %s26
    %s29 = ssub.s32 %s16, %s28
    %s30 = ssub.s32 %s17, %s24
    %s31 = sor.u32 %s29, %s30
    %p32 = scmp.eq.s32.totalorder %s31, 0
    %s34 = sadd.s32 %s33, 1
    %s35 = scalar_select %p32, %s33, %s34
    %p38 = pneg %p32
    %p39 = scmp.eq.s32.totalorder %s9, 3
    %p40 = por %p38, %p39
    %p41 = scmp.ne.s32.totalorder %s33, %s36
    %p42 = scmp.eq.s32.totalorder %s9, 0
    %p43 = por %p41, %p42
    %p44 = scmp.ne.s32.totalorder %s33, %s36
    %p45 = scmp.eq.s32.totalorder %s14, 3
    %p46 = por %p44, %p45
    %p47 = scmp.ne.s32.totalorder %s36, %s37
    %p48 = scmp.eq.s32.totalorder %s14, 0
    %p49 = por %p47, %p48
    %p50 = scmp.ne.s32.totalorder %s36, %s37
    %p51 = scmp.eq.s32.totalorder %s15, 3
    %p52 = por %p50, %p51
    %p54 = scmp.ne.s32.totalorder %s37, %s53
    %p55 = scmp.eq.s32.totalorder %s15, 0
    %p56 = por %p54, %p55
    %s58 = sadd.s32 %s57, 1
    %p61 = scmp.eq.s32.totalorder %s9, 3
    %p62 = scmp.ne.s32.totalorder %s57, %s59
    %p63 = scmp.eq.s32.totalorder %s9, 0
    %p64 = por %p62, %p63
    %p65 = scmp.ne.s32.totalorder %s57, %s59
    %p66 = scmp.eq.s32.totalorder %s14, 3
    %p67 = por %p65, %p66
    %p68 = scmp.ne.s32.totalorder %s59, %s60
    %p69 = scmp.eq.s32.totalorder %s14, 0
    %p70 = por %p68, %p69
    %p71 = scmp.ne.s32.totalorder %s59, %s60
    %p72 = scmp.eq.s32.totalorder %s15, 3
    %p73 = por %p71, %p72
    %p75 = scmp.ne.s32.totalorder %s60, %s74
    %p76 = scmp.eq.s32.totalorder %s15, 0
    %p77 = por %p75, %p76
    %s79 = sadd.s32 %s78, 1
    %p82 = scmp.eq.s32.totalorder %s9, 3
    %p83 = scmp.ne.s32.totalorder %s78, %s80
    %p84 = scmp.eq.s32.totalorder %s9, 0
    %p85 = por %p83, %p84
    %p86 = scmp.ne.s32.totalorder %s78, %s80
    %p87 = scmp.eq.s32.totalorder %s14, 3
    %p88 = por %p86, %p87
    %p89 = scmp.ne.s32.totalorder %s80, %s81
    %p90 = scmp.eq.s32.totalorder %s14, 0
    %p91 = por %p89, %p90
    %p92 = scmp.ne.s32.totalorder %s80, %s81
    %p93 = scmp.eq.s32.totalorder %s15, 3
    %p94 = por %p92, %p93
    %p96 = scmp.ne.s32.totalorder %s81, %s95
    %p97 = scmp.eq.s32.totalorder %s15, 0
    %p98 = por %p96, %p97
    %s99 = ssub.s32 %s16, %s28
    %s100 = ssub.s32 %s17, %s24
    %s101 = sor.u32 %s99, %s100
    %p102 = scmp.eq.s32.totalorder %s101, 0
    %s104 = sadd.s32 %s103, 1
    %s105 = scalar_select %p102, %s103, %s104
    %p108 = pneg %p102
    %p109 = scmp.eq.s32.totalorder %s9, 3
    %p110 = por %p108, %p109
    %p111 = scmp.ne.s32.totalorder %s103, %s106
    %p112 = scmp.eq.s32.totalorder %s9, 0
    %p113 = por %p111, %p112
    %p114 = scmp.ne.s32.totalorder %s103, %s106
    %p115 = scmp.eq.s32.totalorder %s14, 3
    %p116 = por %p114, %p115
    %p117 = scmp.ne.s32.totalorder %s106, %s107
    %p118 = scmp.eq.s32.totalorder %s14, 0
    %p119 = por %p117, %p118
    %p120 = scmp.ne.s32.totalorder %s106, %s107
    %p121 = scmp.eq.s32.totalorder %s15, 3
    %p122 = por %p120, %p121
    %p124 = scmp.ne.s32.totalorder %s107, %s123
    %p125 = scmp.eq.s32.totalorder %s15, 0
    %p126 = por %p124, %p125
    %p127 = scmp.le.s32.totalorder 1, %s9
    %p128 = scmp.lt.s32.totalorder %s9, 5
    %p129 = pnand %p127, %p128
    %p130 = pneg %p129
    // Predicated region
    $region9: #{_lambda_.16} parent=5 // pred_check
      _
    $region10: #{_lambda_.16} parent=5 // pred_check_branch
      %132 = sbr.rel (%p129) target = $region12
    $region11: #{_lambda_.16} parent=5 // pred_region
      %s133 = ssub.s32 %s9, 1
      // Predicated region
      $region13: #{_lambda_.16} parent=11 // pred_check
        %p134 = pneg %p70
      $region14: #{_lambda_.16} parent=11 // pred_check_branch
        %136 = sbr.rel (%p134) target = $region16
      $region15: #{_lambda_.16} parent=11 // pred_region
        _
      $region16: #{_lambda_.16} parent=11 // pred_fallthru
        _
      // Predicated region
      $region17: #{_lambda_.16} parent=11 // pred_check
        %p137 = pneg %p91
      $region18: #{_lambda_.16} parent=11 // pred_check_branch
        %139 = sbr.rel (%p137) target = $region20
      $region19: #{_lambda_.16} parent=11 // pred_region
        _
      $region20: #{_lambda_.16} parent=11 // pred_fallthru
        _
    $region12: #{_lambda_.16} parent=5 // pred_fallthru
      _
    %p140 = scmp.lt.s32.totalorder %s9, 4
    // Predicated region
    $region21: #{_lambda_.16} parent=5 // pred_check
      %p141 = pneg %p140
    $region22: #{_lambda_.16} parent=5 // pred_check_branch
      %143 = sbr.rel (%p141) target = $region24
    $region23: #{_lambda_.16} parent=5 // pred_region
      // Predicated region
      $region25: #{_lambda_.16} parent=23 // pred_check
        %p144 = pneg %p43
      $region26: #{_lambda_.16} parent=23 // pred_check_branch
        %146 = sbr.rel (%p144) target = $region28
      $region27: #{_lambda_.16} parent=23 // pred_region
        %s147 = smul.u32 64, %s17
        %p148 = scmp.lt.s32.totalorder %s16, 3
        %s149 = scalar_select %p148, %s16, 3
        %p150 = scmp.lt.s32.totalorder %s147, 63
        %s151 = scalar_select %p150, %s147, 63
        %s152 = smul.addr %s149, 64
        %s153 = sadd.s32 %s151, %s152
        %s154 = smul.addr %s153, 4
        %s155 = scalar_lea.vmem %s0, %s154
        %s156 = smul.u32 64, %s17
      $region28: #{_lambda_.16} parent=23 // pred_fallthru
        _
    $region24: #{_lambda_.16} parent=5 // pred_fallthru
      _
    %p157 = scmp.le.s32.totalorder 1, %s9
    %p158 = scmp.lt.s32.totalorder %s9, 5
    %p159 = pnand %p157, %p158
    %p160 = pneg %p159
    // Predicated region
    $region29: #{_lambda_.16} parent=5 // pred_check
      _
    $region30: #{_lambda_.16} parent=5 // pred_check_branch
      %162 = sbr.rel (%p159) target = $region32
    $region31: #{_lambda_.16} parent=5 // pred_region
      %s163 = ssub.s32 %s9, 1
      %s164 = smul.u32 64, %s19
      %p165 = scmp.lt.s32.totalorder %s18, 3
      %s166 = scalar_select %p165, %s18, 3
      %p167 = scmp.lt.s32.totalorder %s164, 63
      %s168 = scalar_select %p167, %s164, 63
      %s169 = smul.addr %s166, 64
      %s170 = sadd.s32 %s168, %s169
      %s171 = smul.addr %s170, 4
      %s172 = scalar_lea.vmem %s0, %s171
      %p173 = pneg %p49
      %p174 = pneg %p46
      %p175 = pneg %p70
      %p176 = pneg %p67
      %p177 = pneg %p91
      %p178 = pneg %p88
      %p179 = pneg %p119
      %p180 = pneg %p116
      %s181 = smul.u32 64, %s19
      %p182 = scmp.lt.s32.totalorder %s18, 3
      %s183 = scalar_select %p182, %s18, 3
      %p184 = scmp.lt.s32.totalorder %s181, 63
      %s185 = scalar_select %p184, %s181, 63
      %s186 = smul.addr %s183, 64
      %s187 = sadd.s32 %s185, %s186
      %s188 = smul.addr %s187, 4
      %s189 = scalar_lea.vmem %s3, %s188
      %s190 = smul.u32 64, %s19
      %p191 = scmp.lt.s32.totalorder %s18, 3
      %s192 = scalar_select %p191, %s18, 3
      %p193 = scmp.lt.s32.totalorder %s190, 63
      %s194 = scalar_select %p193, %s190, 63
      %s195 = smul.addr %s192, 64
      %s196 = sadd.s32 %s194, %s195
      %s197 = smul.addr %s196, 4
      %s198 = scalar_lea.vmem %s0, %s197
      %s199 = smul.u32 64, %s19
      %s200 = smul.u32 64, %s19
      %p201 = scmp.lt.s32.totalorder %s18, 3
      %s202 = scalar_select %p201, %s18, 3
      %p203 = scmp.lt.s32.totalorder %s200, 63
      %s204 = scalar_select %p203, %s200, 63
      %s205 = smul.addr %s202, 64
      %s206 = sadd.s32 %s204, %s205
      %s207 = smul.addr %s206, 4
      %s208 = scalar_lea.vmem %s3, %s207
      %s209 = smul.u32 64, %s19
      %v210 = vld [vmem:[%s198] sm:$0xf]
      %v211 = vld [vmem:[%s198 + $0x4] sm:$0xf]
      %v212 = vld [vmem:[%s198 + $0x8] sm:$0xf]
      %v213 = vld [vmem:[%s198 + $0xc] sm:$0xf]
      %v214 = vld [vmem:[%s198 + $0x10] sm:$0xf]
      %v215 = vld [vmem:[%s198 + $0x14] sm:$0xf]
      %v216 = vld [vmem:[%s198 + $0x18] sm:$0xf]
      %v217 = vld [vmem:[%s198 + $0x1c] sm:$0xf]
      %v218 = vld [vmem:[%s198 + $0x20] sm:$0xf]
      %v219 = vld [vmem:[%s198 + $0x24] sm:$0xf]
      %v220 = vld [vmem:[%s198 + $0x28] sm:$0xf]
      %v221 = vld [vmem:[%s198 + $0x2c] sm:$0xf]
      %v222 = vld [vmem:[%s198 + $0x30] sm:$0xf]
      %v223 = vld [vmem:[%s198 + $0x34] sm:$0xf]
      %v224 = vld [vmem:[%s198 + $0x38] sm:$0xf]
      %v225 = vld [vmem:[%s198 + $0x3c] sm:$0xf]
      %v226 = vld [vmem:[%s198 + $0x40] sm:$0xf]
      %v227 = vld [vmem:[%s198 + $0x44] sm:$0xf]
      %v228 = vld [vmem:[%s198 + $0x48] sm:$0xf]
      %v229 = vld [vmem:[%s198 + $0x4c] sm:$0xf]
      %v230 = vld [vmem:[%s198 + $0x50] sm:$0xf]
      %v231 = vld [vmem:[%s198 + $0x54] sm:$0xf]
      %v232 = vld [vmem:[%s198 + $0x58] sm:$0xf]
      %v233 = vld [vmem:[%s198 + $0x5c] sm:$0xf]
      %v234 = vld [vmem:[%s198 + $0x60] sm:$0xf]
      %v235 = vld [vmem:[%s198 + $0x64] sm:$0xf]
      %v236 = vld [vmem:[%s198 + $0x68] sm:$0xf]
      %v237 = vld [vmem:[%s198 + $0x6c] sm:$0xf]
      %v238 = vld [vmem:[%s198 + $0x70] sm:$0xf]
      %v239 = vld [vmem:[%s198 + $0x74] sm:$0xf]
      %v240 = vld [vmem:[%s198 + $0x78] sm:$0xf]
      %v241 = vld [vmem:[%s198 + $0x7c] sm:$0xf]
      %v242 = vld [vmem:[%s198 + $0x80] sm:$0xf]
      %v243 = vld [vmem:[%s198 + $0x84] sm:$0xf]
      %v244 = vld [vmem:[%s198 + $0x88] sm:$0xf]
      %v245 = vld [vmem:[%s198 + $0x8c] sm:$0xf]
      %v246 = vld [vmem:[%s198 + $0x90] sm:$0xf]
      %v247 = vld [vmem:[%s198 + $0x94] sm:$0xf]
      %v248 = vld [vmem:[%s198 + $0x98] sm:$0xf]
      %v249 = vld [vmem:[%s198 + $0x9c] sm:$0xf]
      %v250 = vld [vmem:[%s198 + $0xa0] sm:$0xf]
      %v251 = vld [vmem:[%s198 + $0xa4] sm:$0xf]
      %v252 = vld [vmem:[%s198 + $0xa8] sm:$0xf]
      %v253 = vld [vmem:[%s198 + $0xac] sm:$0xf]
      %v254 = vld [vmem:[%s198 + $0xb0] sm:$0xf]
      %v255 = vld [vmem:[%s198 + $0xb4] sm:$0xf]
      %v256 = vld [vmem:[%s198 + $0xb8] sm:$0xf]
      %v257 = vld [vmem:[%s198 + $0xbc] sm:$0xf]
      %v258 = vld [vmem:[%s198 + $0xc0] sm:$0xf]
      %v259 = vld [vmem:[%s198 + $0xc4] sm:$0xf]
      %v260 = vld [vmem:[%s198 + $0xc8] sm:$0xf]
      %v261 = vld [vmem:[%s198 + $0xcc] sm:$0xf]
      %v262 = vld [vmem:[%s198 + $0xd0] sm:$0xf]
      %v263 = vld [vmem:[%s198 + $0xd4] sm:$0xf]
      %v264 = vld [vmem:[%s198 + $0xd8] sm:$0xf]
      %v265 = vld [vmem:[%s198 + $0xdc] sm:$0xf]
      %v266 = vld [vmem:[%s198 + $0xe0] sm:$0xf]
      %v267 = vld [vmem:[%s198 + $0xe4] sm:$0xf]
      %v268 = vld [vmem:[%s198 + $0xe8] sm:$0xf]
      %v269 = vld [vmem:[%s198 + $0xec] sm:$0xf]
      %v270 = vld [vmem:[%s198 + $0xf0] sm:$0xf]
      %v271 = vld [vmem:[%s198 + $0xf4] sm:$0xf]
      %v272 = vld [vmem:[%s198 + $0xf8] sm:$0xf]
      %v273 = vld [vmem:[%s198 + $0xfc] sm:$0xf]
      %v274 = vunpack.c.l.bf16 %v210
      %v275 = vunpack.c.l.bf16 %v211
      %v276 = vunpack.c.l.bf16 %v212
      %v277 = vunpack.c.l.bf16 %v213
      %v278 = vunpack.c.l.bf16 %v214
      %v279 = vunpack.c.l.bf16 %v215
      %v280 = vunpack.c.l.bf16 %v216
      %v281 = vunpack.c.l.bf16 %v217
      %v282 = vunpack.c.l.bf16 %v218
      %v283 = vunpack.c.l.bf16 %v219
      %v284 = vunpack.c.l.bf16 %v220
      %v285 = vunpack.c.l.bf16 %v221
      %v286 = vunpack.c.l.bf16 %v222
      %v287 = vunpack.c.l.bf16 %v223
      %v288 = vunpack.c.l.bf16 %v224
      %v289 = vunpack.c.l.bf16 %v225
      %v290 = vunpack.c.l.bf16 %v226
      %v291 = vunpack.c.l.bf16 %v227
      %v292 = vunpack.c.l.bf16 %v228
      %v293 = vunpack.c.l.bf16 %v229
      %v294 = vunpack.c.l.bf16 %v230
      %v295 = vunpack.c.l.bf16 %v231
      %v296 = vunpack.c.l.bf16 %v232
      %v297 = vunpack.c.l.bf16 %v233
      %v298 = vunpack.c.l.bf16 %v234
      %v299 = vunpack.c.l.bf16 %v235
      %v300 = vunpack.c.l.bf16 %v236
      %v301 = vunpack.c.l.bf16 %v237
      %v302 = vunpack.c.l.bf16 %v238
      %v303 = vunpack.c.l.bf16 %v239
      %v304 = vunpack.c.l.bf16 %v240
      %v305 = vunpack.c.l.bf16 %v241
      %v306 = vunpack.c.l.bf16 %v242
      %v307 = vunpack.c.l.bf16 %v243
      %v308 = vunpack.c.l.bf16 %v244
      %v309 = vunpack.c.l.bf16 %v245
      %v310 = vunpack.c.l.bf16 %v246
      %v311 = vunpack.c.l.bf16 %v247
      %v312 = vunpack.c.l.bf16 %v248
      %v313 = vunpack.c.l.bf16 %v249
      %v314 = vunpack.c.l.bf16 %v250
      %v315 = vunpack.c.l.bf16 %v251
      %v316 = vunpack.c.l.bf16 %v252
      %v317 = vunpack.c.l.bf16 %v253
      %v318 = vunpack.c.l.bf16 %v254
      %v319 = vunpack.c.l.bf16 %v255
      %v320 = vunpack.c.l.bf16 %v256
      %v321 = vunpack.c.l.bf16 %v257
      %v322 = vunpack.c.l.bf16 %v258
      %v323 = vunpack.c.l.bf16 %v259
      %v324 = vunpack.c.l.bf16 %v260
      %v325 = vunpack.c.l.bf16 %v261
      %v326 = vunpack.c.l.bf16 %v262
      %v327 = vunpack.c.l.bf16 %v263
      %v328 = vunpack.c.l.bf16 %v264
      %v329 = vunpack.c.l.bf16 %v265
      %v330 = vunpack.c.l.bf16 %v266
      %v331 = vunpack.c.l.bf16 %v267
      %v332 = vunpack.c.l.bf16 %v268
      %v333 = vunpack.c.l.bf16 %v269
      %v334 = vunpack.c.l.bf16 %v270
      %v335 = vunpack.c.l.bf16 %v271
      %v336 = vunpack.c.l.bf16 %v272
      %v337 = vunpack.c.l.bf16 %v273
      %v338 = vld [vmem:[%s1] sm:$0x1]
      %v340 = vlaneseq
      %v341 = vshrl.u32 %v340, 7
      %v342 = vsub.s32 0, %v341
      %v343 = vrot.slane %v338, %v342
      %v345 = vmul.f32 %v274, %v343
      %v346 = vmul.f32 %v275, %v343
      %v347 = vmul.f32 %v276, %v343
      %v348 = vmul.f32 %v277, %v343
      %v349 = vmul.f32 %v278, %v343
      %v350 = vmul.f32 %v279, %v343
      %v351 = vmul.f32 %v280, %v343
      %v352 = vmul.f32 %v281, %v343
      %v353 = vmul.f32 %v282, %v343
      %v354 = vmul.f32 %v283, %v343
      %v355 = vmul.f32 %v284, %v343
      %v356 = vmul.f32 %v285, %v343
      %v357 = vmul.f32 %v286, %v343
      %v358 = vmul.f32 %v287, %v343
      %v359 = vmul.f32 %v288, %v343
      %v360 = vmul.f32 %v289, %v343
      %v361 = vmul.f32 %v290, %v343
      %v362 = vmul.f32 %v291, %v343
      %v363 = vmul.f32 %v292, %v343
      %v364 = vmul.f32 %v293, %v343
      %v365 = vmul.f32 %v294, %v343
      %v366 = vmul.f32 %v295, %v343
      %v367 = vmul.f32 %v296, %v343
      %v368 = vmul.f32 %v297, %v343
      %v369 = vmul.f32 %v298, %v343
      %v370 = vmul.f32 %v299, %v343
      %v371 = vmul.f32 %v300, %v343
      %v372 = vmul.f32 %v301, %v343
      %v373 = vmul.f32 %v302, %v343
      %v374 = vmul.f32 %v303, %v343
      %v375 = vmul.f32 %v304, %v343
      %v376 = vmul.f32 %v305, %v343
      %v377 = vmul.f32 %v306, %v343
      %v378 = vmul.f32 %v307, %v343
      %v379 = vmul.f32 %v308, %v343
      %v380 = vmul.f32 %v309, %v343
      %v381 = vmul.f32 %v310, %v343
      %v382 = vmul.f32 %v311, %v343
      %v383 = vmul.f32 %v312, %v343
      %v384 = vmul.f32 %v313, %v343
      %v385 = vmul.f32 %v314, %v343
      %v386 = vmul.f32 %v315, %v343
      %v387 = vmul.f32 %v316, %v343
      %v388 = vmul.f32 %v317, %v343
      %v389 = vmul.f32 %v318, %v343
      %v390 = vmul.f32 %v319, %v343
      %v391 = vmul.f32 %v320, %v343
      %v392 = vmul.f32 %v321, %v343
      %v393 = vmul.f32 %v322, %v343
      %v394 = vmul.f32 %v323, %v343
      %v395 = vmul.f32 %v324, %v343
      %v396 = vmul.f32 %v325, %v343
      %v397 = vmul.f32 %v326, %v343
      %v398 = vmul.f32 %v327, %v343
      %v399 = vmul.f32 %v328, %v343
      %v400 = vmul.f32 %v329, %v343
      %v401 = vmul.f32 %v330, %v343
      %v402 = vmul.f32 %v331, %v343
      %v403 = vmul.f32 %v332, %v343
      %v404 = vmul.f32 %v333, %v343
      %v405 = vmul.f32 %v334, %v343
      %v406 = vmul.f32 %v335, %v343
      %v407 = vmul.f32 %v336, %v343
      %v408 = vmul.f32 %v337, %v343
      %v409 = vld [vmem:[%s2] sm:$0x1]
      %v411 = vlaneseq
      %v412 = vshrl.u32 %v411, 7
      %v413 = vsub.s32 0, %v412
      %v414 = vrot.slane %v409, %v413
      %v416 = vadd.f32 %v345, %v414
      %v417 = vadd.f32 %v346, %v414
      %v418 = vadd.f32 %v347, %v414
      %v419 = vadd.f32 %v348, %v414
      %v420 = vadd.f32 %v349, %v414
      %v421 = vadd.f32 %v350, %v414
      %v422 = vadd.f32 %v351, %v414
      %v423 = vadd.f32 %v352, %v414
      %v424 = vadd.f32 %v353, %v414
      %v425 = vadd.f32 %v354, %v414
      %v426 = vadd.f32 %v355, %v414
      %v427 = vadd.f32 %v356, %v414
      %v428 = vadd.f32 %v357, %v414
      %v429 = vadd.f32 %v358, %v414
      %v430 = vadd.f32 %v359, %v414
      %v431 = vadd.f32 %v360, %v414
      %v432 = vadd.f32 %v361, %v414
      %v433 = vadd.f32 %v362, %v414
      %v434 = vadd.f32 %v363, %v414
      %v435 = vadd.f32 %v364, %v414
      %v436 = vadd.f32 %v365, %v414
      %v437 = vadd.f32 %v366, %v414
      %v438 = vadd.f32 %v367, %v414
      %v439 = vadd.f32 %v368, %v414
      %v440 = vadd.f32 %v369, %v414
      %v441 = vadd.f32 %v370, %v414
      %v442 = vadd.f32 %v371, %v414
      %v443 = vadd.f32 %v372, %v414
      %v444 = vadd.f32 %v373, %v414
      %v445 = vadd.f32 %v374, %v414
      %v446 = vadd.f32 %v375, %v414
      %v447 = vadd.f32 %v376, %v414
      %v448 = vadd.f32 %v377, %v414
      %v449 = vadd.f32 %v378, %v414
      %v450 = vadd.f32 %v379, %v414
      %v451 = vadd.f32 %v380, %v414
      %v452 = vadd.f32 %v381, %v414
      %v453 = vadd.f32 %v382, %v414
      %v454 = vadd.f32 %v383, %v414
      %v455 = vadd.f32 %v384, %v414
      %v456 = vadd.f32 %v385, %v414
      %v457 = vadd.f32 %v386, %v414
      %v458 = vadd.f32 %v387, %v414
      %v459 = vadd.f32 %v388, %v414
      %v460 = vadd.f32 %v389, %v414
      %v461 = vadd.f32 %v390, %v414
      %v462 = vadd.f32 %v391, %v414
      %v463 = vadd.f32 %v392, %v414
      %v464 = vadd.f32 %v393, %v414
      %v465 = vadd.f32 %v394, %v414
      %v466 = vadd.f32 %v395, %v414
      %v467 = vadd.f32 %v396, %v414
      %v468 = vadd.f32 %v397, %v414
      %v469 = vadd.f32 %v398, %v414
      %v470 = vadd.f32 %v399, %v414
      %v471 = vadd.f32 %v400, %v414
      %v472 = vadd.f32 %v401, %v414
      %v473 = vadd.f32 %v402, %v414
      %v474 = vadd.f32 %v403, %v414
      %v475 = vadd.f32 %v404, %v414
      %v476 = vadd.f32 %v405, %v414
      %v477 = vadd.f32 %v406, %v414
      %v478 = vadd.f32 %v407, %v414
      %v479 = vadd.f32 %v408, %v414
      %v480 = vmax.f32 %v416, 0.0
      %v481 = vmax.f32 %v417, 0.0
      %v482 = vmax.f32 %v418, 0.0
      %v483 = vmax.f32 %v419, 0.0
      %v484 = vmax.f32 %v420, 0.0
      %v485 = vmax.f32 %v421, 0.0
      %v486 = vmax.f32 %v422, 0.0
      %v487 = vmax.f32 %v423, 0.0
      %v488 = vmax.f32 %v424, 0.0
      %v489 = vmax.f32 %v425, 0.0
      %v490 = vmax.f32 %v426, 0.0
      %v491 = vmax.f32 %v427, 0.0
      %v492 = vmax.f32 %v428, 0.0
      %v493 = vmax.f32 %v429, 0.0
      %v494 = vmax.f32 %v430, 0.0
      %v495 = vmax.f32 %v431, 0.0
      %v496 = vmax.f32 %v432, 0.0
      %v497 = vmax.f32 %v433, 0.0
      %v498 = vmax.f32 %v434, 0.0
      %v499 = vmax.f32 %v435, 0.0
      %v500 = vmax.f32 %v436, 0.0
      %v501 = vmax.f32 %v437, 0.0
      %v502 = vmax.f32 %v438, 0.0
      %v503 = vmax.f32 %v439, 0.0
      %v504 = vmax.f32 %v440, 0.0
      %v505 = vmax.f32 %v441, 0.0
      %v506 = vmax.f32 %v442, 0.0
      %v507 = vmax.f32 %v443, 0.0
      %v508 = vmax.f32 %v444, 0.0
      %v509 = vmax.f32 %v445, 0.0
      %v510 = vmax.f32 %v446, 0.0
      %v511 = vmax.f32 %v447, 0.0
      %v512 = vmax.f32 %v448, 0.0
      %v513 = vmax.f32 %v449, 0.0
      %v514 = vmax.f32 %v450, 0.0
      %v515 = vmax.f32 %v451, 0.0
      %v516 = vmax.f32 %v452, 0.0
      %v517 = vmax.f32 %v453, 0.0
      %v518 = vmax.f32 %v454, 0.0
      %v519 = vmax.f32 %v455, 0.0
      %v520 = vmax.f32 %v456, 0.0
      %v521 = vmax.f32 %v457, 0.0
      %v522 = vmax.f32 %v458, 0.0
      %v523 = vmax.f32 %v459, 0.0
      %v524 = vmax.f32 %v460, 0.0
      %v525 = vmax.f32 %v461, 0.0
      %v526 = vmax.f32 %v462, 0.0
      %v527 = vmax.f32 %v463, 0.0
      %v528 = vmax.f32 %v464, 0.0
      %v529 = vmax.f32 %v465, 0.0
      %v530 = vmax.f32 %v466, 0.0
      %v531 = vmax.f32 %v467, 0.0
      %v532 = vmax.f32 %v468, 0.0
      %v533 = vmax.f32 %v469, 0.0
      %v534 = vmax.f32 %v470, 0.0
      %v535 = vmax.f32 %v471, 0.0
      %v536 = vmax.f32 %v472, 0.0
      %v537 = vmax.f32 %v473, 0.0
      %v538 = vmax.f32 %v474, 0.0
      %v539 = vmax.f32 %v475, 0.0
      %v540 = vmax.f32 %v476, 0.0
      %v541 = vmax.f32 %v477, 0.0
      %v542 = vmax.f32 %v478, 0.0
      %v543 = vmax.f32 %v479, 0.0
      %v544 = vpack.c.bf16 %v481, %v480
      %v545 = vpack.c.bf16 %v483, %v482
      %v546 = vpack.c.bf16 %v485, %v484
      %v547 = vpack.c.bf16 %v487, %v486
      %v548 = vpack.c.bf16 %v489, %v488
      %v549 = vpack.c.bf16 %v491, %v490
      %v550 = vpack.c.bf16 %v493, %v492
      %v551 = vpack.c.bf16 %v495, %v494
      %v552 = vpack.c.bf16 %v497, %v496
      %v553 = vpack.c.bf16 %v499, %v498
      %v554 = vpack.c.bf16 %v501, %v500
      %v555 = vpack.c.bf16 %v503, %v502
      %v556 = vpack.c.bf16 %v505, %v504
      %v557 = vpack.c.bf16 %v507, %v506
      %v558 = vpack.c.bf16 %v509, %v508
      %v559 = vpack.c.bf16 %v511, %v510
      %v560 = vpack.c.bf16 %v513, %v512
      %v561 = vpack.c.bf16 %v515, %v514
      %v562 = vpack.c.bf16 %v517, %v516
      %v563 = vpack.c.bf16 %v519, %v518
      %v564 = vpack.c.bf16 %v521, %v520
      %v565 = vpack.c.bf16 %v523, %v522
      %v566 = vpack.c.bf16 %v525, %v524
      %v567 = vpack.c.bf16 %v527, %v526
      %v568 = vpack.c.bf16 %v529, %v528
      %v569 = vpack.c.bf16 %v531, %v530
      %v570 = vpack.c.bf16 %v533, %v532
      %v571 = vpack.c.bf16 %v535, %v534
      %v572 = vpack.c.bf16 %v537, %v536
      %v573 = vpack.c.bf16 %v539, %v538
      %v574 = vpack.c.bf16 %v541, %v540
      %v575 = vpack.c.bf16 %v543, %v542
      %v608 = vunpack.c.l.b16 %v544
      %v609 = vunpack.c.h.b16 %v544
      %v610 = vunpack.c.l.b16 %v545
      %v611 = vunpack.c.h.b16 %v545
      %v612 = vunpack.c.l.b16 %v546
      %v613 = vunpack.c.h.b16 %v546
      %v614 = vunpack.c.l.b16 %v547
      %v615 = vunpack.c.h.b16 %v547
      %v616 = vunpack.c.l.b16 %v548
      %v617 = vunpack.c.h.b16 %v548
      %v618 = vunpack.c.l.b16 %v549
      %v619 = vunpack.c.h.b16 %v549
      %v620 = vunpack.c.l.b16 %v550
      %v621 = vunpack.c.h.b16 %v550
      %v622 = vunpack.c.l.b16 %v551
      %v623 = vunpack.c.h.b16 %v551
      %v624 = vunpack.c.l.b16 %v552
      %v625 = vunpack.c.h.b16 %v552
      %v626 = vunpack.c.l.b16 %v553
      %v627 = vunpack.c.h.b16 %v553
      %v628 = vunpack.c.l.b16 %v554
      %v629 = vunpack.c.h.b16 %v554
      %v630 = vunpack.c.l.b16 %v555
      %v631 = vunpack.c.h.b16 %v555
      %v632 = vunpack.c.l.b16 %v556
      %v633 = vunpack.c.h.b16 %v556
      %v634 = vunpack.c.l.b16 %v557
      %v635 = vunpack.c.h.b16 %v557
      %v636 = vunpack.c.l.b16 %v558
      %v637 = vunpack.c.h.b16 %v558
      %v638 = vunpack.c.l.b16 %v559
      %v639 = vunpack.c.h.b16 %v559
      %v640 = vunpack.c.l.b16 %v560
      %v641 = vunpack.c.h.b16 %v560
      %v642 = vunpack.c.l.b16 %v561
      %v643 = vunpack.c.h.b16 %v561
      %v644 = vunpack.c.l.b16 %v562
      %v645 = vunpack.c.h.b16 %v562
      %v646 = vunpack.c.l.b16 %v563
      %v647 = vunpack.c.h.b16 %v563
      %v648 = vunpack.c.l.b16 %v564
      %v649 = vunpack.c.h.b16 %v564
      %v650 = vunpack.c.l.b16 %v565
      %v651 = vunpack.c.h.b16 %v565
      %v652 = vunpack.c.l.b16 %v566
      %v653 = vunpack.c.h.b16 %v566
      %v654 = vunpack.c.l.b16 %v567
      %v655 = vunpack.c.h.b16 %v567
      %v656 = vunpack.c.l.b16 %v568
      %v657 = vunpack.c.h.b16 %v568
      %v658 = vunpack.c.l.b16 %v569
      %v659 = vunpack.c.h.b16 %v569
      %v660 = vunpack.c.l.b16 %v570
      %v661 = vunpack.c.h.b16 %v570
      %v662 = vunpack.c.l.b16 %v571
      %v663 = vunpack.c.h.b16 %v571
      %v664 = vunpack.c.l.b16 %v572
      %v665 = vunpack.c.h.b16 %v572
      %v666 = vunpack.c.l.b16 %v573
      %v667 = vunpack.c.h.b16 %v573
      %v668 = vunpack.c.l.b16 %v574
      %v669 = vunpack.c.h.b16 %v574
      %v670 = vunpack.c.l.b16 %v575
      %v671 = vunpack.c.h.b16 %v575
      %v672 = vpack.c.b16 %v608, %v608
      %v673 = vpack.c.b16 %v609, %v609
      %v674 = vpack.c.b16 %v610, %v610
      %v675 = vpack.c.b16 %v611, %v611
      %v676 = vpack.c.b16 %v612, %v612
      %v677 = vpack.c.b16 %v613, %v613
      %v678 = vpack.c.b16 %v614, %v614
      %v679 = vpack.c.b16 %v615, %v615
      %v680 = vpack.c.b16 %v616, %v616
      %v681 = vpack.c.b16 %v617, %v617
      %v682 = vpack.c.b16 %v618, %v618
      %v683 = vpack.c.b16 %v619, %v619
      %v684 = vpack.c.b16 %v620, %v620
      %v685 = vpack.c.b16 %v621, %v621
      %v686 = vpack.c.b16 %v622, %v622
      %v687 = vpack.c.b16 %v623, %v623
      %v688 = vpack.c.b16 %v624, %v624
      %v689 = vpack.c.b16 %v625, %v625
      %v690 = vpack.c.b16 %v626, %v626
      %v691 = vpack.c.b16 %v627, %v627
      %v692 = vpack.c.b16 %v628, %v628
      %v693 = vpack.c.b16 %v629, %v629
      %v694 = vpack.c.b16 %v630, %v630
      %v695 = vpack.c.b16 %v631, %v631
      %v696 = vpack.c.b16 %v632, %v632
      %v697 = vpack.c.b16 %v633, %v633
      %v698 = vpack.c.b16 %v634, %v634
      %v699 = vpack.c.b16 %v635, %v635
      %v700 = vpack.c.b16 %v636, %v636
      %v701 = vpack.c.b16 %v637, %v637
      %v702 = vpack.c.b16 %v638, %v638
      %v703 = vpack.c.b16 %v639, %v639
      %v704 = vpack.c.b16 %v640, %v640
      %v705 = vpack.c.b16 %v641, %v641
      %v706 = vpack.c.b16 %v642, %v642
      %v707 = vpack.c.b16 %v643, %v643
      %v708 = vpack.c.b16 %v644, %v644
      %v709 = vpack.c.b16 %v645, %v645
      %v710 = vpack.c.b16 %v646, %v646
      %v711 = vpack.c.b16 %v647, %v647
      %v712 = vpack.c.b16 %v648, %v648
      %v713 = vpack.c.b16 %v649, %v649
      %v714 = vpack.c.b16 %v650, %v650
      %v715 = vpack.c.b16 %v651, %v651
      %v716 = vpack.c.b16 %v652, %v652
      %v717 = vpack.c.b16 %v653, %v653
      %v718 = vpack.c.b16 %v654, %v654
      %v719 = vpack.c.b16 %v655, %v655
      %v720 = vpack.c.b16 %v656, %v656
      %v721 = vpack.c.b16 %v657, %v657
      %v722 = vpack.c.b16 %v658, %v658
      %v723 = vpack.c.b16 %v659, %v659
      %v724 = vpack.c.b16 %v660, %v660
      %v725 = vpack.c.b16 %v661, %v661
      %v726 = vpack.c.b16 %v662, %v662
      %v727 = vpack.c.b16 %v663, %v663
      %v728 = vpack.c.b16 %v664, %v664
      %v729 = vpack.c.b16 %v665, %v665
      %v730 = vpack.c.b16 %v666, %v666
      %v731 = vpack.c.b16 %v667, %v667
      %v732 = vpack.c.b16 %v668, %v668
      %v733 = vpack.c.b16 %v669, %v669
      %v734 = vpack.c.b16 %v670, %v670
      %v735 = vpack.c.b16 %v671, %v671
      %800 = vst [vmem:[%s208] sm:$0xf] %v672
      %801 = vst [vmem:[%s208 + $0x4] sm:$0xf] %v673
      %802 = vst [vmem:[%s208 + $0x8] sm:$0xf] %v674
      %803 = vst [vmem:[%s208 + $0xc] sm:$0xf] %v675
      %804 = vst [vmem:[%s208 + $0x10] sm:$0xf] %v676
      %805 = vst [vmem:[%s208 + $0x14] sm:$0xf] %v677
      %806 = vst [vmem:[%s208 + $0x18] sm:$0xf] %v678
      %807 = vst [vmem:[%s208 + $0x1c] sm:$0xf] %v679
      %808 = vst [vmem:[%s208 + $0x20] sm:$0xf] %v680
      %809 = vst [vmem:[%s208 + $0x24] sm:$0xf] %v681
      %810 = vst [vmem:[%s208 + $0x28] sm:$0xf] %v682
      %811 = vst [vmem:[%s208 + $0x2c] sm:$0xf] %v683
      %812 = vst [vmem:[%s208 + $0x30] sm:$0xf] %v684
      %813 = vst [vmem:[%s208 + $0x34] sm:$0xf] %v685
      %814 = vst [vmem:[%s208 + $0x38] sm:$0xf] %v686
      %815 = vst [vmem:[%s208 + $0x3c] sm:$0xf] %v687
      %816 = vst [vmem:[%s208 + $0x40] sm:$0xf] %v688
      %817 = vst [vmem:[%s208 + $0x44] sm:$0xf] %v689
      %818 = vst [vmem:[%s208 + $0x48] sm:$0xf] %v690
      %819 = vst [vmem:[%s208 + $0x4c] sm:$0xf] %v691
      %820 = vst [vmem:[%s208 + $0x50] sm:$0xf] %v692
      %821 = vst [vmem:[%s208 + $0x54] sm:$0xf] %v693
      %822 = vst [vmem:[%s208 + $0x58] sm:$0xf] %v694
      %823 = vst [vmem:[%s208 + $0x5c] sm:$0xf] %v695
      %824 = vst [vmem:[%s208 + $0x60] sm:$0xf] %v696
      %825 = vst [vmem:[%s208 + $0x64] sm:$0xf] %v697
      %826 = vst [vmem:[%s208 + $0x68] sm:$0xf] %v698
      %827 = vst [vmem:[%s208 + $0x6c] sm:$0xf] %v699
      %828 = vst [vmem:[%s208 + $0x70] sm:$0xf] %v700
      %829 = vst [vmem:[%s208 + $0x74] sm:$0xf] %v701
      %830 = vst [vmem:[%s208 + $0x78] sm:$0xf] %v702
      %831 = vst [vmem:[%s208 + $0x7c] sm:$0xf] %v703
      %832 = vst [vmem:[%s208 + $0x80] sm:$0xf] %v704
      %833 = vst [vmem:[%s208 + $0x84] sm:$0xf] %v705
      %834 = vst [vmem:[%s208 + $0x88] sm:$0xf] %v706
      %835 = vst [vmem:[%s208 + $0x8c] sm:$0xf] %v707
      %836 = vst [vmem:[%s208 + $0x90] sm:$0xf] %v708
      %837 = vst [vmem:[%s208 + $0x94] sm:$0xf] %v709
      %838 = vst [vmem:[%s208 + $0x98] sm:$0xf] %v710
      %839 = vst [vmem:[%s208 + $0x9c] sm:$0xf] %v711
      %840 = vst [vmem:[%s208 + $0xa0] sm:$0xf] %v712
      %841 = vst [vmem:[%s208 + $0xa4] sm:$0xf] %v713
      %842 = vst [vmem:[%s208 + $0xa8] sm:$0xf] %v714
      %843 = vst [vmem:[%s208 + $0xac] sm:$0xf] %v715
      %844 = vst [vmem:[%s208 + $0xb0] sm:$0xf] %v716
      %845 = vst [vmem:[%s208 + $0xb4] sm:$0xf] %v717
      %846 = vst [vmem:[%s208 + $0xb8] sm:$0xf] %v718
      %847 = vst [vmem:[%s208 + $0xbc] sm:$0xf] %v719
      %848 = vst [vmem:[%s208 + $0xc0] sm:$0xf] %v720
      %849 = vst [vmem:[%s208 + $0xc4] sm:$0xf] %v721
      %850 = vst [vmem:[%s208 + $0xc8] sm:$0xf] %v722
      %851 = vst [vmem:[%s208 + $0xcc] sm:$0xf] %v723
      %852 = vst [vmem:[%s208 + $0xd0] sm:$0xf] %v724
      %853 = vst [vmem:[%s208 + $0xd4] sm:$0xf] %v725
      %854 = vst [vmem:[%s208 + $0xd8] sm:$0xf] %v726
      %855 = vst [vmem:[%s208 + $0xdc] sm:$0xf] %v727
      %856 = vst [vmem:[%s208 + $0xe0] sm:$0xf] %v728
      %857 = vst [vmem:[%s208 + $0xe4] sm:$0xf] %v729
      %858 = vst [vmem:[%s208 + $0xe8] sm:$0xf] %v730
      %859 = vst [vmem:[%s208 + $0xec] sm:$0xf] %v731
      %860 = vst [vmem:[%s208 + $0xf0] sm:$0xf] %v732
      %861 = vst [vmem:[%s208 + $0xf4] sm:$0xf] %v733
      %862 = vst [vmem:[%s208 + $0xf8] sm:$0xf] %v734
      %863 = vst [vmem:[%s208 + $0xfc] sm:$0xf] %v735
      %s864 = smul.u32 64, %s19
      %p865 = scmp.lt.s32.totalorder %s18, 3
      %s866 = scalar_select %p865, %s18, 3
      %p867 = scmp.lt.s32.totalorder %s864, 63
      %s868 = scalar_select %p867, %s864, 63
      %s869 = smul.addr %s866, 64
      %s870 = sadd.s32 %s868, %s869
      %s871 = smul.addr %s870, 4
      %s872 = scalar_lea.vmem %s3, %s871
      // Predicated region
      $region33: #{_lambda_.16} parent=31 // pred_check
        %p873 = pneg %p116
      $region34: #{_lambda_.16} parent=31 // pred_check_branch
        %875 = sbr.rel (%p873) target = $region36
      $region35: #{_lambda_.16} parent=31 // pred_region
        %s876 = smul.u32 64, %s19
      $region36: #{_lambda_.16} parent=31 // pred_fallthru
        _
    $region32: #{_lambda_.16} parent=5 // pred_fallthru
      _
    %p877 = scmp.le.s32.totalorder 2, %s9
    // Predicated region
    $region37: #{_lambda_.16} parent=5 // pred_check
      %p878 = pneg %p877
    $region38: #{_lambda_.16} parent=5 // pred_check_branch
      %880 = sbr.rel (%p878) target = $region40
    $region39: #{_lambda_.16} parent=5 // pred_region
      %s881 = ssub.s32 %s9, 2
      // Predicated region
      $region41: #{_lambda_.16} parent=39 // pred_check
        %p882 = pneg %p122
      $region42: #{_lambda_.16} parent=39 // pred_check_branch
        %884 = sbr.rel (%p882) target = $region44
      $region43: #{_lambda_.16} parent=39 // pred_region
        %s885 = smul.u32 64, %s21
        %p886 = scmp.lt.s32.totalorder %s20, 3
        %s887 = scalar_select %p886, %s20, 3
        %p888 = scmp.lt.s32.totalorder %s885, 63
        %s889 = scalar_select %p888, %s885, 63
        %s890 = smul.addr %s887, 64
        %s891 = sadd.s32 %s889, %s890
        %s892 = smul.addr %s891, 4
        %s893 = scalar_lea.vmem %s3, %s892
      $region44: #{_lambda_.16} parent=39 // pred_fallthru
        _
    $region40: #{_lambda_.16} parent=5 // pred_fallthru
      _
  $region6: #{_lambda_.16} parent=0 // loop_footer
    %s13 = sadd.s32 1, %s9
  $region7: #{_lambda_.16} parent=0 // loop_footer_branch
    %8 = sbr.rel target = $region3
  $region8: #{_lambda_.16} parent=0 // loop_exit
    _

// kernel: _lambda_.17
$region0: #{_lambda_.17}
  #allocation0 [shape = 'u32[]', space=smem, size = 0x4, offset = 0x4, fixed_abs, tag = 'smem constant byte address 0x4 - core index']
  #allocation1 [shape = 'u32[144,128]{1,0:T(1,128)}', space=vmem, size = 0x12000, scoped, tag = 'internal scratch']
  %s0 = inlined_call_operand.vmem [shape: bf16[4,2048,128], index: 0, kind: input, shape index: {}]
  %s1 = inlined_call_operand.vmem [shape: bf16[4,128,128], index: 1, kind: input, shape index: {}]
  %s2 = inlined_call_operand.vmem [shape: f32[4,2048,128], index: 2, kind: output, shape index: {}]
  %s3 = sld [smem:[#allocation0]]
  $region41: #{_lambda_.17} parent=0
    _
  %s5 = ssub.s32 1, %s3
  %s6 = scalar_select 0, %s5, %s3
  loop: start=0, step=1, limit=18
  $region2: #{_lambda_.17} parent=0 // loop_pre_header
    _
  $region3: #{_lambda_.17} parent=0 // loop_header
    %s8 = sphi 0, %s12
    %p9 = scmp.ge.s32.totalorder %s8, 18
    %s15 = sphi 0, %s27
    %s16 = sphi 0, %s23
    %s17 = sphi 0, %s15
    %s18 = sphi 0, %s16
    %s19 = sphi 0, %s17
    %s20 = sphi 0, %s18
    %s32 = sphi 0, %s34
    %s35 = sphi 0, %s32
    %s36 = sphi 0, %s35
    %s52 = sphi 0, %s36
    %s58 = sphi 0, %s60
    %s61 = sphi 0, %s58
    %s62 = sphi 0, %s61
    %s78 = sphi 0, %s62
    %s86 = sphi 0, %s88
    %s89 = sphi 0, %s86
    %s90 = sphi 0, %s89
    %s106 = sphi 0, %s90
  $region4: #{_lambda_.17} parent=0 // loop_header_branch
    %11 = sbr.rel (%p9) target = $region8
  $region5: #{_lambda_.17} parent=0 // loop_body
    %s13 = ssub.s32 %s8, 1
    %s14 = ssub.s32 %s8, 2
    %s21 = sadd.s32 1, %s16
    %p22 = scmp.ge.s32.totalorder %s21, 4
    %s23 = scalar_select %p22, 0, %s21
    %s24 = sadd.s32 1, %s15
    %s25 = scalar_select %p22, %s24, %s15
    %p26 = scmp.ge.s32.totalorder %s25, 4
    %s27 = scalar_select %p26, 0, %s25
    %s28 = ssub.s32 %s15, %s27
    %s29 = ssub.s32 %s16, %s23
    %s30 = sor.u32 %s28, %s29
    %p31 = scmp.eq.s32.totalorder %s30, 0
    %s33 = sadd.s32 %s32, 1
    %s34 = scalar_select %p31, %s32, %s33
    %p37 = pneg %p31
    %p38 = scmp.eq.s32.totalorder %s8, 15
    %p39 = por %p37, %p38
    %p40 = scmp.ne.s32.totalorder %s32, %s35
    %p41 = scmp.eq.s32.totalorder %s8, 0
    %p42 = por %p40, %p41
    %p43 = scmp.ne.s32.totalorder %s32, %s35
    %p44 = scmp.eq.s32.totalorder %s13, 15
    %p45 = por %p43, %p44
    %p46 = scmp.ne.s32.totalorder %s35, %s36
    %p47 = scmp.eq.s32.totalorder %s13, 0
    %p48 = por %p46, %p47
    %p49 = scmp.ne.s32.totalorder %s35, %s36
    %p50 = scmp.eq.s32.totalorder %s14, 15
    %p51 = por %p49, %p50
    %p53 = scmp.ne.s32.totalorder %s36, %s52
    %p54 = scmp.eq.s32.totalorder %s14, 0
    %p55 = por %p53, %p54
    %s56 = ssub.s32 %s15, %s27
    %p57 = scmp.eq.s32.totalorder %s56, 0
    %s59 = sadd.s32 %s58, 1
    %s60 = scalar_select %p57, %s58, %s59
    %p63 = pneg %p57
    %p64 = scmp.eq.s32.totalorder %s8, 15
    %p65 = por %p63, %p64
    %p66 = scmp.ne.s32.totalorder %s58, %s61
    %p67 = scmp.eq.s32.totalorder %s8, 0
    %p68 = por %p66, %p67
    %p69 = scmp.ne.s32.totalorder %s58, %s61
    %p70 = scmp.eq.s32.totalorder %s13, 15
    %p71 = por %p69, %p70
    %p72 = scmp.ne.s32.totalorder %s61, %s62
    %p73 = scmp.eq.s32.totalorder %s13, 0
    %p74 = por %p72, %p73
    %p75 = scmp.ne.s32.totalorder %s61, %s62
    %p76 = scmp.eq.s32.totalorder %s14, 15
    %p77 = por %p75, %p76
    %p79 = scmp.ne.s32.totalorder %s62, %s78
    %p80 = scmp.eq.s32.totalorder %s14, 0
    %p81 = por %p79, %p80
    %s82 = ssub.s32 %s15, %s27
    %s83 = ssub.s32 %s16, %s23
    %s84 = sor.u32 %s82, %s83
    %p85 = scmp.eq.s32.totalorder %s84, 0
    %s87 = sadd.s32 %s86, 1
    %s88 = scalar_select %p85, %s86, %s87
    %p91 = pneg %p85
    %p92 = scmp.eq.s32.totalorder %s8, 15
    %p93 = por %p91, %p92
    %p94 = scmp.ne.s32.totalorder %s86, %s89
    %p95 = scmp.eq.s32.totalorder %s8, 0
    %p96 = por %p94, %p95
    %p97 = scmp.ne.s32.totalorder %s86, %s89
    %p98 = scmp.eq.s32.totalorder %s13, 15
    %p99 = por %p97, %p98
    %p100 = scmp.ne.s32.totalorder %s89, %s90
    %p101 = scmp.eq.s32.totalorder %s13, 0
    %p102 = por %p100, %p101
    %p103 = scmp.ne.s32.totalorder %s89, %s90
    %p104 = scmp.eq.s32.totalorder %s14, 15
    %p105 = por %p103, %p104
    %p107 = scmp.ne.s32.totalorder %s90, %s106
    %p108 = scmp.eq.s32.totalorder %s14, 0
    %p109 = por %p107, %p108
    %p110 = scmp.le.s32.totalorder 1, %s8
    %p111 = scmp.lt.s32.totalorder %s8, 17
    %p112 = pnand %p110, %p111
    %p113 = pneg %p112
    // Predicated region
    $region9: #{_lambda_.17} parent=5 // pred_check
      _
    $region10: #{_lambda_.17} parent=5 // pred_check_branch
      %115 = sbr.rel (%p112) target = $region12
    $region11: #{_lambda_.17} parent=5 // pred_region
      %s116 = ssub.s32 %s8, 1
    $region12: #{_lambda_.17} parent=5 // pred_fallthru
      _
    %p117 = scmp.lt.s32.totalorder %s8, 16
    // Predicated region
    $region13: #{_lambda_.17} parent=5 // pred_check
      %p118 = pneg %p117
    $region14: #{_lambda_.17} parent=5 // pred_check_branch
      %120 = sbr.rel (%p118) target = $region16
    $region15: #{_lambda_.17} parent=5 // pred_region
      // Predicated region
      $region17: #{_lambda_.17} parent=15 // pred_check
        %p121 = pneg %p42
      $region18: #{_lambda_.17} parent=15 // pred_check_branch
        %123 = sbr.rel (%p121) target = $region20
      $region19: #{_lambda_.17} parent=15 // pred_region
        %s124 = smul.u32 64, %s16
        %p125 = scmp.lt.s32.totalorder %s15, 3
        %s126 = scalar_select %p125, %s15, 3
        %p127 = scmp.lt.s32.totalorder %s124, 255
        %s128 = scalar_select %p127, %s124, 255
        %s129 = smul.addr %s126, 256
        %s130 = sadd.s32 %s128, %s129
        %s131 = smul.addr %s130, 4
        %s132 = scalar_lea.vmem %s0, %s131
        %s133 = smul.u32 64, %s16
      $region20: #{_lambda_.17} parent=15 // pred_fallthru
        _
      // Predicated region
      $region21: #{_lambda_.17} parent=15 // pred_check
        %p134 = pneg %p68
      $region22: #{_lambda_.17} parent=15 // pred_check_branch
        %136 = sbr.rel (%p134) target = $region24
      $region23: #{_lambda_.17} parent=15 // pred_region
        %p137 = scmp.lt.s32.totalorder %s15, 3
        %s138 = scalar_select %p137, %s15, 3
        %s139 = smul.addr %s138, 16
        %s140 = smul.addr %s139, 4
        %s141 = scalar_lea.vmem %s1, %s140
      $region24: #{_lambda_.17} parent=15 // pred_fallthru
        _
    $region16: #{_lambda_.17} parent=5 // pred_fallthru
      _
    %p142 = scmp.le.s32.totalorder 1, %s8
    %p143 = scmp.lt.s32.totalorder %s8, 17
    %p144 = pnand %p142, %p143
    %p145 = pneg %p144
    // Predicated region
    $region25: #{_lambda_.17} parent=5 // pred_check
      _
    $region26: #{_lambda_.17} parent=5 // pred_check_branch
      %147 = sbr.rel (%p144) target = $region28
    $region27: #{_lambda_.17} parent=5 // pred_region
      %s148 = ssub.s32 %s8, 1
      %s149 = smul.u32 64, %s18
      %p150 = scmp.lt.s32.totalorder %s17, 3
      %s151 = scalar_select %p150, %s17, 3
      %p152 = scmp.lt.s32.totalorder %s149, 255
      %s153 = scalar_select %p152, %s149, 255
      %s154 = smul.addr %s151, 256
      %s155 = sadd.s32 %s153, %s154
      %s156 = smul.addr %s155, 4
      %s157 = scalar_lea.vmem %s0, %s156
      %p158 = pneg %p48
      %p159 = pneg %p45
      %p160 = scmp.lt.s32.totalorder %s17, 3
      %s161 = scalar_select %p160, %s17, 3
      %s162 = smul.addr %s161, 16
      %s163 = smul.addr %s162, 4
      %s164 = scalar_lea.vmem %s1, %s163
      %p165 = pneg %p74
      %p166 = pneg %p71
      %p167 = pneg %p102
      %p168 = pneg %p99
      %s169 = smul.u32 64, %s18
      %p170 = scmp.lt.s32.totalorder %s17, 3
      %s171 = scalar_select %p170, %s17, 3
      %p172 = scmp.lt.s32.totalorder %s169, 255
      %s173 = scalar_select %p172, %s169, 255
      %s174 = smul.addr %s171, 256
      %s175 = sadd.s32 %s173, %s174
      %s176 = smul.addr %s175, 8
      %s177 = scalar_lea.vmem %s2, %s176
      %s178 = smul.u32 64, %s18
      %p179 = scmp.lt.s32.totalorder %s17, 3
      %s180 = scalar_select %p179, %s17, 3
      %p181 = scmp.lt.s32.totalorder %s178, 255
      %s182 = scalar_select %p181, %s178, 255
      %s183 = smul.addr %s180, 256
      %s184 = sadd.s32 %s182, %s183
      %s185 = smul.addr %s184, 4
      %s186 = scalar_lea.vmem %s0, %s185
      %s187 = smul.u32 64, %s18
      %p188 = scmp.lt.s32.totalorder %s17, 3
      %s189 = scalar_select %p188, %s17, 3
      %s190 = smul.addr %s189, 16
      %s191 = smul.addr %s190, 4
      %s192 = scalar_lea.vmem %s1, %s191
      %s193 = smul.u32 64, %s18
      %p194 = scmp.lt.s32.totalorder %s17, 3
      %s195 = scalar_select %p194, %s17, 3
      %p196 = scmp.lt.s32.totalorder %s193, 255
      %s197 = scalar_select %p196, %s193, 255
      %s198 = smul.addr %s195, 256
      %s199 = sadd.s32 %s197, %s198
      %s200 = smul.addr %s199, 8
      %s201 = scalar_lea.vmem %s2, %s200
      %s202 = smul.u32 64, %s18
      %v204 = vld [vmem:[%s186] sm:$0xf]
      %v205 = vld [vmem:[%s186 + $0x4] sm:$0xf]
      %v206 = vld [vmem:[%s186 + $0x8] sm:$0xf]
      %v207 = vld [vmem:[%s186 + $0xc] sm:$0xf]
      %v208 = vld [vmem:[%s186 + $0x10] sm:$0xf]
      %v209 = vld [vmem:[%s186 + $0x14] sm:$0xf]
      %v210 = vld [vmem:[%s186 + $0x18] sm:$0xf]
      %v211 = vld [vmem:[%s186 + $0x1c] sm:$0xf]
      %v212 = vld [vmem:[%s186 + $0x20] sm:$0xf]
      %v213 = vld [vmem:[%s186 + $0x24] sm:$0xf]
      %v214 = vld [vmem:[%s186 + $0x28] sm:$0xf]
      %v215 = vld [vmem:[%s186 + $0x2c] sm:$0xf]
      %v216 = vld [vmem:[%s186 + $0x30] sm:$0xf]
      %v217 = vld [vmem:[%s186 + $0x34] sm:$0xf]
      %v218 = vld [vmem:[%s186 + $0x38] sm:$0xf]
      %v219 = vld [vmem:[%s186 + $0x3c] sm:$0xf]
      %v220 = vld [vmem:[%s186 + $0x40] sm:$0xf]
      %v221 = vld [vmem:[%s186 + $0x44] sm:$0xf]
      %v222 = vld [vmem:[%s186 + $0x48] sm:$0xf]
      %v223 = vld [vmem:[%s186 + $0x4c] sm:$0xf]
      %v224 = vld [vmem:[%s186 + $0x50] sm:$0xf]
      %v225 = vld [vmem:[%s186 + $0x54] sm:$0xf]
      %v226 = vld [vmem:[%s186 + $0x58] sm:$0xf]
      %v227 = vld [vmem:[%s186 + $0x5c] sm:$0xf]
      %v228 = vld [vmem:[%s186 + $0x60] sm:$0xf]
      %v229 = vld [vmem:[%s186 + $0x64] sm:$0xf]
      %v230 = vld [vmem:[%s186 + $0x68] sm:$0xf]
      %v231 = vld [vmem:[%s186 + $0x6c] sm:$0xf]
      %v232 = vld [vmem:[%s186 + $0x70] sm:$0xf]
      %v233 = vld [vmem:[%s186 + $0x74] sm:$0xf]
      %v234 = vld [vmem:[%s186 + $0x78] sm:$0xf]
      %v235 = vld [vmem:[%s186 + $0x7c] sm:$0xf]
      %v236 = vld [vmem:[%s186 + $0x80] sm:$0xf]
      %v237 = vld [vmem:[%s186 + $0x84] sm:$0xf]
      %v238 = vld [vmem:[%s186 + $0x88] sm:$0xf]
      %v239 = vld [vmem:[%s186 + $0x8c] sm:$0xf]
      %v240 = vld [vmem:[%s186 + $0x90] sm:$0xf]
      %v241 = vld [vmem:[%s186 + $0x94] sm:$0xf]
      %v242 = vld [vmem:[%s186 + $0x98] sm:$0xf]
      %v243 = vld [vmem:[%s186 + $0x9c] sm:$0xf]
      %v244 = vld [vmem:[%s186 + $0xa0] sm:$0xf]
      %v245 = vld [vmem:[%s186 + $0xa4] sm:$0xf]
      %v246 = vld [vmem:[%s186 + $0xa8] sm:$0xf]
      %v247 = vld [vmem:[%s186 + $0xac] sm:$0xf]
      %v248 = vld [vmem:[%s186 + $0xb0] sm:$0xf]
      %v249 = vld [vmem:[%s186 + $0xb4] sm:$0xf]
      %v250 = vld [vmem:[%s186 + $0xb8] sm:$0xf]
      %v251 = vld [vmem:[%s186 + $0xbc] sm:$0xf]
      %v252 = vld [vmem:[%s186 + $0xc0] sm:$0xf]
      %v253 = vld [vmem:[%s186 + $0xc4] sm:$0xf]
      %v254 = vld [vmem:[%s186 + $0xc8] sm:$0xf]
      %v255 = vld [vmem:[%s186 + $0xcc] sm:$0xf]
      %v256 = vld [vmem:[%s186 + $0xd0] sm:$0xf]
      %v257 = vld [vmem:[%s186 + $0xd4] sm:$0xf]
      %v258 = vld [vmem:[%s186 + $0xd8] sm:$0xf]
      %v259 = vld [vmem:[%s186 + $0xdc] sm:$0xf]
      %v260 = vld [vmem:[%s186 + $0xe0] sm:$0xf]
      %v261 = vld [vmem:[%s186 + $0xe4] sm:$0xf]
      %v262 = vld [vmem:[%s186 + $0xe8] sm:$0xf]
      %v263 = vld [vmem:[%s186 + $0xec] sm:$0xf]
      %v264 = vld [vmem:[%s186 + $0xf0] sm:$0xf]
      %v265 = vld [vmem:[%s186 + $0xf4] sm:$0xf]
      %v266 = vld [vmem:[%s186 + $0xf8] sm:$0xf]
      %v267 = vld [vmem:[%s186 + $0xfc] sm:$0xf]
      %v268 = vld [vmem:[%s192] sm:$0xf]
      %v269 = vld [vmem:[%s192 + $0x4] sm:$0xf]
      %v270 = vld [vmem:[%s192 + $0x8] sm:$0xf]
      %v271 = vld [vmem:[%s192 + $0xc] sm:$0xf]
      %v272 = vld [vmem:[%s192 + $0x10] sm:$0xf]
      %v273 = vld [vmem:[%s192 + $0x14] sm:$0xf]
      %v274 = vld [vmem:[%s192 + $0x18] sm:$0xf]
      %v275 = vld [vmem:[%s192 + $0x1c] sm:$0xf]
      %v276 = vld [vmem:[%s192 + $0x20] sm:$0xf]
      %v277 = vld [vmem:[%s192 + $0x24] sm:$0xf]
      %v278 = vld [vmem:[%s192 + $0x28] sm:$0xf]
      %v279 = vld [vmem:[%s192 + $0x2c] sm:$0xf]
      %v280 = vld [vmem:[%s192 + $0x30] sm:$0xf]
      %v281 = vld [vmem:[%s192 + $0x34] sm:$0xf]
      %v282 = vld [vmem:[%s192 + $0x38] sm:$0xf]
      %v283 = vld [vmem:[%s192 + $0x3c] sm:$0xf]
      %v348 = vunpack.c.l.b16 %v204
      %v349 = vunpack.c.l.b16 %v205
      %v350 = vunpack.c.l.b16 %v206
      %v351 = vunpack.c.l.b16 %v207
      %v352 = vunpack.c.l.b16 %v208
      %v353 = vunpack.c.l.b16 %v209
      %v354 = vunpack.c.l.b16 %v210
      %v355 = vunpack.c.l.b16 %v211
      %v356 = vunpack.c.l.b16 %v212
      %v357 = vunpack.c.l.b16 %v213
      %v358 = vunpack.c.l.b16 %v214
      %v359 = vunpack.c.l.b16 %v215
      %v360 = vunpack.c.l.b16 %v216
      %v361 = vunpack.c.l.b16 %v217
      %v362 = vunpack.c.l.b16 %v218
      %v363 = vunpack.c.l.b16 %v219
      %v364 = vunpack.c.l.b16 %v220
      %v365 = vunpack.c.l.b16 %v221
      %v366 = vunpack.c.l.b16 %v222
      %v367 = vunpack.c.l.b16 %v223
      %v368 = vunpack.c.l.b16 %v224
      %v369 = vunpack.c.l.b16 %v225
      %v370 = vunpack.c.l.b16 %v226
      %v371 = vunpack.c.l.b16 %v227
      %v372 = vunpack.c.l.b16 %v228
      %v373 = vunpack.c.l.b16 %v229
      %v374 = vunpack.c.l.b16 %v230
      %v375 = vunpack.c.l.b16 %v231
      %v376 = vunpack.c.l.b16 %v232
      %v377 = vunpack.c.l.b16 %v233
      %v378 = vunpack.c.l.b16 %v234
      %v379 = vunpack.c.l.b16 %v235
      %v380 = vunpack.c.l.b16 %v236
      %v381 = vunpack.c.l.b16 %v237
      %v382 = vunpack.c.l.b16 %v238
      %v383 = vunpack.c.l.b16 %v239
      %v384 = vunpack.c.l.b16 %v240
      %v385 = vunpack.c.l.b16 %v241
      %v386 = vunpack.c.l.b16 %v242
      %v387 = vunpack.c.l.b16 %v243
      %v388 = vunpack.c.l.b16 %v244
      %v389 = vunpack.c.l.b16 %v245
      %v390 = vunpack.c.l.b16 %v246
      %v391 = vunpack.c.l.b16 %v247
      %v392 = vunpack.c.l.b16 %v248
      %v393 = vunpack.c.l.b16 %v249
      %v394 = vunpack.c.l.b16 %v250
      %v395 = vunpack.c.l.b16 %v251
      %v396 = vunpack.c.l.b16 %v252
      %v397 = vunpack.c.l.b16 %v253
      %v398 = vunpack.c.l.b16 %v254
      %v399 = vunpack.c.l.b16 %v255
      %v400 = vunpack.c.l.b16 %v256
      %v401 = vunpack.c.l.b16 %v257
      %v402 = vunpack.c.l.b16 %v258
      %v403 = vunpack.c.l.b16 %v259
      %v404 = vunpack.c.l.b16 %v260
      %v405 = vunpack.c.l.b16 %v261
      %v406 = vunpack.c.l.b16 %v262
      %v407 = vunpack.c.l.b16 %v263
      %v408 = vunpack.c.l.b16 %v264
      %v409 = vunpack.c.l.b16 %v265
      %v410 = vunpack.c.l.b16 %v266
      %v411 = vunpack.c.l.b16 %v267
      %v412 = vpack.c.b16 %v349, %v348
      %v413 = vpack.c.b16 %v351, %v350
      %v414 = vpack.c.b16 %v353, %v352
      %v415 = vpack.c.b16 %v355, %v354
      %v416 = vpack.c.b16 %v357, %v356
      %v417 = vpack.c.b16 %v359, %v358
      %v418 = vpack.c.b16 %v361, %v360
      %v419 = vpack.c.b16 %v363, %v362
      %v420 = vpack.c.b16 %v365, %v364
      %v421 = vpack.c.b16 %v367, %v366
      %v422 = vpack.c.b16 %v369, %v368
      %v423 = vpack.c.b16 %v371, %v370
      %v424 = vpack.c.b16 %v373, %v372
      %v425 = vpack.c.b16 %v375, %v374
      %v426 = vpack.c.b16 %v377, %v376
      %v427 = vpack.c.b16 %v379, %v378
      %v428 = vpack.c.b16 %v381, %v380
      %v429 = vpack.c.b16 %v383, %v382
      %v430 = vpack.c.b16 %v385, %v384
      %v431 = vpack.c.b16 %v387, %v386
      %v432 = vpack.c.b16 %v389, %v388
      %v433 = vpack.c.b16 %v391, %v390
      %v434 = vpack.c.b16 %v393, %v392
      %v435 = vpack.c.b16 %v395, %v394
      %v436 = vpack.c.b16 %v397, %v396
      %v437 = vpack.c.b16 %v399, %v398
      %v438 = vpack.c.b16 %v401, %v400
      %v439 = vpack.c.b16 %v403, %v402
      %v440 = vpack.c.b16 %v405, %v404
      %v441 = vpack.c.b16 %v407, %v406
      %v442 = vpack.c.b16 %v409, %v408
      %v443 = vpack.c.b16 %v411, %v410
      %v492 = vunpack.c.l.b16 %v268
      %v493 = vunpack.c.l.b16 %v269
      %v494 = vunpack.c.l.b16 %v270
      %v495 = vunpack.c.l.b16 %v271
      %v496 = vunpack.c.l.b16 %v272
      %v497 = vunpack.c.l.b16 %v273
      %v498 = vunpack.c.l.b16 %v274
      %v499 = vunpack.c.l.b16 %v275
      %v500 = vunpack.c.l.b16 %v276
      %v501 = vunpack.c.l.b16 %v277
      %v502 = vunpack.c.l.b16 %v278
      %v503 = vunpack.c.l.b16 %v279
      %v504 = vunpack.c.l.b16 %v280
      %v505 = vunpack.c.l.b16 %v281
      %v506 = vunpack.c.l.b16 %v282
      %v507 = vunpack.c.l.b16 %v283
      %v508 = vpack.c.b16 %v493, %v492
      %v509 = vpack.c.b16 %v495, %v494
      %v510 = vpack.c.b16 %v497, %v496
      %v511 = vpack.c.b16 %v499, %v498
      %v512 = vpack.c.b16 %v501, %v500
      %v513 = vpack.c.b16 %v503, %v502
      %v514 = vpack.c.b16 %v505, %v504
      %v515 = vpack.c.b16 %v507, %v506
      %524 = vmatprep.subr.bf16.mxu0 0
      %525 = vmatpush1.bf16.msra.mxu0 %v515
      %526 = vmatprep.subr.bf16.mxu0 0
      %527 = vmatpush1.bf16.msra.mxu0 %v514
      %528 = vmatprep.subr.bf16.mxu0 0
      %529 = vmatpush1.bf16.msra.mxu0 %v513
      %530 = vmatprep.subr.bf16.mxu0 0
      %531 = vmatpush1.bf16.msra.mxu0 %v512
      %532 = vmatprep.subr.bf16.mxu0 0
      %533 = vmatpush1.bf16.msra.mxu0 %v511
      %534 = vmatprep.subr.bf16.mxu0 0
      %535 = vmatpush1.bf16.msra.mxu0 %v510
      %536 = vmatprep.subr.bf16.mxu0 0
      %537 = vmatpush1.bf16.msra.mxu0 %v509
      %538 = vmatprep.subr.bf16.mxu0 0
      %539 = vmatpush1.bf16.msra.mxu0 %v508
      %540 = vmatprep.subr.bf16.mxu0 0
      %541 = vmatpush2.bf16.msra.mxu0 0
      %542 = vmatprep.subr.bf16.mxu0 0
      %543 = vmatpush2.bf16.msra.mxu0 0
      %544 = vmatprep.subr.bf16.mxu0 0
      %545 = vmatpush2.bf16.msra.mxu0 0
      %546 = vmatprep.subr.bf16.mxu0 0
      %547 = vmatpush2.bf16.msra.mxu0 0
      %548 = vmatprep.subr.bf16.mxu0 0
      %549 = vmatpush2.bf16.msra.mxu0 0
      %550 = vmatprep.subr.bf16.mxu0 0
      %551 = vmatpush2.bf16.msra.mxu0 0
      %552 = vmatprep.subr.bf16.mxu0 0
      %553 = vmatpush2.bf16.msra.mxu0 0
      %554 = vmatprep.subr.bf16.mxu0 0
      %555 = vmatpush2.bf16.msra.mxu0 0
      %556 = vmatprep.mubr.bf16.mxu0 0
      %557 = vmatmul.mubr.bf16.gmra.mxu0 %v412
      %v558 = vpop.f32.mrf.mxu0
      %v559 = vadd.f32 0.0, %v558
      %v560 = vpop.f32.mrf.mxu0
      %v561 = vpop.f32.mrf.mxu0
      %v562 = vadd.f32 0.0, %v561
      %v563 = vpop.f32.mrf.mxu0
      %564 = vmatprep.mubr.bf16.mxu0 0
      %565 = vmatmul.mubr.bf16.gmra.mxu0 %v413
      %v566 = vpop.f32.mrf.mxu0
      %v567 = vadd.f32 0.0, %v566
      %v568 = vpop.f32.mrf.mxu0
      %v569 = vpop.f32.mrf.mxu0
      %v570 = vadd.f32 0.0, %v569
      %v571 = vpop.f32.mrf.mxu0
      %572 = vmatprep.mubr.bf16.mxu0 0
      %573 = vmatmul.mubr.bf16.gmra.mxu0 %v414
      %v574 = vpop.f32.mrf.mxu0
      %v575 = vadd.f32 0.0, %v574
      %v576 = vpop.f32.mrf.mxu0
      %v577 = vpop.f32.mrf.mxu0
      %v578 = vadd.f32 0.0, %v577
      %v579 = vpop.f32.mrf.mxu0
      %580 = vmatprep.mubr.bf16.mxu0 0
      %581 = vmatmul.mubr.bf16.gmra.mxu0 %v415
      %v582 = vpop.f32.mrf.mxu0
      %v583 = vadd.f32 0.0, %v582
      %v584 = vpop.f32.mrf.mxu0
      %v585 = vpop.f32.mrf.mxu0
      %v586 = vadd.f32 0.0, %v585
      %v587 = vpop.f32.mrf.mxu0
      %588 = vmatprep.mubr.bf16.mxu0 0
      %589 = vmatmul.mubr.bf16.gmra.mxu0 %v416
      %v590 = vpop.f32.mrf.mxu0
      %v591 = vadd.f32 0.0, %v590
      %v592 = vpop.f32.mrf.mxu0
      %v593 = vpop.f32.mrf.mxu0
      %v594 = vadd.f32 0.0, %v593
      %v595 = vpop.f32.mrf.mxu0
      %596 = vmatprep.mubr.bf16.mxu0 0
      %597 = vmatmul.mubr.bf16.gmra.mxu0 %v417
      %v598 = vpop.f32.mrf.mxu0
      %v599 = vadd.f32 0.0, %v598
      %v600 = vpop.f32.mrf.mxu0
      %v601 = vpop.f32.mrf.mxu0
      %v602 = vadd.f32 0.0, %v601
      %v603 = vpop.f32.mrf.mxu0
      %604 = vmatprep.mubr.bf16.mxu0 0
      %605 = vmatmul.mubr.bf16.gmra.mxu0 %v418
      %v606 = vpop.f32.mrf.mxu0
      %v607 = vadd.f32 0.0, %v606
      %v608 = vpop.f32.mrf.mxu0
      %v609 = vpop.f32.mrf.mxu0
      %v610 = vadd.f32 0.0, %v609
      %v611 = vpop.f32.mrf.mxu0
      %612 = vmatprep.mubr.bf16.mxu0 0
      %613 = vmatmul.mubr.bf16.gmra.mxu0 %v419
      %v614 = vpop.f32.mrf.mxu0
      %v615 = vadd.f32 0.0, %v614
      %v616 = vpop.f32.mrf.mxu0
      %v617 = vpop.f32.mrf.mxu0
      %v618 = vadd.f32 0.0, %v617
      %v619 = vpop.f32.mrf.mxu0
      %620 = vmatprep.mubr.bf16.mxu0 0
      %621 = vmatmul.mubr.bf16.gmra.mxu0 %v420
      %v622 = vpop.f32.mrf.mxu0
      %v623 = vadd.f32 0.0, %v622
      %v624 = vpop.f32.mrf.mxu0
      %v625 = vpop.f32.mrf.mxu0
      %v626 = vadd.f32 0.0, %v625
      %v627 = vpop.f32.mrf.mxu0
      %628 = vmatprep.mubr.bf16.mxu0 0
      %629 = vmatmul.mubr.bf16.gmra.mxu0 %v421
      %v630 = vpop.f32.mrf.mxu0
      %v631 = vadd.f32 0.0, %v630
      %v632 = vpop.f32.mrf.mxu0
      %v633 = vpop.f32.mrf.mxu0
      %v634 = vadd.f32 0.0, %v633
      %v635 = vpop.f32.mrf.mxu0
      %636 = vmatprep.mubr.bf16.mxu0 0
      %637 = vmatmul.mubr.bf16.gmra.mxu0 %v422
      %v638 = vpop.f32.mrf.mxu0
      %v639 = vadd.f32 0.0, %v638
      %v640 = vpop.f32.mrf.mxu0
      %v641 = vpop.f32.mrf.mxu0
      %v642 = vadd.f32 0.0, %v641
      %v643 = vpop.f32.mrf.mxu0
      %644 = vmatprep.mubr.bf16.mxu0 0
      %645 = vmatmul.mubr.bf16.gmra.mxu0 %v423
      %v646 = vpop.f32.mrf.mxu0
      %v647 = vadd.f32 0.0, %v646
      %v648 = vpop.f32.mrf.mxu0
      %v649 = vpop.f32.mrf.mxu0
      %v650 = vadd.f32 0.0, %v649
      %v651 = vpop.f32.mrf.mxu0
      %652 = vmatprep.mubr.bf16.mxu0 0
      %653 = vmatmul.mubr.bf16.gmra.mxu0 %v424
      %v654 = vpop.f32.mrf.mxu0
      %v655 = vadd.f32 0.0, %v654
      %v656 = vpop.f32.mrf.mxu0
      %v657 = vpop.f32.mrf.mxu0
      %v658 = vadd.f32 0.0, %v657
      %v659 = vpop.f32.mrf.mxu0
      %660 = vmatprep.mubr.bf16.mxu0 0
      %661 = vmatmul.mubr.bf16.gmra.mxu0 %v425
      %v662 = vpop.f32.mrf.mxu0
      %v663 = vadd.f32 0.0, %v662
      %v664 = vpop.f32.mrf.mxu0
      %v665 = vpop.f32.mrf.mxu0
      %v666 = vadd.f32 0.0, %v665
      %v667 = vpop.f32.mrf.mxu0
      %668 = vmatprep.mubr.bf16.mxu0 0
      %669 = vmatmul.mubr.bf16.gmra.mxu0 %v426
      %v670 = vpop.f32.mrf.mxu0
      %v671 = vadd.f32 0.0, %v670
      %v672 = vpop.f32.mrf.mxu0
      %v673 = vpop.f32.mrf.mxu0
      %v674 = vadd.f32 0.0, %v673
      %v675 = vpop.f32.mrf.mxu0
      %676 = vmatprep.mubr.bf16.mxu0 0
      %677 = vmatmul.mubr.bf16.gmra.mxu0 %v427
      %v678 = vpop.f32.mrf.mxu0
      %v679 = vadd.f32 0.0, %v678
      %v680 = vpop.f32.mrf.mxu0
      %v681 = vpop.f32.mrf.mxu0
      %v682 = vadd.f32 0.0, %v681
      %v683 = vpop.f32.mrf.mxu0
      %684 = vmatprep.mubr.bf16.mxu0 0
      %685 = vmatmul.mubr.bf16.gmra.mxu0 %v428
      %v686 = vpop.f32.mrf.mxu0
      %v687 = vadd.f32 0.0, %v686
      %v688 = vpop.f32.mrf.mxu0
      %v689 = vpop.f32.mrf.mxu0
      %v690 = vadd.f32 0.0, %v689
      %v691 = vpop.f32.mrf.mxu0
      %692 = vmatprep.mubr.bf16.mxu0 0
      %693 = vmatmul.mubr.bf16.gmra.mxu0 %v429
      %v694 = vpop.f32.mrf.mxu0
      %v695 = vadd.f32 0.0, %v694
      %v696 = vpop.f32.mrf.mxu0
      %v697 = vpop.f32.mrf.mxu0
      %v698 = vadd.f32 0.0, %v697
      %v699 = vpop.f32.mrf.mxu0
      %700 = vmatprep.mubr.bf16.mxu0 0
      %701 = vmatmul.mubr.bf16.gmra.mxu0 %v430
      %v702 = vpop.f32.mrf.mxu0
      %v703 = vadd.f32 0.0, %v702
      %v704 = vpop.f32.mrf.mxu0
      %v705 = vpop.f32.mrf.mxu0
      %v706 = vadd.f32 0.0, %v705
      %v707 = vpop.f32.mrf.mxu0
      %708 = vmatprep.mubr.bf16.mxu0 0
      %709 = vmatmul.mubr.bf16.gmra.mxu0 %v431
      %v710 = vpop.f32.mrf.mxu0
      %v711 = vadd.f32 0.0, %v710
      %v712 = vpop.f32.mrf.mxu0
      %v713 = vpop.f32.mrf.mxu0
      %v714 = vadd.f32 0.0, %v713
      %v715 = vpop.f32.mrf.mxu0
      %716 = vmatprep.mubr.bf16.mxu0 0
      %717 = vmatmul.mubr.bf16.gmra.mxu0 %v432
      %v718 = vpop.f32.mrf.mxu0
      %v719 = vadd.f32 0.0, %v718
      %v720 = vpop.f32.mrf.mxu0
      %v721 = vpop.f32.mrf.mxu0
      %v722 = vadd.f32 0.0, %v721
      %v723 = vpop.f32.mrf.mxu0
      %724 = vmatprep.mubr.bf16.mxu0 0
      %725 = vmatmul.mubr.bf16.gmra.mxu0 %v433
      %v726 = vpop.f32.mrf.mxu0
      %v727 = vadd.f32 0.0, %v726
      %v728 = vpop.f32.mrf.mxu0
      %v729 = vpop.f32.mrf.mxu0
      %v730 = vadd.f32 0.0, %v729
      %v731 = vpop.f32.mrf.mxu0
      %732 = vmatprep.mubr.bf16.mxu0 0
      %733 = vmatmul.mubr.bf16.gmra.mxu0 %v434
      %v734 = vpop.f32.mrf.mxu0
      %v735 = vadd.f32 0.0, %v734
      %v736 = vpop.f32.mrf.mxu0
      %v737 = vpop.f32.mrf.mxu0
      %v738 = vadd.f32 0.0, %v737
      %v739 = vpop.f32.mrf.mxu0
      %740 = vmatprep.mubr.bf16.mxu0 0
      %741 = vmatmul.mubr.bf16.gmra.mxu0 %v435
      %v742 = vpop.f32.mrf.mxu0
      %v743 = vadd.f32 0.0, %v742
      %v744 = vpop.f32.mrf.mxu0
      %v745 = vpop.f32.mrf.mxu0
      %v746 = vadd.f32 0.0, %v745
      %v747 = vpop.f32.mrf.mxu0
      %748 = vmatprep.mubr.bf16.mxu0 0
      %749 = vmatmul.mubr.bf16.gmra.mxu0 %v436
      %v750 = vpop.f32.mrf.mxu0
      %v751 = vadd.f32 0.0, %v750
      %v752 = vpop.f32.mrf.mxu0
      %v753 = vpop.f32.mrf.mxu0
      %v754 = vadd.f32 0.0, %v753
      %v755 = vpop.f32.mrf.mxu0
      %756 = vmatprep.mubr.bf16.mxu0 0
      %757 = vmatmul.mubr.bf16.gmra.mxu0 %v437
      %v758 = vpop.f32.mrf.mxu0
      %v759 = vadd.f32 0.0, %v758
      %v760 = vpop.f32.mrf.mxu0
      %v761 = vpop.f32.mrf.mxu0
      %v762 = vadd.f32 0.0, %v761
      %v763 = vpop.f32.mrf.mxu0
      %764 = vmatprep.mubr.bf16.mxu0 0
      %765 = vmatmul.mubr.bf16.gmra.mxu0 %v438
      %v766 = vpop.f32.mrf.mxu0
      %v767 = vadd.f32 0.0, %v766
      %v768 = vpop.f32.mrf.mxu0
      %v769 = vpop.f32.mrf.mxu0
      %v770 = vadd.f32 0.0, %v769
      %v771 = vpop.f32.mrf.mxu0
      %772 = vmatprep.mubr.bf16.mxu0 0
      %773 = vmatmul.mubr.bf16.gmra.mxu0 %v439
      %v774 = vpop.f32.mrf.mxu0
      %v775 = vadd.f32 0.0, %v774
      %v776 = vpop.f32.mrf.mxu0
      %v777 = vpop.f32.mrf.mxu0
      %v778 = vadd.f32 0.0, %v777
      %v779 = vpop.f32.mrf.mxu0
      %780 = vmatprep.mubr.bf16.mxu0 0
      %781 = vmatmul.mubr.bf16.gmra.mxu0 %v440
      %v782 = vpop.f32.mrf.mxu0
      %v783 = vadd.f32 0.0, %v782
      %v784 = vpop.f32.mrf.mxu0
      %v785 = vpop.f32.mrf.mxu0
      %v786 = vadd.f32 0.0, %v785
      %v787 = vpop.f32.mrf.mxu0
      %788 = vmatprep.mubr.bf16.mxu0 0
      %789 = vmatmul.mubr.bf16.gmra.mxu0 %v441
      %v790 = vpop.f32.mrf.mxu0
      %v791 = vadd.f32 0.0, %v790
      %v792 = vpop.f32.mrf.mxu0
      %v793 = vpop.f32.mrf.mxu0
      %v794 = vadd.f32 0.0, %v793
      %v795 = vpop.f32.mrf.mxu0
      %796 = vmatprep.mubr.bf16.mxu0 0
      %797 = vmatmul.mubr.bf16.gmra.mxu0 %v442
      %v798 = vpop.f32.mrf.mxu0
      %v799 = vadd.f32 0.0, %v798
      %v800 = vpop.f32.mrf.mxu0
      %v801 = vpop.f32.mrf.mxu0
      %v802 = vadd.f32 0.0, %v801
      %v803 = vpop.f32.mrf.mxu0
      %804 = vmatprep.mubr.bf16.mxu0 0
      %805 = vmatmul.mubr.bf16.gmra.mxu0 %v443
      %v806 = vpop.f32.mrf.mxu0
      %v807 = vadd.f32 0.0, %v806
      %v808 = vpop.f32.mrf.mxu0
      %v809 = vpop.f32.mrf.mxu0
      %v810 = vadd.f32 0.0, %v809
      %v811 = vpop.f32.mrf.mxu0
      %812 = vdwg.mxu0
      %v813 = vtanh.pop %v559
      %v814 = vtanh.pop %v562
      %v815 = vtanh.pop %v567
      %v816 = vtanh.pop %v570
      %v817 = vtanh.pop %v575
      %v818 = vtanh.pop %v578
      %v819 = vtanh.pop %v583
      %v820 = vtanh.pop %v586
      %v821 = vtanh.pop %v591
      %v822 = vtanh.pop %v594
      %v823 = vtanh.pop %v599
      %v824 = vtanh.pop %v602
      %v825 = vtanh.pop %v607
      %v826 = vtanh.pop %v610
      %v827 = vtanh.pop %v615
      %v828 = vtanh.pop %v618
      %v829 = vtanh.pop %v623
      %v830 = vtanh.pop %v626
      %v831 = vtanh.pop %v631
      %v832 = vtanh.pop %v634
      %v833 = vtanh.pop %v639
      %v834 = vtanh.pop %v642
      %v835 = vtanh.pop %v647
      %v836 = vtanh.pop %v650
      %v837 = vtanh.pop %v655
      %v838 = vtanh.pop %v658
      %v839 = vtanh.pop %v663
      %v840 = vtanh.pop %v666
      %v841 = vtanh.pop %v671
      %v842 = vtanh.pop %v674
      %v843 = vtanh.pop %v679
      %v844 = vtanh.pop %v682
      %v845 = vtanh.pop %v687
      %v846 = vtanh.pop %v690
      %v847 = vtanh.pop %v695
      %v848 = vtanh.pop %v698
      %v849 = vtanh.pop %v703
      %v850 = vtanh.pop %v706
      %v851 = vtanh.pop %v711
      %v852 = vtanh.pop %v714
      %v853 = vtanh.pop %v719
      %v854 = vtanh.pop %v722
      %v855 = vtanh.pop %v727
      %v856 = vtanh.pop %v730
      %v857 = vtanh.pop %v735
      %v858 = vtanh.pop %v738
      %v859 = vtanh.pop %v743
      %v860 = vtanh.pop %v746
      %v861 = vtanh.pop %v751
      %v862 = vtanh.pop %v754
      %v863 = vtanh.pop %v759
      %v864 = vtanh.pop %v762
      %v865 = vtanh.pop %v767
      %v866 = vtanh.pop %v770
      %v867 = vtanh.pop %v775
      %v868 = vtanh.pop %v778
      %v869 = vtanh.pop %v783
      %v870 = vtanh.pop %v786
      %v871 = vtanh.pop %v791
      %v872 = vtanh.pop %v794
      %v873 = vtanh.pop %v799
      %v874 = vtanh.pop %v802
      %v875 = vtanh.pop %v807
      %v876 = vtanh.pop %v810
      %877 = vst [vmem:[%s201] sm:$0xff] %v813
      %878 = vst [vmem:[%s201 + $0x8] sm:$0xff] %v814
      %879 = vst [vmem:[%s201 + $0x10] sm:$0xff] %v815
      %880 = vst [vmem:[%s201 + $0x18] sm:$0xff] %v816
      %881 = vst [vmem:[%s201 + $0x20] sm:$0xff] %v817
      %882 = vst [vmem:[%s201 + $0x28] sm:$0xff] %v818
      %883 = vst [vmem:[%s201 + $0x30] sm:$0xff] %v819
      %884 = vst [vmem:[%s201 + $0x38] sm:$0xff] %v820
      %885 = vst [vmem:[%s201 + $0x40] sm:$0xff] %v821
      %886 = vst [vmem:[%s201 + $0x48] sm:$0xff] %v822
      %887 = vst [vmem:[%s201 + $0x50] sm:$0xff] %v823
      %888 = vst [vmem:[%s201 + $0x58] sm:$0xff] %v824
      %889 = vst [vmem:[%s201 + $0x60] sm:$0xff] %v825
      %890 = vst [vmem:[%s201 + $0x68] sm:$0xff] %v826
      %891 = vst [vmem:[%s201 + $0x70] sm:$0xff] %v827
      %892 = vst [vmem:[%s201 + $0x78] sm:$0xff] %v828
      %893 = vst [vmem:[%s201 + $0x80] sm:$0xff] %v829
      %894 = vst [vmem:[%s201 + $0x88] sm:$0xff] %v830
      %895 = vst [vmem:[%s201 + $0x90] sm:$0xff] %v831
      %896 = vst [vmem:[%s201 + $0x98] sm:$0xff] %v832
      %897 = vst [vmem:[%s201 + $0xa0] sm:$0xff] %v833
      %898 = vst [vmem:[%s201 + $0xa8] sm:$0xff] %v834
      %899 = vst [vmem:[%s201 + $0xb0] sm:$0xff] %v835
      %900 = vst [vmem:[%s201 + $0xb8] sm:$0xff] %v836
      %901 = vst [vmem:[%s201 + $0xc0] sm:$0xff] %v837
      %902 = vst [vmem:[%s201 + $0xc8] sm:$0xff] %v838
      %903 = vst [vmem:[%s201 + $0xd0] sm:$0xff] %v839
      %904 = vst [vmem:[%s201 + $0xd8] sm:$0xff] %v840
      %905 = vst [vmem:[%s201 + $0xe0] sm:$0xff] %v841
      %906 = vst [vmem:[%s201 + $0xe8] sm:$0xff] %v842
      %907 = vst [vmem:[%s201 + $0xf0] sm:$0xff] %v843
      %908 = vst [vmem:[%s201 + $0xf8] sm:$0xff] %v844
      %909 = vst [vmem:[%s201 + $0x100] sm:$0xff] %v845
      %910 = vst [vmem:[%s201 + $0x108] sm:$0xff] %v846
      %911 = vst [vmem:[%s201 + $0x110] sm:$0xff] %v847
      %912 = vst [vmem:[%s201 + $0x118] sm:$0xff] %v848
      %913 = vst [vmem:[%s201 + $0x120] sm:$0xff] %v849
      %914 = vst [vmem:[%s201 + $0x128] sm:$0xff] %v850
      %915 = vst [vmem:[%s201 + $0x130] sm:$0xff] %v851
      %916 = vst [vmem:[%s201 + $0x138] sm:$0xff] %v852
      %917 = vst [vmem:[%s201 + $0x140] sm:$0xff] %v853
      %918 = vst [vmem:[%s201 + $0x148] sm:$0xff] %v854
      %919 = vst [vmem:[%s201 + $0x150] sm:$0xff] %v855
      %920 = vst [vmem:[%s201 + $0x158] sm:$0xff] %v856
      %921 = vst [vmem:[%s201 + $0x160] sm:$0xff] %v857
      %922 = vst [vmem:[%s201 + $0x168] sm:$0xff] %v858
      %923 = vst [vmem:[%s201 + $0x170] sm:$0xff] %v859
      %924 = vst [vmem:[%s201 + $0x178] sm:$0xff] %v860
      %925 = vst [vmem:[%s201 + $0x180] sm:$0xff] %v861
      %926 = vst [vmem:[%s201 + $0x188] sm:$0xff] %v862
      %927 = vst [vmem:[%s201 + $0x190] sm:$0xff] %v863
      %928 = vst [vmem:[%s201 + $0x198] sm:$0xff] %v864
      %929 = vst [vmem:[%s201 + $0x1a0] sm:$0xff] %v865
      %930 = vst [vmem:[%s201 + $0x1a8] sm:$0xff] %v866
      %931 = vst [vmem:[%s201 + $0x1b0] sm:$0xff] %v867
      %932 = vst [vmem:[%s201 + $0x1b8] sm:$0xff] %v868
      %933 = vst [vmem:[%s201 + $0x1c0] sm:$0xff] %v869
      %934 = vst [vmem:[%s201 + $0x1c8] sm:$0xff] %v870
      %935 = vst [vmem:[%s201 + $0x1d0] sm:$0xff] %v871
      %936 = vst [vmem:[%s201 + $0x1d8] sm:$0xff] %v872
      %937 = vst [vmem:[%s201 + $0x1e0] sm:$0xff] %v873
      %938 = vst [vmem:[%s201 + $0x1e8] sm:$0xff] %v874
      %939 = vst [vmem:[%s201 + $0x1f0] sm:$0xff] %v875
      %940 = vst [vmem:[%s201 + $0x1f8] sm:$0xff] %v876
      %s941 = smul.u32 64, %s18
      %p942 = scmp.lt.s32.totalorder %s17, 3
      %s943 = scalar_select %p942, %s17, 3
      %p944 = scmp.lt.s32.totalorder %s941, 255
      %s945 = scalar_select %p944, %s941, 255
      %s946 = smul.addr %s943, 256
      %s947 = sadd.s32 %s945, %s946
      %s948 = smul.addr %s947, 8
      %s949 = scalar_lea.vmem %s2, %s948
      // Predicated region
      $region29: #{_lambda_.17} parent=27 // pred_check
        %p950 = pneg %p99
      $region30: #{_lambda_.17} parent=27 // pred_check_branch
        %952 = sbr.rel (%p950) target = $region32
      $region31: #{_lambda_.17} parent=27 // pred_region
        %s953 = smul.u32 64, %s18
      $region32: #{_lambda_.17} parent=27 // pred_fallthru
        _
    $region28: #{_lambda_.17} parent=5 // pred_fallthru
      _
    %p954 = scmp.le.s32.totalorder 2, %s8
    // Predicated region
    $region33: #{_lambda_.17} parent=5 // pred_check
      %p955 = pneg %p954
    $region34: #{_lambda_.17} parent=5 // pred_check_branch
      %957 = sbr.rel (%p955) target = $region36
    $region35: #{_lambda_.17} parent=5 // pred_region
      %s958 = ssub.s32 %s8, 2
      // Predicated region
      $region37: #{_lambda_.17} parent=35 // pred_check
        %p959 = pneg %p105
      $region38: #{_lambda_.17} parent=35 // pred_check_branch
        %961 = sbr.rel (%p959) target = $region40
      $region39: #{_lambda_.17} parent=35 // pred_region
        %s962 = smul.u32 64, %s20
        %p963 = scmp.lt.s32.totalorder %s19, 3
        %s964 = scalar_select %p963, %s19, 3
        %p965 = scmp.lt.s32.totalorder %s962, 255
        %s966 = scalar_select %p965, %s962, 255
        %s967 = smul.addr %s964, 256
        %s968 = sadd.s32 %s966, %s967
        %s969 = smul.addr %s968, 8
        %s970 = scalar_lea.vmem %s2, %s969
      $region40: #{_lambda_.17} parent=35 // pred_fallthru
        _
    $region36: #{_lambda_.17} parent=5 // pred_fallthru
      _
  $region6: #{_lambda_.17} parent=0 // loop_footer
    %s12 = sadd.s32 1, %s8
  $region7: #{_lambda_.17} parent=0 // loop_footer_branch
    %7 = sbr.rel target = $region3
  $region8: #{_lambda_.17} parent=0 // loop_exit
    _

</llo_original>
